<compile_context>
chip_gen: v7x
topology: tpu7x:2x2x1
jax: 0.10.0
libtpu: 0.0.40
codegen_flags: <defaults>
</compile_context>

<pallas_src>
import jax
import jax.numpy as jnp
import numpy as np
from jax.experimental import pallas as pl
from jax.experimental.pallas import tpu as pltpu

T_ENC, T_DEC, B, D, H = 8, 8, 8, 8, 128
OUT_PAD = 128          # lane-dense readout width (padded from D, sliced back in wrapper)

_VMEM = pl.BlockSpec(memory_space=pltpu.MemorySpace.VMEM)
_SMEM = pl.BlockSpec(memory_space=pltpu.MemorySpace.SMEM)


def _gru_gates(gi, gh, h):
    """PyTorch-convention GRU gates (order r, z, n) from precomputed pre-activations."""
    r = jax.nn.sigmoid(gi[:, 0:H] + gh[:, 0:H])
    z = jax.nn.sigmoid(gi[:, H:2 * H] + gh[:, H:2 * H])
    n = jnp.tanh(gi[:, 2 * H:3 * H] + r * gh[:, 2 * H:3 * H])
    return (1.0 - z) * n + z * h


# ----------------------------------------------------------------------------
# Fused encoder + attention-decoder kernel (everything stays in VMEM).
# ----------------------------------------------------------------------------
def seq2seq_kernel(
    x_flat_ref,                 # [T_ENC*B, D]   encoder inputs, time-flattened
    x0_ref,                     # [B, D]         encoder_inputs[-1]
    tgt_ref,                    # [T_DEC, B, D]  teacher-forcing targets
    tf_ref,                     # [T_DEC] int32  teacher-forcing mask (SMEM)
    enc_wih_ref, enc_whh_ref, enc_bih_ref, enc_bhh_ref,
    dec_wih_x_ref, dec_wih_c_ref, dec_whh_ref, dec_bih_ref, dec_bhh_ref,
    out_wh_ref, out_wc_ref, out_b_ref,          # readout, padded to OUT_PAD lanes
    out_ref,                    # [T_DEC, B, OUT_PAD]
    enc_scr,                    # VMEM scratch [T_ENC, B, H]
):
    f32 = jnp.float32

    # ----------------------------- encoder -----------------------------
    enc_whh = enc_whh_ref[...]
    enc_bhh = enc_bhh_ref[...]

    # Input-gate matmul hoisted off the serial chain: one [T*B, D] @ [D, 3H].
    gi_all = (jnp.dot(x_flat_ref[...], enc_wih_ref[...],
                      preferred_element_type=f32) + enc_bih_ref[...])    # [T*B, 3H]

    h = jnp.zeros((B, H), f32)
    for t in range(T_ENC):                       # static trip count -> fully unrolled
        gi = gi_all[t * B:(t + 1) * B, :]        # sublane-aligned static slice
        gh = jnp.dot(h, enc_whh, preferred_element_type=f32) + enc_bhh
        h = _gru_gates(gi, gh, h)
        enc_scr[t] = h

    # One-time relayout so per-step attention reductions are tile-local.
    enc_bth = jnp.transpose(enc_scr[...], (1, 0, 2))                     # [B, T, H]

    # ----------------------------- decoder -----------------------------
    dec_wih_x = dec_wih_x_ref[...]
    dec_wih_c = dec_wih_c_ref[...]
    dec_whh = dec_whh_ref[...]
    dec_bih = dec_bih_ref[...]
    dec_bhh = dec_bhh_ref[...]
    out_wh = out_wh_ref[...]
    out_wc = out_wc_ref[...]
    out_b = out_b_ref[...]

    x = x0_ref[...]                                                      # [B, D]
    for t in range(T_DEC):                       # static trip count -> fully unrolled
        # Dot-product attention over the encoder time axis.
        scores = jnp.sum(enc_bth * h[:, None, :], axis=-1)               # [B, T]
        scores = scores - jnp.max(scores, axis=-1, keepdims=True)
        ex = jnp.exp(scores)
        inv_denom = pl.reciprocal(jnp.sum(ex, axis=-1, keepdims=True), approx=True)
        alpha = ex * inv_denom
        context = jnp.sum(alpha[:, :, None] * enc_bth, axis=1)           # [B, H]

        # GRU step with [x ; context] input (concat expressed as two matmuls).
        gi = (jnp.dot(x, dec_wih_x, preferred_element_type=f32)
              + jnp.dot(context, dec_wih_c, preferred_element_type=f32)
              + dec_bih)
        gh = jnp.dot(h, dec_whh, preferred_element_type=f32) + dec_bhh
        h = _gru_gates(gi, gh, h)

        # Lane-dense (width-128 padded) linear readout on [h ; context].
        out_pad = (jnp.dot(h, out_wh, preferred_element_type=f32)
                   + jnp.dot(context, out_wc, preferred_element_type=f32)
                   + out_b)                                              # [B, OUT_PAD]
        out_ref[t] = out_pad

        # Teacher forcing (deterministic 0/1 mask from SMEM).
        tf = tf_ref[t].astype(f32)
        x = tf * tgt_ref[t] + (1.0 - tf) * out_pad[:, :D]


# ----------------------------------------------------------------------------
# Wrapper
# ----------------------------------------------------------------------------
@jax.jit
def seq2seq_forward(params, encoder_inputs, targets, tf_mask):
    x_flat = encoder_inputs.reshape(T_ENC * B, D)
    x0 = encoder_inputs[-1]                     # matches PyTorch encoder_inputs[-1]

    # Pad the readout to a lane-dense width (D -> OUT_PAD); sliced back after the call.
    out_wh_p = jnp.zeros((H, OUT_PAD), jnp.float32).at[:, :D].set(params["out_wh"])
    out_wc_p = jnp.zeros((H, OUT_PAD), jnp.float32).at[:, :D].set(params["out_wc"])
    out_b_p = jnp.zeros((1, OUT_PAD), jnp.float32).at[:, :D].set(params["out_b"])

    out_pad = pl.pallas_call(
        seq2seq_kernel,
        out_shape=jax.ShapeDtypeStruct((T_DEC, B, OUT_PAD), jnp.float32),
        in_specs=[_VMEM, _VMEM, _VMEM, _SMEM] + [_VMEM] * 12,
        out_specs=_VMEM,
        scratch_shapes=[pltpu.VMEM((T_ENC, B, H), jnp.float32)],
    )(x_flat, x0, targets, tf_mask,
      params["enc_wih"], params["enc_whh"], params["enc_bih"], params["enc_bhh"],
      params["dec_wih_x"], params["dec_wih_c"], params["dec_whh"],
      params["dec_bih"], params["dec_bhh"],
      out_wh_p, out_wc_p, out_b_p)
    return out_pad[..., :D]


def seq2seq_reference(params, encoder_inputs, targets, tf_mask):
    """Pure-JAX reference of the same forward pass (exact division, unfused)."""
    h = jnp.zeros((B, H), jnp.float32)
    enc_outs = []
    for t in range(T_ENC):
        x = encoder_inputs[t]
        gi = x @ params["enc_wih"] + params["enc_bih"]
        gh = h @ params["enc_whh"] + params["enc_bhh"]
        r = jax.nn.sigmoid(gi[:, :H] + gh[:, :H])
        z = jax.nn.sigmoid(gi[:, H:2 * H] + gh[:, H:2 * H])
        n = jnp.tanh(gi[:, 2 * H:] + r * gh[:, 2 * H:])
        h = (1.0 - z) * n + z * h
        enc_outs.append(h)
    enc = jnp.stack(enc_outs)                    # [T, B, H]

    x = encoder_inputs[-1]
    outs = []
    for t in range(T_DEC):
        scores = jnp.sum(enc * h[None], axis=-1)
        scores = scores - jnp.max(scores, axis=0, keepdims=True)
        alpha = jnp.exp(scores)
        alpha = alpha / jnp.sum(alpha, axis=0, keepdims=True)
        ctx = jnp.sum(alpha[:, :, None] * enc, axis=0)
        gi = x @ params["dec_wih_x"] + ctx @ params["dec_wih_c"] + params["dec_bih"]
        gh = h @ params["dec_whh"] + params["dec_bhh"]
        r = jax.nn.sigmoid(gi[:, :H] + gh[:, :H])
        z = jax.nn.sigmoid(gi[:, H:2 * H] + gh[:, H:2 * H])
        n = jnp.tanh(gi[:, 2 * H:] + r * gh[:, 2 * H:])
        h = (1.0 - z) * n + z * h
        out = h @ params["out_wh"] + ctx @ params["out_wc"] + params["out_b"]
        outs.append(out)
        tf = tf_mask[t].astype(jnp.float32)
        x = tf * targets[t] + (1.0 - tf) * out
    return jnp.stack(outs)


def init_params(key):
    ks = jax.random.split(key, 12)
    s = 0.1
    return {
        "enc_wih":   s * jax.random.normal(ks[0], (D, 3 * H), jnp.float32),
        "enc_whh":   s * jax.random.normal(ks[1], (H, 3 * H), jnp.float32),
        "enc_bih":   s * jax.random.normal(ks[2], (1, 3 * H), jnp.float32),
        "enc_bhh":   s * jax.random.normal(ks[3], (1, 3 * H), jnp.float32),
        "dec_wih_x": s * jax.random.normal(ks[4], (D, 3 * H), jnp.float32),
        "dec_wih_c": s * jax.random.normal(ks[5], (H, 3 * H), jnp.float32),
        "dec_whh":   s * jax.random.normal(ks[6], (H, 3 * H), jnp.float32),
        "dec_bih":   s * jax.random.normal(ks[7], (1, 3 * H), jnp.float32),
        "dec_bhh":   s * jax.random.normal(ks[8], (1, 3 * H), jnp.float32),
        "out_wh":    s * jax.random.normal(ks[9], (H, D), jnp.float32),
        "out_wc":    s * jax.random.normal(ks[10], (H, D), jnp.float32),
        "out_b":     s * jax.random.normal(ks[11], (1, D), jnp.float32),
    }


if __name__ == "__main__":
    key = jax.random.PRNGKey(0)
    k_p, k_x, k_t, k_tf = jax.random.split(key, 4)

    params = init_params(k_p)
    encoder_inputs = jax.random.normal(k_x, (T_ENC, B, D), jnp.float32)
    targets = jax.random.normal(k_t, (T_DEC, B, D), jnp.float32)

    # teacher_force_probability -> deterministic per-step 0/1 mask.
    teacher_force_probability = 0.5
    tf_mask = (jax.random.uniform(k_tf, (T_DEC,))
               < teacher_force_probability).astype(jnp.int32)

    outputs = seq2seq_forward(params, encoder_inputs, targets, tf_mask)
    outputs = jax.block_until_ready(outputs)

    ref = seq2seq_reference(params, encoder_inputs, targets, tf_mask)
    np.testing.assert_allclose(np.asarray(outputs), np.asarray(ref),
                               rtol=5e-3, atol=5e-3)

    # TODO(synk): compute_loss/optimize (Adam + L1Loss training step) are not part
    # of the forward pass and are left to standard JAX/optax outside the kernel.
    print("KERNEL_OK")
</pallas_src>

<mosaic_0001>
module attributes {stable_mosaic.version = 11 : i64} {
  func.func @seq2seq_kernel(%arg0: memref<64x8xf32, #tpu.memory_space<vmem>>, %arg1: memref<8x8xf32, #tpu.memory_space<vmem>>, %arg2: memref<8x8x8xf32, #tpu.memory_space<vmem>>, %arg3: memref<8xi32, #tpu.memory_space<smem>>, %arg4: memref<8x384xf32, #tpu.memory_space<vmem>>, %arg5: memref<128x384xf32, #tpu.memory_space<vmem>>, %arg6: memref<1x384xf32, #tpu.memory_space<vmem>>, %arg7: memref<1x384xf32, #tpu.memory_space<vmem>>, %arg8: memref<8x384xf32, #tpu.memory_space<vmem>>, %arg9: memref<128x384xf32, #tpu.memory_space<vmem>>, %arg10: memref<128x384xf32, #tpu.memory_space<vmem>>, %arg11: memref<1x384xf32, #tpu.memory_space<vmem>>, %arg12: memref<1x384xf32, #tpu.memory_space<vmem>>, %arg13: memref<128x128xf32, #tpu.memory_space<vmem>>, %arg14: memref<128x128xf32, #tpu.memory_space<vmem>>, %arg15: memref<1x128xf32, #tpu.memory_space<vmem>>, %arg16: memref<8x8x128xf32, #tpu.memory_space<vmem>>, %arg17: memref<8x8x128xf32, #tpu.memory_space<vmem>>) attributes {dimension_semantics = [], scalar_prefetch = 0 : i64, scratch_operands = 1 : i64, tpu.core_type = #tpu.core_type<tc>} {
    %c0 = arith.constant 0 : index
    %c0_0 = arith.constant 0 : index
    %0 = vector.load %arg5[%c0, %c0_0] : memref<128x384xf32, #tpu.memory_space<vmem>>, vector<128x384xf32>
    %c0_1 = arith.constant 0 : index
    %c0_2 = arith.constant 0 : index
    %1 = vector.load %arg7[%c0_1, %c0_2] : memref<1x384xf32, #tpu.memory_space<vmem>>, vector<1x384xf32>
    %c0_3 = arith.constant 0 : index
    %c0_4 = arith.constant 0 : index
    %2 = vector.load %arg0[%c0_3, %c0_4] : memref<64x8xf32, #tpu.memory_space<vmem>>, vector<64x8xf32>
    %c0_5 = arith.constant 0 : index
    %c0_6 = arith.constant 0 : index
    %3 = vector.load %arg4[%c0_5, %c0_6] : memref<8x384xf32, #tpu.memory_space<vmem>>, vector<8x384xf32>
    %cst = arith.constant dense<0.000000e+00> : vector<64x384xf32>
    %4 = tpu.matmul %2, %3, %cst {dimension_numbers = #tpu.dot_dimension_numbers<[1], [0], [0], [1], [0, 0, 1, 1], [], []>} : vector<64x8xf32>, vector<8x384xf32>, vector<64x384xf32> -> vector<64x384xf32>
    %c0_7 = arith.constant 0 : index
    %c0_8 = arith.constant 0 : index
    %5 = vector.load %arg6[%c0_7, %c0_8] : memref<1x384xf32, #tpu.memory_space<vmem>>, vector<1x384xf32>
    %6 = vector.broadcast %5 : vector<1x384xf32> to vector<64x384xf32>
    %7 = arith.addf %4, %6 : vector<64x384xf32>
    %cst_9 = arith.constant 0.000000e+00 : f32
    %8 = vector.broadcast %cst_9 : f32 to vector<8x128xf32>
    %9 = vector.extract_strided_slice %7 {offsets = [0, 0], sizes = [8, 384], strides = [1, 1]} : vector<64x384xf32> to vector<8x384xf32>
    %cst_10 = arith.constant dense<0.000000e+00> : vector<8x384xf32>
    %10 = tpu.matmul %8, %0, %cst_10 {dimension_numbers = #tpu.dot_dimension_numbers<[1], [0], [0], [1], [0, 0, 1, 1], [], []>} : vector<8x128xf32>, vector<128x384xf32>, vector<8x384xf32> -> vector<8x384xf32>
    %11 = vector.broadcast %1 : vector<1x384xf32> to vector<8x384xf32>
    %12 = arith.addf %10, %11 : vector<8x384xf32>
    %13 = vector.extract_strided_slice %9 {offsets = [0, 0], sizes = [8, 128], strides = [1, 1]} : vector<8x384xf32> to vector<8x128xf32>
    %14 = vector.extract_strided_slice %12 {offsets = [0, 0], sizes = [8, 128], strides = [1, 1]} : vector<8x384xf32> to vector<8x128xf32>
    %15 = arith.addf %13, %14 : vector<8x128xf32>
    %16 = arith.negf %15 : vector<8x128xf32>
    %17 = math.exp %16 : vector<8x128xf32>
    %cst_11 = arith.constant 1.000000e+00 : f32
    %18 = vector.broadcast %cst_11 : f32 to vector<8x128xf32>
    %19 = arith.addf %18, %17 : vector<8x128xf32>
    %20 = arith.divf %18, %19 : vector<8x128xf32>
    %21 = vector.extract_strided_slice %9 {offsets = [0, 128], sizes = [8, 128], strides = [1, 1]} : vector<8x384xf32> to vector<8x128xf32>
    %22 = vector.extract_strided_slice %12 {offsets = [0, 128], sizes = [8, 128], strides = [1, 1]} : vector<8x384xf32> to vector<8x128xf32>
    %23 = arith.addf %21, %22 : vector<8x128xf32>
    %24 = arith.negf %23 : vector<8x128xf32>
    %25 = math.exp %24 : vector<8x128xf32>
    %cst_12 = arith.constant 1.000000e+00 : f32
    %26 = vector.broadcast %cst_12 : f32 to vector<8x128xf32>
    %27 = arith.addf %26, %25 : vector<8x128xf32>
    %28 = arith.divf %26, %27 : vector<8x128xf32>
    %29 = vector.extract_strided_slice %9 {offsets = [0, 256], sizes = [8, 128], strides = [1, 1]} : vector<8x384xf32> to vector<8x128xf32>
    %30 = vector.extract_strided_slice %12 {offsets = [0, 256], sizes = [8, 128], strides = [1, 1]} : vector<8x384xf32> to vector<8x128xf32>
    %31 = arith.mulf %20, %30 : vector<8x128xf32>
    %32 = arith.addf %29, %31 : vector<8x128xf32>
    %33 = math.tanh %32 : vector<8x128xf32>
    %cst_13 = arith.constant 1.000000e+00 : f32
    %34 = vector.broadcast %cst_13 : f32 to vector<8x128xf32>
    %35 = arith.subf %34, %28 : vector<8x128xf32>
    %36 = arith.mulf %35, %33 : vector<8x128xf32>
    %37 = arith.mulf %28, %8 : vector<8x128xf32>
    %38 = arith.addf %36, %37 : vector<8x128xf32>
    %c0_14 = arith.constant 0 : index
    %c0_15 = arith.constant 0 : index
    %c0_16 = arith.constant 0 : index
    %39 = vector.load %arg17[%c0_14, %c0_15, %c0_16] : memref<8x8x128xf32, #tpu.memory_space<vmem>>, vector<1x8x128xf32>
    %40 = vector.shape_cast %39 : vector<1x8x128xf32> to vector<8x128xf32>
    %41 = vector.shape_cast %38 : vector<8x128xf32> to vector<1x8x128xf32>
    tpu.vector_store %arg17[%c0_14, %c0_15, %c0_16], %41 {strides = array<i32>} : memref<8x8x128xf32, #tpu.memory_space<vmem>>, vector<1x8x128xf32>,
    %42 = vector.extract_strided_slice %7 {offsets = [8, 0], sizes = [8, 384], strides = [1, 1]} : vector<64x384xf32> to vector<8x384xf32>
    %cst_17 = arith.constant dense<0.000000e+00> : vector<8x384xf32>
    %43 = tpu.matmul %38, %0, %cst_17 {dimension_numbers = #tpu.dot_dimension_numbers<[1], [0], [0], [1], [0, 0, 1, 1], [], []>} : vector<8x128xf32>, vector<128x384xf32>, vector<8x384xf32> -> vector<8x384xf32>
    %44 = vector.broadcast %1 : vector<1x384xf32> to vector<8x384xf32>
    %45 = arith.addf %43, %44 : vector<8x384xf32>
    %46 = vector.extract_strided_slice %42 {offsets = [0, 0], sizes = [8, 128], strides = [1, 1]} : vector<8x384xf32> to vector<8x128xf32>
    %47 = vector.extract_strided_slice %45 {offsets = [0, 0], sizes = [8, 128], strides = [1, 1]} : vector<8x384xf32> to vector<8x128xf32>
    %48 = arith.addf %46, %47 : vector<8x128xf32>
    %49 = arith.negf %48 : vector<8x128xf32>
    %50 = math.exp %49 : vector<8x128xf32>
    %cst_18 = arith.constant 1.000000e+00 : f32
    %51 = vector.broadcast %cst_18 : f32 to vector<8x128xf32>
    %52 = arith.addf %51, %50 : vector<8x128xf32>
    %53 = arith.divf %51, %52 : vector<8x128xf32>
    %54 = vector.extract_strided_slice %42 {offsets = [0, 128], sizes = [8, 128], strides = [1, 1]} : vector<8x384xf32> to vector<8x128xf32>
    %55 = vector.extract_strided_slice %45 {offsets = [0, 128], sizes = [8, 128], strides = [1, 1]} : vector<8x384xf32> to vector<8x128xf32>
    %56 = arith.addf %54, %55 : vector<8x128xf32>
    %57 = arith.negf %56 : vector<8x128xf32>
    %58 = math.exp %57 : vector<8x128xf32>
    %cst_19 = arith.constant 1.000000e+00 : f32
    %59 = vector.broadcast %cst_19 : f32 to vector<8x128xf32>
    %60 = arith.addf %59, %58 : vector<8x128xf32>
    %61 = arith.divf %59, %60 : vector<8x128xf32>
    %62 = vector.extract_strided_slice %42 {offsets = [0, 256], sizes = [8, 128], strides = [1, 1]} : vector<8x384xf32> to vector<8x128xf32>
    %63 = vector.extract_strided_slice %45 {offsets = [0, 256], sizes = [8, 128], strides = [1, 1]} : vector<8x384xf32> to vector<8x128xf32>
    %64 = arith.mulf %53, %63 : vector<8x128xf32>
    %65 = arith.addf %62, %64 : vector<8x128xf32>
    %66 = math.tanh %65 : vector<8x128xf32>
    %cst_20 = arith.constant 1.000000e+00 : f32
    %67 = vector.broadcast %cst_20 : f32 to vector<8x128xf32>
    %68 = arith.subf %67, %61 : vector<8x128xf32>
    %69 = arith.mulf %68, %66 : vector<8x128xf32>
    %70 = arith.mulf %61, %38 : vector<8x128xf32>
    %71 = arith.addf %69, %70 : vector<8x128xf32>
    %c1 = arith.constant 1 : index
    %c0_21 = arith.constant 0 : index
    %c0_22 = arith.constant 0 : index
    %72 = vector.load %arg17[%c1, %c0_21, %c0_22] : memref<8x8x128xf32, #tpu.memory_space<vmem>>, vector<1x8x128xf32>
    %73 = vector.shape_cast %72 : vector<1x8x128xf32> to vector<8x128xf32>
    %74 = vector.shape_cast %71 : vector<8x128xf32> to vector<1x8x128xf32>
    tpu.vector_store %arg17[%c1, %c0_21, %c0_22], %74 {strides = array<i32>} : memref<8x8x128xf32, #tpu.memory_space<vmem>>, vector<1x8x128xf32>,
    %75 = vector.extract_strided_slice %7 {offsets = [16, 0], sizes = [8, 384], strides = [1, 1]} : vector<64x384xf32> to vector<8x384xf32>
    %cst_23 = arith.constant dense<0.000000e+00> : vector<8x384xf32>
    %76 = tpu.matmul %71, %0, %cst_23 {dimension_numbers = #tpu.dot_dimension_numbers<[1], [0], [0], [1], [0, 0, 1, 1], [], []>} : vector<8x128xf32>, vector<128x384xf32>, vector<8x384xf32> -> vector<8x384xf32>
    %77 = vector.broadcast %1 : vector<1x384xf32> to vector<8x384xf32>
    %78 = arith.addf %76, %77 : vector<8x384xf32>
    %79 = vector.extract_strided_slice %75 {offsets = [0, 0], sizes = [8, 128], strides = [1, 1]} : vector<8x384xf32> to vector<8x128xf32>
    %80 = vector.extract_strided_slice %78 {offsets = [0, 0], sizes = [8, 128], strides = [1, 1]} : vector<8x384xf32> to vector<8x128xf32>
    %81 = arith.addf %79, %80 : vector<8x128xf32>
    %82 = arith.negf %81 : vector<8x128xf32>
    %83 = math.exp %82 : vector<8x128xf32>
    %cst_24 = arith.constant 1.000000e+00 : f32
    %84 = vector.broadcast %cst_24 : f32 to vector<8x128xf32>
    %85 = arith.addf %84, %83 : vector<8x128xf32>
    %86 = arith.divf %84, %85 : vector<8x128xf32>
    %87 = vector.extract_strided_slice %75 {offsets = [0, 128], sizes = [8, 128], strides = [1, 1]} : vector<8x384xf32> to vector<8x128xf32>
    %88 = vector.extract_strided_slice %78 {offsets = [0, 128], sizes = [8, 128], strides = [1, 1]} : vector<8x384xf32> to vector<8x128xf32>
    %89 = arith.addf %87, %88 : vector<8x128xf32>
    %90 = arith.negf %89 : vector<8x128xf32>
    %91 = math.exp %90 : vector<8x128xf32>
    %cst_25 = arith.constant 1.000000e+00 : f32
    %92 = vector.broadcast %cst_25 : f32 to vector<8x128xf32>
    %93 = arith.addf %92, %91 : vector<8x128xf32>
    %94 = arith.divf %92, %93 : vector<8x128xf32>
    %95 = vector.extract_strided_slice %75 {offsets = [0, 256], sizes = [8, 128], strides = [1, 1]} : vector<8x384xf32> to vector<8x128xf32>
    %96 = vector.extract_strided_slice %78 {offsets = [0, 256], sizes = [8, 128], strides = [1, 1]} : vector<8x384xf32> to vector<8x128xf32>
    %97 = arith.mulf %86, %96 : vector<8x128xf32>
    %98 = arith.addf %95, %97 : vector<8x128xf32>
    %99 = math.tanh %98 : vector<8x128xf32>
    %cst_26 = arith.constant 1.000000e+00 : f32
    %100 = vector.broadcast %cst_26 : f32 to vector<8x128xf32>
    %101 = arith.subf %100, %94 : vector<8x128xf32>
    %102 = arith.mulf %101, %99 : vector<8x128xf32>
    %103 = arith.mulf %94, %71 : vector<8x128xf32>
    %104 = arith.addf %102, %103 : vector<8x128xf32>
    %c2 = arith.constant 2 : index
    %c0_27 = arith.constant 0 : index
    %c0_28 = arith.constant 0 : index
    %105 = vector.load %arg17[%c2, %c0_27, %c0_28] : memref<8x8x128xf32, #tpu.memory_space<vmem>>, vector<1x8x128xf32>
    %106 = vector.shape_cast %105 : vector<1x8x128xf32> to vector<8x128xf32>
    %107 = vector.shape_cast %104 : vector<8x128xf32> to vector<1x8x128xf32>
    tpu.vector_store %arg17[%c2, %c0_27, %c0_28], %107 {strides = array<i32>} : memref<8x8x128xf32, #tpu.memory_space<vmem>>, vector<1x8x128xf32>,
    %108 = vector.extract_strided_slice %7 {offsets = [24, 0], sizes = [8, 384], strides = [1, 1]} : vector<64x384xf32> to vector<8x384xf32>
    %cst_29 = arith.constant dense<0.000000e+00> : vector<8x384xf32>
    %109 = tpu.matmul %104, %0, %cst_29 {dimension_numbers = #tpu.dot_dimension_numbers<[1], [0], [0], [1], [0, 0, 1, 1], [], []>} : vector<8x128xf32>, vector<128x384xf32>, vector<8x384xf32> -> vector<8x384xf32>
    %110 = vector.broadcast %1 : vector<1x384xf32> to vector<8x384xf32>
    %111 = arith.addf %109, %110 : vector<8x384xf32>
    %112 = vector.extract_strided_slice %108 {offsets = [0, 0], sizes = [8, 128], strides = [1, 1]} : vector<8x384xf32> to vector<8x128xf32>
    %113 = vector.extract_strided_slice %111 {offsets = [0, 0], sizes = [8, 128], strides = [1, 1]} : vector<8x384xf32> to vector<8x128xf32>
    %114 = arith.addf %112, %113 : vector<8x128xf32>
    %115 = arith.negf %114 : vector<8x128xf32>
    %116 = math.exp %115 : vector<8x128xf32>
    %cst_30 = arith.constant 1.000000e+00 : f32
    %117 = vector.broadcast %cst_30 : f32 to vector<8x128xf32>
    %118 = arith.addf %117, %116 : vector<8x128xf32>
    %119 = arith.divf %117, %118 : vector<8x128xf32>
    %120 = vector.extract_strided_slice %108 {offsets = [0, 128], sizes = [8, 128], strides = [1, 1]} : vector<8x384xf32> to vector<8x128xf32>
    %121 = vector.extract_strided_slice %111 {offsets = [0, 128], sizes = [8, 128], strides = [1, 1]} : vector<8x384xf32> to vector<8x128xf32>
    %122 = arith.addf %120, %121 : vector<8x128xf32>
    %123 = arith.negf %122 : vector<8x128xf32>
    %124 = math.exp %123 : vector<8x128xf32>
    %cst_31 = arith.constant 1.000000e+00 : f32
    %125 = vector.broadcast %cst_31 : f32 to vector<8x128xf32>
    %126 = arith.addf %125, %124 : vector<8x128xf32>
    %127 = arith.divf %125, %126 : vector<8x128xf32>
    %128 = vector.extract_strided_slice %108 {offsets = [0, 256], sizes = [8, 128], strides = [1, 1]} : vector<8x384xf32> to vector<8x128xf32>
    %129 = vector.extract_strided_slice %111 {offsets = [0, 256], sizes = [8, 128], strides = [1, 1]} : vector<8x384xf32> to vector<8x128xf32>
    %130 = arith.mulf %119, %129 : vector<8x128xf32>
    %131 = arith.addf %128, %130 : vector<8x128xf32>
    %132 = math.tanh %131 : vector<8x128xf32>
    %cst_32 = arith.constant 1.000000e+00 : f32
    %133 = vector.broadcast %cst_32 : f32 to vector<8x128xf32>
    %134 = arith.subf %133, %127 : vector<8x128xf32>
    %135 = arith.mulf %134, %132 : vector<8x128xf32>
    %136 = arith.mulf %127, %104 : vector<8x128xf32>
    %137 = arith.addf %135, %136 : vector<8x128xf32>
    %c3 = arith.constant 3 : index
    %c0_33 = arith.constant 0 : index
    %c0_34 = arith.constant 0 : index
    %138 = vector.load %arg17[%c3, %c0_33, %c0_34] : memref<8x8x128xf32, #tpu.memory_space<vmem>>, vector<1x8x128xf32>
    %139 = vector.shape_cast %138 : vector<1x8x128xf32> to vector<8x128xf32>
    %140 = vector.shape_cast %137 : vector<8x128xf32> to vector<1x8x128xf32>
    tpu.vector_store %arg17[%c3, %c0_33, %c0_34], %140 {strides = array<i32>} : memref<8x8x128xf32, #tpu.memory_space<vmem>>, vector<1x8x128xf32>,
    %141 = vector.extract_strided_slice %7 {offsets = [32, 0], sizes = [8, 384], strides = [1, 1]} : vector<64x384xf32> to vector<8x384xf32>
    %cst_35 = arith.constant dense<0.000000e+00> : vector<8x384xf32>
    %142 = tpu.matmul %137, %0, %cst_35 {dimension_numbers = #tpu.dot_dimension_numbers<[1], [0], [0], [1], [0, 0, 1, 1], [], []>} : vector<8x128xf32>, vector<128x384xf32>, vector<8x384xf32> -> vector<8x384xf32>
    %143 = vector.broadcast %1 : vector<1x384xf32> to vector<8x384xf32>
    %144 = arith.addf %142, %143 : vector<8x384xf32>
    %145 = vector.extract_strided_slice %141 {offsets = [0, 0], sizes = [8, 128], strides = [1, 1]} : vector<8x384xf32> to vector<8x128xf32>
    %146 = vector.extract_strided_slice %144 {offsets = [0, 0], sizes = [8, 128], strides = [1, 1]} : vector<8x384xf32> to vector<8x128xf32>
    %147 = arith.addf %145, %146 : vector<8x128xf32>
    %148 = arith.negf %147 : vector<8x128xf32>
    %149 = math.exp %148 : vector<8x128xf32>
    %cst_36 = arith.constant 1.000000e+00 : f32
    %150 = vector.broadcast %cst_36 : f32 to vector<8x128xf32>
    %151 = arith.addf %150, %149 : vector<8x128xf32>
    %152 = arith.divf %150, %151 : vector<8x128xf32>
    %153 = vector.extract_strided_slice %141 {offsets = [0, 128], sizes = [8, 128], strides = [1, 1]} : vector<8x384xf32> to vector<8x128xf32>
    %154 = vector.extract_strided_slice %144 {offsets = [0, 128], sizes = [8, 128], strides = [1, 1]} : vector<8x384xf32> to vector<8x128xf32>
    %155 = arith.addf %153, %154 : vector<8x128xf32>
    %156 = arith.negf %155 : vector<8x128xf32>
    %157 = math.exp %156 : vector<8x128xf32>
    %cst_37 = arith.constant 1.000000e+00 : f32
    %158 = vector.broadcast %cst_37 : f32 to vector<8x128xf32>
    %159 = arith.addf %158, %157 : vector<8x128xf32>
    %160 = arith.divf %158, %159 : vector<8x128xf32>
    %161 = vector.extract_strided_slice %141 {offsets = [0, 256], sizes = [8, 128], strides = [1, 1]} : vector<8x384xf32> to vector<8x128xf32>
    %162 = vector.extract_strided_slice %144 {offsets = [0, 256], sizes = [8, 128], strides = [1, 1]} : vector<8x384xf32> to vector<8x128xf32>
    %163 = arith.mulf %152, %162 : vector<8x128xf32>
    %164 = arith.addf %161, %163 : vector<8x128xf32>
    %165 = math.tanh %164 : vector<8x128xf32>
    %cst_38 = arith.constant 1.000000e+00 : f32
    %166 = vector.broadcast %cst_38 : f32 to vector<8x128xf32>
    %167 = arith.subf %166, %160 : vector<8x128xf32>
    %168 = arith.mulf %167, %165 : vector<8x128xf32>
    %169 = arith.mulf %160, %137 : vector<8x128xf32>
    %170 = arith.addf %168, %169 : vector<8x128xf32>
    %c4 = arith.constant 4 : index
    %c0_39 = arith.constant 0 : index
    %c0_40 = arith.constant 0 : index
    %171 = vector.load %arg17[%c4, %c0_39, %c0_40] : memref<8x8x128xf32, #tpu.memory_space<vmem>>, vector<1x8x128xf32>
    %172 = vector.shape_cast %171 : vector<1x8x128xf32> to vector<8x128xf32>
    %173 = vector.shape_cast %170 : vector<8x128xf32> to vector<1x8x128xf32>
    tpu.vector_store %arg17[%c4, %c0_39, %c0_40], %173 {strides = array<i32>} : memref<8x8x128xf32, #tpu.memory_space<vmem>>, vector<1x8x128xf32>,
    %174 = vector.extract_strided_slice %7 {offsets = [40, 0], sizes = [8, 384], strides = [1, 1]} : vector<64x384xf32> to vector<8x384xf32>
    %cst_41 = arith.constant dense<0.000000e+00> : vector<8x384xf32>
    %175 = tpu.matmul %170, %0, %cst_41 {dimension_numbers = #tpu.dot_dimension_numbers<[1], [0], [0], [1], [0, 0, 1, 1], [], []>} : vector<8x128xf32>, vector<128x384xf32>, vector<8x384xf32> -> vector<8x384xf32>
    %176 = vector.broadcast %1 : vector<1x384xf32> to vector<8x384xf32>
    %177 = arith.addf %175, %176 : vector<8x384xf32>
    %178 = vector.extract_strided_slice %174 {offsets = [0, 0], sizes = [8, 128], strides = [1, 1]} : vector<8x384xf32> to vector<8x128xf32>
    %179 = vector.extract_strided_slice %177 {offsets = [0, 0], sizes = [8, 128], strides = [1, 1]} : vector<8x384xf32> to vector<8x128xf32>
    %180 = arith.addf %178, %179 : vector<8x128xf32>
    %181 = arith.negf %180 : vector<8x128xf32>
    %182 = math.exp %181 : vector<8x128xf32>
    %cst_42 = arith.constant 1.000000e+00 : f32
    %183 = vector.broadcast %cst_42 : f32 to vector<8x128xf32>
    %184 = arith.addf %183, %182 : vector<8x128xf32>
    %185 = arith.divf %183, %184 : vector<8x128xf32>
    %186 = vector.extract_strided_slice %174 {offsets = [0, 128], sizes = [8, 128], strides = [1, 1]} : vector<8x384xf32> to vector<8x128xf32>
    %187 = vector.extract_strided_slice %177 {offsets = [0, 128], sizes = [8, 128], strides = [1, 1]} : vector<8x384xf32> to vector<8x128xf32>
    %188 = arith.addf %186, %187 : vector<8x128xf32>
    %189 = arith.negf %188 : vector<8x128xf32>
    %190 = math.exp %189 : vector<8x128xf32>
    %cst_43 = arith.constant 1.000000e+00 : f32
    %191 = vector.broadcast %cst_43 : f32 to vector<8x128xf32>
    %192 = arith.addf %191, %190 : vector<8x128xf32>
    %193 = arith.divf %191, %192 : vector<8x128xf32>
    %194 = vector.extract_strided_slice %174 {offsets = [0, 256], sizes = [8, 128], strides = [1, 1]} : vector<8x384xf32> to vector<8x128xf32>
    %195 = vector.extract_strided_slice %177 {offsets = [0, 256], sizes = [8, 128], strides = [1, 1]} : vector<8x384xf32> to vector<8x128xf32>
    %196 = arith.mulf %185, %195 : vector<8x128xf32>
    %197 = arith.addf %194, %196 : vector<8x128xf32>
    %198 = math.tanh %197 : vector<8x128xf32>
    %cst_44 = arith.constant 1.000000e+00 : f32
    %199 = vector.broadcast %cst_44 : f32 to vector<8x128xf32>
    %200 = arith.subf %199, %193 : vector<8x128xf32>
    %201 = arith.mulf %200, %198 : vector<8x128xf32>
    %202 = arith.mulf %193, %170 : vector<8x128xf32>
    %203 = arith.addf %201, %202 : vector<8x128xf32>
    %c5 = arith.constant 5 : index
    %c0_45 = arith.constant 0 : index
    %c0_46 = arith.constant 0 : index
    %204 = vector.load %arg17[%c5, %c0_45, %c0_46] : memref<8x8x128xf32, #tpu.memory_space<vmem>>, vector<1x8x128xf32>
    %205 = vector.shape_cast %204 : vector<1x8x128xf32> to vector<8x128xf32>
    %206 = vector.shape_cast %203 : vector<8x128xf32> to vector<1x8x128xf32>
    tpu.vector_store %arg17[%c5, %c0_45, %c0_46], %206 {strides = array<i32>} : memref<8x8x128xf32, #tpu.memory_space<vmem>>, vector<1x8x128xf32>,
    %207 = vector.extract_strided_slice %7 {offsets = [48, 0], sizes = [8, 384], strides = [1, 1]} : vector<64x384xf32> to vector<8x384xf32>
    %cst_47 = arith.constant dense<0.000000e+00> : vector<8x384xf32>
    %208 = tpu.matmul %203, %0, %cst_47 {dimension_numbers = #tpu.dot_dimension_numbers<[1], [0], [0], [1], [0, 0, 1, 1], [], []>} : vector<8x128xf32>, vector<128x384xf32>, vector<8x384xf32> -> vector<8x384xf32>
    %209 = vector.broadcast %1 : vector<1x384xf32> to vector<8x384xf32>
    %210 = arith.addf %208, %209 : vector<8x384xf32>
    %211 = vector.extract_strided_slice %207 {offsets = [0, 0], sizes = [8, 128], strides = [1, 1]} : vector<8x384xf32> to vector<8x128xf32>
    %212 = vector.extract_strided_slice %210 {offsets = [0, 0], sizes = [8, 128], strides = [1, 1]} : vector<8x384xf32> to vector<8x128xf32>
    %213 = arith.addf %211, %212 : vector<8x128xf32>
    %214 = arith.negf %213 : vector<8x128xf32>
    %215 = math.exp %214 : vector<8x128xf32>
    %cst_48 = arith.constant 1.000000e+00 : f32
    %216 = vector.broadcast %cst_48 : f32 to vector<8x128xf32>
    %217 = arith.addf %216, %215 : vector<8x128xf32>
    %218 = arith.divf %216, %217 : vector<8x128xf32>
    %219 = vector.extract_strided_slice %207 {offsets = [0, 128], sizes = [8, 128], strides = [1, 1]} : vector<8x384xf32> to vector<8x128xf32>
    %220 = vector.extract_strided_slice %210 {offsets = [0, 128], sizes = [8, 128], strides = [1, 1]} : vector<8x384xf32> to vector<8x128xf32>
    %221 = arith.addf %219, %220 : vector<8x128xf32>
    %222 = arith.negf %221 : vector<8x128xf32>
    %223 = math.exp %222 : vector<8x128xf32>
    %cst_49 = arith.constant 1.000000e+00 : f32
    %224 = vector.broadcast %cst_49 : f32 to vector<8x128xf32>
    %225 = arith.addf %224, %223 : vector<8x128xf32>
    %226 = arith.divf %224, %225 : vector<8x128xf32>
    %227 = vector.extract_strided_slice %207 {offsets = [0, 256], sizes = [8, 128], strides = [1, 1]} : vector<8x384xf32> to vector<8x128xf32>
    %228 = vector.extract_strided_slice %210 {offsets = [0, 256], sizes = [8, 128], strides = [1, 1]} : vector<8x384xf32> to vector<8x128xf32>
    %229 = arith.mulf %218, %228 : vector<8x128xf32>
    %230 = arith.addf %227, %229 : vector<8x128xf32>
    %231 = math.tanh %230 : vector<8x128xf32>
    %cst_50 = arith.constant 1.000000e+00 : f32
    %232 = vector.broadcast %cst_50 : f32 to vector<8x128xf32>
    %233 = arith.subf %232, %226 : vector<8x128xf32>
    %234 = arith.mulf %233, %231 : vector<8x128xf32>
    %235 = arith.mulf %226, %203 : vector<8x128xf32>
    %236 = arith.addf %234, %235 : vector<8x128xf32>
    %c6 = arith.constant 6 : index
    %c0_51 = arith.constant 0 : index
    %c0_52 = arith.constant 0 : index
    %237 = vector.load %arg17[%c6, %c0_51, %c0_52] : memref<8x8x128xf32, #tpu.memory_space<vmem>>, vector<1x8x128xf32>
    %238 = vector.shape_cast %237 : vector<1x8x128xf32> to vector<8x128xf32>
    %239 = vector.shape_cast %236 : vector<8x128xf32> to vector<1x8x128xf32>
    tpu.vector_store %arg17[%c6, %c0_51, %c0_52], %239 {strides = array<i32>} : memref<8x8x128xf32, #tpu.memory_space<vmem>>, vector<1x8x128xf32>,
    %240 = vector.extract_strided_slice %7 {offsets = [56, 0], sizes = [8, 384], strides = [1, 1]} : vector<64x384xf32> to vector<8x384xf32>
    %cst_53 = arith.constant dense<0.000000e+00> : vector<8x384xf32>
    %241 = tpu.matmul %236, %0, %cst_53 {dimension_numbers = #tpu.dot_dimension_numbers<[1], [0], [0], [1], [0, 0, 1, 1], [], []>} : vector<8x128xf32>, vector<128x384xf32>, vector<8x384xf32> -> vector<8x384xf32>
    %242 = vector.broadcast %1 : vector<1x384xf32> to vector<8x384xf32>
    %243 = arith.addf %241, %242 : vector<8x384xf32>
    %244 = vector.extract_strided_slice %240 {offsets = [0, 0], sizes = [8, 128], strides = [1, 1]} : vector<8x384xf32> to vector<8x128xf32>
    %245 = vector.extract_strided_slice %243 {offsets = [0, 0], sizes = [8, 128], strides = [1, 1]} : vector<8x384xf32> to vector<8x128xf32>
    %246 = arith.addf %244, %245 : vector<8x128xf32>
    %247 = arith.negf %246 : vector<8x128xf32>
    %248 = math.exp %247 : vector<8x128xf32>
    %cst_54 = arith.constant 1.000000e+00 : f32
    %249 = vector.broadcast %cst_54 : f32 to vector<8x128xf32>
    %250 = arith.addf %249, %248 : vector<8x128xf32>
    %251 = arith.divf %249, %250 : vector<8x128xf32>
    %252 = vector.extract_strided_slice %240 {offsets = [0, 128], sizes = [8, 128], strides = [1, 1]} : vector<8x384xf32> to vector<8x128xf32>
    %253 = vector.extract_strided_slice %243 {offsets = [0, 128], sizes = [8, 128], strides = [1, 1]} : vector<8x384xf32> to vector<8x128xf32>
    %254 = arith.addf %252, %253 : vector<8x128xf32>
    %255 = arith.negf %254 : vector<8x128xf32>
    %256 = math.exp %255 : vector<8x128xf32>
    %cst_55 = arith.constant 1.000000e+00 : f32
    %257 = vector.broadcast %cst_55 : f32 to vector<8x128xf32>
    %258 = arith.addf %257, %256 : vector<8x128xf32>
    %259 = arith.divf %257, %258 : vector<8x128xf32>
    %260 = vector.extract_strided_slice %240 {offsets = [0, 256], sizes = [8, 128], strides = [1, 1]} : vector<8x384xf32> to vector<8x128xf32>
    %261 = vector.extract_strided_slice %243 {offsets = [0, 256], sizes = [8, 128], strides = [1, 1]} : vector<8x384xf32> to vector<8x128xf32>
    %262 = arith.mulf %251, %261 : vector<8x128xf32>
    %263 = arith.addf %260, %262 : vector<8x128xf32>
    %264 = math.tanh %263 : vector<8x128xf32>
    %cst_56 = arith.constant 1.000000e+00 : f32
    %265 = vector.broadcast %cst_56 : f32 to vector<8x128xf32>
    %266 = arith.subf %265, %259 : vector<8x128xf32>
    %267 = arith.mulf %266, %264 : vector<8x128xf32>
    %268 = arith.mulf %259, %236 : vector<8x128xf32>
    %269 = arith.addf %267, %268 : vector<8x128xf32>
    %c7 = arith.constant 7 : index
    %c0_57 = arith.constant 0 : index
    %c0_58 = arith.constant 0 : index
    %270 = vector.load %arg17[%c7, %c0_57, %c0_58] : memref<8x8x128xf32, #tpu.memory_space<vmem>>, vector<1x8x128xf32>
    %271 = vector.shape_cast %270 : vector<1x8x128xf32> to vector<8x128xf32>
    %272 = vector.shape_cast %269 : vector<8x128xf32> to vector<1x8x128xf32>
    tpu.vector_store %arg17[%c7, %c0_57, %c0_58], %272 {strides = array<i32>} : memref<8x8x128xf32, #tpu.memory_space<vmem>>, vector<1x8x128xf32>,
    %c0_59 = arith.constant 0 : index
    %c0_60 = arith.constant 0 : index
    %c0_61 = arith.constant 0 : index
    %273 = vector.load %arg17[%c0_59, %c0_60, %c0_61] : memref<8x8x128xf32, #tpu.memory_space<vmem>>, vector<8x8x128xf32>
    %274 = tpu.transpose %273, [1, 0, 2] : vector<8x8x128xf32> -> vector<8x8x128xf32>
    %c0_62 = arith.constant 0 : index
    %c0_63 = arith.constant 0 : index
    %275 = vector.load %arg8[%c0_62, %c0_63] : memref<8x384xf32, #tpu.memory_space<vmem>>, vector<8x384xf32>
    %c0_64 = arith.constant 0 : index
    %c0_65 = arith.constant 0 : index
    %276 = vector.load %arg9[%c0_64, %c0_65] : memref<128x384xf32, #tpu.memory_space<vmem>>, vector<128x384xf32>
    %c0_66 = arith.constant 0 : index
    %c0_67 = arith.constant 0 : index
    %277 = vector.load %arg10[%c0_66, %c0_67] : memref<128x384xf32, #tpu.memory_space<vmem>>, vector<128x384xf32>
    %c0_68 = arith.constant 0 : index
    %c0_69 = arith.constant 0 : index
    %278 = vector.load %arg11[%c0_68, %c0_69] : memref<1x384xf32, #tpu.memory_space<vmem>>, vector<1x384xf32>
    %c0_70 = arith.constant 0 : index
    %c0_71 = arith.constant 0 : index
    %279 = vector.load %arg12[%c0_70, %c0_71] : memref<1x384xf32, #tpu.memory_space<vmem>>, vector<1x384xf32>
    %c0_72 = arith.constant 0 : index
    %c0_73 = arith.constant 0 : index
    %280 = vector.load %arg13[%c0_72, %c0_73] : memref<128x128xf32, #tpu.memory_space<vmem>>, vector<128x128xf32>
    %c0_74 = arith.constant 0 : index
    %c0_75 = arith.constant 0 : index
    %281 = vector.load %arg14[%c0_74, %c0_75] : memref<128x128xf32, #tpu.memory_space<vmem>>, vector<128x128xf32>
    %c0_76 = arith.constant 0 : index
    %c0_77 = arith.constant 0 : index
    %282 = vector.load %arg15[%c0_76, %c0_77] : memref<1x128xf32, #tpu.memory_space<vmem>>, vector<1x128xf32>
    %c0_78 = arith.constant 0 : index
    %c0_79 = arith.constant 0 : index
    %283 = vector.load %arg1[%c0_78, %c0_79] : memref<8x8xf32, #tpu.memory_space<vmem>>, vector<8x8xf32>
    %284 = vector.shape_cast %269 : vector<8x128xf32> to vector<8x1x128xf32>
    %285 = vector.broadcast %284 : vector<8x1x128xf32> to vector<8x8x128xf32>
    %286 = arith.mulf %274, %285 : vector<8x8x128xf32>
    %cst_80 = arith.constant dense<0.000000e+00> : vector<8x8xf32>
    %287 = vector.multi_reduction <add>, %286, %cst_80 [2] : vector<8x8x128xf32> to vector<8x8xf32>
    %cst_81 = arith.constant dense<0xFF800000> : vector<8xf32>
    %288 = vector.multi_reduction <maximumf>, %287, %cst_81 [1] : vector<8x8xf32> to vector<8xf32>
    %289 = vector.shape_cast %288 : vector<8xf32> to vector<8x1xf32>
    %290 = vector.broadcast %289 : vector<8x1xf32> to vector<8x8xf32>
    %291 = arith.subf %287, %290 : vector<8x8xf32>
    %292 = math.exp %291 : vector<8x8xf32>
    %cst_82 = arith.constant dense<0.000000e+00> : vector<8xf32>
    %293 = vector.multi_reduction <add>, %292, %cst_82 [1] : vector<8x8xf32> to vector<8xf32>
    %294 = vector.shape_cast %293 : vector<8xf32> to vector<8x1xf32>
    %295 = tpu.reciprocal %294 {approx = true} : vector<8x1xf32> -> vector<8x1xf32>
    %296 = vector.broadcast %295 : vector<8x1xf32> to vector<8x8xf32>
    %297 = arith.mulf %292, %296 : vector<8x8xf32>
    %298 = vector.shape_cast %297 : vector<8x8xf32> to vector<8x8x1xf32>
    %299 = vector.broadcast %298 : vector<8x8x1xf32> to vector<8x8x128xf32>
    %300 = arith.mulf %299, %274 : vector<8x8x128xf32>
    %cst_83 = arith.constant dense<0.000000e+00> : vector<8x128xf32>
    %301 = vector.multi_reduction <add>, %300, %cst_83 [1] : vector<8x8x128xf32> to vector<8x128xf32>
    %cst_84 = arith.constant dense<0.000000e+00> : vector<8x384xf32>
    %302 = tpu.matmul %283, %275, %cst_84 {dimension_numbers = #tpu.dot_dimension_numbers<[1], [0], [0], [1], [0, 0, 1, 1], [], []>} : vector<8x8xf32>, vector<8x384xf32>, vector<8x384xf32> -> vector<8x384xf32>
    %cst_85 = arith.constant dense<0.000000e+00> : vector<8x384xf32>
    %303 = tpu.matmul %301, %276, %cst_85 {dimension_numbers = #tpu.dot_dimension_numbers<[1], [0], [0], [1], [0, 0, 1, 1], [], []>} : vector<8x128xf32>, vector<128x384xf32>, vector<8x384xf32> -> vector<8x384xf32>
    %304 = arith.addf %302, %303 : vector<8x384xf32>
    %305 = vector.broadcast %278 : vector<1x384xf32> to vector<8x384xf32>
    %306 = arith.addf %304, %305 : vector<8x384xf32>
    %cst_86 = arith.constant dense<0.000000e+00> : vector<8x384xf32>
    %307 = tpu.matmul %269, %277, %cst_86 {dimension_numbers = #tpu.dot_dimension_numbers<[1], [0], [0], [1], [0, 0, 1, 1], [], []>} : vector<8x128xf32>, vector<128x384xf32>, vector<8x384xf32> -> vector<8x384xf32>
    %308 = vector.broadcast %279 : vector<1x384xf32> to vector<8x384xf32>
    %309 = arith.addf %307, %308 : vector<8x384xf32>
    %310 = vector.extract_strided_slice %306 {offsets = [0, 0], sizes = [8, 128], strides = [1, 1]} : vector<8x384xf32> to vector<8x128xf32>
    %311 = vector.extract_strided_slice %309 {offsets = [0, 0], sizes = [8, 128], strides = [1, 1]} : vector<8x384xf32> to vector<8x128xf32>
    %312 = arith.addf %310, %311 : vector<8x128xf32>
    %313 = arith.negf %312 : vector<8x128xf32>
    %314 = math.exp %313 : vector<8x128xf32>
    %cst_87 = arith.constant 1.000000e+00 : f32
    %315 = vector.broadcast %cst_87 : f32 to vector<8x128xf32>
    %316 = arith.addf %315, %314 : vector<8x128xf32>
    %317 = arith.divf %315, %316 : vector<8x128xf32>
    %318 = vector.extract_strided_slice %306 {offsets = [0, 128], sizes = [8, 128], strides = [1, 1]} : vector<8x384xf32> to vector<8x128xf32>
    %319 = vector.extract_strided_slice %309 {offsets = [0, 128], sizes = [8, 128], strides = [1, 1]} : vector<8x384xf32> to vector<8x128xf32>
    %320 = arith.addf %318, %319 : vector<8x128xf32>
    %321 = arith.negf %320 : vector<8x128xf32>
    %322 = math.exp %321 : vector<8x128xf32>
    %cst_88 = arith.constant 1.000000e+00 : f32
    %323 = vector.broadcast %cst_88 : f32 to vector<8x128xf32>
    %324 = arith.addf %323, %322 : vector<8x128xf32>
    %325 = arith.divf %323, %324 : vector<8x128xf32>
    %326 = vector.extract_strided_slice %306 {offsets = [0, 256], sizes = [8, 128], strides = [1, 1]} : vector<8x384xf32> to vector<8x128xf32>
    %327 = vector.extract_strided_slice %309 {offsets = [0, 256], sizes = [8, 128], strides = [1, 1]} : vector<8x384xf32> to vector<8x128xf32>
    %328 = arith.mulf %317, %327 : vector<8x128xf32>
    %329 = arith.addf %326, %328 : vector<8x128xf32>
    %330 = math.tanh %329 : vector<8x128xf32>
    %cst_89 = arith.constant 1.000000e+00 : f32
    %331 = vector.broadcast %cst_89 : f32 to vector<8x128xf32>
    %332 = arith.subf %331, %325 : vector<8x128xf32>
    %333 = arith.mulf %332, %330 : vector<8x128xf32>
    %334 = arith.mulf %325, %269 : vector<8x128xf32>
    %335 = arith.addf %333, %334 : vector<8x128xf32>
    %cst_90 = arith.constant dense<0.000000e+00> : vector<8x128xf32>
    %336 = tpu.matmul %335, %280, %cst_90 {dimension_numbers = #tpu.dot_dimension_numbers<[1], [0], [0], [1], [0, 0, 1, 1], [], []>} : vector<8x128xf32>, vector<128x128xf32>, vector<8x128xf32> -> vector<8x128xf32>
    %cst_91 = arith.constant dense<0.000000e+00> : vector<8x128xf32>
    %337 = tpu.matmul %301, %281, %cst_91 {dimension_numbers = #tpu.dot_dimension_numbers<[1], [0], [0], [1], [0, 0, 1, 1], [], []>} : vector<8x128xf32>, vector<128x128xf32>, vector<8x128xf32> -> vector<8x128xf32>
    %338 = arith.addf %336, %337 : vector<8x128xf32>
    %339 = vector.broadcast %282 : vector<1x128xf32> to vector<8x128xf32>
    %340 = arith.addf %338, %339 : vector<8x128xf32>
    %c0_92 = arith.constant 0 : index
    %c0_93 = arith.constant 0 : index
    %c0_94 = arith.constant 0 : index
    %341 = vector.load %arg16[%c0_92, %c0_93, %c0_94] : memref<8x8x128xf32, #tpu.memory_space<vmem>>, vector<1x8x128xf32>
    %342 = vector.shape_cast %341 : vector<1x8x128xf32> to vector<8x128xf32>
    %343 = vector.shape_cast %340 : vector<8x128xf32> to vector<1x8x128xf32>
    tpu.vector_store %arg16[%c0_92, %c0_93, %c0_94], %343 {strides = array<i32>} : memref<8x8x128xf32, #tpu.memory_space<vmem>>, vector<1x8x128xf32>,
    %c0_95 = arith.constant 0 : index
    %344 = memref.load %arg3[%c0_95] : memref<8xi32, #tpu.memory_space<smem>>
    %345 = arith.sitofp %344 : i32 to f32
    %c0_96 = arith.constant 0 : index
    %c0_97 = arith.constant 0 : index
    %c0_98 = arith.constant 0 : index
    %346 = vector.load %arg2[%c0_96, %c0_97, %c0_98] : memref<8x8x8xf32, #tpu.memory_space<vmem>>, vector<1x8x8xf32>
    %347 = vector.shape_cast %346 : vector<1x8x8xf32> to vector<8x8xf32>
    %348 = vector.broadcast %345 : f32 to vector<8x8xf32>
    %349 = arith.mulf %348, %347 : vector<8x8xf32>
    %cst_99 = arith.constant 1.000000e+00 : f32
    %350 = arith.subf %cst_99, %345 : f32
    %351 = vector.extract_strided_slice %340 {offsets = [0, 0], sizes = [8, 8], strides = [1, 1]} : vector<8x128xf32> to vector<8x8xf32>
    %352 = vector.broadcast %350 : f32 to vector<8x8xf32>
    %353 = arith.mulf %352, %351 : vector<8x8xf32>
    %354 = arith.addf %349, %353 : vector<8x8xf32>
    %355 = vector.shape_cast %335 : vector<8x128xf32> to vector<8x1x128xf32>
    %356 = vector.broadcast %355 : vector<8x1x128xf32> to vector<8x8x128xf32>
    %357 = arith.mulf %274, %356 : vector<8x8x128xf32>
    %cst_100 = arith.constant dense<0.000000e+00> : vector<8x8xf32>
    %358 = vector.multi_reduction <add>, %357, %cst_100 [2] : vector<8x8x128xf32> to vector<8x8xf32>
    %cst_101 = arith.constant dense<0xFF800000> : vector<8xf32>
    %359 = vector.multi_reduction <maximumf>, %358, %cst_101 [1] : vector<8x8xf32> to vector<8xf32>
    %360 = vector.shape_cast %359 : vector<8xf32> to vector<8x1xf32>
    %361 = vector.broadcast %360 : vector<8x1xf32> to vector<8x8xf32>
    %362 = arith.subf %358, %361 : vector<8x8xf32>
    %363 = math.exp %362 : vector<8x8xf32>
    %cst_102 = arith.constant dense<0.000000e+00> : vector<8xf32>
    %364 = vector.multi_reduction <add>, %363, %cst_102 [1] : vector<8x8xf32> to vector<8xf32>
    %365 = vector.shape_cast %364 : vector<8xf32> to vector<8x1xf32>
    %366 = tpu.reciprocal %365 {approx = true} : vector<8x1xf32> -> vector<8x1xf32>
    %367 = vector.broadcast %366 : vector<8x1xf32> to vector<8x8xf32>
    %368 = arith.mulf %363, %367 : vector<8x8xf32>
    %369 = vector.shape_cast %368 : vector<8x8xf32> to vector<8x8x1xf32>
    %370 = vector.broadcast %369 : vector<8x8x1xf32> to vector<8x8x128xf32>
    %371 = arith.mulf %370, %274 : vector<8x8x128xf32>
    %cst_103 = arith.constant dense<0.000000e+00> : vector<8x128xf32>
    %372 = vector.multi_reduction <add>, %371, %cst_103 [1] : vector<8x8x128xf32> to vector<8x128xf32>
    %cst_104 = arith.constant dense<0.000000e+00> : vector<8x384xf32>
    %373 = tpu.matmul %354, %275, %cst_104 {dimension_numbers = #tpu.dot_dimension_numbers<[1], [0], [0], [1], [0, 0, 1, 1], [], []>} : vector<8x8xf32>, vector<8x384xf32>, vector<8x384xf32> -> vector<8x384xf32>
    %cst_105 = arith.constant dense<0.000000e+00> : vector<8x384xf32>
    %374 = tpu.matmul %372, %276, %cst_105 {dimension_numbers = #tpu.dot_dimension_numbers<[1], [0], [0], [1], [0, 0, 1, 1], [], []>} : vector<8x128xf32>, vector<128x384xf32>, vector<8x384xf32> -> vector<8x384xf32>
    %375 = arith.addf %373, %374 : vector<8x384xf32>
    %376 = vector.broadcast %278 : vector<1x384xf32> to vector<8x384xf32>
    %377 = arith.addf %375, %376 : vector<8x384xf32>
    %cst_106 = arith.constant dense<0.000000e+00> : vector<8x384xf32>
    %378 = tpu.matmul %335, %277, %cst_106 {dimension_numbers = #tpu.dot_dimension_numbers<[1], [0], [0], [1], [0, 0, 1, 1], [], []>} : vector<8x128xf32>, vector<128x384xf32>, vector<8x384xf32> -> vector<8x384xf32>
    %379 = vector.broadcast %279 : vector<1x384xf32> to vector<8x384xf32>
    %380 = arith.addf %378, %379 : vector<8x384xf32>
    %381 = vector.extract_strided_slice %377 {offsets = [0, 0], sizes = [8, 128], strides = [1, 1]} : vector<8x384xf32> to vector<8x128xf32>
    %382 = vector.extract_strided_slice %380 {offsets = [0, 0], sizes = [8, 128], strides = [1, 1]} : vector<8x384xf32> to vector<8x128xf32>
    %383 = arith.addf %381, %382 : vector<8x128xf32>
    %384 = arith.negf %383 : vector<8x128xf32>
    %385 = math.exp %384 : vector<8x128xf32>
    %cst_107 = arith.constant 1.000000e+00 : f32
    %386 = vector.broadcast %cst_107 : f32 to vector<8x128xf32>
    %387 = arith.addf %386, %385 : vector<8x128xf32>
    %388 = arith.divf %386, %387 : vector<8x128xf32>
    %389 = vector.extract_strided_slice %377 {offsets = [0, 128], sizes = [8, 128], strides = [1, 1]} : vector<8x384xf32> to vector<8x128xf32>
    %390 = vector.extract_strided_slice %380 {offsets = [0, 128], sizes = [8, 128], strides = [1, 1]} : vector<8x384xf32> to vector<8x128xf32>
    %391 = arith.addf %389, %390 : vector<8x128xf32>
    %392 = arith.negf %391 : vector<8x128xf32>
    %393 = math.exp %392 : vector<8x128xf32>
    %cst_108 = arith.constant 1.000000e+00 : f32
    %394 = vector.broadcast %cst_108 : f32 to vector<8x128xf32>
    %395 = arith.addf %394, %393 : vector<8x128xf32>
    %396 = arith.divf %394, %395 : vector<8x128xf32>
    %397 = vector.extract_strided_slice %377 {offsets = [0, 256], sizes = [8, 128], strides = [1, 1]} : vector<8x384xf32> to vector<8x128xf32>
    %398 = vector.extract_strided_slice %380 {offsets = [0, 256], sizes = [8, 128], strides = [1, 1]} : vector<8x384xf32> to vector<8x128xf32>
    %399 = arith.mulf %388, %398 : vector<8x128xf32>
    %400 = arith.addf %397, %399 : vector<8x128xf32>
    %401 = math.tanh %400 : vector<8x128xf32>
    %cst_109 = arith.constant 1.000000e+00 : f32
    %402 = vector.broadcast %cst_109 : f32 to vector<8x128xf32>
    %403 = arith.subf %402, %396 : vector<8x128xf32>
    %404 = arith.mulf %403, %401 : vector<8x128xf32>
    %405 = arith.mulf %396, %335 : vector<8x128xf32>
    %406 = arith.addf %404, %405 : vector<8x128xf32>
    %cst_110 = arith.constant dense<0.000000e+00> : vector<8x128xf32>
    %407 = tpu.matmul %406, %280, %cst_110 {dimension_numbers = #tpu.dot_dimension_numbers<[1], [0], [0], [1], [0, 0, 1, 1], [], []>} : vector<8x128xf32>, vector<128x128xf32>, vector<8x128xf32> -> vector<8x128xf32>
    %cst_111 = arith.constant dense<0.000000e+00> : vector<8x128xf32>
    %408 = tpu.matmul %372, %281, %cst_111 {dimension_numbers = #tpu.dot_dimension_numbers<[1], [0], [0], [1], [0, 0, 1, 1], [], []>} : vector<8x128xf32>, vector<128x128xf32>, vector<8x128xf32> -> vector<8x128xf32>
    %409 = arith.addf %407, %408 : vector<8x128xf32>
    %410 = vector.broadcast %282 : vector<1x128xf32> to vector<8x128xf32>
    %411 = arith.addf %409, %410 : vector<8x128xf32>
    %c1_112 = arith.constant 1 : index
    %c0_113 = arith.constant 0 : index
    %c0_114 = arith.constant 0 : index
    %412 = vector.load %arg16[%c1_112, %c0_113, %c0_114] : memref<8x8x128xf32, #tpu.memory_space<vmem>>, vector<1x8x128xf32>
    %413 = vector.shape_cast %412 : vector<1x8x128xf32> to vector<8x128xf32>
    %414 = vector.shape_cast %411 : vector<8x128xf32> to vector<1x8x128xf32>
    tpu.vector_store %arg16[%c1_112, %c0_113, %c0_114], %414 {strides = array<i32>} : memref<8x8x128xf32, #tpu.memory_space<vmem>>, vector<1x8x128xf32>,
    %c1_115 = arith.constant 1 : index
    %415 = memref.load %arg3[%c1_115] : memref<8xi32, #tpu.memory_space<smem>>
    %416 = arith.sitofp %415 : i32 to f32
    %c1_116 = arith.constant 1 : index
    %c0_117 = arith.constant 0 : index
    %c0_118 = arith.constant 0 : index
    %417 = vector.load %arg2[%c1_116, %c0_117, %c0_118] : memref<8x8x8xf32, #tpu.memory_space<vmem>>, vector<1x8x8xf32>
    %418 = vector.shape_cast %417 : vector<1x8x8xf32> to vector<8x8xf32>
    %419 = vector.broadcast %416 : f32 to vector<8x8xf32>
    %420 = arith.mulf %419, %418 : vector<8x8xf32>
    %cst_119 = arith.constant 1.000000e+00 : f32
    %421 = arith.subf %cst_119, %416 : f32
    %422 = vector.extract_strided_slice %411 {offsets = [0, 0], sizes = [8, 8], strides = [1, 1]} : vector<8x128xf32> to vector<8x8xf32>
    %423 = vector.broadcast %421 : f32 to vector<8x8xf32>
    %424 = arith.mulf %423, %422 : vector<8x8xf32>
    %425 = arith.addf %420, %424 : vector<8x8xf32>
    %426 = vector.shape_cast %406 : vector<8x128xf32> to vector<8x1x128xf32>
    %427 = vector.broadcast %426 : vector<8x1x128xf32> to vector<8x8x128xf32>
    %428 = arith.mulf %274, %427 : vector<8x8x128xf32>
    %cst_120 = arith.constant dense<0.000000e+00> : vector<8x8xf32>
    %429 = vector.multi_reduction <add>, %428, %cst_120 [2] : vector<8x8x128xf32> to vector<8x8xf32>
    %cst_121 = arith.constant dense<0xFF800000> : vector<8xf32>
    %430 = vector.multi_reduction <maximumf>, %429, %cst_121 [1] : vector<8x8xf32> to vector<8xf32>
    %431 = vector.shape_cast %430 : vector<8xf32> to vector<8x1xf32>
    %432 = vector.broadcast %431 : vector<8x1xf32> to vector<8x8xf32>
    %433 = arith.subf %429, %432 : vector<8x8xf32>
    %434 = math.exp %433 : vector<8x8xf32>
    %cst_122 = arith.constant dense<0.000000e+00> : vector<8xf32>
    %435 = vector.multi_reduction <add>, %434, %cst_122 [1] : vector<8x8xf32> to vector<8xf32>
    %436 = vector.shape_cast %435 : vector<8xf32> to vector<8x1xf32>
    %437 = tpu.reciprocal %436 {approx = true} : vector<8x1xf32> -> vector<8x1xf32>
    %438 = vector.broadcast %437 : vector<8x1xf32> to vector<8x8xf32>
    %439 = arith.mulf %434, %438 : vector<8x8xf32>
    %440 = vector.shape_cast %439 : vector<8x8xf32> to vector<8x8x1xf32>
    %441 = vector.broadcast %440 : vector<8x8x1xf32> to vector<8x8x128xf32>
    %442 = arith.mulf %441, %274 : vector<8x8x128xf32>
    %cst_123 = arith.constant dense<0.000000e+00> : vector<8x128xf32>
    %443 = vector.multi_reduction <add>, %442, %cst_123 [1] : vector<8x8x128xf32> to vector<8x128xf32>
    %cst_124 = arith.constant dense<0.000000e+00> : vector<8x384xf32>
    %444 = tpu.matmul %425, %275, %cst_124 {dimension_numbers = #tpu.dot_dimension_numbers<[1], [0], [0], [1], [0, 0, 1, 1], [], []>} : vector<8x8xf32>, vector<8x384xf32>, vector<8x384xf32> -> vector<8x384xf32>
    %cst_125 = arith.constant dense<0.000000e+00> : vector<8x384xf32>
    %445 = tpu.matmul %443, %276, %cst_125 {dimension_numbers = #tpu.dot_dimension_numbers<[1], [0], [0], [1], [0, 0, 1, 1], [], []>} : vector<8x128xf32>, vector<128x384xf32>, vector<8x384xf32> -> vector<8x384xf32>
    %446 = arith.addf %444, %445 : vector<8x384xf32>
    %447 = vector.broadcast %278 : vector<1x384xf32> to vector<8x384xf32>
    %448 = arith.addf %446, %447 : vector<8x384xf32>
    %cst_126 = arith.constant dense<0.000000e+00> : vector<8x384xf32>
    %449 = tpu.matmul %406, %277, %cst_126 {dimension_numbers = #tpu.dot_dimension_numbers<[1], [0], [0], [1], [0, 0, 1, 1], [], []>} : vector<8x128xf32>, vector<128x384xf32>, vector<8x384xf32> -> vector<8x384xf32>
    %450 = vector.broadcast %279 : vector<1x384xf32> to vector<8x384xf32>
    %451 = arith.addf %449, %450 : vector<8x384xf32>
    %452 = vector.extract_strided_slice %448 {offsets = [0, 0], sizes = [8, 128], strides = [1, 1]} : vector<8x384xf32> to vector<8x128xf32>
    %453 = vector.extract_strided_slice %451 {offsets = [0, 0], sizes = [8, 128], strides = [1, 1]} : vector<8x384xf32> to vector<8x128xf32>
    %454 = arith.addf %452, %453 : vector<8x128xf32>
    %455 = arith.negf %454 : vector<8x128xf32>
    %456 = math.exp %455 : vector<8x128xf32>
    %cst_127 = arith.constant 1.000000e+00 : f32
    %457 = vector.broadcast %cst_127 : f32 to vector<8x128xf32>
    %458 = arith.addf %457, %456 : vector<8x128xf32>
    %459 = arith.divf %457, %458 : vector<8x128xf32>
    %460 = vector.extract_strided_slice %448 {offsets = [0, 128], sizes = [8, 128], strides = [1, 1]} : vector<8x384xf32> to vector<8x128xf32>
    %461 = vector.extract_strided_slice %451 {offsets = [0, 128], sizes = [8, 128], strides = [1, 1]} : vector<8x384xf32> to vector<8x128xf32>
    %462 = arith.addf %460, %461 : vector<8x128xf32>
    %463 = arith.negf %462 : vector<8x128xf32>
    %464 = math.exp %463 : vector<8x128xf32>
    %cst_128 = arith.constant 1.000000e+00 : f32
    %465 = vector.broadcast %cst_128 : f32 to vector<8x128xf32>
    %466 = arith.addf %465, %464 : vector<8x128xf32>
    %467 = arith.divf %465, %466 : vector<8x128xf32>
    %468 = vector.extract_strided_slice %448 {offsets = [0, 256], sizes = [8, 128], strides = [1, 1]} : vector<8x384xf32> to vector<8x128xf32>
    %469 = vector.extract_strided_slice %451 {offsets = [0, 256], sizes = [8, 128], strides = [1, 1]} : vector<8x384xf32> to vector<8x128xf32>
    %470 = arith.mulf %459, %469 : vector<8x128xf32>
    %471 = arith.addf %468, %470 : vector<8x128xf32>
    %472 = math.tanh %471 : vector<8x128xf32>
    %cst_129 = arith.constant 1.000000e+00 : f32
    %473 = vector.broadcast %cst_129 : f32 to vector<8x128xf32>
    %474 = arith.subf %473, %467 : vector<8x128xf32>
    %475 = arith.mulf %474, %472 : vector<8x128xf32>
    %476 = arith.mulf %467, %406 : vector<8x128xf32>
    %477 = arith.addf %475, %476 : vector<8x128xf32>
    %cst_130 = arith.constant dense<0.000000e+00> : vector<8x128xf32>
    %478 = tpu.matmul %477, %280, %cst_130 {dimension_numbers = #tpu.dot_dimension_numbers<[1], [0], [0], [1], [0, 0, 1, 1], [], []>} : vector<8x128xf32>, vector<128x128xf32>, vector<8x128xf32> -> vector<8x128xf32>
    %cst_131 = arith.constant dense<0.000000e+00> : vector<8x128xf32>
    %479 = tpu.matmul %443, %281, %cst_131 {dimension_numbers = #tpu.dot_dimension_numbers<[1], [0], [0], [1], [0, 0, 1, 1], [], []>} : vector<8x128xf32>, vector<128x128xf32>, vector<8x128xf32> -> vector<8x128xf32>
    %480 = arith.addf %478, %479 : vector<8x128xf32>
    %481 = vector.broadcast %282 : vector<1x128xf32> to vector<8x128xf32>
    %482 = arith.addf %480, %481 : vector<8x128xf32>
    %c2_132 = arith.constant 2 : index
    %c0_133 = arith.constant 0 : index
    %c0_134 = arith.constant 0 : index
    %483 = vector.load %arg16[%c2_132, %c0_133, %c0_134] : memref<8x8x128xf32, #tpu.memory_space<vmem>>, vector<1x8x128xf32>
    %484 = vector.shape_cast %483 : vector<1x8x128xf32> to vector<8x128xf32>
    %485 = vector.shape_cast %482 : vector<8x128xf32> to vector<1x8x128xf32>
    tpu.vector_store %arg16[%c2_132, %c0_133, %c0_134], %485 {strides = array<i32>} : memref<8x8x128xf32, #tpu.memory_space<vmem>>, vector<1x8x128xf32>,
    %c2_135 = arith.constant 2 : index
    %486 = memref.load %arg3[%c2_135] : memref<8xi32, #tpu.memory_space<smem>>
    %487 = arith.sitofp %486 : i32 to f32
    %c2_136 = arith.constant 2 : index
    %c0_137 = arith.constant 0 : index
    %c0_138 = arith.constant 0 : index
    %488 = vector.load %arg2[%c2_136, %c0_137, %c0_138] : memref<8x8x8xf32, #tpu.memory_space<vmem>>, vector<1x8x8xf32>
    %489 = vector.shape_cast %488 : vector<1x8x8xf32> to vector<8x8xf32>
    %490 = vector.broadcast %487 : f32 to vector<8x8xf32>
    %491 = arith.mulf %490, %489 : vector<8x8xf32>
    %cst_139 = arith.constant 1.000000e+00 : f32
    %492 = arith.subf %cst_139, %487 : f32
    %493 = vector.extract_strided_slice %482 {offsets = [0, 0], sizes = [8, 8], strides = [1, 1]} : vector<8x128xf32> to vector<8x8xf32>
    %494 = vector.broadcast %492 : f32 to vector<8x8xf32>
    %495 = arith.mulf %494, %493 : vector<8x8xf32>
    %496 = arith.addf %491, %495 : vector<8x8xf32>
    %497 = vector.shape_cast %477 : vector<8x128xf32> to vector<8x1x128xf32>
    %498 = vector.broadcast %497 : vector<8x1x128xf32> to vector<8x8x128xf32>
    %499 = arith.mulf %274, %498 : vector<8x8x128xf32>
    %cst_140 = arith.constant dense<0.000000e+00> : vector<8x8xf32>
    %500 = vector.multi_reduction <add>, %499, %cst_140 [2] : vector<8x8x128xf32> to vector<8x8xf32>
    %cst_141 = arith.constant dense<0xFF800000> : vector<8xf32>
    %501 = vector.multi_reduction <maximumf>, %500, %cst_141 [1] : vector<8x8xf32> to vector<8xf32>
    %502 = vector.shape_cast %501 : vector<8xf32> to vector<8x1xf32>
    %503 = vector.broadcast %502 : vector<8x1xf32> to vector<8x8xf32>
    %504 = arith.subf %500, %503 : vector<8x8xf32>
    %505 = math.exp %504 : vector<8x8xf32>
    %cst_142 = arith.constant dense<0.000000e+00> : vector<8xf32>
    %506 = vector.multi_reduction <add>, %505, %cst_142 [1] : vector<8x8xf32> to vector<8xf32>
    %507 = vector.shape_cast %506 : vector<8xf32> to vector<8x1xf32>
    %508 = tpu.reciprocal %507 {approx = true} : vector<8x1xf32> -> vector<8x1xf32>
    %509 = vector.broadcast %508 : vector<8x1xf32> to vector<8x8xf32>
    %510 = arith.mulf %505, %509 : vector<8x8xf32>
    %511 = vector.shape_cast %510 : vector<8x8xf32> to vector<8x8x1xf32>
    %512 = vector.broadcast %511 : vector<8x8x1xf32> to vector<8x8x128xf32>
    %513 = arith.mulf %512, %274 : vector<8x8x128xf32>
    %cst_143 = arith.constant dense<0.000000e+00> : vector<8x128xf32>
    %514 = vector.multi_reduction <add>, %513, %cst_143 [1] : vector<8x8x128xf32> to vector<8x128xf32>
    %cst_144 = arith.constant dense<0.000000e+00> : vector<8x384xf32>
    %515 = tpu.matmul %496, %275, %cst_144 {dimension_numbers = #tpu.dot_dimension_numbers<[1], [0], [0], [1], [0, 0, 1, 1], [], []>} : vector<8x8xf32>, vector<8x384xf32>, vector<8x384xf32> -> vector<8x384xf32>
    %cst_145 = arith.constant dense<0.000000e+00> : vector<8x384xf32>
    %516 = tpu.matmul %514, %276, %cst_145 {dimension_numbers = #tpu.dot_dimension_numbers<[1], [0], [0], [1], [0, 0, 1, 1], [], []>} : vector<8x128xf32>, vector<128x384xf32>, vector<8x384xf32> -> vector<8x384xf32>
    %517 = arith.addf %515, %516 : vector<8x384xf32>
    %518 = vector.broadcast %278 : vector<1x384xf32> to vector<8x384xf32>
    %519 = arith.addf %517, %518 : vector<8x384xf32>
    %cst_146 = arith.constant dense<0.000000e+00> : vector<8x384xf32>
    %520 = tpu.matmul %477, %277, %cst_146 {dimension_numbers = #tpu.dot_dimension_numbers<[1], [0], [0], [1], [0, 0, 1, 1], [], []>} : vector<8x128xf32>, vector<128x384xf32>, vector<8x384xf32> -> vector<8x384xf32>
    %521 = vector.broadcast %279 : vector<1x384xf32> to vector<8x384xf32>
    %522 = arith.addf %520, %521 : vector<8x384xf32>
    %523 = vector.extract_strided_slice %519 {offsets = [0, 0], sizes = [8, 128], strides = [1, 1]} : vector<8x384xf32> to vector<8x128xf32>
    %524 = vector.extract_strided_slice %522 {offsets = [0, 0], sizes = [8, 128], strides = [1, 1]} : vector<8x384xf32> to vector<8x128xf32>
    %525 = arith.addf %523, %524 : vector<8x128xf32>
    %526 = arith.negf %525 : vector<8x128xf32>
    %527 = math.exp %526 : vector<8x128xf32>
    %cst_147 = arith.constant 1.000000e+00 : f32
    %528 = vector.broadcast %cst_147 : f32 to vector<8x128xf32>
    %529 = arith.addf %528, %527 : vector<8x128xf32>
    %530 = arith.divf %528, %529 : vector<8x128xf32>
    %531 = vector.extract_strided_slice %519 {offsets = [0, 128], sizes = [8, 128], strides = [1, 1]} : vector<8x384xf32> to vector<8x128xf32>
    %532 = vector.extract_strided_slice %522 {offsets = [0, 128], sizes = [8, 128], strides = [1, 1]} : vector<8x384xf32> to vector<8x128xf32>
    %533 = arith.addf %531, %532 : vector<8x128xf32>
    %534 = arith.negf %533 : vector<8x128xf32>
    %535 = math.exp %534 : vector<8x128xf32>
    %cst_148 = arith.constant 1.000000e+00 : f32
    %536 = vector.broadcast %cst_148 : f32 to vector<8x128xf32>
    %537 = arith.addf %536, %535 : vector<8x128xf32>
    %538 = arith.divf %536, %537 : vector<8x128xf32>
    %539 = vector.extract_strided_slice %519 {offsets = [0, 256], sizes = [8, 128], strides = [1, 1]} : vector<8x384xf32> to vector<8x128xf32>
    %540 = vector.extract_strided_slice %522 {offsets = [0, 256], sizes = [8, 128], strides = [1, 1]} : vector<8x384xf32> to vector<8x128xf32>
    %541 = arith.mulf %530, %540 : vector<8x128xf32>
    %542 = arith.addf %539, %541 : vector<8x128xf32>
    %543 = math.tanh %542 : vector<8x128xf32>
    %cst_149 = arith.constant 1.000000e+00 : f32
    %544 = vector.broadcast %cst_149 : f32 to vector<8x128xf32>
    %545 = arith.subf %544, %538 : vector<8x128xf32>
    %546 = arith.mulf %545, %543 : vector<8x128xf32>
    %547 = arith.mulf %538, %477 : vector<8x128xf32>
    %548 = arith.addf %546, %547 : vector<8x128xf32>
    %cst_150 = arith.constant dense<0.000000e+00> : vector<8x128xf32>
    %549 = tpu.matmul %548, %280, %cst_150 {dimension_numbers = #tpu.dot_dimension_numbers<[1], [0], [0], [1], [0, 0, 1, 1], [], []>} : vector<8x128xf32>, vector<128x128xf32>, vector<8x128xf32> -> vector<8x128xf32>
    %cst_151 = arith.constant dense<0.000000e+00> : vector<8x128xf32>
    %550 = tpu.matmul %514, %281, %cst_151 {dimension_numbers = #tpu.dot_dimension_numbers<[1], [0], [0], [1], [0, 0, 1, 1], [], []>} : vector<8x128xf32>, vector<128x128xf32>, vector<8x128xf32> -> vector<8x128xf32>
    %551 = arith.addf %549, %550 : vector<8x128xf32>
    %552 = vector.broadcast %282 : vector<1x128xf32> to vector<8x128xf32>
    %553 = arith.addf %551, %552 : vector<8x128xf32>
    %c3_152 = arith.constant 3 : index
    %c0_153 = arith.constant 0 : index
    %c0_154 = arith.constant 0 : index
    %554 = vector.load %arg16[%c3_152, %c0_153, %c0_154] : memref<8x8x128xf32, #tpu.memory_space<vmem>>, vector<1x8x128xf32>
    %555 = vector.shape_cast %554 : vector<1x8x128xf32> to vector<8x128xf32>
    %556 = vector.shape_cast %553 : vector<8x128xf32> to vector<1x8x128xf32>
    tpu.vector_store %arg16[%c3_152, %c0_153, %c0_154], %556 {strides = array<i32>} : memref<8x8x128xf32, #tpu.memory_space<vmem>>, vector<1x8x128xf32>,
    %c3_155 = arith.constant 3 : index
    %557 = memref.load %arg3[%c3_155] : memref<8xi32, #tpu.memory_space<smem>>
    %558 = arith.sitofp %557 : i32 to f32
    %c3_156 = arith.constant 3 : index
    %c0_157 = arith.constant 0 : index
    %c0_158 = arith.constant 0 : index
    %559 = vector.load %arg2[%c3_156, %c0_157, %c0_158] : memref<8x8x8xf32, #tpu.memory_space<vmem>>, vector<1x8x8xf32>
    %560 = vector.shape_cast %559 : vector<1x8x8xf32> to vector<8x8xf32>
    %561 = vector.broadcast %558 : f32 to vector<8x8xf32>
    %562 = arith.mulf %561, %560 : vector<8x8xf32>
    %cst_159 = arith.constant 1.000000e+00 : f32
    %563 = arith.subf %cst_159, %558 : f32
    %564 = vector.extract_strided_slice %553 {offsets = [0, 0], sizes = [8, 8], strides = [1, 1]} : vector<8x128xf32> to vector<8x8xf32>
    %565 = vector.broadcast %563 : f32 to vector<8x8xf32>
    %566 = arith.mulf %565, %564 : vector<8x8xf32>
    %567 = arith.addf %562, %566 : vector<8x8xf32>
    %568 = vector.shape_cast %548 : vector<8x128xf32> to vector<8x1x128xf32>
    %569 = vector.broadcast %568 : vector<8x1x128xf32> to vector<8x8x128xf32>
    %570 = arith.mulf %274, %569 : vector<8x8x128xf32>
    %cst_160 = arith.constant dense<0.000000e+00> : vector<8x8xf32>
    %571 = vector.multi_reduction <add>, %570, %cst_160 [2] : vector<8x8x128xf32> to vector<8x8xf32>
    %cst_161 = arith.constant dense<0xFF800000> : vector<8xf32>
    %572 = vector.multi_reduction <maximumf>, %571, %cst_161 [1] : vector<8x8xf32> to vector<8xf32>
    %573 = vector.shape_cast %572 : vector<8xf32> to vector<8x1xf32>
    %574 = vector.broadcast %573 : vector<8x1xf32> to vector<8x8xf32>
    %575 = arith.subf %571, %574 : vector<8x8xf32>
    %576 = math.exp %575 : vector<8x8xf32>
    %cst_162 = arith.constant dense<0.000000e+00> : vector<8xf32>
    %577 = vector.multi_reduction <add>, %576, %cst_162 [1] : vector<8x8xf32> to vector<8xf32>
    %578 = vector.shape_cast %577 : vector<8xf32> to vector<8x1xf32>
    %579 = tpu.reciprocal %578 {approx = true} : vector<8x1xf32> -> vector<8x1xf32>
    %580 = vector.broadcast %579 : vector<8x1xf32> to vector<8x8xf32>
    %581 = arith.mulf %576, %580 : vector<8x8xf32>
    %582 = vector.shape_cast %581 : vector<8x8xf32> to vector<8x8x1xf32>
    %583 = vector.broadcast %582 : vector<8x8x1xf32> to vector<8x8x128xf32>
    %584 = arith.mulf %583, %274 : vector<8x8x128xf32>
    %cst_163 = arith.constant dense<0.000000e+00> : vector<8x128xf32>
    %585 = vector.multi_reduction <add>, %584, %cst_163 [1] : vector<8x8x128xf32> to vector<8x128xf32>
    %cst_164 = arith.constant dense<0.000000e+00> : vector<8x384xf32>
    %586 = tpu.matmul %567, %275, %cst_164 {dimension_numbers = #tpu.dot_dimension_numbers<[1], [0], [0], [1], [0, 0, 1, 1], [], []>} : vector<8x8xf32>, vector<8x384xf32>, vector<8x384xf32> -> vector<8x384xf32>
    %cst_165 = arith.constant dense<0.000000e+00> : vector<8x384xf32>
    %587 = tpu.matmul %585, %276, %cst_165 {dimension_numbers = #tpu.dot_dimension_numbers<[1], [0], [0], [1], [0, 0, 1, 1], [], []>} : vector<8x128xf32>, vector<128x384xf32>, vector<8x384xf32> -> vector<8x384xf32>
    %588 = arith.addf %586, %587 : vector<8x384xf32>
    %589 = vector.broadcast %278 : vector<1x384xf32> to vector<8x384xf32>
    %590 = arith.addf %588, %589 : vector<8x384xf32>
    %cst_166 = arith.constant dense<0.000000e+00> : vector<8x384xf32>
    %591 = tpu.matmul %548, %277, %cst_166 {dimension_numbers = #tpu.dot_dimension_numbers<[1], [0], [0], [1], [0, 0, 1, 1], [], []>} : vector<8x128xf32>, vector<128x384xf32>, vector<8x384xf32> -> vector<8x384xf32>
    %592 = vector.broadcast %279 : vector<1x384xf32> to vector<8x384xf32>
    %593 = arith.addf %591, %592 : vector<8x384xf32>
    %594 = vector.extract_strided_slice %590 {offsets = [0, 0], sizes = [8, 128], strides = [1, 1]} : vector<8x384xf32> to vector<8x128xf32>
    %595 = vector.extract_strided_slice %593 {offsets = [0, 0], sizes = [8, 128], strides = [1, 1]} : vector<8x384xf32> to vector<8x128xf32>
    %596 = arith.addf %594, %595 : vector<8x128xf32>
    %597 = arith.negf %596 : vector<8x128xf32>
    %598 = math.exp %597 : vector<8x128xf32>
    %cst_167 = arith.constant 1.000000e+00 : f32
    %599 = vector.broadcast %cst_167 : f32 to vector<8x128xf32>
    %600 = arith.addf %599, %598 : vector<8x128xf32>
    %601 = arith.divf %599, %600 : vector<8x128xf32>
    %602 = vector.extract_strided_slice %590 {offsets = [0, 128], sizes = [8, 128], strides = [1, 1]} : vector<8x384xf32> to vector<8x128xf32>
    %603 = vector.extract_strided_slice %593 {offsets = [0, 128], sizes = [8, 128], strides = [1, 1]} : vector<8x384xf32> to vector<8x128xf32>
    %604 = arith.addf %602, %603 : vector<8x128xf32>
    %605 = arith.negf %604 : vector<8x128xf32>
    %606 = math.exp %605 : vector<8x128xf32>
    %cst_168 = arith.constant 1.000000e+00 : f32
    %607 = vector.broadcast %cst_168 : f32 to vector<8x128xf32>
    %608 = arith.addf %607, %606 : vector<8x128xf32>
    %609 = arith.divf %607, %608 : vector<8x128xf32>
    %610 = vector.extract_strided_slice %590 {offsets = [0, 256], sizes = [8, 128], strides = [1, 1]} : vector<8x384xf32> to vector<8x128xf32>
    %611 = vector.extract_strided_slice %593 {offsets = [0, 256], sizes = [8, 128], strides = [1, 1]} : vector<8x384xf32> to vector<8x128xf32>
    %612 = arith.mulf %601, %611 : vector<8x128xf32>
    %613 = arith.addf %610, %612 : vector<8x128xf32>
    %614 = math.tanh %613 : vector<8x128xf32>
    %cst_169 = arith.constant 1.000000e+00 : f32
    %615 = vector.broadcast %cst_169 : f32 to vector<8x128xf32>
    %616 = arith.subf %615, %609 : vector<8x128xf32>
    %617 = arith.mulf %616, %614 : vector<8x128xf32>
    %618 = arith.mulf %609, %548 : vector<8x128xf32>
    %619 = arith.addf %617, %618 : vector<8x128xf32>
    %cst_170 = arith.constant dense<0.000000e+00> : vector<8x128xf32>
    %620 = tpu.matmul %619, %280, %cst_170 {dimension_numbers = #tpu.dot_dimension_numbers<[1], [0], [0], [1], [0, 0, 1, 1], [], []>} : vector<8x128xf32>, vector<128x128xf32>, vector<8x128xf32> -> vector<8x128xf32>
    %cst_171 = arith.constant dense<0.000000e+00> : vector<8x128xf32>
    %621 = tpu.matmul %585, %281, %cst_171 {dimension_numbers = #tpu.dot_dimension_numbers<[1], [0], [0], [1], [0, 0, 1, 1], [], []>} : vector<8x128xf32>, vector<128x128xf32>, vector<8x128xf32> -> vector<8x128xf32>
    %622 = arith.addf %620, %621 : vector<8x128xf32>
    %623 = vector.broadcast %282 : vector<1x128xf32> to vector<8x128xf32>
    %624 = arith.addf %622, %623 : vector<8x128xf32>
    %c4_172 = arith.constant 4 : index
    %c0_173 = arith.constant 0 : index
    %c0_174 = arith.constant 0 : index
    %625 = vector.load %arg16[%c4_172, %c0_173, %c0_174] : memref<8x8x128xf32, #tpu.memory_space<vmem>>, vector<1x8x128xf32>
    %626 = vector.shape_cast %625 : vector<1x8x128xf32> to vector<8x128xf32>
    %627 = vector.shape_cast %624 : vector<8x128xf32> to vector<1x8x128xf32>
    tpu.vector_store %arg16[%c4_172, %c0_173, %c0_174], %627 {strides = array<i32>} : memref<8x8x128xf32, #tpu.memory_space<vmem>>, vector<1x8x128xf32>,
    %c4_175 = arith.constant 4 : index
    %628 = memref.load %arg3[%c4_175] : memref<8xi32, #tpu.memory_space<smem>>
    %629 = arith.sitofp %628 : i32 to f32
    %c4_176 = arith.constant 4 : index
    %c0_177 = arith.constant 0 : index
    %c0_178 = arith.constant 0 : index
    %630 = vector.load %arg2[%c4_176, %c0_177, %c0_178] : memref<8x8x8xf32, #tpu.memory_space<vmem>>, vector<1x8x8xf32>
    %631 = vector.shape_cast %630 : vector<1x8x8xf32> to vector<8x8xf32>
    %632 = vector.broadcast %629 : f32 to vector<8x8xf32>
    %633 = arith.mulf %632, %631 : vector<8x8xf32>
    %cst_179 = arith.constant 1.000000e+00 : f32
    %634 = arith.subf %cst_179, %629 : f32
    %635 = vector.extract_strided_slice %624 {offsets = [0, 0], sizes = [8, 8], strides = [1, 1]} : vector<8x128xf32> to vector<8x8xf32>
    %636 = vector.broadcast %634 : f32 to vector<8x8xf32>
    %637 = arith.mulf %636, %635 : vector<8x8xf32>
    %638 = arith.addf %633, %637 : vector<8x8xf32>
    %639 = vector.shape_cast %619 : vector<8x128xf32> to vector<8x1x128xf32>
    %640 = vector.broadcast %639 : vector<8x1x128xf32> to vector<8x8x128xf32>
    %641 = arith.mulf %274, %640 : vector<8x8x128xf32>
    %cst_180 = arith.constant dense<0.000000e+00> : vector<8x8xf32>
    %642 = vector.multi_reduction <add>, %641, %cst_180 [2] : vector<8x8x128xf32> to vector<8x8xf32>
    %cst_181 = arith.constant dense<0xFF800000> : vector<8xf32>
    %643 = vector.multi_reduction <maximumf>, %642, %cst_181 [1] : vector<8x8xf32> to vector<8xf32>
    %644 = vector.shape_cast %643 : vector<8xf32> to vector<8x1xf32>
    %645 = vector.broadcast %644 : vector<8x1xf32> to vector<8x8xf32>
    %646 = arith.subf %642, %645 : vector<8x8xf32>
    %647 = math.exp %646 : vector<8x8xf32>
    %cst_182 = arith.constant dense<0.000000e+00> : vector<8xf32>
    %648 = vector.multi_reduction <add>, %647, %cst_182 [1] : vector<8x8xf32> to vector<8xf32>
    %649 = vector.shape_cast %648 : vector<8xf32> to vector<8x1xf32>
    %650 = tpu.reciprocal %649 {approx = true} : vector<8x1xf32> -> vector<8x1xf32>
    %651 = vector.broadcast %650 : vector<8x1xf32> to vector<8x8xf32>
    %652 = arith.mulf %647, %651 : vector<8x8xf32>
    %653 = vector.shape_cast %652 : vector<8x8xf32> to vector<8x8x1xf32>
    %654 = vector.broadcast %653 : vector<8x8x1xf32> to vector<8x8x128xf32>
    %655 = arith.mulf %654, %274 : vector<8x8x128xf32>
    %cst_183 = arith.constant dense<0.000000e+00> : vector<8x128xf32>
    %656 = vector.multi_reduction <add>, %655, %cst_183 [1] : vector<8x8x128xf32> to vector<8x128xf32>
    %cst_184 = arith.constant dense<0.000000e+00> : vector<8x384xf32>
    %657 = tpu.matmul %638, %275, %cst_184 {dimension_numbers = #tpu.dot_dimension_numbers<[1], [0], [0], [1], [0, 0, 1, 1], [], []>} : vector<8x8xf32>, vector<8x384xf32>, vector<8x384xf32> -> vector<8x384xf32>
    %cst_185 = arith.constant dense<0.000000e+00> : vector<8x384xf32>
    %658 = tpu.matmul %656, %276, %cst_185 {dimension_numbers = #tpu.dot_dimension_numbers<[1], [0], [0], [1], [0, 0, 1, 1], [], []>} : vector<8x128xf32>, vector<128x384xf32>, vector<8x384xf32> -> vector<8x384xf32>
    %659 = arith.addf %657, %658 : vector<8x384xf32>
    %660 = vector.broadcast %278 : vector<1x384xf32> to vector<8x384xf32>
    %661 = arith.addf %659, %660 : vector<8x384xf32>
    %cst_186 = arith.constant dense<0.000000e+00> : vector<8x384xf32>
    %662 = tpu.matmul %619, %277, %cst_186 {dimension_numbers = #tpu.dot_dimension_numbers<[1], [0], [0], [1], [0, 0, 1, 1], [], []>} : vector<8x128xf32>, vector<128x384xf32>, vector<8x384xf32> -> vector<8x384xf32>
    %663 = vector.broadcast %279 : vector<1x384xf32> to vector<8x384xf32>
    %664 = arith.addf %662, %663 : vector<8x384xf32>
    %665 = vector.extract_strided_slice %661 {offsets = [0, 0], sizes = [8, 128], strides = [1, 1]} : vector<8x384xf32> to vector<8x128xf32>
    %666 = vector.extract_strided_slice %664 {offsets = [0, 0], sizes = [8, 128], strides = [1, 1]} : vector<8x384xf32> to vector<8x128xf32>
    %667 = arith.addf %665, %666 : vector<8x128xf32>
    %668 = arith.negf %667 : vector<8x128xf32>
    %669 = math.exp %668 : vector<8x128xf32>
    %cst_187 = arith.constant 1.000000e+00 : f32
    %670 = vector.broadcast %cst_187 : f32 to vector<8x128xf32>
    %671 = arith.addf %670, %669 : vector<8x128xf32>
    %672 = arith.divf %670, %671 : vector<8x128xf32>
    %673 = vector.extract_strided_slice %661 {offsets = [0, 128], sizes = [8, 128], strides = [1, 1]} : vector<8x384xf32> to vector<8x128xf32>
    %674 = vector.extract_strided_slice %664 {offsets = [0, 128], sizes = [8, 128], strides = [1, 1]} : vector<8x384xf32> to vector<8x128xf32>
    %675 = arith.addf %673, %674 : vector<8x128xf32>
    %676 = arith.negf %675 : vector<8x128xf32>
    %677 = math.exp %676 : vector<8x128xf32>
    %cst_188 = arith.constant 1.000000e+00 : f32
    %678 = vector.broadcast %cst_188 : f32 to vector<8x128xf32>
    %679 = arith.addf %678, %677 : vector<8x128xf32>
    %680 = arith.divf %678, %679 : vector<8x128xf32>
    %681 = vector.extract_strided_slice %661 {offsets = [0, 256], sizes = [8, 128], strides = [1, 1]} : vector<8x384xf32> to vector<8x128xf32>
    %682 = vector.extract_strided_slice %664 {offsets = [0, 256], sizes = [8, 128], strides = [1, 1]} : vector<8x384xf32> to vector<8x128xf32>
    %683 = arith.mulf %672, %682 : vector<8x128xf32>
    %684 = arith.addf %681, %683 : vector<8x128xf32>
    %685 = math.tanh %684 : vector<8x128xf32>
    %cst_189 = arith.constant 1.000000e+00 : f32
    %686 = vector.broadcast %cst_189 : f32 to vector<8x128xf32>
    %687 = arith.subf %686, %680 : vector<8x128xf32>
    %688 = arith.mulf %687, %685 : vector<8x128xf32>
    %689 = arith.mulf %680, %619 : vector<8x128xf32>
    %690 = arith.addf %688, %689 : vector<8x128xf32>
    %cst_190 = arith.constant dense<0.000000e+00> : vector<8x128xf32>
    %691 = tpu.matmul %690, %280, %cst_190 {dimension_numbers = #tpu.dot_dimension_numbers<[1], [0], [0], [1], [0, 0, 1, 1], [], []>} : vector<8x128xf32>, vector<128x128xf32>, vector<8x128xf32> -> vector<8x128xf32>
    %cst_191 = arith.constant dense<0.000000e+00> : vector<8x128xf32>
    %692 = tpu.matmul %656, %281, %cst_191 {dimension_numbers = #tpu.dot_dimension_numbers<[1], [0], [0], [1], [0, 0, 1, 1], [], []>} : vector<8x128xf32>, vector<128x128xf32>, vector<8x128xf32> -> vector<8x128xf32>
    %693 = arith.addf %691, %692 : vector<8x128xf32>
    %694 = vector.broadcast %282 : vector<1x128xf32> to vector<8x128xf32>
    %695 = arith.addf %693, %694 : vector<8x128xf32>
    %c5_192 = arith.constant 5 : index
    %c0_193 = arith.constant 0 : index
    %c0_194 = arith.constant 0 : index
    %696 = vector.load %arg16[%c5_192, %c0_193, %c0_194] : memref<8x8x128xf32, #tpu.memory_space<vmem>>, vector<1x8x128xf32>
    %697 = vector.shape_cast %696 : vector<1x8x128xf32> to vector<8x128xf32>
    %698 = vector.shape_cast %695 : vector<8x128xf32> to vector<1x8x128xf32>
    tpu.vector_store %arg16[%c5_192, %c0_193, %c0_194], %698 {strides = array<i32>} : memref<8x8x128xf32, #tpu.memory_space<vmem>>, vector<1x8x128xf32>,
    %c5_195 = arith.constant 5 : index
    %699 = memref.load %arg3[%c5_195] : memref<8xi32, #tpu.memory_space<smem>>
    %700 = arith.sitofp %699 : i32 to f32
    %c5_196 = arith.constant 5 : index
    %c0_197 = arith.constant 0 : index
    %c0_198 = arith.constant 0 : index
    %701 = vector.load %arg2[%c5_196, %c0_197, %c0_198] : memref<8x8x8xf32, #tpu.memory_space<vmem>>, vector<1x8x8xf32>
    %702 = vector.shape_cast %701 : vector<1x8x8xf32> to vector<8x8xf32>
    %703 = vector.broadcast %700 : f32 to vector<8x8xf32>
    %704 = arith.mulf %703, %702 : vector<8x8xf32>
    %cst_199 = arith.constant 1.000000e+00 : f32
    %705 = arith.subf %cst_199, %700 : f32
    %706 = vector.extract_strided_slice %695 {offsets = [0, 0], sizes = [8, 8], strides = [1, 1]} : vector<8x128xf32> to vector<8x8xf32>
    %707 = vector.broadcast %705 : f32 to vector<8x8xf32>
    %708 = arith.mulf %707, %706 : vector<8x8xf32>
    %709 = arith.addf %704, %708 : vector<8x8xf32>
    %710 = vector.shape_cast %690 : vector<8x128xf32> to vector<8x1x128xf32>
    %711 = vector.broadcast %710 : vector<8x1x128xf32> to vector<8x8x128xf32>
    %712 = arith.mulf %274, %711 : vector<8x8x128xf32>
    %cst_200 = arith.constant dense<0.000000e+00> : vector<8x8xf32>
    %713 = vector.multi_reduction <add>, %712, %cst_200 [2] : vector<8x8x128xf32> to vector<8x8xf32>
    %cst_201 = arith.constant dense<0xFF800000> : vector<8xf32>
    %714 = vector.multi_reduction <maximumf>, %713, %cst_201 [1] : vector<8x8xf32> to vector<8xf32>
    %715 = vector.shape_cast %714 : vector<8xf32> to vector<8x1xf32>
    %716 = vector.broadcast %715 : vector<8x1xf32> to vector<8x8xf32>
    %717 = arith.subf %713, %716 : vector<8x8xf32>
    %718 = math.exp %717 : vector<8x8xf32>
    %cst_202 = arith.constant dense<0.000000e+00> : vector<8xf32>
    %719 = vector.multi_reduction <add>, %718, %cst_202 [1] : vector<8x8xf32> to vector<8xf32>
    %720 = vector.shape_cast %719 : vector<8xf32> to vector<8x1xf32>
    %721 = tpu.reciprocal %720 {approx = true} : vector<8x1xf32> -> vector<8x1xf32>
    %722 = vector.broadcast %721 : vector<8x1xf32> to vector<8x8xf32>
    %723 = arith.mulf %718, %722 : vector<8x8xf32>
    %724 = vector.shape_cast %723 : vector<8x8xf32> to vector<8x8x1xf32>
    %725 = vector.broadcast %724 : vector<8x8x1xf32> to vector<8x8x128xf32>
    %726 = arith.mulf %725, %274 : vector<8x8x128xf32>
    %cst_203 = arith.constant dense<0.000000e+00> : vector<8x128xf32>
    %727 = vector.multi_reduction <add>, %726, %cst_203 [1] : vector<8x8x128xf32> to vector<8x128xf32>
    %cst_204 = arith.constant dense<0.000000e+00> : vector<8x384xf32>
    %728 = tpu.matmul %709, %275, %cst_204 {dimension_numbers = #tpu.dot_dimension_numbers<[1], [0], [0], [1], [0, 0, 1, 1], [], []>} : vector<8x8xf32>, vector<8x384xf32>, vector<8x384xf32> -> vector<8x384xf32>
    %cst_205 = arith.constant dense<0.000000e+00> : vector<8x384xf32>
    %729 = tpu.matmul %727, %276, %cst_205 {dimension_numbers = #tpu.dot_dimension_numbers<[1], [0], [0], [1], [0, 0, 1, 1], [], []>} : vector<8x128xf32>, vector<128x384xf32>, vector<8x384xf32> -> vector<8x384xf32>
    %730 = arith.addf %728, %729 : vector<8x384xf32>
    %731 = vector.broadcast %278 : vector<1x384xf32> to vector<8x384xf32>
    %732 = arith.addf %730, %731 : vector<8x384xf32>
    %cst_206 = arith.constant dense<0.000000e+00> : vector<8x384xf32>
    %733 = tpu.matmul %690, %277, %cst_206 {dimension_numbers = #tpu.dot_dimension_numbers<[1], [0], [0], [1], [0, 0, 1, 1], [], []>} : vector<8x128xf32>, vector<128x384xf32>, vector<8x384xf32> -> vector<8x384xf32>
    %734 = vector.broadcast %279 : vector<1x384xf32> to vector<8x384xf32>
    %735 = arith.addf %733, %734 : vector<8x384xf32>
    %736 = vector.extract_strided_slice %732 {offsets = [0, 0], sizes = [8, 128], strides = [1, 1]} : vector<8x384xf32> to vector<8x128xf32>
    %737 = vector.extract_strided_slice %735 {offsets = [0, 0], sizes = [8, 128], strides = [1, 1]} : vector<8x384xf32> to vector<8x128xf32>
    %738 = arith.addf %736, %737 : vector<8x128xf32>
    %739 = arith.negf %738 : vector<8x128xf32>
    %740 = math.exp %739 : vector<8x128xf32>
    %cst_207 = arith.constant 1.000000e+00 : f32
    %741 = vector.broadcast %cst_207 : f32 to vector<8x128xf32>
    %742 = arith.addf %741, %740 : vector<8x128xf32>
    %743 = arith.divf %741, %742 : vector<8x128xf32>
    %744 = vector.extract_strided_slice %732 {offsets = [0, 128], sizes = [8, 128], strides = [1, 1]} : vector<8x384xf32> to vector<8x128xf32>
    %745 = vector.extract_strided_slice %735 {offsets = [0, 128], sizes = [8, 128], strides = [1, 1]} : vector<8x384xf32> to vector<8x128xf32>
    %746 = arith.addf %744, %745 : vector<8x128xf32>
    %747 = arith.negf %746 : vector<8x128xf32>
    %748 = math.exp %747 : vector<8x128xf32>
    %cst_208 = arith.constant 1.000000e+00 : f32
    %749 = vector.broadcast %cst_208 : f32 to vector<8x128xf32>
    %750 = arith.addf %749, %748 : vector<8x128xf32>
    %751 = arith.divf %749, %750 : vector<8x128xf32>
    %752 = vector.extract_strided_slice %732 {offsets = [0, 256], sizes = [8, 128], strides = [1, 1]} : vector<8x384xf32> to vector<8x128xf32>
    %753 = vector.extract_strided_slice %735 {offsets = [0, 256], sizes = [8, 128], strides = [1, 1]} : vector<8x384xf32> to vector<8x128xf32>
    %754 = arith.mulf %743, %753 : vector<8x128xf32>
    %755 = arith.addf %752, %754 : vector<8x128xf32>
    %756 = math.tanh %755 : vector<8x128xf32>
    %cst_209 = arith.constant 1.000000e+00 : f32
    %757 = vector.broadcast %cst_209 : f32 to vector<8x128xf32>
    %758 = arith.subf %757, %751 : vector<8x128xf32>
    %759 = arith.mulf %758, %756 : vector<8x128xf32>
    %760 = arith.mulf %751, %690 : vector<8x128xf32>
    %761 = arith.addf %759, %760 : vector<8x128xf32>
    %cst_210 = arith.constant dense<0.000000e+00> : vector<8x128xf32>
    %762 = tpu.matmul %761, %280, %cst_210 {dimension_numbers = #tpu.dot_dimension_numbers<[1], [0], [0], [1], [0, 0, 1, 1], [], []>} : vector<8x128xf32>, vector<128x128xf32>, vector<8x128xf32> -> vector<8x128xf32>
    %cst_211 = arith.constant dense<0.000000e+00> : vector<8x128xf32>
    %763 = tpu.matmul %727, %281, %cst_211 {dimension_numbers = #tpu.dot_dimension_numbers<[1], [0], [0], [1], [0, 0, 1, 1], [], []>} : vector<8x128xf32>, vector<128x128xf32>, vector<8x128xf32> -> vector<8x128xf32>
    %764 = arith.addf %762, %763 : vector<8x128xf32>
    %765 = vector.broadcast %282 : vector<1x128xf32> to vector<8x128xf32>
    %766 = arith.addf %764, %765 : vector<8x128xf32>
    %c6_212 = arith.constant 6 : index
    %c0_213 = arith.constant 0 : index
    %c0_214 = arith.constant 0 : index
    %767 = vector.load %arg16[%c6_212, %c0_213, %c0_214] : memref<8x8x128xf32, #tpu.memory_space<vmem>>, vector<1x8x128xf32>
    %768 = vector.shape_cast %767 : vector<1x8x128xf32> to vector<8x128xf32>
    %769 = vector.shape_cast %766 : vector<8x128xf32> to vector<1x8x128xf32>
    tpu.vector_store %arg16[%c6_212, %c0_213, %c0_214], %769 {strides = array<i32>} : memref<8x8x128xf32, #tpu.memory_space<vmem>>, vector<1x8x128xf32>,
    %c6_215 = arith.constant 6 : index
    %770 = memref.load %arg3[%c6_215] : memref<8xi32, #tpu.memory_space<smem>>
    %771 = arith.sitofp %770 : i32 to f32
    %c6_216 = arith.constant 6 : index
    %c0_217 = arith.constant 0 : index
    %c0_218 = arith.constant 0 : index
    %772 = vector.load %arg2[%c6_216, %c0_217, %c0_218] : memref<8x8x8xf32, #tpu.memory_space<vmem>>, vector<1x8x8xf32>
    %773 = vector.shape_cast %772 : vector<1x8x8xf32> to vector<8x8xf32>
    %774 = vector.broadcast %771 : f32 to vector<8x8xf32>
    %775 = arith.mulf %774, %773 : vector<8x8xf32>
    %cst_219 = arith.constant 1.000000e+00 : f32
    %776 = arith.subf %cst_219, %771 : f32
    %777 = vector.extract_strided_slice %766 {offsets = [0, 0], sizes = [8, 8], strides = [1, 1]} : vector<8x128xf32> to vector<8x8xf32>
    %778 = vector.broadcast %776 : f32 to vector<8x8xf32>
    %779 = arith.mulf %778, %777 : vector<8x8xf32>
    %780 = arith.addf %775, %779 : vector<8x8xf32>
    %781 = vector.shape_cast %761 : vector<8x128xf32> to vector<8x1x128xf32>
    %782 = vector.broadcast %781 : vector<8x1x128xf32> to vector<8x8x128xf32>
    %783 = arith.mulf %274, %782 : vector<8x8x128xf32>
    %cst_220 = arith.constant dense<0.000000e+00> : vector<8x8xf32>
    %784 = vector.multi_reduction <add>, %783, %cst_220 [2] : vector<8x8x128xf32> to vector<8x8xf32>
    %cst_221 = arith.constant dense<0xFF800000> : vector<8xf32>
    %785 = vector.multi_reduction <maximumf>, %784, %cst_221 [1] : vector<8x8xf32> to vector<8xf32>
    %786 = vector.shape_cast %785 : vector<8xf32> to vector<8x1xf32>
    %787 = vector.broadcast %786 : vector<8x1xf32> to vector<8x8xf32>
    %788 = arith.subf %784, %787 : vector<8x8xf32>
    %789 = math.exp %788 : vector<8x8xf32>
    %cst_222 = arith.constant dense<0.000000e+00> : vector<8xf32>
    %790 = vector.multi_reduction <add>, %789, %cst_222 [1] : vector<8x8xf32> to vector<8xf32>
    %791 = vector.shape_cast %790 : vector<8xf32> to vector<8x1xf32>
    %792 = tpu.reciprocal %791 {approx = true} : vector<8x1xf32> -> vector<8x1xf32>
    %793 = vector.broadcast %792 : vector<8x1xf32> to vector<8x8xf32>
    %794 = arith.mulf %789, %793 : vector<8x8xf32>
    %795 = vector.shape_cast %794 : vector<8x8xf32> to vector<8x8x1xf32>
    %796 = vector.broadcast %795 : vector<8x8x1xf32> to vector<8x8x128xf32>
    %797 = arith.mulf %796, %274 : vector<8x8x128xf32>
    %cst_223 = arith.constant dense<0.000000e+00> : vector<8x128xf32>
    %798 = vector.multi_reduction <add>, %797, %cst_223 [1] : vector<8x8x128xf32> to vector<8x128xf32>
    %cst_224 = arith.constant dense<0.000000e+00> : vector<8x384xf32>
    %799 = tpu.matmul %780, %275, %cst_224 {dimension_numbers = #tpu.dot_dimension_numbers<[1], [0], [0], [1], [0, 0, 1, 1], [], []>} : vector<8x8xf32>, vector<8x384xf32>, vector<8x384xf32> -> vector<8x384xf32>
    %cst_225 = arith.constant dense<0.000000e+00> : vector<8x384xf32>
    %800 = tpu.matmul %798, %276, %cst_225 {dimension_numbers = #tpu.dot_dimension_numbers<[1], [0], [0], [1], [0, 0, 1, 1], [], []>} : vector<8x128xf32>, vector<128x384xf32>, vector<8x384xf32> -> vector<8x384xf32>
    %801 = arith.addf %799, %800 : vector<8x384xf32>
    %802 = vector.broadcast %278 : vector<1x384xf32> to vector<8x384xf32>
    %803 = arith.addf %801, %802 : vector<8x384xf32>
    %cst_226 = arith.constant dense<0.000000e+00> : vector<8x384xf32>
    %804 = tpu.matmul %761, %277, %cst_226 {dimension_numbers = #tpu.dot_dimension_numbers<[1], [0], [0], [1], [0, 0, 1, 1], [], []>} : vector<8x128xf32>, vector<128x384xf32>, vector<8x384xf32> -> vector<8x384xf32>
    %805 = vector.broadcast %279 : vector<1x384xf32> to vector<8x384xf32>
    %806 = arith.addf %804, %805 : vector<8x384xf32>
    %807 = vector.extract_strided_slice %803 {offsets = [0, 0], sizes = [8, 128], strides = [1, 1]} : vector<8x384xf32> to vector<8x128xf32>
    %808 = vector.extract_strided_slice %806 {offsets = [0, 0], sizes = [8, 128], strides = [1, 1]} : vector<8x384xf32> to vector<8x128xf32>
    %809 = arith.addf %807, %808 : vector<8x128xf32>
    %810 = arith.negf %809 : vector<8x128xf32>
    %811 = math.exp %810 : vector<8x128xf32>
    %cst_227 = arith.constant 1.000000e+00 : f32
    %812 = vector.broadcast %cst_227 : f32 to vector<8x128xf32>
    %813 = arith.addf %812, %811 : vector<8x128xf32>
    %814 = arith.divf %812, %813 : vector<8x128xf32>
    %815 = vector.extract_strided_slice %803 {offsets = [0, 128], sizes = [8, 128], strides = [1, 1]} : vector<8x384xf32> to vector<8x128xf32>
    %816 = vector.extract_strided_slice %806 {offsets = [0, 128], sizes = [8, 128], strides = [1, 1]} : vector<8x384xf32> to vector<8x128xf32>
    %817 = arith.addf %815, %816 : vector<8x128xf32>
    %818 = arith.negf %817 : vector<8x128xf32>
    %819 = math.exp %818 : vector<8x128xf32>
    %cst_228 = arith.constant 1.000000e+00 : f32
    %820 = vector.broadcast %cst_228 : f32 to vector<8x128xf32>
    %821 = arith.addf %820, %819 : vector<8x128xf32>
    %822 = arith.divf %820, %821 : vector<8x128xf32>
    %823 = vector.extract_strided_slice %803 {offsets = [0, 256], sizes = [8, 128], strides = [1, 1]} : vector<8x384xf32> to vector<8x128xf32>
    %824 = vector.extract_strided_slice %806 {offsets = [0, 256], sizes = [8, 128], strides = [1, 1]} : vector<8x384xf32> to vector<8x128xf32>
    %825 = arith.mulf %814, %824 : vector<8x128xf32>
    %826 = arith.addf %823, %825 : vector<8x128xf32>
    %827 = math.tanh %826 : vector<8x128xf32>
    %cst_229 = arith.constant 1.000000e+00 : f32
    %828 = vector.broadcast %cst_229 : f32 to vector<8x128xf32>
    %829 = arith.subf %828, %822 : vector<8x128xf32>
    %830 = arith.mulf %829, %827 : vector<8x128xf32>
    %831 = arith.mulf %822, %761 : vector<8x128xf32>
    %832 = arith.addf %830, %831 : vector<8x128xf32>
    %cst_230 = arith.constant dense<0.000000e+00> : vector<8x128xf32>
    %833 = tpu.matmul %832, %280, %cst_230 {dimension_numbers = #tpu.dot_dimension_numbers<[1], [0], [0], [1], [0, 0, 1, 1], [], []>} : vector<8x128xf32>, vector<128x128xf32>, vector<8x128xf32> -> vector<8x128xf32>
    %cst_231 = arith.constant dense<0.000000e+00> : vector<8x128xf32>
    %834 = tpu.matmul %798, %281, %cst_231 {dimension_numbers = #tpu.dot_dimension_numbers<[1], [0], [0], [1], [0, 0, 1, 1], [], []>} : vector<8x128xf32>, vector<128x128xf32>, vector<8x128xf32> -> vector<8x128xf32>
    %835 = arith.addf %833, %834 : vector<8x128xf32>
    %836 = vector.broadcast %282 : vector<1x128xf32> to vector<8x128xf32>
    %837 = arith.addf %835, %836 : vector<8x128xf32>
    %c7_232 = arith.constant 7 : index
    %c0_233 = arith.constant 0 : index
    %c0_234 = arith.constant 0 : index
    %838 = vector.load %arg16[%c7_232, %c0_233, %c0_234] : memref<8x8x128xf32, #tpu.memory_space<vmem>>, vector<1x8x128xf32>
    %839 = vector.shape_cast %838 : vector<1x8x128xf32> to vector<8x128xf32>
    %840 = vector.shape_cast %837 : vector<8x128xf32> to vector<1x8x128xf32>
    tpu.vector_store %arg16[%c7_232, %c0_233, %c0_234], %840 {strides = array<i32>} : memref<8x8x128xf32, #tpu.memory_space<vmem>>, vector<1x8x128xf32>,
    return
  }
}

</mosaic_0001>

<llo_original>
// kernel: seq2seq_forward.1
$region0: #{seq2seq_forward.1}
  #allocation0 [shape = 'u32[]', space=smem, size = 0x4, offset = 0x4, fixed_abs, tag = 'smem constant byte address 0x4 - core index']
  #allocation1 [shape = 'u32[144,128]{1,0:T(1,128)}', space=vmem, size = 0x12000, scoped, tag = 'internal scratch']
  #allocation2 [shape = 'f32[8,8,128]{2,1,0:T(8,128)}', space=vmem, size = 0x8000, scoped, tag = 'scratch operand']
  %s0 = inlined_call_operand.vmem [shape: f32[64,8], index: 0, kind: input, shape index: {}]
  %s1 = inlined_call_operand.vmem [shape: f32[8,8], index: 1, kind: input, shape index: {}]
  %s2 = inlined_call_operand.vmem [shape: f32[8,8,8], index: 2, kind: input, shape index: {}]
  %s3 = inlined_call_operand.vmem [shape: s32[8], index: 3, kind: input, shape index: {}]
  %s4 = inlined_call_operand.vmem [shape: f32[8,384], index: 4, kind: input, shape index: {}]
  %s5 = inlined_call_operand.vmem [shape: f32[128,384], index: 5, kind: input, shape index: {}]
  %s6 = inlined_call_operand.vmem [shape: f32[1,384], index: 6, kind: input, shape index: {}]
  %s7 = inlined_call_operand.hbm [shape: f32[1,384], index: 7, kind: input, shape index: {}]
  %s8 = inlined_call_operand.vmem [shape: f32[8,384], index: 8, kind: input, shape index: {}]
  %s9 = inlined_call_operand.vmem [shape: f32[128,384], index: 9, kind: input, shape index: {}]
  %s10 = inlined_call_operand.vmem [shape: f32[128,384], index: 10, kind: input, shape index: {}]
  %s11 = inlined_call_operand.vmem [shape: f32[1,384], index: 11, kind: input, shape index: {}]
  %s12 = inlined_call_operand.vmem [shape: f32[1,384], index: 12, kind: input, shape index: {}]
  %s13 = inlined_call_operand.vmem [shape: f32[128,128], index: 13, kind: input, shape index: {}]
  %s14 = inlined_call_operand.vmem [shape: f32[128,128], index: 14, kind: input, shape index: {}]
  %s15 = inlined_call_operand.vmem [shape: f32[1,128], index: 15, kind: input, shape index: {}]
  %s16 = inlined_call_operand.hbm [shape: f32[8,8,128], index: 16, kind: output, shape index: {}]
  %s17 = sld [smem:[#allocation0]]
  $region82: #{seq2seq_forward.1} parent=0
    _
  %s19 = ssub.s32 1, %s17
  %s20 = scalar_select 0, %s19, %s17
  $region1: #{seq2seq_forward.1} parent=0
    #allocation3 [shape = 'u8[512]{0}', space=smem, size = 0x200, scoped, tag = 'input window, operand 3, single buffered']
    #allocation4 [shape = 's32[1]{0}', space=sflag, size = 0x4, scoped, tag = 'scoped memory for seq2seq_forward.1']
    #allocation5 [shape = 's32[1]{0}', space=sflag, size = 0x4, scoped, tag = 'scoped memory for seq2seq_forward.1']
    #allocation6 [shape = 's32[1]{0}', space=sflag, size = 0x4, scoped, tag = 'scoped memory for seq2seq_forward.1']
    #allocation7 [shape = 'u8[1536]{0}', space=vmem, size = 0x800, scoped, tag = 'input window, operand 7, single buffered']
    #allocation8 [shape = 'u8[32768]{0}', space=vmem, size = 0x8000, scoped, tag = 'output window, operand 0, single buffered']
    %21 = vsyncpa [#allocation6], 0
    %22 = vsyncpa [#allocation4], 0
    %23 = vsyncpa [#allocation5], 0
    // Predicated region
    $region2: #{seq2seq_forward.1} parent=1 // pred_check
      _
    $region3: #{seq2seq_forward.1} parent=1 // pred_check_branch
      %25 = sbr.rel (0) target = $region5
    $region4: #{seq2seq_forward.1} parent=1 // pred_region
      _
    $region5: #{seq2seq_forward.1} parent=1 // pred_fallthru
      _
    // Predicated region
    $region6: #{seq2seq_forward.1} parent=1 // pred_check
      _
    $region7: #{seq2seq_forward.1} parent=1 // pred_check_branch
      %27 = sbr.rel (0) target = $region9
    $region8: #{seq2seq_forward.1} parent=1 // pred_region
      _
    $region9: #{seq2seq_forward.1} parent=1 // pred_fallthru
      _
    // Predicated region
    $region10: #{seq2seq_forward.1} parent=1 // pred_check
      _
    $region11: #{seq2seq_forward.1} parent=1 // pred_check_branch
      %29 = sbr.rel (0) target = $region13
    $region12: #{seq2seq_forward.1} parent=1 // pred_region
      _
    $region13: #{seq2seq_forward.1} parent=1 // pred_fallthru
      _
    // Predicated region
    $region14: #{seq2seq_forward.1} parent=1 // pred_check
      _
    $region15: #{seq2seq_forward.1} parent=1 // pred_check_branch
      %31 = sbr.rel (0) target = $region17
    $region16: #{seq2seq_forward.1} parent=1 // pred_region
      %s33 = ssub.s32 16, 16
      %34 = vsyncadd [#allocation6], %s33
      %s36 = sshll.u32 %s3, 4
      %s37 = int_to_ptr.vmem [resolvable:$true] %s36
      %39 = dma.vmem_to_smem %s37, 16, [#allocation3], [#allocation6]
    $region17: #{seq2seq_forward.1} parent=1 // pred_fallthru
      _
    // Predicated region
    $region18: #{seq2seq_forward.1} parent=1 // pred_check
      _
    $region19: #{seq2seq_forward.1} parent=1 // pred_check_branch
      %41 = sbr.rel (0) target = $region21
    $region20: #{seq2seq_forward.1} parent=1 // pred_region
      _
    $region21: #{seq2seq_forward.1} parent=1 // pred_fallthru
      _
    // Predicated region
    $region22: #{seq2seq_forward.1} parent=1 // pred_check
      _
    $region23: #{seq2seq_forward.1} parent=1 // pred_check_branch
      %43 = sbr.rel (0) target = $region25
    $region24: #{seq2seq_forward.1} parent=1 // pred_region
      _
    $region25: #{seq2seq_forward.1} parent=1 // pred_fallthru
      _
    // Predicated region
    $region26: #{seq2seq_forward.1} parent=1 // pred_check
      _
    $region27: #{seq2seq_forward.1} parent=1 // pred_check_branch
      %45 = sbr.rel (0) target = $region29
    $region28: #{seq2seq_forward.1} parent=1 // pred_region
      _
    $region29: #{seq2seq_forward.1} parent=1 // pred_fallthru
      _
    // Predicated region
    $region30: #{seq2seq_forward.1} parent=1 // pred_check
      _
    $region31: #{seq2seq_forward.1} parent=1 // pred_check_branch
      %47 = sbr.rel (0) target = $region33
    $region32: #{seq2seq_forward.1} parent=1 // pred_region
      %s49 = ssub.s32 48, 48
      %50 = vsyncadd [#allocation4], %s49
      %s52 = sshll.u32 [#allocation7], 4
      %s53 = int_to_ptr.vmem [resolvable:$true] %s52
      %55 = dma.hbm_to_vmem [thread:$0]  %s7, 48, %s53, [#allocation4]
    $region33: #{seq2seq_forward.1} parent=1 // pred_fallthru
      _
    // Predicated region
    $region34: #{seq2seq_forward.1} parent=1 // pred_check
      _
    $region35: #{seq2seq_forward.1} parent=1 // pred_check_branch
      %57 = sbr.rel (0) target = $region37
    $region36: #{seq2seq_forward.1} parent=1 // pred_region
      _
    $region37: #{seq2seq_forward.1} parent=1 // pred_fallthru
      _
    // Predicated region
    $region38: #{seq2seq_forward.1} parent=1 // pred_check
      _
    $region39: #{seq2seq_forward.1} parent=1 // pred_check_branch
      %59 = sbr.rel (0) target = $region41
    $region40: #{seq2seq_forward.1} parent=1 // pred_region
      _
    $region41: #{seq2seq_forward.1} parent=1 // pred_fallthru
      _
    // Predicated region
    $region42: #{seq2seq_forward.1} parent=1 // pred_check
      _
    $region43: #{seq2seq_forward.1} parent=1 // pred_check_branch
      %61 = sbr.rel (0) target = $region45
    $region44: #{seq2seq_forward.1} parent=1 // pred_region
      _
    $region45: #{seq2seq_forward.1} parent=1 // pred_fallthru
      _
    // Predicated region
    $region46: #{seq2seq_forward.1} parent=1 // pred_check
      _
    $region47: #{seq2seq_forward.1} parent=1 // pred_check_branch
      %63 = sbr.rel (0) target = $region49
    $region48: #{seq2seq_forward.1} parent=1 // pred_region
      _
    $region49: #{seq2seq_forward.1} parent=1 // pred_fallthru
      _
    // Predicated region
    $region50: #{seq2seq_forward.1} parent=1 // pred_check
      _
    $region51: #{seq2seq_forward.1} parent=1 // pred_check_branch
      %65 = sbr.rel (0) target = $region53
    $region52: #{seq2seq_forward.1} parent=1 // pred_region
      _
    $region53: #{seq2seq_forward.1} parent=1 // pred_fallthru
      _
    // Predicated region
    $region54: #{seq2seq_forward.1} parent=1 // pred_check
      _
    $region55: #{seq2seq_forward.1} parent=1 // pred_check_branch
      %67 = sbr.rel (0) target = $region57
    $region56: #{seq2seq_forward.1} parent=1 // pred_region
      _
    $region57: #{seq2seq_forward.1} parent=1 // pred_fallthru
      _
    // Predicated region
    $region58: #{seq2seq_forward.1} parent=1 // pred_check
      _
    $region59: #{seq2seq_forward.1} parent=1 // pred_check_branch
      %69 = sbr.rel (0) target = $region61
    $region60: #{seq2seq_forward.1} parent=1 // pred_region
      _
    $region61: #{seq2seq_forward.1} parent=1 // pred_fallthru
      _
    // Predicated region
    $region62: #{seq2seq_forward.1} parent=1 // pred_check
      _
    $region63: #{seq2seq_forward.1} parent=1 // pred_check_branch
      %71 = sbr.rel (0) target = $region65
    $region64: #{seq2seq_forward.1} parent=1 // pred_region
      _
    $region65: #{seq2seq_forward.1} parent=1 // pred_fallthru
      _
    // Predicated region
    $region66: #{seq2seq_forward.1} parent=1 // pred_check
      _
    $region67: #{seq2seq_forward.1} parent=1 // pred_check_branch
      %73 = sbr.rel (0) target = $region69
    $region68: #{seq2seq_forward.1} parent=1 // pred_region
      %74 = dma.done [#allocation6], 16
    $region69: #{seq2seq_forward.1} parent=1 // pred_fallthru
      _
    // Predicated region
    $region70: #{seq2seq_forward.1} parent=1 // pred_check
      _
    $region71: #{seq2seq_forward.1} parent=1 // pred_check_branch
      %76 = sbr.rel (0) target = $region73
    $region72: #{seq2seq_forward.1} parent=1 // pred_region
      %77 = dma.done [#allocation4], 48
    $region73: #{seq2seq_forward.1} parent=1 // pred_fallthru
      _
    %78 = sfence
    %v79 = vld [vmem:[%s5] sm:$0xff]
    %v80 = vld [vmem:[%s5 + $0x8] sm:$0xff]
    %v81 = vld [vmem:[%s5 + $0x10] sm:$0xff]
    %v82 = vld [vmem:[%s5 + $0x18] sm:$0xff]
    %v83 = vld [vmem:[%s5 + $0x20] sm:$0xff]
    %v84 = vld [vmem:[%s5 + $0x28] sm:$0xff]
    %v85 = vld [vmem:[%s5 + $0x30] sm:$0xff]
    %v86 = vld [vmem:[%s5 + $0x38] sm:$0xff]
    %v87 = vld [vmem:[%s5 + $0x40] sm:$0xff]
    %v88 = vld [vmem:[%s5 + $0x48] sm:$0xff]
    %v89 = vld [vmem:[%s5 + $0x50] sm:$0xff]
    %v90 = vld [vmem:[%s5 + $0x58] sm:$0xff]
    %v91 = vld [vmem:[%s5 + $0x60] sm:$0xff]
    %v92 = vld [vmem:[%s5 + $0x68] sm:$0xff]
    %v93 = vld [vmem:[%s5 + $0x70] sm:$0xff]
    %v94 = vld [vmem:[%s5 + $0x78] sm:$0xff]
    %v95 = vld [vmem:[%s5 + $0x80] sm:$0xff]
    %v96 = vld [vmem:[%s5 + $0x88] sm:$0xff]
    %v97 = vld [vmem:[%s5 + $0x90] sm:$0xff]
    %v98 = vld [vmem:[%s5 + $0x98] sm:$0xff]
    %v99 = vld [vmem:[%s5 + $0xa0] sm:$0xff]
    %v100 = vld [vmem:[%s5 + $0xa8] sm:$0xff]
    %v101 = vld [vmem:[%s5 + $0xb0] sm:$0xff]
    %v102 = vld [vmem:[%s5 + $0xb8] sm:$0xff]
    %v103 = vld [vmem:[%s5 + $0xc0] sm:$0xff]
    %v104 = vld [vmem:[%s5 + $0xc8] sm:$0xff]
    %v105 = vld [vmem:[%s5 + $0xd0] sm:$0xff]
    %v106 = vld [vmem:[%s5 + $0xd8] sm:$0xff]
    %v107 = vld [vmem:[%s5 + $0xe0] sm:$0xff]
    %v108 = vld [vmem:[%s5 + $0xe8] sm:$0xff]
    %v109 = vld [vmem:[%s5 + $0xf0] sm:$0xff]
    %v110 = vld [vmem:[%s5 + $0xf8] sm:$0xff]
    %v111 = vld [vmem:[%s5 + $0x100] sm:$0xff]
    %v112 = vld [vmem:[%s5 + $0x108] sm:$0xff]
    %v113 = vld [vmem:[%s5 + $0x110] sm:$0xff]
    %v114 = vld [vmem:[%s5 + $0x118] sm:$0xff]
    %v115 = vld [vmem:[%s5 + $0x120] sm:$0xff]
    %v116 = vld [vmem:[%s5 + $0x128] sm:$0xff]
    %v117 = vld [vmem:[%s5 + $0x130] sm:$0xff]
    %v118 = vld [vmem:[%s5 + $0x138] sm:$0xff]
    %v119 = vld [vmem:[%s5 + $0x140] sm:$0xff]
    %v120 = vld [vmem:[%s5 + $0x148] sm:$0xff]
    %v121 = vld [vmem:[%s5 + $0x150] sm:$0xff]
    %v122 = vld [vmem:[%s5 + $0x158] sm:$0xff]
    %v123 = vld [vmem:[%s5 + $0x160] sm:$0xff]
    %v124 = vld [vmem:[%s5 + $0x168] sm:$0xff]
    %v125 = vld [vmem:[%s5 + $0x170] sm:$0xff]
    %v126 = vld [vmem:[%s5 + $0x178] sm:$0xff]
    %v127 = vld [vmem:[#allocation7] sm:$0x7]
    %v128 = vld [vmem:[%s0] sm:$0xff]
    %v129 = vld [vmem:[%s0 + $0x8] sm:$0xff]
    %v130 = vld [vmem:[%s0 + $0x10] sm:$0xff]
    %v131 = vld [vmem:[%s0 + $0x18] sm:$0xff]
    %v132 = vld [vmem:[%s0 + $0x20] sm:$0xff]
    %v133 = vld [vmem:[%s0 + $0x28] sm:$0xff]
    %v134 = vld [vmem:[%s0 + $0x30] sm:$0xff]
    %v135 = vld [vmem:[%s0 + $0x38] sm:$0xff]
    %v136 = vld [vmem:[%s4] sm:$0xff]
    %v137 = vld [vmem:[%s4 + $0x8] sm:$0xff]
    %v138 = vld [vmem:[%s4 + $0x10] sm:$0xff]
    %v139 = vld [vmem:[%s6] sm:$0x7]
    %v141 = vlaneseq
    %v142 = vshrl.u32 %v141, 7
    %v143 = vsub.s32 0, %v142
    %v144 = vrot.slane %v139, %v143
    %v145 = vlaneseq
    %v146 = vshrl.u32 %v145, 7
    %v147 = vsub.s32 1, %v146
    %v148 = vrot.slane %v139, %v147
    %v149 = vlaneseq
    %v150 = vshrl.u32 %v149, 7
    %v151 = vsub.s32 2, %v150
    %v152 = vrot.slane %v139, %v151
    %vm156 = vcmask 64512
    %v158 = vsel %vm156, %v128, 0
    %v161 = vsel %vm156, %v129, 0
    %v164 = vsel %vm156, %v130, 0
    %v167 = vsel %vm156, %v131, 0
    %v170 = vsel %vm156, %v132, 0
    %v173 = vsel %vm156, %v133, 0
    %v176 = vsel %vm156, %v134, 0
    %v179 = vsel %vm156, %v135, 0
    %181 = vmatprep.subr.mxu0 %v137
    %182 = vmatpush1.msra.mxu0 %v136
    %183 = vmatprep.subr.mxu0 0.0
    %184 = vmatpush1.msra.mxu0 0.0
    %185 = vmatprep.subr.mxu0 0.0
    %186 = vmatpush1.msra.mxu0 0.0
    %187 = vmatprep.subr.mxu0 0.0
    %188 = vmatpush1.msra.mxu0 0.0
    %189 = vmatprep.subr.mxu0 0.0
    %190 = vmatpush1.msra.mxu0 0.0
    %191 = vmatprep.subr.mxu0 0.0
    %192 = vmatpush1.msra.mxu0 0.0
    %193 = vmatprep.subr.mxu0 0.0
    %194 = vmatpush1.msra.mxu0 0.0
    %195 = vmatprep.subr.mxu0 0.0
    %196 = vmatpush1.msra.mxu0 0.0
    %197 = vmatprep.subr.mxu0 0.0
    %198 = vmatpush1.msra.mxu0 0.0
    %199 = vmatprep.subr.mxu0 0.0
    %200 = vmatpush1.msra.mxu0 0.0
    %201 = vmatprep.subr.mxu0 0.0
    %202 = vmatpush1.msra.mxu0 0.0
    %203 = vmatprep.subr.mxu0 0.0
    %204 = vmatpush1.msra.mxu0 0.0
    %205 = vmatprep.subr.mxu0 0.0
    %206 = vmatpush1.msra.mxu0 0.0
    %207 = vmatprep.subr.mxu0 0.0
    %208 = vmatpush1.msra.mxu0 0.0
    %209 = vmatprep.subr.mxu0 0.0
    %210 = vmatpush1.msra.mxu0 0.0
    %211 = vmatprep.subr.mxu0 0.0
    %212 = vmatpush1.msra.mxu0 0.0
    %213 = vmatprep.subr.mxu0 0.0
    %214 = vmatpush1.msra.mxu0 0.0
    %215 = vmatprep.subr.mxu0 0.0
    %216 = vmatpush1.msra.mxu0 0.0
    %217 = vmatprep.subr.mxu0 0.0
    %218 = vmatpush1.msra.mxu0 0.0
    %219 = vmatprep.subr.mxu0 0.0
    %220 = vmatpush1.msra.mxu0 0.0
    %221 = vmatprep.subr.mxu0 0.0
    %222 = vmatpush1.msra.mxu0 0.0
    %223 = vmatprep.subr.mxu0 0.0
    %224 = vmatpush1.msra.mxu0 0.0
    %225 = vmatprep.subr.mxu0 0.0
    %226 = vmatpush1.msra.mxu0 0.0
    %227 = vmatprep.subr.mxu0 0.0
    %228 = vmatpush1.msra.mxu0 0.0
    %229 = vmatprep.subr.mxu0 0.0
    %230 = vmatpush1.msra.mxu0 0.0
    %231 = vmatprep.subr.mxu0 0.0
    %232 = vmatpush1.msra.mxu0 0.0
    %233 = vmatprep.subr.mxu0 0.0
    %234 = vmatpush1.msra.mxu0 0.0
    %235 = vmatprep.subr.mxu0 0.0
    %236 = vmatpush1.msra.mxu0 0.0
    %237 = vmatprep.subr.mxu0 0.0
    %238 = vmatpush1.msra.mxu0 0.0
    %239 = vmatprep.subr.mxu0 0.0
    %240 = vmatpush1.msra.mxu0 0.0
    %241 = vmatprep.subr.mxu0 0.0
    %242 = vmatpush1.msra.mxu0 0.0
    %243 = vmatprep.subr.mxu0 0.0
    %244 = vmatpush1.msra.mxu0 0.0
    %245 = vmatprep.mubr.f32.mxu0 0.0
    %246 = vmatmul.mubr.f32.gmra.mrb[0].mxu0 %v158
    %v247 = vpop.f32.mrb[0].mxu0
    %v248 = vadd.f32 %v144, %v247
    %v249 = vpop.f32.mrb[0].mxu0
    %v250 = vadd.f32 %v148, %v249
    %251 = vmatprep.mubr.f32.mxu0 0.0
    %252 = vmatmul.mubr.f32.gmra.mrb[0].mxu0 %v161
    %v253 = vpop.f32.mrb[0].mxu0
    %v254 = vadd.f32 %v144, %v253
    %v255 = vpop.f32.mrb[0].mxu0
    %v256 = vadd.f32 %v148, %v255
    %257 = vmatprep.mubr.f32.mxu0 0.0
    %258 = vmatmul.mubr.f32.gmra.mrb[0].mxu0 %v164
    %v259 = vpop.f32.mrb[0].mxu0
    %v260 = vadd.f32 %v144, %v259
    %v261 = vpop.f32.mrb[0].mxu0
    %v262 = vadd.f32 %v148, %v261
    %263 = vmatprep.mubr.f32.mxu0 0.0
    %264 = vmatmul.mubr.f32.gmra.mrb[0].mxu0 %v167
    %v265 = vpop.f32.mrb[0].mxu0
    %v266 = vadd.f32 %v144, %v265
    %v267 = vpop.f32.mrb[0].mxu0
    %v268 = vadd.f32 %v148, %v267
    %269 = vmatprep.mubr.f32.mxu0 0.0
    %270 = vmatmul.mubr.f32.gmra.mrb[0].mxu0 %v170
    %v271 = vpop.f32.mrb[0].mxu0
    %v272 = vadd.f32 %v144, %v271
    %v273 = vpop.f32.mrb[0].mxu0
    %v274 = vadd.f32 %v148, %v273
    %275 = vmatprep.mubr.f32.mxu0 0.0
    %276 = vmatmul.mubr.f32.gmra.mrb[0].mxu0 %v173
    %v277 = vpop.f32.mrb[0].mxu0
    %v278 = vadd.f32 %v144, %v277
    %v279 = vpop.f32.mrb[0].mxu0
    %v280 = vadd.f32 %v148, %v279
    %281 = vmatprep.mubr.f32.mxu0 0.0
    %282 = vmatmul.mubr.f32.gmra.mrb[0].mxu0 %v176
    %v283 = vpop.f32.mrb[0].mxu0
    %v284 = vadd.f32 %v144, %v283
    %v285 = vpop.f32.mrb[0].mxu0
    %v286 = vadd.f32 %v148, %v285
    %287 = vmatprep.mubr.f32.mxu0 0.0
    %288 = vmatmul.mubr.f32.gmra.mrb[0].mxu0 %v179
    %v289 = vpop.f32.mrb[0].mxu0
    %v290 = vadd.f32 %v144, %v289
    %v291 = vpop.f32.mrb[0].mxu0
    %v292 = vadd.f32 %v148, %v291
    %293 = vdwg.mxu0
    %294 = vmatprep.subr.mxu0 0.0
    %295 = vmatpush1.msra.mxu0 %v138
    %296 = vmatprep.subr.mxu0 0.0
    %297 = vmatpush1.msra.mxu0 0.0
    %298 = vmatprep.subr.mxu0 0.0
    %299 = vmatpush1.msra.mxu0 0.0
    %300 = vmatprep.subr.mxu0 0.0
    %301 = vmatpush1.msra.mxu0 0.0
    %302 = vmatprep.subr.mxu0 0.0
    %303 = vmatpush1.msra.mxu0 0.0
    %304 = vmatprep.subr.mxu0 0.0
    %305 = vmatpush1.msra.mxu0 0.0
    %306 = vmatprep.subr.mxu0 0.0
    %307 = vmatpush1.msra.mxu0 0.0
    %308 = vmatprep.subr.mxu0 0.0
    %309 = vmatpush1.msra.mxu0 0.0
    %310 = vmatprep.subr.mxu0 0.0
    %311 = vmatpush1.msra.mxu0 0.0
    %312 = vmatprep.subr.mxu0 0.0
    %313 = vmatpush1.msra.mxu0 0.0
    %314 = vmatprep.subr.mxu0 0.0
    %315 = vmatpush1.msra.mxu0 0.0
    %316 = vmatprep.subr.mxu0 0.0
    %317 = vmatpush1.msra.mxu0 0.0
    %318 = vmatprep.subr.mxu0 0.0
    %319 = vmatpush1.msra.mxu0 0.0
    %320 = vmatprep.subr.mxu0 0.0
    %321 = vmatpush1.msra.mxu0 0.0
    %322 = vmatprep.subr.mxu0 0.0
    %323 = vmatpush1.msra.mxu0 0.0
    %324 = vmatprep.subr.mxu0 0.0
    %325 = vmatpush1.msra.mxu0 0.0
    %326 = vmatprep.subr.mxu0 0.0
    %327 = vmatpush1.msra.mxu0 0.0
    %328 = vmatprep.subr.mxu0 0.0
    %329 = vmatpush1.msra.mxu0 0.0
    %330 = vmatprep.subr.mxu0 0.0
    %331 = vmatpush1.msra.mxu0 0.0
    %332 = vmatprep.subr.mxu0 0.0
    %333 = vmatpush1.msra.mxu0 0.0
    %334 = vmatprep.subr.mxu0 0.0
    %335 = vmatpush1.msra.mxu0 0.0
    %336 = vmatprep.subr.mxu0 0.0
    %337 = vmatpush1.msra.mxu0 0.0
    %338 = vmatprep.subr.mxu0 0.0
    %339 = vmatpush1.msra.mxu0 0.0
    %340 = vmatprep.subr.mxu0 0.0
    %341 = vmatpush1.msra.mxu0 0.0
    %342 = vmatprep.subr.mxu0 0.0
    %343 = vmatpush1.msra.mxu0 0.0
    %344 = vmatprep.subr.mxu0 0.0
    %345 = vmatpush1.msra.mxu0 0.0
    %346 = vmatprep.subr.mxu0 0.0
    %347 = vmatpush1.msra.mxu0 0.0
    %348 = vmatprep.subr.mxu0 0.0
    %349 = vmatpush1.msra.mxu0 0.0
    %350 = vmatprep.subr.mxu0 0.0
    %351 = vmatpush1.msra.mxu0 0.0
    %352 = vmatprep.subr.mxu0 0.0
    %353 = vmatpush1.msra.mxu0 0.0
    %354 = vmatprep.subr.mxu0 0.0
    %355 = vmatpush1.msra.mxu0 0.0
    %356 = vmatprep.subr.mxu0 0.0
    %357 = vmatpush1.msra.mxu0 0.0
    %358 = vmatprep.mubr.f32.mxu0 0.0
    %359 = vmatmul.mubr.f32.gmra.mrb[0].mxu0 %v158
    %v360 = vpop.f32.mrb[0].mxu0
    %v361 = vadd.f32 %v152, %v360
    %v362 = vpop.f32.mrb[0].mxu0
    %363 = vmatprep.mubr.f32.mxu0 0.0
    %364 = vmatmul.mubr.f32.gmra.mrb[0].mxu0 %v161
    %v365 = vpop.f32.mrb[0].mxu0
    %v366 = vadd.f32 %v152, %v365
    %v367 = vpop.f32.mrb[0].mxu0
    %368 = vmatprep.mubr.f32.mxu0 0.0
    %369 = vmatmul.mubr.f32.gmra.mrb[0].mxu0 %v164
    %v370 = vpop.f32.mrb[0].mxu0
    %v371 = vadd.f32 %v152, %v370
    %v372 = vpop.f32.mrb[0].mxu0
    %373 = vmatprep.mubr.f32.mxu0 0.0
    %374 = vmatmul.mubr.f32.gmra.mrb[0].mxu0 %v167
    %v375 = vpop.f32.mrb[0].mxu0
    %v376 = vadd.f32 %v152, %v375
    %v377 = vpop.f32.mrb[0].mxu0
    %378 = vmatprep.mubr.f32.mxu0 0.0
    %379 = vmatmul.mubr.f32.gmra.mrb[0].mxu0 %v170
    %v380 = vpop.f32.mrb[0].mxu0
    %v381 = vadd.f32 %v152, %v380
    %v382 = vpop.f32.mrb[0].mxu0
    %383 = vmatprep.mubr.f32.mxu0 0.0
    %384 = vmatmul.mubr.f32.gmra.mrb[0].mxu0 %v173
    %v385 = vpop.f32.mrb[0].mxu0
    %v386 = vadd.f32 %v152, %v385
    %v387 = vpop.f32.mrb[0].mxu0
    %388 = vmatprep.mubr.f32.mxu0 0.0
    %389 = vmatmul.mubr.f32.gmra.mrb[0].mxu0 %v176
    %v390 = vpop.f32.mrb[0].mxu0
    %v391 = vadd.f32 %v152, %v390
    %v392 = vpop.f32.mrb[0].mxu0
    %393 = vmatprep.mubr.f32.mxu0 0.0
    %394 = vmatmul.mubr.f32.gmra.mrb[0].mxu0 %v179
    %v395 = vpop.f32.mrb[0].mxu0
    %v396 = vadd.f32 %v152, %v395
    %v397 = vpop.f32.mrb[0].mxu0
    %398 = vdwg.mxu0
    %v400 = vlaneseq
    %v401 = vshrl.u32 %v400, 7
    %v402 = vsub.s32 0, %v401
    %v403 = vrot.slane %v127, %v402
    %v404 = vlaneseq
    %v405 = vshrl.u32 %v404, 7
    %v406 = vsub.s32 1, %v405
    %v407 = vrot.slane %v127, %v406
    %v408 = vlaneseq
    %v409 = vshrl.u32 %v408, 7
    %v410 = vsub.s32 2, %v409
    %v411 = vrot.slane %v127, %v410
    %415 = vmatprep.subr.mxu0 %v80
    %416 = vmatpush1.msra.mxu0 %v79
    %417 = vmatprep.subr.mxu0 %v83
    %418 = vmatpush1.msra.mxu0 %v82
    %419 = vmatprep.subr.mxu0 %v86
    %420 = vmatpush1.msra.mxu0 %v85
    %421 = vmatprep.subr.mxu0 %v89
    %422 = vmatpush1.msra.mxu0 %v88
    %423 = vmatprep.subr.mxu0 %v92
    %424 = vmatpush1.msra.mxu0 %v91
    %425 = vmatprep.subr.mxu0 %v95
    %426 = vmatpush1.msra.mxu0 %v94
    %427 = vmatprep.subr.mxu0 %v98
    %428 = vmatpush1.msra.mxu0 %v97
    %429 = vmatprep.subr.mxu0 %v101
    %430 = vmatpush1.msra.mxu0 %v100
    %431 = vmatprep.subr.mxu0 %v104
    %432 = vmatpush1.msra.mxu0 %v103
    %433 = vmatprep.subr.mxu0 %v107
    %434 = vmatpush1.msra.mxu0 %v106
    %435 = vmatprep.subr.mxu0 %v110
    %436 = vmatpush1.msra.mxu0 %v109
    %437 = vmatprep.subr.mxu0 %v113
    %438 = vmatpush1.msra.mxu0 %v112
    %439 = vmatprep.subr.mxu0 %v116
    %440 = vmatpush1.msra.mxu0 %v115
    %441 = vmatprep.subr.mxu0 %v119
    %442 = vmatpush1.msra.mxu0 %v118
    %443 = vmatprep.subr.mxu0 %v122
    %444 = vmatpush1.msra.mxu0 %v121
    %445 = vmatprep.subr.mxu0 %v125
    %446 = vmatpush1.msra.mxu0 %v124
    %447 = vmatprep.subr.mxu0 0.0
    %448 = vmatpush1.msra.mxu0 0.0
    %449 = vmatprep.subr.mxu0 0.0
    %450 = vmatpush1.msra.mxu0 0.0
    %451 = vmatprep.subr.mxu0 0.0
    %452 = vmatpush1.msra.mxu0 0.0
    %453 = vmatprep.subr.mxu0 0.0
    %454 = vmatpush1.msra.mxu0 0.0
    %455 = vmatprep.subr.mxu0 0.0
    %456 = vmatpush1.msra.mxu0 0.0
    %457 = vmatprep.subr.mxu0 0.0
    %458 = vmatpush1.msra.mxu0 0.0
    %459 = vmatprep.subr.mxu0 0.0
    %460 = vmatpush1.msra.mxu0 0.0
    %461 = vmatprep.subr.mxu0 0.0
    %462 = vmatpush1.msra.mxu0 0.0
    %463 = vmatprep.subr.mxu0 0.0
    %464 = vmatpush1.msra.mxu0 0.0
    %465 = vmatprep.subr.mxu0 0.0
    %466 = vmatpush1.msra.mxu0 0.0
    %467 = vmatprep.subr.mxu0 0.0
    %468 = vmatpush1.msra.mxu0 0.0
    %469 = vmatprep.subr.mxu0 0.0
    %470 = vmatpush1.msra.mxu0 0.0
    %471 = vmatprep.subr.mxu0 0.0
    %472 = vmatpush1.msra.mxu0 0.0
    %473 = vmatprep.subr.mxu0 0.0
    %474 = vmatpush1.msra.mxu0 0.0
    %475 = vmatprep.subr.mxu0 0.0
    %476 = vmatpush1.msra.mxu0 0.0
    %477 = vmatprep.subr.mxu0 0.0
    %478 = vmatpush1.msra.mxu0 0.0
    %479 = vmatprep.mubr.f32.mxu0 0.0
    %480 = vmatmul.mubr.f32.gmra.mrb[0].mxu0 0.0
    %v481 = vpop.f32.mrb[0].mxu0
    %v482 = vadd.f32 %v403, %v481
    %v483 = vpop.f32.mrb[0].mxu0
    %v484 = vadd.f32 %v407, %v483
    %485 = vdwg.mxu0
    %486 = vmatprep.subr.mxu0 0.0
    %487 = vmatpush1.msra.mxu0 %v81
    %488 = vmatprep.subr.mxu0 0.0
    %489 = vmatpush1.msra.mxu0 %v84
    %490 = vmatprep.subr.mxu0 0.0
    %491 = vmatpush1.msra.mxu0 %v87
    %492 = vmatprep.subr.mxu0 0.0
    %493 = vmatpush1.msra.mxu0 %v90
    %494 = vmatprep.subr.mxu0 0.0
    %495 = vmatpush1.msra.mxu0 %v93
    %496 = vmatprep.subr.mxu0 0.0
    %497 = vmatpush1.msra.mxu0 %v96
    %498 = vmatprep.subr.mxu0 0.0
    %499 = vmatpush1.msra.mxu0 %v99
    %500 = vmatprep.subr.mxu0 0.0
    %501 = vmatpush1.msra.mxu0 %v102
    %502 = vmatprep.subr.mxu0 0.0
    %503 = vmatpush1.msra.mxu0 %v105
    %504 = vmatprep.subr.mxu0 0.0
    %505 = vmatpush1.msra.mxu0 %v108
    %506 = vmatprep.subr.mxu0 0.0
    %507 = vmatpush1.msra.mxu0 %v111
    %508 = vmatprep.subr.mxu0 0.0
    %509 = vmatpush1.msra.mxu0 %v114
    %510 = vmatprep.subr.mxu0 0.0
    %511 = vmatpush1.msra.mxu0 %v117
    %512 = vmatprep.subr.mxu0 0.0
    %513 = vmatpush1.msra.mxu0 %v120
    %514 = vmatprep.subr.mxu0 0.0
    %515 = vmatpush1.msra.mxu0 %v123
    %516 = vmatprep.subr.mxu0 0.0
    %517 = vmatpush1.msra.mxu0 %v126
    %518 = vmatprep.subr.mxu0 0.0
    %519 = vmatpush1.msra.mxu0 0.0
    %520 = vmatprep.subr.mxu0 0.0
    %521 = vmatpush1.msra.mxu0 0.0
    %522 = vmatprep.subr.mxu0 0.0
    %523 = vmatpush1.msra.mxu0 0.0
    %524 = vmatprep.subr.mxu0 0.0
    %525 = vmatpush1.msra.mxu0 0.0
    %526 = vmatprep.subr.mxu0 0.0
    %527 = vmatpush1.msra.mxu0 0.0
    %528 = vmatprep.subr.mxu0 0.0
    %529 = vmatpush1.msra.mxu0 0.0
    %530 = vmatprep.subr.mxu0 0.0
    %531 = vmatpush1.msra.mxu0 0.0
    %532 = vmatprep.subr.mxu0 0.0
    %533 = vmatpush1.msra.mxu0 0.0
    %534 = vmatprep.subr.mxu0 0.0
    %535 = vmatpush1.msra.mxu0 0.0
    %536 = vmatprep.subr.mxu0 0.0
    %537 = vmatpush1.msra.mxu0 0.0
    %538 = vmatprep.subr.mxu0 0.0
    %539 = vmatpush1.msra.mxu0 0.0
    %540 = vmatprep.subr.mxu0 0.0
    %541 = vmatpush1.msra.mxu0 0.0
    %542 = vmatprep.subr.mxu0 0.0
    %543 = vmatpush1.msra.mxu0 0.0
    %544 = vmatprep.subr.mxu0 0.0
    %545 = vmatpush1.msra.mxu0 0.0
    %546 = vmatprep.subr.mxu0 0.0
    %547 = vmatpush1.msra.mxu0 0.0
    %548 = vmatprep.subr.mxu0 0.0
    %549 = vmatpush1.msra.mxu0 0.0
    %550 = vmatprep.mubr.f32.mxu0 0.0
    %551 = vmatmul.mubr.f32.gmra.mrb[0].mxu0 0.0
    %v552 = vpop.f32.mrb[0].mxu0
    %v553 = vadd.f32 %v411, %v552
    %v554 = vpop.f32.mrb[0].mxu0
    %555 = vdwg.mxu0
    %v556 = vadd.f32 %v248, %v482
    %v557 = vxor.u32 %v556, 2147483648
    %v558 = vmul.f32 %v557, 1.442695
    %v559 = vpow.pop %v558
    %v560 = vadd.f32 %v559, 1.0
    %v561 = vrcp.pop %v560
    %v562 = vmul.f32 1.0, %v561
    %v563 = vadd.f32 %v250, %v484
    %v564 = vxor.u32 %v563, 2147483648
    %v565 = vmul.f32 %v564, 1.442695
    %v566 = vpow.pop %v565
    %v567 = vadd.f32 %v566, 1.0
    %v568 = vrcp.pop %v567
    %v569 = vmul.f32 1.0, %v568
    %v570 = vmul.f32 %v562, %v553
    %v571 = vadd.f32 %v361, %v570
    %v572 = vtanh.pop %v571
    %v573 = vsub.f32 1.0, %v569
    %v574 = vmul.f32 %v573, %v572
    %v575 = vmul.f32 %v569, 0.0
    %v576 = vadd.f32 %v574, %v575
    %577 = vst [vmem:[#allocation2] sm:$0xff] %v576
    %578 = vmatprep.subr.mxu0 %v80
    %579 = vmatpush1.msra.mxu0 %v79
    %580 = vmatprep.subr.mxu0 %v83
    %581 = vmatpush1.msra.mxu0 %v82
    %582 = vmatprep.subr.mxu0 %v86
    %583 = vmatpush1.msra.mxu0 %v85
    %584 = vmatprep.subr.mxu0 %v89
    %585 = vmatpush1.msra.mxu0 %v88
    %586 = vmatprep.subr.mxu0 %v92
    %587 = vmatpush1.msra.mxu0 %v91
    %588 = vmatprep.subr.mxu0 %v95
    %589 = vmatpush1.msra.mxu0 %v94
    %590 = vmatprep.subr.mxu0 %v98
    %591 = vmatpush1.msra.mxu0 %v97
    %592 = vmatprep.subr.mxu0 %v101
    %593 = vmatpush1.msra.mxu0 %v100
    %594 = vmatprep.subr.mxu0 %v104
    %595 = vmatpush1.msra.mxu0 %v103
    %596 = vmatprep.subr.mxu0 %v107
    %597 = vmatpush1.msra.mxu0 %v106
    %598 = vmatprep.subr.mxu0 %v110
    %599 = vmatpush1.msra.mxu0 %v109
    %600 = vmatprep.subr.mxu0 %v113
    %601 = vmatpush1.msra.mxu0 %v112
    %602 = vmatprep.subr.mxu0 %v116
    %603 = vmatpush1.msra.mxu0 %v115
    %604 = vmatprep.subr.mxu0 %v119
    %605 = vmatpush1.msra.mxu0 %v118
    %606 = vmatprep.subr.mxu0 %v122
    %607 = vmatpush1.msra.mxu0 %v121
    %608 = vmatprep.subr.mxu0 %v125
    %609 = vmatpush1.msra.mxu0 %v124
    %610 = vmatprep.subr.mxu0 0.0
    %611 = vmatpush1.msra.mxu0 0.0
    %612 = vmatprep.subr.mxu0 0.0
    %613 = vmatpush1.msra.mxu0 0.0
    %614 = vmatprep.subr.mxu0 0.0
    %615 = vmatpush1.msra.mxu0 0.0
    %616 = vmatprep.subr.mxu0 0.0
    %617 = vmatpush1.msra.mxu0 0.0
    %618 = vmatprep.subr.mxu0 0.0
    %619 = vmatpush1.msra.mxu0 0.0
    %620 = vmatprep.subr.mxu0 0.0
    %621 = vmatpush1.msra.mxu0 0.0
    %622 = vmatprep.subr.mxu0 0.0
    %623 = vmatpush1.msra.mxu0 0.0
    %624 = vmatprep.subr.mxu0 0.0
    %625 = vmatpush1.msra.mxu0 0.0
    %626 = vmatprep.subr.mxu0 0.0
    %627 = vmatpush1.msra.mxu0 0.0
    %628 = vmatprep.subr.mxu0 0.0
    %629 = vmatpush1.msra.mxu0 0.0
    %630 = vmatprep.subr.mxu0 0.0
    %631 = vmatpush1.msra.mxu0 0.0
    %632 = vmatprep.subr.mxu0 0.0
    %633 = vmatpush1.msra.mxu0 0.0
    %634 = vmatprep.subr.mxu0 0.0
    %635 = vmatpush1.msra.mxu0 0.0
    %636 = vmatprep.subr.mxu0 0.0
    %637 = vmatpush1.msra.mxu0 0.0
    %638 = vmatprep.subr.mxu0 0.0
    %639 = vmatpush1.msra.mxu0 0.0
    %640 = vmatprep.subr.mxu0 0.0
    %641 = vmatpush1.msra.mxu0 0.0
    %642 = vmatprep.mubr.f32.mxu0 0.0
    %643 = vmatmul.mubr.f32.gmra.mrb[0].mxu0 %v576
    %v644 = vpop.f32.mrb[0].mxu0
    %v645 = vadd.f32 %v403, %v644
    %v646 = vpop.f32.mrb[0].mxu0
    %v647 = vadd.f32 %v407, %v646
    %648 = vdwg.mxu0
    %649 = vmatprep.subr.mxu0 0.0
    %650 = vmatpush1.msra.mxu0 %v81
    %651 = vmatprep.subr.mxu0 0.0
    %652 = vmatpush1.msra.mxu0 %v84
    %653 = vmatprep.subr.mxu0 0.0
    %654 = vmatpush1.msra.mxu0 %v87
    %655 = vmatprep.subr.mxu0 0.0
    %656 = vmatpush1.msra.mxu0 %v90
    %657 = vmatprep.subr.mxu0 0.0
    %658 = vmatpush1.msra.mxu0 %v93
    %659 = vmatprep.subr.mxu0 0.0
    %660 = vmatpush1.msra.mxu0 %v96
    %661 = vmatprep.subr.mxu0 0.0
    %662 = vmatpush1.msra.mxu0 %v99
    %663 = vmatprep.subr.mxu0 0.0
    %664 = vmatpush1.msra.mxu0 %v102
    %665 = vmatprep.subr.mxu0 0.0
    %666 = vmatpush1.msra.mxu0 %v105
    %667 = vmatprep.subr.mxu0 0.0
    %668 = vmatpush1.msra.mxu0 %v108
    %669 = vmatprep.subr.mxu0 0.0
    %670 = vmatpush1.msra.mxu0 %v111
    %671 = vmatprep.subr.mxu0 0.0
    %672 = vmatpush1.msra.mxu0 %v114
    %673 = vmatprep.subr.mxu0 0.0
    %674 = vmatpush1.msra.mxu0 %v117
    %675 = vmatprep.subr.mxu0 0.0
    %676 = vmatpush1.msra.mxu0 %v120
    %677 = vmatprep.subr.mxu0 0.0
    %678 = vmatpush1.msra.mxu0 %v123
    %679 = vmatprep.subr.mxu0 0.0
    %680 = vmatpush1.msra.mxu0 %v126
    %681 = vmatprep.subr.mxu0 0.0
    %682 = vmatpush1.msra.mxu0 0.0
    %683 = vmatprep.subr.mxu0 0.0
    %684 = vmatpush1.msra.mxu0 0.0
    %685 = vmatprep.subr.mxu0 0.0
    %686 = vmatpush1.msra.mxu0 0.0
    %687 = vmatprep.subr.mxu0 0.0
    %688 = vmatpush1.msra.mxu0 0.0
    %689 = vmatprep.subr.mxu0 0.0
    %690 = vmatpush1.msra.mxu0 0.0
    %691 = vmatprep.subr.mxu0 0.0
    %692 = vmatpush1.msra.mxu0 0.0
    %693 = vmatprep.subr.mxu0 0.0
    %694 = vmatpush1.msra.mxu0 0.0
    %695 = vmatprep.subr.mxu0 0.0
    %696 = vmatpush1.msra.mxu0 0.0
    %697 = vmatprep.subr.mxu0 0.0
    %698 = vmatpush1.msra.mxu0 0.0
    %699 = vmatprep.subr.mxu0 0.0
    %700 = vmatpush1.msra.mxu0 0.0
    %701 = vmatprep.subr.mxu0 0.0
    %702 = vmatpush1.msra.mxu0 0.0
    %703 = vmatprep.subr.mxu0 0.0
    %704 = vmatpush1.msra.mxu0 0.0
    %705 = vmatprep.subr.mxu0 0.0
    %706 = vmatpush1.msra.mxu0 0.0
    %707 = vmatprep.subr.mxu0 0.0
    %708 = vmatpush1.msra.mxu0 0.0
    %709 = vmatprep.subr.mxu0 0.0
    %710 = vmatpush1.msra.mxu0 0.0
    %711 = vmatprep.subr.mxu0 0.0
    %712 = vmatpush1.msra.mxu0 0.0
    %713 = vmatprep.mubr.f32.mxu0 0.0
    %714 = vmatmul.mubr.f32.gmra.mrb[0].mxu0 %v576
    %v715 = vpop.f32.mrb[0].mxu0
    %v716 = vadd.f32 %v411, %v715
    %v717 = vpop.f32.mrb[0].mxu0
    %718 = vdwg.mxu0
    %v719 = vadd.f32 %v254, %v645
    %v720 = vxor.u32 %v719, 2147483648
    %v721 = vmul.f32 %v720, 1.442695
    %v722 = vpow.pop %v721
    %v723 = vadd.f32 %v722, 1.0
    %v724 = vrcp.pop %v723
    %v725 = vmul.f32 1.0, %v724
    %v726 = vadd.f32 %v256, %v647
    %v727 = vxor.u32 %v726, 2147483648
    %v728 = vmul.f32 %v727, 1.442695
    %v729 = vpow.pop %v728
    %v730 = vadd.f32 %v729, 1.0
    %v731 = vrcp.pop %v730
    %v732 = vmul.f32 1.0, %v731
    %v733 = vmul.f32 %v725, %v716
    %v734 = vadd.f32 %v366, %v733
    %v735 = vtanh.pop %v734
    %v736 = vsub.f32 1.0, %v732
    %v737 = vmul.f32 %v736, %v735
    %v738 = vmul.f32 %v732, %v576
    %v739 = vadd.f32 %v737, %v738
    %s740 = scalar_lea.vmem [#allocation2], 8
    %741 = vst [vmem:[%s740] sm:$0xff] %v739
    %742 = vmatprep.subr.mxu0 %v80
    %743 = vmatpush1.msra.mxu0 %v79
    %744 = vmatprep.subr.mxu0 %v83
    %745 = vmatpush1.msra.mxu0 %v82
    %746 = vmatprep.subr.mxu0 %v86
    %747 = vmatpush1.msra.mxu0 %v85
    %748 = vmatprep.subr.mxu0 %v89
    %749 = vmatpush1.msra.mxu0 %v88
    %750 = vmatprep.subr.mxu0 %v92
    %751 = vmatpush1.msra.mxu0 %v91
    %752 = vmatprep.subr.mxu0 %v95
    %753 = vmatpush1.msra.mxu0 %v94
    %754 = vmatprep.subr.mxu0 %v98
    %755 = vmatpush1.msra.mxu0 %v97
    %756 = vmatprep.subr.mxu0 %v101
    %757 = vmatpush1.msra.mxu0 %v100
    %758 = vmatprep.subr.mxu0 %v104
    %759 = vmatpush1.msra.mxu0 %v103
    %760 = vmatprep.subr.mxu0 %v107
    %761 = vmatpush1.msra.mxu0 %v106
    %762 = vmatprep.subr.mxu0 %v110
    %763 = vmatpush1.msra.mxu0 %v109
    %764 = vmatprep.subr.mxu0 %v113
    %765 = vmatpush1.msra.mxu0 %v112
    %766 = vmatprep.subr.mxu0 %v116
    %767 = vmatpush1.msra.mxu0 %v115
    %768 = vmatprep.subr.mxu0 %v119
    %769 = vmatpush1.msra.mxu0 %v118
    %770 = vmatprep.subr.mxu0 %v122
    %771 = vmatpush1.msra.mxu0 %v121
    %772 = vmatprep.subr.mxu0 %v125
    %773 = vmatpush1.msra.mxu0 %v124
    %774 = vmatprep.subr.mxu0 0.0
    %775 = vmatpush1.msra.mxu0 0.0
    %776 = vmatprep.subr.mxu0 0.0
    %777 = vmatpush1.msra.mxu0 0.0
    %778 = vmatprep.subr.mxu0 0.0
    %779 = vmatpush1.msra.mxu0 0.0
    %780 = vmatprep.subr.mxu0 0.0
    %781 = vmatpush1.msra.mxu0 0.0
    %782 = vmatprep.subr.mxu0 0.0
    %783 = vmatpush1.msra.mxu0 0.0
    %784 = vmatprep.subr.mxu0 0.0
    %785 = vmatpush1.msra.mxu0 0.0
    %786 = vmatprep.subr.mxu0 0.0
    %787 = vmatpush1.msra.mxu0 0.0
    %788 = vmatprep.subr.mxu0 0.0
    %789 = vmatpush1.msra.mxu0 0.0
    %790 = vmatprep.subr.mxu0 0.0
    %791 = vmatpush1.msra.mxu0 0.0
    %792 = vmatprep.subr.mxu0 0.0
    %793 = vmatpush1.msra.mxu0 0.0
    %794 = vmatprep.subr.mxu0 0.0
    %795 = vmatpush1.msra.mxu0 0.0
    %796 = vmatprep.subr.mxu0 0.0
    %797 = vmatpush1.msra.mxu0 0.0
    %798 = vmatprep.subr.mxu0 0.0
    %799 = vmatpush1.msra.mxu0 0.0
    %800 = vmatprep.subr.mxu0 0.0
    %801 = vmatpush1.msra.mxu0 0.0
    %802 = vmatprep.subr.mxu0 0.0
    %803 = vmatpush1.msra.mxu0 0.0
    %804 = vmatprep.subr.mxu0 0.0
    %805 = vmatpush1.msra.mxu0 0.0
    %806 = vmatprep.mubr.f32.mxu0 0.0
    %807 = vmatmul.mubr.f32.gmra.mrb[0].mxu0 %v739
    %v808 = vpop.f32.mrb[0].mxu0
    %v809 = vadd.f32 %v403, %v808
    %v810 = vpop.f32.mrb[0].mxu0
    %v811 = vadd.f32 %v407, %v810
    %812 = vdwg.mxu0
    %813 = vmatprep.subr.mxu0 0.0
    %814 = vmatpush1.msra.mxu0 %v81
    %815 = vmatprep.subr.mxu0 0.0
    %816 = vmatpush1.msra.mxu0 %v84
    %817 = vmatprep.subr.mxu0 0.0
    %818 = vmatpush1.msra.mxu0 %v87
    %819 = vmatprep.subr.mxu0 0.0
    %820 = vmatpush1.msra.mxu0 %v90
    %821 = vmatprep.subr.mxu0 0.0
    %822 = vmatpush1.msra.mxu0 %v93
    %823 = vmatprep.subr.mxu0 0.0
    %824 = vmatpush1.msra.mxu0 %v96
    %825 = vmatprep.subr.mxu0 0.0
    %826 = vmatpush1.msra.mxu0 %v99
    %827 = vmatprep.subr.mxu0 0.0
    %828 = vmatpush1.msra.mxu0 %v102
    %829 = vmatprep.subr.mxu0 0.0
    %830 = vmatpush1.msra.mxu0 %v105
    %831 = vmatprep.subr.mxu0 0.0
    %832 = vmatpush1.msra.mxu0 %v108
    %833 = vmatprep.subr.mxu0 0.0
    %834 = vmatpush1.msra.mxu0 %v111
    %835 = vmatprep.subr.mxu0 0.0
    %836 = vmatpush1.msra.mxu0 %v114
    %837 = vmatprep.subr.mxu0 0.0
    %838 = vmatpush1.msra.mxu0 %v117
    %839 = vmatprep.subr.mxu0 0.0
    %840 = vmatpush1.msra.mxu0 %v120
    %841 = vmatprep.subr.mxu0 0.0
    %842 = vmatpush1.msra.mxu0 %v123
    %843 = vmatprep.subr.mxu0 0.0
    %844 = vmatpush1.msra.mxu0 %v126
    %845 = vmatprep.subr.mxu0 0.0
    %846 = vmatpush1.msra.mxu0 0.0
    %847 = vmatprep.subr.mxu0 0.0
    %848 = vmatpush1.msra.mxu0 0.0
    %849 = vmatprep.subr.mxu0 0.0
    %850 = vmatpush1.msra.mxu0 0.0
    %851 = vmatprep.subr.mxu0 0.0
    %852 = vmatpush1.msra.mxu0 0.0
    %853 = vmatprep.subr.mxu0 0.0
    %854 = vmatpush1.msra.mxu0 0.0
    %855 = vmatprep.subr.mxu0 0.0
    %856 = vmatpush1.msra.mxu0 0.0
    %857 = vmatprep.subr.mxu0 0.0
    %858 = vmatpush1.msra.mxu0 0.0
    %859 = vmatprep.subr.mxu0 0.0
    %860 = vmatpush1.msra.mxu0 0.0
    %861 = vmatprep.subr.mxu0 0.0
    %862 = vmatpush1.msra.mxu0 0.0
    %863 = vmatprep.subr.mxu0 0.0
    %864 = vmatpush1.msra.mxu0 0.0
    %865 = vmatprep.subr.mxu0 0.0
    %866 = vmatpush1.msra.mxu0 0.0
    %867 = vmatprep.subr.mxu0 0.0
    %868 = vmatpush1.msra.mxu0 0.0
    %869 = vmatprep.subr.mxu0 0.0
    %870 = vmatpush1.msra.mxu0 0.0
    %871 = vmatprep.subr.mxu0 0.0
    %872 = vmatpush1.msra.mxu0 0.0
    %873 = vmatprep.subr.mxu0 0.0
    %874 = vmatpush1.msra.mxu0 0.0
    %875 = vmatprep.subr.mxu0 0.0
    %876 = vmatpush1.msra.mxu0 0.0
    %877 = vmatprep.mubr.f32.mxu0 0.0
    %878 = vmatmul.mubr.f32.gmra.mrb[0].mxu0 %v739
    %v879 = vpop.f32.mrb[0].mxu0
    %v880 = vadd.f32 %v411, %v879
    %v881 = vpop.f32.mrb[0].mxu0
    %882 = vdwg.mxu0
    %v883 = vadd.f32 %v260, %v809
    %v884 = vxor.u32 %v883, 2147483648
    %v885 = vmul.f32 %v884, 1.442695
    %v886 = vpow.pop %v885
    %v887 = vadd.f32 %v886, 1.0
    %v888 = vrcp.pop %v887
    %v889 = vmul.f32 1.0, %v888
    %v890 = vadd.f32 %v262, %v811
    %v891 = vxor.u32 %v890, 2147483648
    %v892 = vmul.f32 %v891, 1.442695
    %v893 = vpow.pop %v892
    %v894 = vadd.f32 %v893, 1.0
    %v895 = vrcp.pop %v894
    %v896 = vmul.f32 1.0, %v895
    %v897 = vmul.f32 %v889, %v880
    %v898 = vadd.f32 %v371, %v897
    %v899 = vtanh.pop %v898
    %v900 = vsub.f32 1.0, %v896
    %v901 = vmul.f32 %v900, %v899
    %v902 = vmul.f32 %v896, %v739
    %v903 = vadd.f32 %v901, %v902
    %s904 = scalar_lea.vmem [#allocation2], 16
    %905 = vst [vmem:[%s904] sm:$0xff] %v903
    %906 = vmatprep.subr.mxu0 %v80
    %907 = vmatpush1.msra.mxu0 %v79
    %908 = vmatprep.subr.mxu0 %v83
    %909 = vmatpush1.msra.mxu0 %v82
    %910 = vmatprep.subr.mxu0 %v86
    %911 = vmatpush1.msra.mxu0 %v85
    %912 = vmatprep.subr.mxu0 %v89
    %913 = vmatpush1.msra.mxu0 %v88
    %914 = vmatprep.subr.mxu0 %v92
    %915 = vmatpush1.msra.mxu0 %v91
    %916 = vmatprep.subr.mxu0 %v95
    %917 = vmatpush1.msra.mxu0 %v94
    %918 = vmatprep.subr.mxu0 %v98
    %919 = vmatpush1.msra.mxu0 %v97
    %920 = vmatprep.subr.mxu0 %v101
    %921 = vmatpush1.msra.mxu0 %v100
    %922 = vmatprep.subr.mxu0 %v104
    %923 = vmatpush1.msra.mxu0 %v103
    %924 = vmatprep.subr.mxu0 %v107
    %925 = vmatpush1.msra.mxu0 %v106
    %926 = vmatprep.subr.mxu0 %v110
    %927 = vmatpush1.msra.mxu0 %v109
    %928 = vmatprep.subr.mxu0 %v113
    %929 = vmatpush1.msra.mxu0 %v112
    %930 = vmatprep.subr.mxu0 %v116
    %931 = vmatpush1.msra.mxu0 %v115
    %932 = vmatprep.subr.mxu0 %v119
    %933 = vmatpush1.msra.mxu0 %v118
    %934 = vmatprep.subr.mxu0 %v122
    %935 = vmatpush1.msra.mxu0 %v121
    %936 = vmatprep.subr.mxu0 %v125
    %937 = vmatpush1.msra.mxu0 %v124
    %938 = vmatprep.subr.mxu0 0.0
    %939 = vmatpush1.msra.mxu0 0.0
    %940 = vmatprep.subr.mxu0 0.0
    %941 = vmatpush1.msra.mxu0 0.0
    %942 = vmatprep.subr.mxu0 0.0
    %943 = vmatpush1.msra.mxu0 0.0
    %944 = vmatprep.subr.mxu0 0.0
    %945 = vmatpush1.msra.mxu0 0.0
    %946 = vmatprep.subr.mxu0 0.0
    %947 = vmatpush1.msra.mxu0 0.0
    %948 = vmatprep.subr.mxu0 0.0
    %949 = vmatpush1.msra.mxu0 0.0
    %950 = vmatprep.subr.mxu0 0.0
    %951 = vmatpush1.msra.mxu0 0.0
    %952 = vmatprep.subr.mxu0 0.0
    %953 = vmatpush1.msra.mxu0 0.0
    %954 = vmatprep.subr.mxu0 0.0
    %955 = vmatpush1.msra.mxu0 0.0
    %956 = vmatprep.subr.mxu0 0.0
    %957 = vmatpush1.msra.mxu0 0.0
    %958 = vmatprep.subr.mxu0 0.0
    %959 = vmatpush1.msra.mxu0 0.0
    %960 = vmatprep.subr.mxu0 0.0
    %961 = vmatpush1.msra.mxu0 0.0
    %962 = vmatprep.subr.mxu0 0.0
    %963 = vmatpush1.msra.mxu0 0.0
    %964 = vmatprep.subr.mxu0 0.0
    %965 = vmatpush1.msra.mxu0 0.0
    %966 = vmatprep.subr.mxu0 0.0
    %967 = vmatpush1.msra.mxu0 0.0
    %968 = vmatprep.subr.mxu0 0.0
    %969 = vmatpush1.msra.mxu0 0.0
    %970 = vmatprep.mubr.f32.mxu0 0.0
    %971 = vmatmul.mubr.f32.gmra.mrb[0].mxu0 %v903
    %v972 = vpop.f32.mrb[0].mxu0
    %v973 = vadd.f32 %v403, %v972
    %v974 = vpop.f32.mrb[0].mxu0
    %v975 = vadd.f32 %v407, %v974
    %976 = vdwg.mxu0
    %977 = vmatprep.subr.mxu0 0.0
    %978 = vmatpush1.msra.mxu0 %v81
    %979 = vmatprep.subr.mxu0 0.0
    %980 = vmatpush1.msra.mxu0 %v84
    %981 = vmatprep.subr.mxu0 0.0
    %982 = vmatpush1.msra.mxu0 %v87
    %983 = vmatprep.subr.mxu0 0.0
    %984 = vmatpush1.msra.mxu0 %v90
    %985 = vmatprep.subr.mxu0 0.0
    %986 = vmatpush1.msra.mxu0 %v93
    %987 = vmatprep.subr.mxu0 0.0
    %988 = vmatpush1.msra.mxu0 %v96
    %989 = vmatprep.subr.mxu0 0.0
    %990 = vmatpush1.msra.mxu0 %v99
    %991 = vmatprep.subr.mxu0 0.0
    %992 = vmatpush1.msra.mxu0 %v102
    %993 = vmatprep.subr.mxu0 0.0
    %994 = vmatpush1.msra.mxu0 %v105
    %995 = vmatprep.subr.mxu0 0.0
    %996 = vmatpush1.msra.mxu0 %v108
    %997 = vmatprep.subr.mxu0 0.0
    %998 = vmatpush1.msra.mxu0 %v111
    %999 = vmatprep.subr.mxu0 0.0
    %1000 = vmatpush1.msra.mxu0 %v114
    %1001 = vmatprep.subr.mxu0 0.0
    %1002 = vmatpush1.msra.mxu0 %v117
    %1003 = vmatprep.subr.mxu0 0.0
    %1004 = vmatpush1.msra.mxu0 %v120
    %1005 = vmatprep.subr.mxu0 0.0
    %1006 = vmatpush1.msra.mxu0 %v123
    %1007 = vmatprep.subr.mxu0 0.0
    %1008 = vmatpush1.msra.mxu0 %v126
    %1009 = vmatprep.subr.mxu0 0.0
    %1010 = vmatpush1.msra.mxu0 0.0
    %1011 = vmatprep.subr.mxu0 0.0
    %1012 = vmatpush1.msra.mxu0 0.0
    %1013 = vmatprep.subr.mxu0 0.0
    %1014 = vmatpush1.msra.mxu0 0.0
    %1015 = vmatprep.subr.mxu0 0.0
    %1016 = vmatpush1.msra.mxu0 0.0
    %1017 = vmatprep.subr.mxu0 0.0
    %1018 = vmatpush1.msra.mxu0 0.0
    %1019 = vmatprep.subr.mxu0 0.0
    %1020 = vmatpush1.msra.mxu0 0.0
    %1021 = vmatprep.subr.mxu0 0.0
    %1022 = vmatpush1.msra.mxu0 0.0
    %1023 = vmatprep.subr.mxu0 0.0
    %1024 = vmatpush1.msra.mxu0 0.0
    %1025 = vmatprep.subr.mxu0 0.0
    %1026 = vmatpush1.msra.mxu0 0.0
    %1027 = vmatprep.subr.mxu0 0.0
    %1028 = vmatpush1.msra.mxu0 0.0
    %1029 = vmatprep.subr.mxu0 0.0
    %1030 = vmatpush1.msra.mxu0 0.0
    %1031 = vmatprep.subr.mxu0 0.0
    %1032 = vmatpush1.msra.mxu0 0.0
    %1033 = vmatprep.subr.mxu0 0.0
    %1034 = vmatpush1.msra.mxu0 0.0
    %1035 = vmatprep.subr.mxu0 0.0
    %1036 = vmatpush1.msra.mxu0 0.0
    %1037 = vmatprep.subr.mxu0 0.0
    %1038 = vmatpush1.msra.mxu0 0.0
    %1039 = vmatprep.subr.mxu0 0.0
    %1040 = vmatpush1.msra.mxu0 0.0
    %1041 = vmatprep.mubr.f32.mxu0 0.0
    %1042 = vmatmul.mubr.f32.gmra.mrb[0].mxu0 %v903
    %v1043 = vpop.f32.mrb[0].mxu0
    %v1044 = vadd.f32 %v411, %v1043
    %v1045 = vpop.f32.mrb[0].mxu0
    %1046 = vdwg.mxu0
    %v1047 = vadd.f32 %v266, %v973
    %v1048 = vxor.u32 %v1047, 2147483648
    %v1049 = vmul.f32 %v1048, 1.442695
    %v1050 = vpow.pop %v1049
    %v1051 = vadd.f32 %v1050, 1.0
    %v1052 = vrcp.pop %v1051
    %v1053 = vmul.f32 1.0, %v1052
    %v1054 = vadd.f32 %v268, %v975
    %v1055 = vxor.u32 %v1054, 2147483648
    %v1056 = vmul.f32 %v1055, 1.442695
    %v1057 = vpow.pop %v1056
    %v1058 = vadd.f32 %v1057, 1.0
    %v1059 = vrcp.pop %v1058
    %v1060 = vmul.f32 1.0, %v1059
    %v1061 = vmul.f32 %v1053, %v1044
    %v1062 = vadd.f32 %v376, %v1061
    %v1063 = vtanh.pop %v1062
    %v1064 = vsub.f32 1.0, %v1060
    %v1065 = vmul.f32 %v1064, %v1063
    %v1066 = vmul.f32 %v1060, %v903
    %v1067 = vadd.f32 %v1065, %v1066
    %s1068 = scalar_lea.vmem [#allocation2], 24
    %1069 = vst [vmem:[%s1068] sm:$0xff] %v1067
    %1070 = vmatprep.subr.mxu0 %v80
    %1071 = vmatpush1.msra.mxu0 %v79
    %1072 = vmatprep.subr.mxu0 %v83
    %1073 = vmatpush1.msra.mxu0 %v82
    %1074 = vmatprep.subr.mxu0 %v86
    %1075 = vmatpush1.msra.mxu0 %v85
    %1076 = vmatprep.subr.mxu0 %v89
    %1077 = vmatpush1.msra.mxu0 %v88
    %1078 = vmatprep.subr.mxu0 %v92
    %1079 = vmatpush1.msra.mxu0 %v91
    %1080 = vmatprep.subr.mxu0 %v95
    %1081 = vmatpush1.msra.mxu0 %v94
    %1082 = vmatprep.subr.mxu0 %v98
    %1083 = vmatpush1.msra.mxu0 %v97
    %1084 = vmatprep.subr.mxu0 %v101
    %1085 = vmatpush1.msra.mxu0 %v100
    %1086 = vmatprep.subr.mxu0 %v104
    %1087 = vmatpush1.msra.mxu0 %v103
    %1088 = vmatprep.subr.mxu0 %v107
    %1089 = vmatpush1.msra.mxu0 %v106
    %1090 = vmatprep.subr.mxu0 %v110
    %1091 = vmatpush1.msra.mxu0 %v109
    %1092 = vmatprep.subr.mxu0 %v113
    %1093 = vmatpush1.msra.mxu0 %v112
    %1094 = vmatprep.subr.mxu0 %v116
    %1095 = vmatpush1.msra.mxu0 %v115
    %1096 = vmatprep.subr.mxu0 %v119
    %1097 = vmatpush1.msra.mxu0 %v118
    %1098 = vmatprep.subr.mxu0 %v122
    %1099 = vmatpush1.msra.mxu0 %v121
    %1100 = vmatprep.subr.mxu0 %v125
    %1101 = vmatpush1.msra.mxu0 %v124
    %1102 = vmatprep.subr.mxu0 0.0
    %1103 = vmatpush1.msra.mxu0 0.0
    %1104 = vmatprep.subr.mxu0 0.0
    %1105 = vmatpush1.msra.mxu0 0.0
    %1106 = vmatprep.subr.mxu0 0.0
    %1107 = vmatpush1.msra.mxu0 0.0
    %1108 = vmatprep.subr.mxu0 0.0
    %1109 = vmatpush1.msra.mxu0 0.0
    %1110 = vmatprep.subr.mxu0 0.0
    %1111 = vmatpush1.msra.mxu0 0.0
    %1112 = vmatprep.subr.mxu0 0.0
    %1113 = vmatpush1.msra.mxu0 0.0
    %1114 = vmatprep.subr.mxu0 0.0
    %1115 = vmatpush1.msra.mxu0 0.0
    %1116 = vmatprep.subr.mxu0 0.0
    %1117 = vmatpush1.msra.mxu0 0.0
    %1118 = vmatprep.subr.mxu0 0.0
    %1119 = vmatpush1.msra.mxu0 0.0
    %1120 = vmatprep.subr.mxu0 0.0
    %1121 = vmatpush1.msra.mxu0 0.0
    %1122 = vmatprep.subr.mxu0 0.0
    %1123 = vmatpush1.msra.mxu0 0.0
    %1124 = vmatprep.subr.mxu0 0.0
    %1125 = vmatpush1.msra.mxu0 0.0
    %1126 = vmatprep.subr.mxu0 0.0
    %1127 = vmatpush1.msra.mxu0 0.0
    %1128 = vmatprep.subr.mxu0 0.0
    %1129 = vmatpush1.msra.mxu0 0.0
    %1130 = vmatprep.subr.mxu0 0.0
    %1131 = vmatpush1.msra.mxu0 0.0
    %1132 = vmatprep.subr.mxu0 0.0
    %1133 = vmatpush1.msra.mxu0 0.0
    %1134 = vmatprep.mubr.f32.mxu0 0.0
    %1135 = vmatmul.mubr.f32.gmra.mrb[0].mxu0 %v1067
    %v1136 = vpop.f32.mrb[0].mxu0
    %v1137 = vadd.f32 %v403, %v1136
    %v1138 = vpop.f32.mrb[0].mxu0
    %v1139 = vadd.f32 %v407, %v1138
    %1140 = vdwg.mxu0
    %1141 = vmatprep.subr.mxu0 0.0
    %1142 = vmatpush1.msra.mxu0 %v81
    %1143 = vmatprep.subr.mxu0 0.0
    %1144 = vmatpush1.msra.mxu0 %v84
    %1145 = vmatprep.subr.mxu0 0.0
    %1146 = vmatpush1.msra.mxu0 %v87
    %1147 = vmatprep.subr.mxu0 0.0
    %1148 = vmatpush1.msra.mxu0 %v90
    %1149 = vmatprep.subr.mxu0 0.0
    %1150 = vmatpush1.msra.mxu0 %v93
    %1151 = vmatprep.subr.mxu0 0.0
    %1152 = vmatpush1.msra.mxu0 %v96
    %1153 = vmatprep.subr.mxu0 0.0
    %1154 = vmatpush1.msra.mxu0 %v99
    %1155 = vmatprep.subr.mxu0 0.0
    %1156 = vmatpush1.msra.mxu0 %v102
    %1157 = vmatprep.subr.mxu0 0.0
    %1158 = vmatpush1.msra.mxu0 %v105
    %1159 = vmatprep.subr.mxu0 0.0
    %1160 = vmatpush1.msra.mxu0 %v108
    %1161 = vmatprep.subr.mxu0 0.0
    %1162 = vmatpush1.msra.mxu0 %v111
    %1163 = vmatprep.subr.mxu0 0.0
    %1164 = vmatpush1.msra.mxu0 %v114
    %1165 = vmatprep.subr.mxu0 0.0
    %1166 = vmatpush1.msra.mxu0 %v117
    %1167 = vmatprep.subr.mxu0 0.0
    %1168 = vmatpush1.msra.mxu0 %v120
    %1169 = vmatprep.subr.mxu0 0.0
    %1170 = vmatpush1.msra.mxu0 %v123
    %1171 = vmatprep.subr.mxu0 0.0
    %1172 = vmatpush1.msra.mxu0 %v126
    %1173 = vmatprep.subr.mxu0 0.0
    %1174 = vmatpush1.msra.mxu0 0.0
    %1175 = vmatprep.subr.mxu0 0.0
    %1176 = vmatpush1.msra.mxu0 0.0
    %1177 = vmatprep.subr.mxu0 0.0
    %1178 = vmatpush1.msra.mxu0 0.0
    %1179 = vmatprep.subr.mxu0 0.0
    %1180 = vmatpush1.msra.mxu0 0.0
    %1181 = vmatprep.subr.mxu0 0.0
    %1182 = vmatpush1.msra.mxu0 0.0
    %1183 = vmatprep.subr.mxu0 0.0
    %1184 = vmatpush1.msra.mxu0 0.0
    %1185 = vmatprep.subr.mxu0 0.0
    %1186 = vmatpush1.msra.mxu0 0.0
    %1187 = vmatprep.subr.mxu0 0.0
    %1188 = vmatpush1.msra.mxu0 0.0
    %1189 = vmatprep.subr.mxu0 0.0
    %1190 = vmatpush1.msra.mxu0 0.0
    %1191 = vmatprep.subr.mxu0 0.0
    %1192 = vmatpush1.msra.mxu0 0.0
    %1193 = vmatprep.subr.mxu0 0.0
    %1194 = vmatpush1.msra.mxu0 0.0
    %1195 = vmatprep.subr.mxu0 0.0
    %1196 = vmatpush1.msra.mxu0 0.0
    %1197 = vmatprep.subr.mxu0 0.0
    %1198 = vmatpush1.msra.mxu0 0.0
    %1199 = vmatprep.subr.mxu0 0.0
    %1200 = vmatpush1.msra.mxu0 0.0
    %1201 = vmatprep.subr.mxu0 0.0
    %1202 = vmatpush1.msra.mxu0 0.0
    %1203 = vmatprep.subr.mxu0 0.0
    %1204 = vmatpush1.msra.mxu0 0.0
    %1205 = vmatprep.mubr.f32.mxu0 0.0
    %1206 = vmatmul.mubr.f32.gmra.mrb[0].mxu0 %v1067
    %v1207 = vpop.f32.mrb[0].mxu0
    %v1208 = vadd.f32 %v411, %v1207
    %v1209 = vpop.f32.mrb[0].mxu0
    %1210 = vdwg.mxu0
    %v1211 = vadd.f32 %v272, %v1137
    %v1212 = vxor.u32 %v1211, 2147483648
    %v1213 = vmul.f32 %v1212, 1.442695
    %v1214 = vpow.pop %v1213
    %v1215 = vadd.f32 %v1214, 1.0
    %v1216 = vrcp.pop %v1215
    %v1217 = vmul.f32 1.0, %v1216
    %v1218 = vadd.f32 %v274, %v1139
    %v1219 = vxor.u32 %v1218, 2147483648
    %v1220 = vmul.f32 %v1219, 1.442695
    %v1221 = vpow.pop %v1220
    %v1222 = vadd.f32 %v1221, 1.0
    %v1223 = vrcp.pop %v1222
    %v1224 = vmul.f32 1.0, %v1223
    %v1225 = vmul.f32 %v1217, %v1208
    %v1226 = vadd.f32 %v381, %v1225
    %v1227 = vtanh.pop %v1226
    %v1228 = vsub.f32 1.0, %v1224
    %v1229 = vmul.f32 %v1228, %v1227
    %v1230 = vmul.f32 %v1224, %v1067
    %v1231 = vadd.f32 %v1229, %v1230
    %s1232 = scalar_lea.vmem [#allocation2], 32
    %1233 = vst [vmem:[%s1232] sm:$0xff] %v1231
    %1234 = vmatprep.subr.mxu0 %v80
    %1235 = vmatpush1.msra.mxu0 %v79
    %1236 = vmatprep.subr.mxu0 %v83
    %1237 = vmatpush1.msra.mxu0 %v82
    %1238 = vmatprep.subr.mxu0 %v86
    %1239 = vmatpush1.msra.mxu0 %v85
    %1240 = vmatprep.subr.mxu0 %v89
    %1241 = vmatpush1.msra.mxu0 %v88
    %1242 = vmatprep.subr.mxu0 %v92
    %1243 = vmatpush1.msra.mxu0 %v91
    %1244 = vmatprep.subr.mxu0 %v95
    %1245 = vmatpush1.msra.mxu0 %v94
    %1246 = vmatprep.subr.mxu0 %v98
    %1247 = vmatpush1.msra.mxu0 %v97
    %1248 = vmatprep.subr.mxu0 %v101
    %1249 = vmatpush1.msra.mxu0 %v100
    %1250 = vmatprep.subr.mxu0 %v104
    %1251 = vmatpush1.msra.mxu0 %v103
    %1252 = vmatprep.subr.mxu0 %v107
    %1253 = vmatpush1.msra.mxu0 %v106
    %1254 = vmatprep.subr.mxu0 %v110
    %1255 = vmatpush1.msra.mxu0 %v109
    %1256 = vmatprep.subr.mxu0 %v113
    %1257 = vmatpush1.msra.mxu0 %v112
    %1258 = vmatprep.subr.mxu0 %v116
    %1259 = vmatpush1.msra.mxu0 %v115
    %1260 = vmatprep.subr.mxu0 %v119
    %1261 = vmatpush1.msra.mxu0 %v118
    %1262 = vmatprep.subr.mxu0 %v122
    %1263 = vmatpush1.msra.mxu0 %v121
    %1264 = vmatprep.subr.mxu0 %v125
    %1265 = vmatpush1.msra.mxu0 %v124
    %1266 = vmatprep.subr.mxu0 0.0
    %1267 = vmatpush1.msra.mxu0 0.0
    %1268 = vmatprep.subr.mxu0 0.0
    %1269 = vmatpush1.msra.mxu0 0.0
    %1270 = vmatprep.subr.mxu0 0.0
    %1271 = vmatpush1.msra.mxu0 0.0
    %1272 = vmatprep.subr.mxu0 0.0
    %1273 = vmatpush1.msra.mxu0 0.0
    %1274 = vmatprep.subr.mxu0 0.0
    %1275 = vmatpush1.msra.mxu0 0.0
    %1276 = vmatprep.subr.mxu0 0.0
    %1277 = vmatpush1.msra.mxu0 0.0
    %1278 = vmatprep.subr.mxu0 0.0
    %1279 = vmatpush1.msra.mxu0 0.0
    %1280 = vmatprep.subr.mxu0 0.0
    %1281 = vmatpush1.msra.mxu0 0.0
    %1282 = vmatprep.subr.mxu0 0.0
    %1283 = vmatpush1.msra.mxu0 0.0
    %1284 = vmatprep.subr.mxu0 0.0
    %1285 = vmatpush1.msra.mxu0 0.0
    %1286 = vmatprep.subr.mxu0 0.0
    %1287 = vmatpush1.msra.mxu0 0.0
    %1288 = vmatprep.subr.mxu0 0.0
    %1289 = vmatpush1.msra.mxu0 0.0
    %1290 = vmatprep.subr.mxu0 0.0
    %1291 = vmatpush1.msra.mxu0 0.0
    %1292 = vmatprep.subr.mxu0 0.0
    %1293 = vmatpush1.msra.mxu0 0.0
    %1294 = vmatprep.subr.mxu0 0.0
    %1295 = vmatpush1.msra.mxu0 0.0
    %1296 = vmatprep.subr.mxu0 0.0
    %1297 = vmatpush1.msra.mxu0 0.0
    %1298 = vmatprep.mubr.f32.mxu0 0.0
    %1299 = vmatmul.mubr.f32.gmra.mrb[0].mxu0 %v1231
    %v1300 = vpop.f32.mrb[0].mxu0
    %v1301 = vadd.f32 %v403, %v1300
    %v1302 = vpop.f32.mrb[0].mxu0
    %v1303 = vadd.f32 %v407, %v1302
    %1304 = vdwg.mxu0
    %1305 = vmatprep.subr.mxu0 0.0
    %1306 = vmatpush1.msra.mxu0 %v81
    %1307 = vmatprep.subr.mxu0 0.0
    %1308 = vmatpush1.msra.mxu0 %v84
    %1309 = vmatprep.subr.mxu0 0.0
    %1310 = vmatpush1.msra.mxu0 %v87
    %1311 = vmatprep.subr.mxu0 0.0
    %1312 = vmatpush1.msra.mxu0 %v90
    %1313 = vmatprep.subr.mxu0 0.0
    %1314 = vmatpush1.msra.mxu0 %v93
    %1315 = vmatprep.subr.mxu0 0.0
    %1316 = vmatpush1.msra.mxu0 %v96
    %1317 = vmatprep.subr.mxu0 0.0
    %1318 = vmatpush1.msra.mxu0 %v99
    %1319 = vmatprep.subr.mxu0 0.0
    %1320 = vmatpush1.msra.mxu0 %v102
    %1321 = vmatprep.subr.mxu0 0.0
    %1322 = vmatpush1.msra.mxu0 %v105
    %1323 = vmatprep.subr.mxu0 0.0
    %1324 = vmatpush1.msra.mxu0 %v108
    %1325 = vmatprep.subr.mxu0 0.0
    %1326 = vmatpush1.msra.mxu0 %v111
    %1327 = vmatprep.subr.mxu0 0.0
    %1328 = vmatpush1.msra.mxu0 %v114
    %1329 = vmatprep.subr.mxu0 0.0
    %1330 = vmatpush1.msra.mxu0 %v117
    %1331 = vmatprep.subr.mxu0 0.0
    %1332 = vmatpush1.msra.mxu0 %v120
    %1333 = vmatprep.subr.mxu0 0.0
    %1334 = vmatpush1.msra.mxu0 %v123
    %1335 = vmatprep.subr.mxu0 0.0
    %1336 = vmatpush1.msra.mxu0 %v126
    %1337 = vmatprep.subr.mxu0 0.0
    %1338 = vmatpush1.msra.mxu0 0.0
    %1339 = vmatprep.subr.mxu0 0.0
    %1340 = vmatpush1.msra.mxu0 0.0
    %1341 = vmatprep.subr.mxu0 0.0
    %1342 = vmatpush1.msra.mxu0 0.0
    %1343 = vmatprep.subr.mxu0 0.0
    %1344 = vmatpush1.msra.mxu0 0.0
    %1345 = vmatprep.subr.mxu0 0.0
    %1346 = vmatpush1.msra.mxu0 0.0
    %1347 = vmatprep.subr.mxu0 0.0
    %1348 = vmatpush1.msra.mxu0 0.0
    %1349 = vmatprep.subr.mxu0 0.0
    %1350 = vmatpush1.msra.mxu0 0.0
    %1351 = vmatprep.subr.mxu0 0.0
    %1352 = vmatpush1.msra.mxu0 0.0
    %1353 = vmatprep.subr.mxu0 0.0
    %1354 = vmatpush1.msra.mxu0 0.0
    %1355 = vmatprep.subr.mxu0 0.0
    %1356 = vmatpush1.msra.mxu0 0.0
    %1357 = vmatprep.subr.mxu0 0.0
    %1358 = vmatpush1.msra.mxu0 0.0
    %1359 = vmatprep.subr.mxu0 0.0
    %1360 = vmatpush1.msra.mxu0 0.0
    %1361 = vmatprep.subr.mxu0 0.0
    %1362 = vmatpush1.msra.mxu0 0.0
    %1363 = vmatprep.subr.mxu0 0.0
    %1364 = vmatpush1.msra.mxu0 0.0
    %1365 = vmatprep.subr.mxu0 0.0
    %1366 = vmatpush1.msra.mxu0 0.0
    %1367 = vmatprep.subr.mxu0 0.0
    %1368 = vmatpush1.msra.mxu0 0.0
    %1369 = vmatprep.mubr.f32.mxu0 0.0
    %1370 = vmatmul.mubr.f32.gmra.mrb[0].mxu0 %v1231
    %v1371 = vpop.f32.mrb[0].mxu0
    %v1372 = vadd.f32 %v411, %v1371
    %v1373 = vpop.f32.mrb[0].mxu0
    %1374 = vdwg.mxu0
    %v1375 = vadd.f32 %v278, %v1301
    %v1376 = vxor.u32 %v1375, 2147483648
    %v1377 = vmul.f32 %v1376, 1.442695
    %v1378 = vpow.pop %v1377
    %v1379 = vadd.f32 %v1378, 1.0
    %v1380 = vrcp.pop %v1379
    %v1381 = vmul.f32 1.0, %v1380
    %v1382 = vadd.f32 %v280, %v1303
    %v1383 = vxor.u32 %v1382, 2147483648
    %v1384 = vmul.f32 %v1383, 1.442695
    %v1385 = vpow.pop %v1384
    %v1386 = vadd.f32 %v1385, 1.0
    %v1387 = vrcp.pop %v1386
    %v1388 = vmul.f32 1.0, %v1387
    %v1389 = vmul.f32 %v1381, %v1372
    %v1390 = vadd.f32 %v386, %v1389
    %v1391 = vtanh.pop %v1390
    %v1392 = vsub.f32 1.0, %v1388
    %v1393 = vmul.f32 %v1392, %v1391
    %v1394 = vmul.f32 %v1388, %v1231
    %v1395 = vadd.f32 %v1393, %v1394
    %s1396 = scalar_lea.vmem [#allocation2], 40
    %1397 = vst [vmem:[%s1396] sm:$0xff] %v1395
    %1398 = vmatprep.subr.mxu0 %v80
    %1399 = vmatpush1.msra.mxu0 %v79
    %1400 = vmatprep.subr.mxu0 %v83
    %1401 = vmatpush1.msra.mxu0 %v82
    %1402 = vmatprep.subr.mxu0 %v86
    %1403 = vmatpush1.msra.mxu0 %v85
    %1404 = vmatprep.subr.mxu0 %v89
    %1405 = vmatpush1.msra.mxu0 %v88
    %1406 = vmatprep.subr.mxu0 %v92
    %1407 = vmatpush1.msra.mxu0 %v91
    %1408 = vmatprep.subr.mxu0 %v95
    %1409 = vmatpush1.msra.mxu0 %v94
    %1410 = vmatprep.subr.mxu0 %v98
    %1411 = vmatpush1.msra.mxu0 %v97
    %1412 = vmatprep.subr.mxu0 %v101
    %1413 = vmatpush1.msra.mxu0 %v100
    %1414 = vmatprep.subr.mxu0 %v104
    %1415 = vmatpush1.msra.mxu0 %v103
    %1416 = vmatprep.subr.mxu0 %v107
    %1417 = vmatpush1.msra.mxu0 %v106
    %1418 = vmatprep.subr.mxu0 %v110
    %1419 = vmatpush1.msra.mxu0 %v109
    %1420 = vmatprep.subr.mxu0 %v113
    %1421 = vmatpush1.msra.mxu0 %v112
    %1422 = vmatprep.subr.mxu0 %v116
    %1423 = vmatpush1.msra.mxu0 %v115
    %1424 = vmatprep.subr.mxu0 %v119
    %1425 = vmatpush1.msra.mxu0 %v118
    %1426 = vmatprep.subr.mxu0 %v122
    %1427 = vmatpush1.msra.mxu0 %v121
    %1428 = vmatprep.subr.mxu0 %v125
    %1429 = vmatpush1.msra.mxu0 %v124
    %1430 = vmatprep.subr.mxu0 0.0
    %1431 = vmatpush1.msra.mxu0 0.0
    %1432 = vmatprep.subr.mxu0 0.0
    %1433 = vmatpush1.msra.mxu0 0.0
    %1434 = vmatprep.subr.mxu0 0.0
    %1435 = vmatpush1.msra.mxu0 0.0
    %1436 = vmatprep.subr.mxu0 0.0
    %1437 = vmatpush1.msra.mxu0 0.0
    %1438 = vmatprep.subr.mxu0 0.0
    %1439 = vmatpush1.msra.mxu0 0.0
    %1440 = vmatprep.subr.mxu0 0.0
    %1441 = vmatpush1.msra.mxu0 0.0
    %1442 = vmatprep.subr.mxu0 0.0
    %1443 = vmatpush1.msra.mxu0 0.0
    %1444 = vmatprep.subr.mxu0 0.0
    %1445 = vmatpush1.msra.mxu0 0.0
    %1446 = vmatprep.subr.mxu0 0.0
    %1447 = vmatpush1.msra.mxu0 0.0
    %1448 = vmatprep.subr.mxu0 0.0
    %1449 = vmatpush1.msra.mxu0 0.0
    %1450 = vmatprep.subr.mxu0 0.0
    %1451 = vmatpush1.msra.mxu0 0.0
    %1452 = vmatprep.subr.mxu0 0.0
    %1453 = vmatpush1.msra.mxu0 0.0
    %1454 = vmatprep.subr.mxu0 0.0
    %1455 = vmatpush1.msra.mxu0 0.0
    %1456 = vmatprep.subr.mxu0 0.0
    %1457 = vmatpush1.msra.mxu0 0.0
    %1458 = vmatprep.subr.mxu0 0.0
    %1459 = vmatpush1.msra.mxu0 0.0
    %1460 = vmatprep.subr.mxu0 0.0
    %1461 = vmatpush1.msra.mxu0 0.0
    %1462 = vmatprep.mubr.f32.mxu0 0.0
    %1463 = vmatmul.mubr.f32.gmra.mrb[0].mxu0 %v1395
    %v1464 = vpop.f32.mrb[0].mxu0
    %v1465 = vadd.f32 %v403, %v1464
    %v1466 = vpop.f32.mrb[0].mxu0
    %v1467 = vadd.f32 %v407, %v1466
    %1468 = vdwg.mxu0
    %1469 = vmatprep.subr.mxu0 0.0
    %1470 = vmatpush1.msra.mxu0 %v81
    %1471 = vmatprep.subr.mxu0 0.0
    %1472 = vmatpush1.msra.mxu0 %v84
    %1473 = vmatprep.subr.mxu0 0.0
    %1474 = vmatpush1.msra.mxu0 %v87
    %1475 = vmatprep.subr.mxu0 0.0
    %1476 = vmatpush1.msra.mxu0 %v90
    %1477 = vmatprep.subr.mxu0 0.0
    %1478 = vmatpush1.msra.mxu0 %v93
    %1479 = vmatprep.subr.mxu0 0.0
    %1480 = vmatpush1.msra.mxu0 %v96
    %1481 = vmatprep.subr.mxu0 0.0
    %1482 = vmatpush1.msra.mxu0 %v99
    %1483 = vmatprep.subr.mxu0 0.0
    %1484 = vmatpush1.msra.mxu0 %v102
    %1485 = vmatprep.subr.mxu0 0.0
    %1486 = vmatpush1.msra.mxu0 %v105
    %1487 = vmatprep.subr.mxu0 0.0
    %1488 = vmatpush1.msra.mxu0 %v108
    %1489 = vmatprep.subr.mxu0 0.0
    %1490 = vmatpush1.msra.mxu0 %v111
    %1491 = vmatprep.subr.mxu0 0.0
    %1492 = vmatpush1.msra.mxu0 %v114
    %1493 = vmatprep.subr.mxu0 0.0
    %1494 = vmatpush1.msra.mxu0 %v117
    %1495 = vmatprep.subr.mxu0 0.0
    %1496 = vmatpush1.msra.mxu0 %v120
    %1497 = vmatprep.subr.mxu0 0.0
    %1498 = vmatpush1.msra.mxu0 %v123
    %1499 = vmatprep.subr.mxu0 0.0
    %1500 = vmatpush1.msra.mxu0 %v126
    %1501 = vmatprep.subr.mxu0 0.0
    %1502 = vmatpush1.msra.mxu0 0.0
    %1503 = vmatprep.subr.mxu0 0.0
    %1504 = vmatpush1.msra.mxu0 0.0
    %1505 = vmatprep.subr.mxu0 0.0
    %1506 = vmatpush1.msra.mxu0 0.0
    %1507 = vmatprep.subr.mxu0 0.0
    %1508 = vmatpush1.msra.mxu0 0.0
    %1509 = vmatprep.subr.mxu0 0.0
    %1510 = vmatpush1.msra.mxu0 0.0
    %1511 = vmatprep.subr.mxu0 0.0
    %1512 = vmatpush1.msra.mxu0 0.0
    %1513 = vmatprep.subr.mxu0 0.0
    %1514 = vmatpush1.msra.mxu0 0.0
    %1515 = vmatprep.subr.mxu0 0.0
    %1516 = vmatpush1.msra.mxu0 0.0
    %1517 = vmatprep.subr.mxu0 0.0
    %1518 = vmatpush1.msra.mxu0 0.0
    %1519 = vmatprep.subr.mxu0 0.0
    %1520 = vmatpush1.msra.mxu0 0.0
    %1521 = vmatprep.subr.mxu0 0.0
    %1522 = vmatpush1.msra.mxu0 0.0
    %1523 = vmatprep.subr.mxu0 0.0
    %1524 = vmatpush1.msra.mxu0 0.0
    %1525 = vmatprep.subr.mxu0 0.0
    %1526 = vmatpush1.msra.mxu0 0.0
    %1527 = vmatprep.subr.mxu0 0.0
    %1528 = vmatpush1.msra.mxu0 0.0
    %1529 = vmatprep.subr.mxu0 0.0
    %1530 = vmatpush1.msra.mxu0 0.0
    %1531 = vmatprep.subr.mxu0 0.0
    %1532 = vmatpush1.msra.mxu0 0.0
    %1533 = vmatprep.mubr.f32.mxu0 0.0
    %1534 = vmatmul.mubr.f32.gmra.mrb[0].mxu0 %v1395
    %v1535 = vpop.f32.mrb[0].mxu0
    %v1536 = vadd.f32 %v411, %v1535
    %v1537 = vpop.f32.mrb[0].mxu0
    %1538 = vdwg.mxu0
    %v1539 = vadd.f32 %v284, %v1465
    %v1540 = vxor.u32 %v1539, 2147483648
    %v1541 = vmul.f32 %v1540, 1.442695
    %v1542 = vpow.pop %v1541
    %v1543 = vadd.f32 %v1542, 1.0
    %v1544 = vrcp.pop %v1543
    %v1545 = vmul.f32 1.0, %v1544
    %v1546 = vadd.f32 %v286, %v1467
    %v1547 = vxor.u32 %v1546, 2147483648
    %v1548 = vmul.f32 %v1547, 1.442695
    %v1549 = vpow.pop %v1548
    %v1550 = vadd.f32 %v1549, 1.0
    %v1551 = vrcp.pop %v1550
    %v1552 = vmul.f32 1.0, %v1551
    %v1553 = vmul.f32 %v1545, %v1536
    %v1554 = vadd.f32 %v391, %v1553
    %v1555 = vtanh.pop %v1554
    %v1556 = vsub.f32 1.0, %v1552
    %v1557 = vmul.f32 %v1556, %v1555
    %v1558 = vmul.f32 %v1552, %v1395
    %v1559 = vadd.f32 %v1557, %v1558
    %s1560 = scalar_lea.vmem [#allocation2], 48
    %1561 = vst [vmem:[%s1560] sm:$0xff] %v1559
    %1562 = vmatprep.subr.mxu0 %v80
    %1563 = vmatpush1.msra.mxu0 %v79
    %1564 = vmatprep.subr.mxu0 %v83
    %1565 = vmatpush1.msra.mxu0 %v82
    %1566 = vmatprep.subr.mxu0 %v86
    %1567 = vmatpush1.msra.mxu0 %v85
    %1568 = vmatprep.subr.mxu0 %v89
    %1569 = vmatpush1.msra.mxu0 %v88
    %1570 = vmatprep.subr.mxu0 %v92
    %1571 = vmatpush1.msra.mxu0 %v91
    %1572 = vmatprep.subr.mxu0 %v95
    %1573 = vmatpush1.msra.mxu0 %v94
    %1574 = vmatprep.subr.mxu0 %v98
    %1575 = vmatpush1.msra.mxu0 %v97
    %1576 = vmatprep.subr.mxu0 %v101
    %1577 = vmatpush1.msra.mxu0 %v100
    %1578 = vmatprep.subr.mxu0 %v104
    %1579 = vmatpush1.msra.mxu0 %v103
    %1580 = vmatprep.subr.mxu0 %v107
    %1581 = vmatpush1.msra.mxu0 %v106
    %1582 = vmatprep.subr.mxu0 %v110
    %1583 = vmatpush1.msra.mxu0 %v109
    %1584 = vmatprep.subr.mxu0 %v113
    %1585 = vmatpush1.msra.mxu0 %v112
    %1586 = vmatprep.subr.mxu0 %v116
    %1587 = vmatpush1.msra.mxu0 %v115
    %1588 = vmatprep.subr.mxu0 %v119
    %1589 = vmatpush1.msra.mxu0 %v118
    %1590 = vmatprep.subr.mxu0 %v122
    %1591 = vmatpush1.msra.mxu0 %v121
    %1592 = vmatprep.subr.mxu0 %v125
    %1593 = vmatpush1.msra.mxu0 %v124
    %1594 = vmatprep.subr.mxu0 0.0
    %1595 = vmatpush1.msra.mxu0 0.0
    %1596 = vmatprep.subr.mxu0 0.0
    %1597 = vmatpush1.msra.mxu0 0.0
    %1598 = vmatprep.subr.mxu0 0.0
    %1599 = vmatpush1.msra.mxu0 0.0
    %1600 = vmatprep.subr.mxu0 0.0
    %1601 = vmatpush1.msra.mxu0 0.0
    %1602 = vmatprep.subr.mxu0 0.0
    %1603 = vmatpush1.msra.mxu0 0.0
    %1604 = vmatprep.subr.mxu0 0.0
    %1605 = vmatpush1.msra.mxu0 0.0
    %1606 = vmatprep.subr.mxu0 0.0
    %1607 = vmatpush1.msra.mxu0 0.0
    %1608 = vmatprep.subr.mxu0 0.0
    %1609 = vmatpush1.msra.mxu0 0.0
    %1610 = vmatprep.subr.mxu0 0.0
    %1611 = vmatpush1.msra.mxu0 0.0
    %1612 = vmatprep.subr.mxu0 0.0
    %1613 = vmatpush1.msra.mxu0 0.0
    %1614 = vmatprep.subr.mxu0 0.0
    %1615 = vmatpush1.msra.mxu0 0.0
    %1616 = vmatprep.subr.mxu0 0.0
    %1617 = vmatpush1.msra.mxu0 0.0
    %1618 = vmatprep.subr.mxu0 0.0
    %1619 = vmatpush1.msra.mxu0 0.0
    %1620 = vmatprep.subr.mxu0 0.0
    %1621 = vmatpush1.msra.mxu0 0.0
    %1622 = vmatprep.subr.mxu0 0.0
    %1623 = vmatpush1.msra.mxu0 0.0
    %1624 = vmatprep.subr.mxu0 0.0
    %1625 = vmatpush1.msra.mxu0 0.0
    %1626 = vmatprep.mubr.f32.mxu0 0.0
    %1627 = vmatmul.mubr.f32.gmra.mrb[0].mxu0 %v1559
    %v1628 = vpop.f32.mrb[0].mxu0
    %v1629 = vadd.f32 %v403, %v1628
    %v1630 = vpop.f32.mrb[0].mxu0
    %v1631 = vadd.f32 %v407, %v1630
    %1632 = vdwg.mxu0
    %1633 = vmatprep.subr.mxu0 0.0
    %1634 = vmatpush1.msra.mxu0 %v81
    %1635 = vmatprep.subr.mxu0 0.0
    %1636 = vmatpush1.msra.mxu0 %v84
    %1637 = vmatprep.subr.mxu0 0.0
    %1638 = vmatpush1.msra.mxu0 %v87
    %1639 = vmatprep.subr.mxu0 0.0
    %1640 = vmatpush1.msra.mxu0 %v90
    %1641 = vmatprep.subr.mxu0 0.0
    %1642 = vmatpush1.msra.mxu0 %v93
    %1643 = vmatprep.subr.mxu0 0.0
    %1644 = vmatpush1.msra.mxu0 %v96
    %1645 = vmatprep.subr.mxu0 0.0
    %1646 = vmatpush1.msra.mxu0 %v99
    %1647 = vmatprep.subr.mxu0 0.0
    %1648 = vmatpush1.msra.mxu0 %v102
    %1649 = vmatprep.subr.mxu0 0.0
    %1650 = vmatpush1.msra.mxu0 %v105
    %1651 = vmatprep.subr.mxu0 0.0
    %1652 = vmatpush1.msra.mxu0 %v108
    %1653 = vmatprep.subr.mxu0 0.0
    %1654 = vmatpush1.msra.mxu0 %v111
    %1655 = vmatprep.subr.mxu0 0.0
    %1656 = vmatpush1.msra.mxu0 %v114
    %1657 = vmatprep.subr.mxu0 0.0
    %1658 = vmatpush1.msra.mxu0 %v117
    %1659 = vmatprep.subr.mxu0 0.0
    %1660 = vmatpush1.msra.mxu0 %v120
    %1661 = vmatprep.subr.mxu0 0.0
    %1662 = vmatpush1.msra.mxu0 %v123
    %1663 = vmatprep.subr.mxu0 0.0
    %1664 = vmatpush1.msra.mxu0 %v126
    %1665 = vmatprep.subr.mxu0 0.0
    %1666 = vmatpush1.msra.mxu0 0.0
    %1667 = vmatprep.subr.mxu0 0.0
    %1668 = vmatpush1.msra.mxu0 0.0
    %1669 = vmatprep.subr.mxu0 0.0
    %1670 = vmatpush1.msra.mxu0 0.0
    %1671 = vmatprep.subr.mxu0 0.0
    %1672 = vmatpush1.msra.mxu0 0.0
    %1673 = vmatprep.subr.mxu0 0.0
    %1674 = vmatpush1.msra.mxu0 0.0
    %1675 = vmatprep.subr.mxu0 0.0
    %1676 = vmatpush1.msra.mxu0 0.0
    %1677 = vmatprep.subr.mxu0 0.0
    %1678 = vmatpush1.msra.mxu0 0.0
    %1679 = vmatprep.subr.mxu0 0.0
    %1680 = vmatpush1.msra.mxu0 0.0
    %1681 = vmatprep.subr.mxu0 0.0
    %1682 = vmatpush1.msra.mxu0 0.0
    %1683 = vmatprep.subr.mxu0 0.0
    %1684 = vmatpush1.msra.mxu0 0.0
    %1685 = vmatprep.subr.mxu0 0.0
    %1686 = vmatpush1.msra.mxu0 0.0
    %1687 = vmatprep.subr.mxu0 0.0
    %1688 = vmatpush1.msra.mxu0 0.0
    %1689 = vmatprep.subr.mxu0 0.0
    %1690 = vmatpush1.msra.mxu0 0.0
    %1691 = vmatprep.subr.mxu0 0.0
    %1692 = vmatpush1.msra.mxu0 0.0
    %1693 = vmatprep.subr.mxu0 0.0
    %1694 = vmatpush1.msra.mxu0 0.0
    %1695 = vmatprep.subr.mxu0 0.0
    %1696 = vmatpush1.msra.mxu0 0.0
    %1697 = vmatprep.mubr.f32.mxu0 0.0
    %1698 = vmatmul.mubr.f32.gmra.mrb[0].mxu0 %v1559
    %v1699 = vpop.f32.mrb[0].mxu0
    %v1700 = vadd.f32 %v411, %v1699
    %v1701 = vpop.f32.mrb[0].mxu0
    %1702 = vdwg.mxu0
    %v1703 = vadd.f32 %v290, %v1629
    %v1704 = vxor.u32 %v1703, 2147483648
    %v1705 = vmul.f32 %v1704, 1.442695
    %v1706 = vpow.pop %v1705
    %v1707 = vadd.f32 %v1706, 1.0
    %v1708 = vrcp.pop %v1707
    %v1709 = vmul.f32 1.0, %v1708
    %v1710 = vadd.f32 %v292, %v1631
    %v1711 = vxor.u32 %v1710, 2147483648
    %v1712 = vmul.f32 %v1711, 1.442695
    %v1713 = vpow.pop %v1712
    %v1714 = vadd.f32 %v1713, 1.0
    %v1715 = vrcp.pop %v1714
    %v1716 = vmul.f32 1.0, %v1715
    %v1717 = vmul.f32 %v1709, %v1700
    %v1718 = vadd.f32 %v396, %v1717
    %v1719 = vtanh.pop %v1718
    %v1720 = vsub.f32 1.0, %v1716
    %v1721 = vmul.f32 %v1720, %v1719
    %v1722 = vmul.f32 %v1716, %v1559
    %v1723 = vadd.f32 %v1721, %v1722
    %s1724 = scalar_lea.vmem [#allocation2], 56
    %1725 = vst [vmem:[%s1724] sm:$0xff] %v1723
    %v1726 = vld [vmem:[#allocation2] sm:$0xff]
    %v1727 = vld [vmem:[#allocation2 + $0x8] sm:$0xff]
    %v1728 = vld [vmem:[#allocation2 + $0x10] sm:$0xff]
    %v1729 = vld [vmem:[#allocation2 + $0x18] sm:$0xff]
    %v1730 = vld [vmem:[#allocation2 + $0x20] sm:$0xff]
    %v1731 = vld [vmem:[#allocation2 + $0x28] sm:$0xff]
    %v1732 = vld [vmem:[#allocation2 + $0x30] sm:$0xff]
    %v1733 = vld [vmem:[#allocation2 + $0x38] sm:$0xff]
    %v1734 = vcombine.low %v1726, %v1728
    %v1735 = vcombine.high %v1726, %v1728
    %v1737 = vunpack.c.l.s4 1983009808
    %v1738 = vunpack.c.0.s8 %v1737
    %v1739 = vlaneseq
    %v1740 = vshrl.u32 %v1739, 7
    %v1741 = vsub.s32 %v1738, %v1740
    %v1742 = vrot.slane %v1734, %v1741
    %v1744 = vunpack.c.l.s4 1983009808
    %v1745 = vunpack.c.0.s8 %v1744
    %v1746 = vlaneseq
    %v1747 = vshrl.u32 %v1746, 7
    %v1748 = vsub.s32 %v1745, %v1747
    %v1749 = vrot.slane %v1735, %v1748
    %v1750 = vcombine.low %v1727, %v1729
    %v1751 = vcombine.high %v1727, %v1729
    %v1753 = vunpack.c.l.s4 1983009808
    %v1754 = vunpack.c.0.s8 %v1753
    %v1755 = vlaneseq
    %v1756 = vshrl.u32 %v1755, 7
    %v1757 = vsub.s32 %v1754, %v1756
    %v1758 = vrot.slane %v1750, %v1757
    %v1760 = vunpack.c.l.s4 1983009808
    %v1761 = vunpack.c.0.s8 %v1760
    %v1762 = vlaneseq
    %v1763 = vshrl.u32 %v1762, 7
    %v1764 = vsub.s32 %v1761, %v1763
    %v1765 = vrot.slane %v1751, %v1764
    %v1766 = vcombine.low %v1730, %v1732
    %v1767 = vcombine.high %v1730, %v1732
    %v1769 = vunpack.c.l.s4 1983009808
    %v1770 = vunpack.c.0.s8 %v1769
    %v1771 = vlaneseq
    %v1772 = vshrl.u32 %v1771, 7
    %v1773 = vsub.s32 %v1770, %v1772
    %v1774 = vrot.slane %v1766, %v1773
    %v1776 = vunpack.c.l.s4 1983009808
    %v1777 = vunpack.c.0.s8 %v1776
    %v1778 = vlaneseq
    %v1779 = vshrl.u32 %v1778, 7
    %v1780 = vsub.s32 %v1777, %v1779
    %v1781 = vrot.slane %v1767, %v1780
    %v1782 = vcombine.low %v1731, %v1733
    %v1783 = vcombine.high %v1731, %v1733
    %v1785 = vunpack.c.l.s4 1983009808
    %v1786 = vunpack.c.0.s8 %v1785
    %v1787 = vlaneseq
    %v1788 = vshrl.u32 %v1787, 7
    %v1789 = vsub.s32 %v1786, %v1788
    %v1790 = vrot.slane %v1782, %v1789
    %v1792 = vunpack.c.l.s4 1983009808
    %v1793 = vunpack.c.0.s8 %v1792
    %v1794 = vlaneseq
    %v1795 = vshrl.u32 %v1794, 7
    %v1796 = vsub.s32 %v1793, %v1795
    %v1797 = vrot.slane %v1783, %v1796
    %v1798 = vcombine.low %v1742, %v1758
    %v1799 = vcombine.high %v1742, %v1758
    %v1801 = vunpack.c.l.s4 1934713408
    %v1802 = vunpack.c.0.s8 %v1801
    %v1803 = vlaneseq
    %v1804 = vshrl.u32 %v1803, 7
    %v1805 = vsub.s32 %v1802, %v1804
    %v1806 = vrot.slane %v1798, %v1805
    %v1808 = vunpack.c.l.s4 1934713408
    %v1809 = vunpack.c.0.s8 %v1808
    %v1810 = vlaneseq
    %v1811 = vshrl.u32 %v1810, 7
    %v1812 = vsub.s32 %v1809, %v1811
    %v1813 = vrot.slane %v1799, %v1812
    %v1814 = vcombine.low %v1749, %v1765
    %v1815 = vcombine.high %v1749, %v1765
    %v1817 = vunpack.c.l.s4 1934713408
    %v1818 = vunpack.c.0.s8 %v1817
    %v1819 = vlaneseq
    %v1820 = vshrl.u32 %v1819, 7
    %v1821 = vsub.s32 %v1818, %v1820
    %v1822 = vrot.slane %v1814, %v1821
    %v1824 = vunpack.c.l.s4 1934713408
    %v1825 = vunpack.c.0.s8 %v1824
    %v1826 = vlaneseq
    %v1827 = vshrl.u32 %v1826, 7
    %v1828 = vsub.s32 %v1825, %v1827
    %v1829 = vrot.slane %v1815, %v1828
    %v1830 = vcombine.low %v1774, %v1790
    %v1831 = vcombine.high %v1774, %v1790
    %v1833 = vunpack.c.l.s4 1934713408
    %v1834 = vunpack.c.0.s8 %v1833
    %v1835 = vlaneseq
    %v1836 = vshrl.u32 %v1835, 7
    %v1837 = vsub.s32 %v1834, %v1836
    %v1838 = vrot.slane %v1830, %v1837
    %v1840 = vunpack.c.l.s4 1934713408
    %v1841 = vunpack.c.0.s8 %v1840
    %v1842 = vlaneseq
    %v1843 = vshrl.u32 %v1842, 7
    %v1844 = vsub.s32 %v1841, %v1843
    %v1845 = vrot.slane %v1831, %v1844
    %v1846 = vcombine.low %v1781, %v1797
    %v1847 = vcombine.high %v1781, %v1797
    %v1849 = vunpack.c.l.s4 1934713408
    %v1850 = vunpack.c.0.s8 %v1849
    %v1851 = vlaneseq
    %v1852 = vshrl.u32 %v1851, 7
    %v1853 = vsub.s32 %v1850, %v1852
    %v1854 = vrot.slane %v1846, %v1853
    %v1856 = vunpack.c.l.s4 1934713408
    %v1857 = vunpack.c.0.s8 %v1856
    %v1858 = vlaneseq
    %v1859 = vshrl.u32 %v1858, 7
    %v1860 = vsub.s32 %v1857, %v1859
    %v1861 = vrot.slane %v1847, %v1860
    %v1862 = vcombine.low %v1806, %v1838
    %v1863 = vcombine.high %v1806, %v1838
    %v1864 = vcombine.low %v1813, %v1845
    %v1865 = vcombine.high %v1813, %v1845
    %v1866 = vcombine.low %v1822, %v1854
    %v1867 = vcombine.high %v1822, %v1854
    %v1868 = vcombine.low %v1829, %v1861
    %v1869 = vcombine.high %v1829, %v1861
    %v1870 = vld [vmem:[%s8] sm:$0xff]
    %v1871 = vld [vmem:[%s8 + $0x8] sm:$0xff]
    %v1872 = vld [vmem:[%s8 + $0x10] sm:$0xff]
    %v1873 = vld [vmem:[%s9] sm:$0xff]
    %v1874 = vld [vmem:[%s9 + $0x8] sm:$0xff]
    %v1875 = vld [vmem:[%s9 + $0x10] sm:$0xff]
    %v1876 = vld [vmem:[%s9 + $0x18] sm:$0xff]
    %v1877 = vld [vmem:[%s9 + $0x20] sm:$0xff]
    %v1878 = vld [vmem:[%s9 + $0x28] sm:$0xff]
    %v1879 = vld [vmem:[%s9 + $0x30] sm:$0xff]
    %v1880 = vld [vmem:[%s9 + $0x38] sm:$0xff]
    %v1881 = vld [vmem:[%s9 + $0x40] sm:$0xff]
    %v1882 = vld [vmem:[%s9 + $0x48] sm:$0xff]
    %v1883 = vld [vmem:[%s9 + $0x50] sm:$0xff]
    %v1884 = vld [vmem:[%s9 + $0x58] sm:$0xff]
    %v1885 = vld [vmem:[%s9 + $0x60] sm:$0xff]
    %v1886 = vld [vmem:[%s9 + $0x68] sm:$0xff]
    %v1887 = vld [vmem:[%s9 + $0x70] sm:$0xff]
    %v1888 = vld [vmem:[%s9 + $0x78] sm:$0xff]
    %v1889 = vld [vmem:[%s9 + $0x80] sm:$0xff]
    %v1890 = vld [vmem:[%s9 + $0x88] sm:$0xff]
    %v1891 = vld [vmem:[%s9 + $0x90] sm:$0xff]
    %v1892 = vld [vmem:[%s9 + $0x98] sm:$0xff]
    %v1893 = vld [vmem:[%s9 + $0xa0] sm:$0xff]
    %v1894 = vld [vmem:[%s9 + $0xa8] sm:$0xff]
    %v1895 = vld [vmem:[%s9 + $0xb0] sm:$0xff]
    %v1896 = vld [vmem:[%s9 + $0xb8] sm:$0xff]
    %v1897 = vld [vmem:[%s9 + $0xc0] sm:$0xff]
    %v1898 = vld [vmem:[%s9 + $0xc8] sm:$0xff]
    %v1899 = vld [vmem:[%s9 + $0xd0] sm:$0xff]
    %v1900 = vld [vmem:[%s9 + $0xd8] sm:$0xff]
    %v1901 = vld [vmem:[%s9 + $0xe0] sm:$0xff]
    %v1902 = vld [vmem:[%s9 + $0xe8] sm:$0xff]
    %v1903 = vld [vmem:[%s9 + $0xf0] sm:$0xff]
    %v1904 = vld [vmem:[%s9 + $0xf8] sm:$0xff]
    %v1905 = vld [vmem:[%s9 + $0x100] sm:$0xff]
    %v1906 = vld [vmem:[%s9 + $0x108] sm:$0xff]
    %v1907 = vld [vmem:[%s9 + $0x110] sm:$0xff]
    %v1908 = vld [vmem:[%s9 + $0x118] sm:$0xff]
    %v1909 = vld [vmem:[%s9 + $0x120] sm:$0xff]
    %v1910 = vld [vmem:[%s9 + $0x128] sm:$0xff]
    %v1911 = vld [vmem:[%s9 + $0x130] sm:$0xff]
    %v1912 = vld [vmem:[%s9 + $0x138] sm:$0xff]
    %v1913 = vld [vmem:[%s9 + $0x140] sm:$0xff]
    %v1914 = vld [vmem:[%s9 + $0x148] sm:$0xff]
    %v1915 = vld [vmem:[%s9 + $0x150] sm:$0xff]
    %v1916 = vld [vmem:[%s9 + $0x158] sm:$0xff]
    %v1917 = vld [vmem:[%s9 + $0x160] sm:$0xff]
    %v1918 = vld [vmem:[%s9 + $0x168] sm:$0xff]
    %v1919 = vld [vmem:[%s9 + $0x170] sm:$0xff]
    %v1920 = vld [vmem:[%s9 + $0x178] sm:$0xff]
    %v1921 = vld [vmem:[%s10] sm:$0xff]
    %v1922 = vld [vmem:[%s10 + $0x8] sm:$0xff]
    %v1923 = vld [vmem:[%s10 + $0x10] sm:$0xff]
    %v1924 = vld [vmem:[%s10 + $0x18] sm:$0xff]
    %v1925 = vld [vmem:[%s10 + $0x20] sm:$0xff]
    %v1926 = vld [vmem:[%s10 + $0x28] sm:$0xff]
    %v1927 = vld [vmem:[%s10 + $0x30] sm:$0xff]
    %v1928 = vld [vmem:[%s10 + $0x38] sm:$0xff]
    %v1929 = vld [vmem:[%s10 + $0x40] sm:$0xff]
    %v1930 = vld [vmem:[%s10 + $0x48] sm:$0xff]
    %v1931 = vld [vmem:[%s10 + $0x50] sm:$0xff]
    %v1932 = vld [vmem:[%s10 + $0x58] sm:$0xff]
    %v1933 = vld [vmem:[%s10 + $0x60] sm:$0xff]
    %v1934 = vld [vmem:[%s10 + $0x68] sm:$0xff]
    %v1935 = vld [vmem:[%s10 + $0x70] sm:$0xff]
    %v1936 = vld [vmem:[%s10 + $0x78] sm:$0xff]
    %v1937 = vld [vmem:[%s10 + $0x80] sm:$0xff]
    %v1938 = vld [vmem:[%s10 + $0x88] sm:$0xff]
    %v1939 = vld [vmem:[%s10 + $0x90] sm:$0xff]
    %v1940 = vld [vmem:[%s10 + $0x98] sm:$0xff]
    %v1941 = vld [vmem:[%s10 + $0xa0] sm:$0xff]
    %v1942 = vld [vmem:[%s10 + $0xa8] sm:$0xff]
    %v1943 = vld [vmem:[%s10 + $0xb0] sm:$0xff]
    %v1944 = vld [vmem:[%s10 + $0xb8] sm:$0xff]
    %v1945 = vld [vmem:[%s10 + $0xc0] sm:$0xff]
    %v1946 = vld [vmem:[%s10 + $0xc8] sm:$0xff]
    %v1947 = vld [vmem:[%s10 + $0xd0] sm:$0xff]
    %v1948 = vld [vmem:[%s10 + $0xd8] sm:$0xff]
    %v1949 = vld [vmem:[%s10 + $0xe0] sm:$0xff]
    %v1950 = vld [vmem:[%s10 + $0xe8] sm:$0xff]
    %v1951 = vld [vmem:[%s10 + $0xf0] sm:$0xff]
    %v1952 = vld [vmem:[%s10 + $0xf8] sm:$0xff]
    %v1953 = vld [vmem:[%s10 + $0x100] sm:$0xff]
    %v1954 = vld [vmem:[%s10 + $0x108] sm:$0xff]
    %v1955 = vld [vmem:[%s10 + $0x110] sm:$0xff]
    %v1956 = vld [vmem:[%s10 + $0x118] sm:$0xff]
    %v1957 = vld [vmem:[%s10 + $0x120] sm:$0xff]
    %v1958 = vld [vmem:[%s10 + $0x128] sm:$0xff]
    %v1959 = vld [vmem:[%s10 + $0x130] sm:$0xff]
    %v1960 = vld [vmem:[%s10 + $0x138] sm:$0xff]
    %v1961 = vld [vmem:[%s10 + $0x140] sm:$0xff]
    %v1962 = vld [vmem:[%s10 + $0x148] sm:$0xff]
    %v1963 = vld [vmem:[%s10 + $0x150] sm:$0xff]
    %v1964 = vld [vmem:[%s10 + $0x158] sm:$0xff]
    %v1965 = vld [vmem:[%s10 + $0x160] sm:$0xff]
    %v1966 = vld [vmem:[%s10 + $0x168] sm:$0xff]
    %v1967 = vld [vmem:[%s10 + $0x170] sm:$0xff]
    %v1968 = vld [vmem:[%s10 + $0x178] sm:$0xff]
    %v1969 = vld [vmem:[%s11] sm:$0x7]
    %v1970 = vld [vmem:[%s12] sm:$0x7]
    %v1971 = vld [vmem:[%s13] sm:$0xff]
    %v1972 = vld [vmem:[%s13 + $0x8] sm:$0xff]
    %v1973 = vld [vmem:[%s13 + $0x10] sm:$0xff]
    %v1974 = vld [vmem:[%s13 + $0x18] sm:$0xff]
    %v1975 = vld [vmem:[%s13 + $0x20] sm:$0xff]
    %v1976 = vld [vmem:[%s13 + $0x28] sm:$0xff]
    %v1977 = vld [vmem:[%s13 + $0x30] sm:$0xff]
    %v1978 = vld [vmem:[%s13 + $0x38] sm:$0xff]
    %v1979 = vld [vmem:[%s13 + $0x40] sm:$0xff]
    %v1980 = vld [vmem:[%s13 + $0x48] sm:$0xff]
    %v1981 = vld [vmem:[%s13 + $0x50] sm:$0xff]
    %v1982 = vld [vmem:[%s13 + $0x58] sm:$0xff]
    %v1983 = vld [vmem:[%s13 + $0x60] sm:$0xff]
    %v1984 = vld [vmem:[%s13 + $0x68] sm:$0xff]
    %v1985 = vld [vmem:[%s13 + $0x70] sm:$0xff]
    %v1986 = vld [vmem:[%s13 + $0x78] sm:$0xff]
    %v1987 = vld [vmem:[%s14] sm:$0xff]
    %v1988 = vld [vmem:[%s14 + $0x8] sm:$0xff]
    %v1989 = vld [vmem:[%s14 + $0x10] sm:$0xff]
    %v1990 = vld [vmem:[%s14 + $0x18] sm:$0xff]
    %v1991 = vld [vmem:[%s14 + $0x20] sm:$0xff]
    %v1992 = vld [vmem:[%s14 + $0x28] sm:$0xff]
    %v1993 = vld [vmem:[%s14 + $0x30] sm:$0xff]
    %v1994 = vld [vmem:[%s14 + $0x38] sm:$0xff]
    %v1995 = vld [vmem:[%s14 + $0x40] sm:$0xff]
    %v1996 = vld [vmem:[%s14 + $0x48] sm:$0xff]
    %v1997 = vld [vmem:[%s14 + $0x50] sm:$0xff]
    %v1998 = vld [vmem:[%s14 + $0x58] sm:$0xff]
    %v1999 = vld [vmem:[%s14 + $0x60] sm:$0xff]
    %v2000 = vld [vmem:[%s14 + $0x68] sm:$0xff]
    %v2001 = vld [vmem:[%s14 + $0x70] sm:$0xff]
    %v2002 = vld [vmem:[%s14 + $0x78] sm:$0xff]
    %v2003 = vld [vmem:[%s15] sm:$0x1]
    %v2004 = vld [vmem:[%s1] sm:$0xff]
    %v2006 = vcombine.high %v1723, %v1723
    %v2008 = vunpack.c.l.s4 1966171168
    %v2009 = vunpack.c.0.s8 %v2008
    %v2010 = vlaneseq
    %v2011 = vshrl.u32 %v2010, 7
    %v2012 = vsub.s32 %v2009, %v2011
    %v2013 = vrot.slane %v1723, %v2012
    %v2015 = vunpack.c.l.s4 1966171168
    %v2016 = vunpack.c.0.s8 %v2015
    %v2017 = vlaneseq
    %v2018 = vshrl.u32 %v2017, 7
    %v2019 = vsub.s32 %v2016, %v2018
    %v2020 = vrot.slane %v2006, %v2019
    %v2021 = vcombine.high %v2013, %v2013
    %v2022 = vcombine.high %v2020, %v2020
    %v2024 = vunpack.c.l.s4 1966171168
    %v2025 = vunpack.c.0.s8 %v2024
    %v2026 = vlaneseq
    %v2027 = vshrl.u32 %v2026, 7
    %v2028 = vsub.s32 %v2025, %v2027
    %v2029 = vrot.slane %v2013, %v2028
    %v2031 = vunpack.c.l.s4 1966171168
    %v2032 = vunpack.c.0.s8 %v2031
    %v2033 = vlaneseq
    %v2034 = vshrl.u32 %v2033, 7
    %v2035 = vsub.s32 %v2032, %v2034
    %v2036 = vrot.slane %v2020, %v2035
    %v2038 = vunpack.c.l.s4 1966171168
    %v2039 = vunpack.c.0.s8 %v2038
    %v2040 = vlaneseq
    %v2041 = vshrl.u32 %v2040, 7
    %v2042 = vsub.s32 %v2039, %v2041
    %v2043 = vrot.slane %v2021, %v2042
    %v2045 = vunpack.c.l.s4 1966171168
    %v2046 = vunpack.c.0.s8 %v2045
    %v2047 = vlaneseq
    %v2048 = vshrl.u32 %v2047, 7
    %v2049 = vsub.s32 %v2046, %v2048
    %v2050 = vrot.slane %v2022, %v2049
    %v2051 = vcombine.high %v2029, %v2029
    %v2052 = vcombine.high %v2036, %v2036
    %v2053 = vcombine.high %v2043, %v2043
    %v2054 = vcombine.high %v2050, %v2050
    %v2055 = vlaneseq
    %v2056 = vshrl.u32 %v2055, 7
    %v2057 = vsub.s32 0, %v2056
    %v2058 = vrot.slane %v2029, %v2057
    %v2059 = vlaneseq
    %v2060 = vshrl.u32 %v2059, 7
    %v2061 = vsub.s32 0, %v2060
    %v2062 = vrot.slane %v2043, %v2061
    %v2063 = vlaneseq
    %v2064 = vshrl.u32 %v2063, 7
    %v2065 = vsub.s32 0, %v2064
    %v2066 = vrot.slane %v2051, %v2065
    %v2067 = vlaneseq
    %v2068 = vshrl.u32 %v2067, 7
    %v2069 = vsub.s32 0, %v2068
    %v2070 = vrot.slane %v2053, %v2069
    %v2071 = vlaneseq
    %v2072 = vshrl.u32 %v2071, 7
    %v2073 = vsub.s32 0, %v2072
    %v2074 = vrot.slane %v2036, %v2073
    %v2075 = vlaneseq
    %v2076 = vshrl.u32 %v2075, 7
    %v2077 = vsub.s32 0, %v2076
    %v2078 = vrot.slane %v2050, %v2077
    %v2079 = vlaneseq
    %v2080 = vshrl.u32 %v2079, 7
    %v2081 = vsub.s32 0, %v2080
    %v2082 = vrot.slane %v2052, %v2081
    %v2083 = vlaneseq
    %v2084 = vshrl.u32 %v2083, 7
    %v2085 = vsub.s32 0, %v2084
    %v2086 = vrot.slane %v2054, %v2085
    %v2095 = vmul.f32 %v1862, %v2058
    %v2096 = vmul.f32 %v1863, %v2062
    %v2097 = vmul.f32 %v1864, %v2066
    %v2098 = vmul.f32 %v1865, %v2070
    %v2099 = vmul.f32 %v1866, %v2074
    %v2100 = vmul.f32 %v1867, %v2078
    %v2101 = vmul.f32 %v1868, %v2082
    %v2102 = vmul.f32 %v1869, %v2086
    %2103 = vadd.xlane.f32.xlu0 %v2095
    %v2104 = vpop.xlane.xlu0 %2103
    %2105 = vadd.xlane.f32.xlu0 %v2096
    %v2106 = vpop.xlane.xlu0 %2105
    %2107 = vadd.xlane.f32.xlu0 %v2097
    %v2108 = vpop.xlane.xlu0 %2107
    %2109 = vadd.xlane.f32.xlu0 %v2098
    %v2110 = vpop.xlane.xlu0 %2109
    %2111 = vadd.xlane.f32.xlu0 %v2099
    %v2112 = vpop.xlane.xlu0 %2111
    %2113 = vadd.xlane.f32.xlu0 %v2100
    %v2114 = vpop.xlane.xlu0 %2113
    %2115 = vadd.xlane.f32.xlu0 %v2101
    %v2116 = vpop.xlane.xlu0 %2115
    %2117 = vadd.xlane.f32.xlu0 %v2102
    %v2118 = vpop.xlane.xlu0 %2117
    %v2127 = vlaneseq
    %v2128 = vand.u32 %v2127, 127
    %v2129 = vlaneseq
    %v2130 = vshrl.u32 %v2129, 7
    %v2131 = vsub.s32 %v2128, %v2130
    %v2132 = vrot.slane %v2104, %v2131
    %v2133 = vlaneseq
    %v2134 = vshrl.u32 %v2133, 7
    %v2135 = vsub.s32 %v2128, %v2134
    %v2136 = vrot.slane %v2106, %v2135
    %v2137 = vlaneseq
    %v2138 = vshrl.u32 %v2137, 7
    %v2139 = vsub.s32 %v2128, %v2138
    %v2140 = vrot.slane %v2108, %v2139
    %v2141 = vlaneseq
    %v2142 = vshrl.u32 %v2141, 7
    %v2143 = vsub.s32 %v2128, %v2142
    %v2144 = vrot.slane %v2110, %v2143
    %v2145 = vlaneseq
    %v2146 = vshrl.u32 %v2145, 7
    %v2147 = vsub.s32 %v2128, %v2146
    %v2148 = vrot.slane %v2112, %v2147
    %v2149 = vlaneseq
    %v2150 = vshrl.u32 %v2149, 7
    %v2151 = vsub.s32 %v2128, %v2150
    %v2152 = vrot.slane %v2114, %v2151
    %v2153 = vlaneseq
    %v2154 = vshrl.u32 %v2153, 7
    %v2155 = vsub.s32 %v2128, %v2154
    %v2156 = vrot.slane %v2116, %v2155
    %v2157 = vlaneseq
    %v2158 = vshrl.u32 %v2157, 7
    %v2159 = vsub.s32 %v2128, %v2158
    %v2160 = vrot.slane %v2118, %v2159
    %vm2161 = vcmask 1041409
    %v2162 = vsel %vm2161, %v2136, %v2132
    %vm2163 = vcmask 1042434
    %v2164 = vsel %vm2163, %v2140, %v2162
    %vm2165 = vcmask 1043459
    %v2166 = vsel %vm2165, %v2144, %v2164
    %vm2167 = vcmask 1044484
    %v2168 = vsel %vm2167, %v2148, %v2166
    %vm2169 = vcmask 1045509
    %v2170 = vsel %vm2169, %v2152, %v2168
    %vm2171 = vcmask 1046534
    %v2172 = vsel %vm2171, %v2156, %v2170
    %vm2173 = vcmask 1047559
    %v2174 = vsel %vm2173, %v2160, %v2172
    %v2176 = vsel %vm156, %v2174, -inf
    %2177 = vmax.xlane.f32.xlu0 %v2176
    %v2178 = vpop.xlane.xlu0 %2177
    %v2180 = vlaneseq
    %v2181 = vshrl.u32 %v2180, 7
    %v2182 = vsub.s32 0, %v2181
    %v2183 = vrot.slane %v2178, %v2182
    %v2184 = vlaneseq
    %v2185 = vshrl.u32 %v2184, 7
    %v2186 = vsub.s32 1, %v2185
    %v2187 = vrot.slane %v2178, %v2186
    %v2188 = vlaneseq
    %v2189 = vshrl.u32 %v2188, 7
    %v2190 = vsub.s32 2, %v2189
    %v2191 = vrot.slane %v2178, %v2190
    %v2192 = vlaneseq
    %v2193 = vshrl.u32 %v2192, 7
    %v2194 = vsub.s32 3, %v2193
    %v2195 = vrot.slane %v2178, %v2194
    %v2196 = vlaneseq
    %v2197 = vshrl.u32 %v2196, 7
    %v2198 = vsub.s32 4, %v2197
    %v2199 = vrot.slane %v2178, %v2198
    %v2200 = vlaneseq
    %v2201 = vshrl.u32 %v2200, 7
    %v2202 = vsub.s32 5, %v2201
    %v2203 = vrot.slane %v2178, %v2202
    %v2204 = vlaneseq
    %v2205 = vshrl.u32 %v2204, 7
    %v2206 = vsub.s32 6, %v2205
    %v2207 = vrot.slane %v2178, %v2206
    %v2208 = vlaneseq
    %v2209 = vshrl.u32 %v2208, 7
    %v2210 = vsub.s32 7, %v2209
    %v2211 = vrot.slane %v2178, %v2210
    %v2220 = vsub.f32 %v2104, %v2183
    %v2221 = vsub.f32 %v2106, %v2187
    %v2222 = vsub.f32 %v2108, %v2191
    %v2223 = vsub.f32 %v2110, %v2195
    %v2224 = vsub.f32 %v2112, %v2199
    %v2225 = vsub.f32 %v2114, %v2203
    %v2226 = vsub.f32 %v2116, %v2207
    %v2227 = vsub.f32 %v2118, %v2211
    %v2228 = vmul.f32 %v2220, 1.442695
    %v2229 = vpow.pop %v2228
    %v2230 = vmul.f32 %v2221, 1.442695
    %v2231 = vpow.pop %v2230
    %v2232 = vmul.f32 %v2222, 1.442695
    %v2233 = vpow.pop %v2232
    %v2234 = vmul.f32 %v2223, 1.442695
    %v2235 = vpow.pop %v2234
    %v2236 = vmul.f32 %v2224, 1.442695
    %v2237 = vpow.pop %v2236
    %v2238 = vmul.f32 %v2225, 1.442695
    %v2239 = vpow.pop %v2238
    %v2240 = vmul.f32 %v2226, 1.442695
    %v2241 = vpow.pop %v2240
    %v2242 = vmul.f32 %v2227, 1.442695
    %v2243 = vpow.pop %v2242
    %2252 = vset.pattern.permute.xlu0 0
    %2253 = vperm.xlu0 %2252, %v2229
    %v2254 = vpop.permute.xlu0 %2253
    %2255 = vset.pattern.permute.xlu0 0
    %2256 = vperm.xlu0 %2255, %v2231
    %v2257 = vpop.permute.xlu0 %2256
    %2258 = vset.pattern.permute.xlu0 0
    %2259 = vperm.xlu0 %2258, %v2233
    %v2260 = vpop.permute.xlu0 %2259
    %2261 = vset.pattern.permute.xlu0 0
    %2262 = vperm.xlu0 %2261, %v2235
    %v2263 = vpop.permute.xlu0 %2262
    %2264 = vset.pattern.permute.xlu0 0
    %2265 = vperm.xlu0 %2264, %v2237
    %v2266 = vpop.permute.xlu0 %2265
    %2267 = vset.pattern.permute.xlu0 0
    %2268 = vperm.xlu0 %2267, %v2239
    %v2269 = vpop.permute.xlu0 %2268
    %2270 = vset.pattern.permute.xlu0 0
    %2271 = vperm.xlu0 %2270, %v2241
    %v2272 = vpop.permute.xlu0 %2271
    %2273 = vset.pattern.permute.xlu0 0
    %2274 = vperm.xlu0 %2273, %v2243
    %v2275 = vpop.permute.xlu0 %2274
    %v2276 = vlaneseq
    %v2277 = vshrl.u32 %v2276, 7
    %v2278 = vsub.s32 %v2128, %v2277
    %v2279 = vrot.slane %v2254, %v2278
    %v2280 = vlaneseq
    %v2281 = vshrl.u32 %v2280, 7
    %v2282 = vsub.s32 %v2128, %v2281
    %v2283 = vrot.slane %v2257, %v2282
    %v2284 = vlaneseq
    %v2285 = vshrl.u32 %v2284, 7
    %v2286 = vsub.s32 %v2128, %v2285
    %v2287 = vrot.slane %v2260, %v2286
    %v2288 = vlaneseq
    %v2289 = vshrl.u32 %v2288, 7
    %v2290 = vsub.s32 %v2128, %v2289
    %v2291 = vrot.slane %v2263, %v2290
    %v2292 = vlaneseq
    %v2293 = vshrl.u32 %v2292, 7
    %v2294 = vsub.s32 %v2128, %v2293
    %v2295 = vrot.slane %v2266, %v2294
    %v2296 = vlaneseq
    %v2297 = vshrl.u32 %v2296, 7
    %v2298 = vsub.s32 %v2128, %v2297
    %v2299 = vrot.slane %v2269, %v2298
    %v2300 = vlaneseq
    %v2301 = vshrl.u32 %v2300, 7
    %v2302 = vsub.s32 %v2128, %v2301
    %v2303 = vrot.slane %v2272, %v2302
    %v2304 = vlaneseq
    %v2305 = vshrl.u32 %v2304, 7
    %v2306 = vsub.s32 %v2128, %v2305
    %v2307 = vrot.slane %v2275, %v2306
    %v2308 = vsel %vm2161, %v2283, %v2279
    %v2309 = vsel %vm2163, %v2287, %v2308
    %v2310 = vsel %vm2165, %v2291, %v2309
    %v2311 = vsel %vm2167, %v2295, %v2310
    %v2312 = vsel %vm2169, %v2299, %v2311
    %v2313 = vsel %vm2171, %v2303, %v2312
    %v2314 = vsel %vm2173, %v2307, %v2313
    %v2316 = vsel %vm156, %v2314, 0.0
    %2317 = vadd.xlane.f32.xlu0 %v2316
    %v2318 = vpop.xlane.xlu0 %2317
    %v2319 = vrcp.pop %v2318
    %v2321 = vlaneseq
    %v2322 = vshrl.u32 %v2321, 7
    %v2323 = vsub.s32 0, %v2322
    %v2324 = vrot.slane %v2319, %v2323
    %v2325 = vlaneseq
    %v2326 = vshrl.u32 %v2325, 7
    %v2327 = vsub.s32 1, %v2326
    %v2328 = vrot.slane %v2319, %v2327
    %v2329 = vlaneseq
    %v2330 = vshrl.u32 %v2329, 7
    %v2331 = vsub.s32 2, %v2330
    %v2332 = vrot.slane %v2319, %v2331
    %v2333 = vlaneseq
    %v2334 = vshrl.u32 %v2333, 7
    %v2335 = vsub.s32 3, %v2334
    %v2336 = vrot.slane %v2319, %v2335
    %v2337 = vlaneseq
    %v2338 = vshrl.u32 %v2337, 7
    %v2339 = vsub.s32 4, %v2338
    %v2340 = vrot.slane %v2319, %v2339
    %v2341 = vlaneseq
    %v2342 = vshrl.u32 %v2341, 7
    %v2343 = vsub.s32 5, %v2342
    %v2344 = vrot.slane %v2319, %v2343
    %v2345 = vlaneseq
    %v2346 = vshrl.u32 %v2345, 7
    %v2347 = vsub.s32 6, %v2346
    %v2348 = vrot.slane %v2319, %v2347
    %v2349 = vlaneseq
    %v2350 = vshrl.u32 %v2349, 7
    %v2351 = vsub.s32 7, %v2350
    %v2352 = vrot.slane %v2319, %v2351
    %v2361 = vmul.f32 %v2229, %v2324
    %v2362 = vmul.f32 %v2231, %v2328
    %v2363 = vmul.f32 %v2233, %v2332
    %v2364 = vmul.f32 %v2235, %v2336
    %v2365 = vmul.f32 %v2237, %v2340
    %v2366 = vmul.f32 %v2239, %v2344
    %v2367 = vmul.f32 %v2241, %v2348
    %v2368 = vmul.f32 %v2243, %v2352
    %2370 = vset.pattern.permute.xlu0 0
    %2371 = vperm.xlu0 %2370, %v2361
    %v2372 = vpop.permute.xlu0 %2371
    %2375 = vset.pattern.permute.xlu0 0
    %2376 = vperm.xlu0 %2375, %v2362
    %v2377 = vpop.permute.xlu0 %2376
    %2380 = vset.pattern.permute.xlu0 0
    %2381 = vperm.xlu0 %2380, %v2363
    %v2382 = vpop.permute.xlu0 %2381
    %2385 = vset.pattern.permute.xlu0 0
    %2386 = vperm.xlu0 %2385, %v2364
    %v2387 = vpop.permute.xlu0 %2386
    %2390 = vset.pattern.permute.xlu0 0
    %2391 = vperm.xlu0 %2390, %v2365
    %v2392 = vpop.permute.xlu0 %2391
    %2395 = vset.pattern.permute.xlu0 0
    %2396 = vperm.xlu0 %2395, %v2366
    %v2397 = vpop.permute.xlu0 %2396
    %2400 = vset.pattern.permute.xlu0 0
    %2401 = vperm.xlu0 %2400, %v2367
    %v2402 = vpop.permute.xlu0 %2401
    %2405 = vset.pattern.permute.xlu0 0
    %2406 = vperm.xlu0 %2405, %v2368
    %v2407 = vpop.permute.xlu0 %2406
    %v2409 = vmul.f32 %v2372, %v1862
    %v2410 = vmul.f32 %v2377, %v1863
    %v2411 = vmul.f32 %v2382, %v1864
    %v2412 = vmul.f32 %v2387, %v1865
    %v2413 = vmul.f32 %v2392, %v1866
    %v2414 = vmul.f32 %v2397, %v1867
    %v2415 = vmul.f32 %v2402, %v1868
    %v2416 = vmul.f32 %v2407, %v1869
    %v2417 = vrot.slane %v2409, 4
    %v2418 = vadd.f32 %v2409, %v2417
    %v2419 = vrot.slane %v2418, 2
    %v2420 = vadd.f32 %v2418, %v2419
    %v2421 = vrot.slane %v2420, 1
    %v2422 = vadd.f32 %v2420, %v2421
    %v2423 = vrot.slane %v2410, 4
    %v2424 = vadd.f32 %v2410, %v2423
    %v2425 = vrot.slane %v2424, 2
    %v2426 = vadd.f32 %v2424, %v2425
    %v2427 = vrot.slane %v2426, 1
    %v2428 = vadd.f32 %v2426, %v2427
    %v2429 = vrot.slane %v2411, 4
    %v2430 = vadd.f32 %v2411, %v2429
    %v2431 = vrot.slane %v2430, 2
    %v2432 = vadd.f32 %v2430, %v2431
    %v2433 = vrot.slane %v2432, 1
    %v2434 = vadd.f32 %v2432, %v2433
    %v2435 = vrot.slane %v2412, 4
    %v2436 = vadd.f32 %v2412, %v2435
    %v2437 = vrot.slane %v2436, 2
    %v2438 = vadd.f32 %v2436, %v2437
    %v2439 = vrot.slane %v2438, 1
    %v2440 = vadd.f32 %v2438, %v2439
    %v2441 = vrot.slane %v2413, 4
    %v2442 = vadd.f32 %v2413, %v2441
    %v2443 = vrot.slane %v2442, 2
    %v2444 = vadd.f32 %v2442, %v2443
    %v2445 = vrot.slane %v2444, 1
    %v2446 = vadd.f32 %v2444, %v2445
    %v2447 = vrot.slane %v2414, 4
    %v2448 = vadd.f32 %v2414, %v2447
    %v2449 = vrot.slane %v2448, 2
    %v2450 = vadd.f32 %v2448, %v2449
    %v2451 = vrot.slane %v2450, 1
    %v2452 = vadd.f32 %v2450, %v2451
    %v2453 = vrot.slane %v2415, 4
    %v2454 = vadd.f32 %v2415, %v2453
    %v2455 = vrot.slane %v2454, 2
    %v2456 = vadd.f32 %v2454, %v2455
    %v2457 = vrot.slane %v2456, 1
    %v2458 = vadd.f32 %v2456, %v2457
    %v2459 = vrot.slane %v2416, 4
    %v2460 = vadd.f32 %v2416, %v2459
    %v2461 = vrot.slane %v2460, 2
    %v2462 = vadd.f32 %v2460, %v2461
    %v2463 = vrot.slane %v2462, 1
    %v2464 = vadd.f32 %v2462, %v2463
    %v2473 = vsel %vm2161, %v2428, %v2422
    %v2474 = vsel %vm2163, %v2434, %v2473
    %v2475 = vsel %vm2165, %v2440, %v2474
    %v2476 = vsel %vm2167, %v2446, %v2475
    %v2477 = vsel %vm2169, %v2452, %v2476
    %v2478 = vsel %vm2171, %v2458, %v2477
    %v2479 = vsel %vm2173, %v2464, %v2478
    %2481 = vmatprep.subr.mxu0 %v1874
    %2482 = vmatpush1.msra.mxu0 %v1873
    %2483 = vmatprep.subr.mxu0 %v1877
    %2484 = vmatpush1.msra.mxu0 %v1876
    %2485 = vmatprep.subr.mxu0 %v1880
    %2486 = vmatpush1.msra.mxu0 %v1879
    %2487 = vmatprep.subr.mxu0 %v1883
    %2488 = vmatpush1.msra.mxu0 %v1882
    %2489 = vmatprep.subr.mxu0 %v1886
    %2490 = vmatpush1.msra.mxu0 %v1885
    %2491 = vmatprep.subr.mxu0 %v1889
    %2492 = vmatpush1.msra.mxu0 %v1888
    %2493 = vmatprep.subr.mxu0 %v1892
    %2494 = vmatpush1.msra.mxu0 %v1891
    %2495 = vmatprep.subr.mxu0 %v1895
    %2496 = vmatpush1.msra.mxu0 %v1894
    %2497 = vmatprep.subr.mxu0 %v1898
    %2498 = vmatpush1.msra.mxu0 %v1897
    %2499 = vmatprep.subr.mxu0 %v1901
    %2500 = vmatpush1.msra.mxu0 %v1900
    %2501 = vmatprep.subr.mxu0 %v1904
    %2502 = vmatpush1.msra.mxu0 %v1903
    %2503 = vmatprep.subr.mxu0 %v1907
    %2504 = vmatpush1.msra.mxu0 %v1906
    %2505 = vmatprep.subr.mxu0 %v1910
    %2506 = vmatpush1.msra.mxu0 %v1909
    %2507 = vmatprep.subr.mxu0 %v1913
    %2508 = vmatpush1.msra.mxu0 %v1912
    %2509 = vmatprep.subr.mxu0 %v1916
    %2510 = vmatpush1.msra.mxu0 %v1915
    %2511 = vmatprep.subr.mxu0 %v1919
    %2512 = vmatpush1.msra.mxu0 %v1918
    %2513 = vmatprep.subr.mxu0 0.0
    %2514 = vmatpush1.msra.mxu0 0.0
    %2515 = vmatprep.subr.mxu0 0.0
    %2516 = vmatpush1.msra.mxu0 0.0
    %2517 = vmatprep.subr.mxu0 0.0
    %2518 = vmatpush1.msra.mxu0 0.0
    %2519 = vmatprep.subr.mxu0 0.0
    %2520 = vmatpush1.msra.mxu0 0.0
    %2521 = vmatprep.subr.mxu0 0.0
    %2522 = vmatpush1.msra.mxu0 0.0
    %2523 = vmatprep.subr.mxu0 0.0
    %2524 = vmatpush1.msra.mxu0 0.0
    %2525 = vmatprep.subr.mxu0 0.0
    %2526 = vmatpush1.msra.mxu0 0.0
    %2527 = vmatprep.subr.mxu0 0.0
    %2528 = vmatpush1.msra.mxu0 0.0
    %2529 = vmatprep.subr.mxu0 0.0
    %2530 = vmatpush1.msra.mxu0 0.0
    %2531 = vmatprep.subr.mxu0 0.0
    %2532 = vmatpush1.msra.mxu0 0.0
    %2533 = vmatprep.subr.mxu0 0.0
    %2534 = vmatpush1.msra.mxu0 0.0
    %2535 = vmatprep.subr.mxu0 0.0
    %2536 = vmatpush1.msra.mxu0 0.0
    %2537 = vmatprep.subr.mxu0 0.0
    %2538 = vmatpush1.msra.mxu0 0.0
    %2539 = vmatprep.subr.mxu0 0.0
    %2540 = vmatpush1.msra.mxu0 0.0
    %2541 = vmatprep.subr.mxu0 0.0
    %2542 = vmatpush1.msra.mxu0 0.0
    %2543 = vmatprep.subr.mxu0 0.0
    %2544 = vmatpush1.msra.mxu0 0.0
    %2545 = vmatprep.mubr.f32.mxu0 0.0
    %2546 = vmatmul.mubr.f32.gmra.mrb[0].mxu0 %v2479
    %v2547 = vpop.f32.mrb[0].mxu0
    %v2548 = vadd.f32 0.0, %v2547
    %v2549 = vpop.f32.mrb[0].mxu0
    %v2550 = vadd.f32 0.0, %v2549
    %2551 = vdwg.mxu0
    %2552 = vmatprep.subr.mxu0 0.0
    %2553 = vmatpush1.msra.mxu0 %v1875
    %2554 = vmatprep.subr.mxu0 0.0
    %2555 = vmatpush1.msra.mxu0 %v1878
    %2556 = vmatprep.subr.mxu0 0.0
    %2557 = vmatpush1.msra.mxu0 %v1881
    %2558 = vmatprep.subr.mxu0 0.0
    %2559 = vmatpush1.msra.mxu0 %v1884
    %2560 = vmatprep.subr.mxu0 0.0
    %2561 = vmatpush1.msra.mxu0 %v1887
    %2562 = vmatprep.subr.mxu0 0.0
    %2563 = vmatpush1.msra.mxu0 %v1890
    %2564 = vmatprep.subr.mxu0 0.0
    %2565 = vmatpush1.msra.mxu0 %v1893
    %2566 = vmatprep.subr.mxu0 0.0
    %2567 = vmatpush1.msra.mxu0 %v1896
    %2568 = vmatprep.subr.mxu0 0.0
    %2569 = vmatpush1.msra.mxu0 %v1899
    %2570 = vmatprep.subr.mxu0 0.0
    %2571 = vmatpush1.msra.mxu0 %v1902
    %2572 = vmatprep.subr.mxu0 0.0
    %2573 = vmatpush1.msra.mxu0 %v1905
    %2574 = vmatprep.subr.mxu0 0.0
    %2575 = vmatpush1.msra.mxu0 %v1908
    %2576 = vmatprep.subr.mxu0 0.0
    %2577 = vmatpush1.msra.mxu0 %v1911
    %2578 = vmatprep.subr.mxu0 0.0
    %2579 = vmatpush1.msra.mxu0 %v1914
    %2580 = vmatprep.subr.mxu0 0.0
    %2581 = vmatpush1.msra.mxu0 %v1917
    %2582 = vmatprep.subr.mxu0 0.0
    %2583 = vmatpush1.msra.mxu0 %v1920
    %2584 = vmatprep.subr.mxu0 0.0
    %2585 = vmatpush1.msra.mxu0 0.0
    %2586 = vmatprep.subr.mxu0 0.0
    %2587 = vmatpush1.msra.mxu0 0.0
    %2588 = vmatprep.subr.mxu0 0.0
    %2589 = vmatpush1.msra.mxu0 0.0
    %2590 = vmatprep.subr.mxu0 0.0
    %2591 = vmatpush1.msra.mxu0 0.0
    %2592 = vmatprep.subr.mxu0 0.0
    %2593 = vmatpush1.msra.mxu0 0.0
    %2594 = vmatprep.subr.mxu0 0.0
    %2595 = vmatpush1.msra.mxu0 0.0
    %2596 = vmatprep.subr.mxu0 0.0
    %2597 = vmatpush1.msra.mxu0 0.0
    %2598 = vmatprep.subr.mxu0 0.0
    %2599 = vmatpush1.msra.mxu0 0.0
    %2600 = vmatprep.subr.mxu0 0.0
    %2601 = vmatpush1.msra.mxu0 0.0
    %2602 = vmatprep.subr.mxu0 0.0
    %2603 = vmatpush1.msra.mxu0 0.0
    %2604 = vmatprep.subr.mxu0 0.0
    %2605 = vmatpush1.msra.mxu0 0.0
    %2606 = vmatprep.subr.mxu0 0.0
    %2607 = vmatpush1.msra.mxu0 0.0
    %2608 = vmatprep.subr.mxu0 0.0
    %2609 = vmatpush1.msra.mxu0 0.0
    %2610 = vmatprep.subr.mxu0 0.0
    %2611 = vmatpush1.msra.mxu0 0.0
    %2612 = vmatprep.subr.mxu0 0.0
    %2613 = vmatpush1.msra.mxu0 0.0
    %2614 = vmatprep.subr.mxu0 0.0
    %2615 = vmatpush1.msra.mxu0 0.0
    %2616 = vmatprep.mubr.f32.mxu0 0.0
    %2617 = vmatmul.mubr.f32.gmra.mrb[0].mxu0 %v2479
    %v2618 = vpop.f32.mrb[0].mxu0
    %v2619 = vadd.f32 0.0, %v2618
    %v2620 = vpop.f32.mrb[0].mxu0
    %2621 = vdwg.mxu0
    %v2623 = vsel %vm156, %v2004, 0
    %2625 = vmatprep.subr.mxu0 %v1871
    %2626 = vmatpush1.msra.mxu0 %v1870
    %2627 = vmatprep.subr.mxu0 0.0
    %2628 = vmatpush1.msra.mxu0 0.0
    %2629 = vmatprep.subr.mxu0 0.0
    %2630 = vmatpush1.msra.mxu0 0.0
    %2631 = vmatprep.subr.mxu0 0.0
    %2632 = vmatpush1.msra.mxu0 0.0
    %2633 = vmatprep.subr.mxu0 0.0
    %2634 = vmatpush1.msra.mxu0 0.0
    %2635 = vmatprep.subr.mxu0 0.0
    %2636 = vmatpush1.msra.mxu0 0.0
    %2637 = vmatprep.subr.mxu0 0.0
    %2638 = vmatpush1.msra.mxu0 0.0
    %2639 = vmatprep.subr.mxu0 0.0
    %2640 = vmatpush1.msra.mxu0 0.0
    %2641 = vmatprep.subr.mxu0 0.0
    %2642 = vmatpush1.msra.mxu0 0.0
    %2643 = vmatprep.subr.mxu0 0.0
    %2644 = vmatpush1.msra.mxu0 0.0
    %2645 = vmatprep.subr.mxu0 0.0
    %2646 = vmatpush1.msra.mxu0 0.0
    %2647 = vmatprep.subr.mxu0 0.0
    %2648 = vmatpush1.msra.mxu0 0.0
    %2649 = vmatprep.subr.mxu0 0.0
    %2650 = vmatpush1.msra.mxu0 0.0
    %2651 = vmatprep.subr.mxu0 0.0
    %2652 = vmatpush1.msra.mxu0 0.0
    %2653 = vmatprep.subr.mxu0 0.0
    %2654 = vmatpush1.msra.mxu0 0.0
    %2655 = vmatprep.subr.mxu0 0.0
    %2656 = vmatpush1.msra.mxu0 0.0
    %2657 = vmatprep.subr.mxu0 0.0
    %2658 = vmatpush1.msra.mxu0 0.0
    %2659 = vmatprep.subr.mxu0 0.0
    %2660 = vmatpush1.msra.mxu0 0.0
    %2661 = vmatprep.subr.mxu0 0.0
    %2662 = vmatpush1.msra.mxu0 0.0
    %2663 = vmatprep.subr.mxu0 0.0
    %2664 = vmatpush1.msra.mxu0 0.0
    %2665 = vmatprep.subr.mxu0 0.0
    %2666 = vmatpush1.msra.mxu0 0.0
    %2667 = vmatprep.subr.mxu0 0.0
    %2668 = vmatpush1.msra.mxu0 0.0
    %2669 = vmatprep.subr.mxu0 0.0
    %2670 = vmatpush1.msra.mxu0 0.0
    %2671 = vmatprep.subr.mxu0 0.0
    %2672 = vmatpush1.msra.mxu0 0.0
    %2673 = vmatprep.subr.mxu0 0.0
    %2674 = vmatpush1.msra.mxu0 0.0
    %2675 = vmatprep.subr.mxu0 0.0
    %2676 = vmatpush1.msra.mxu0 0.0
    %2677 = vmatprep.subr.mxu0 0.0
    %2678 = vmatpush1.msra.mxu0 0.0
    %2679 = vmatprep.subr.mxu0 0.0
    %2680 = vmatpush1.msra.mxu0 0.0
    %2681 = vmatprep.subr.mxu0 0.0
    %2682 = vmatpush1.msra.mxu0 0.0
    %2683 = vmatprep.subr.mxu0 0.0
    %2684 = vmatpush1.msra.mxu0 0.0
    %2685 = vmatprep.subr.mxu0 0.0
    %2686 = vmatpush1.msra.mxu0 0.0
    %2687 = vmatprep.subr.mxu0 0.0
    %2688 = vmatpush1.msra.mxu0 0.0
    %2689 = vmatprep.mubr.f32.mxu0 0.0
    %2690 = vmatmul.mubr.f32.gmra.mrb[0].mxu0 %v2623
    %v2691 = vpop.f32.mrb[0].mxu0
    %v2692 = vadd.f32 %v2548, %v2691
    %v2693 = vpop.f32.mrb[0].mxu0
    %v2694 = vadd.f32 %v2550, %v2693
    %2695 = vdwg.mxu0
    %2696 = vmatprep.subr.mxu0 0.0
    %2697 = vmatpush1.msra.mxu0 %v1872
    %2698 = vmatprep.subr.mxu0 0.0
    %2699 = vmatpush1.msra.mxu0 0.0
    %2700 = vmatprep.subr.mxu0 0.0
    %2701 = vmatpush1.msra.mxu0 0.0
    %2702 = vmatprep.subr.mxu0 0.0
    %2703 = vmatpush1.msra.mxu0 0.0
    %2704 = vmatprep.subr.mxu0 0.0
    %2705 = vmatpush1.msra.mxu0 0.0
    %2706 = vmatprep.subr.mxu0 0.0
    %2707 = vmatpush1.msra.mxu0 0.0
    %2708 = vmatprep.subr.mxu0 0.0
    %2709 = vmatpush1.msra.mxu0 0.0
    %2710 = vmatprep.subr.mxu0 0.0
    %2711 = vmatpush1.msra.mxu0 0.0
    %2712 = vmatprep.subr.mxu0 0.0
    %2713 = vmatpush1.msra.mxu0 0.0
    %2714 = vmatprep.subr.mxu0 0.0
    %2715 = vmatpush1.msra.mxu0 0.0
    %2716 = vmatprep.subr.mxu0 0.0
    %2717 = vmatpush1.msra.mxu0 0.0
    %2718 = vmatprep.subr.mxu0 0.0
    %2719 = vmatpush1.msra.mxu0 0.0
    %2720 = vmatprep.subr.mxu0 0.0
    %2721 = vmatpush1.msra.mxu0 0.0
    %2722 = vmatprep.subr.mxu0 0.0
    %2723 = vmatpush1.msra.mxu0 0.0
    %2724 = vmatprep.subr.mxu0 0.0
    %2725 = vmatpush1.msra.mxu0 0.0
    %2726 = vmatprep.subr.mxu0 0.0
    %2727 = vmatpush1.msra.mxu0 0.0
    %2728 = vmatprep.subr.mxu0 0.0
    %2729 = vmatpush1.msra.mxu0 0.0
    %2730 = vmatprep.subr.mxu0 0.0
    %2731 = vmatpush1.msra.mxu0 0.0
    %2732 = vmatprep.subr.mxu0 0.0
    %2733 = vmatpush1.msra.mxu0 0.0
    %2734 = vmatprep.subr.mxu0 0.0
    %2735 = vmatpush1.msra.mxu0 0.0
    %2736 = vmatprep.subr.mxu0 0.0
    %2737 = vmatpush1.msra.mxu0 0.0
    %2738 = vmatprep.subr.mxu0 0.0
    %2739 = vmatpush1.msra.mxu0 0.0
    %2740 = vmatprep.subr.mxu0 0.0
    %2741 = vmatpush1.msra.mxu0 0.0
    %2742 = vmatprep.subr.mxu0 0.0
    %2743 = vmatpush1.msra.mxu0 0.0
    %2744 = vmatprep.subr.mxu0 0.0
    %2745 = vmatpush1.msra.mxu0 0.0
    %2746 = vmatprep.subr.mxu0 0.0
    %2747 = vmatpush1.msra.mxu0 0.0
    %2748 = vmatprep.subr.mxu0 0.0
    %2749 = vmatpush1.msra.mxu0 0.0
    %2750 = vmatprep.subr.mxu0 0.0
    %2751 = vmatpush1.msra.mxu0 0.0
    %2752 = vmatprep.subr.mxu0 0.0
    %2753 = vmatpush1.msra.mxu0 0.0
    %2754 = vmatprep.subr.mxu0 0.0
    %2755 = vmatpush1.msra.mxu0 0.0
    %2756 = vmatprep.subr.mxu0 0.0
    %2757 = vmatpush1.msra.mxu0 0.0
    %2758 = vmatprep.subr.mxu0 0.0
    %2759 = vmatpush1.msra.mxu0 0.0
    %2760 = vmatprep.mubr.f32.mxu0 0.0
    %2761 = vmatmul.mubr.f32.gmra.mrb[0].mxu0 %v2623
    %v2762 = vpop.f32.mrb[0].mxu0
    %v2763 = vadd.f32 %v2619, %v2762
    %v2764 = vpop.f32.mrb[0].mxu0
    %2765 = vdwg.mxu0
    %v2767 = vlaneseq
    %v2768 = vshrl.u32 %v2767, 7
    %v2769 = vsub.s32 0, %v2768
    %v2770 = vrot.slane %v1969, %v2769
    %v2771 = vlaneseq
    %v2772 = vshrl.u32 %v2771, 7
    %v2773 = vsub.s32 1, %v2772
    %v2774 = vrot.slane %v1969, %v2773
    %v2775 = vlaneseq
    %v2776 = vshrl.u32 %v2775, 7
    %v2777 = vsub.s32 2, %v2776
    %v2778 = vrot.slane %v1969, %v2777
    %v2782 = vadd.f32 %v2692, %v2770
    %v2783 = vadd.f32 %v2694, %v2774
    %v2784 = vadd.f32 %v2763, %v2778
    %v2786 = vlaneseq
    %v2787 = vshrl.u32 %v2786, 7
    %v2788 = vsub.s32 0, %v2787
    %v2789 = vrot.slane %v1970, %v2788
    %v2790 = vlaneseq
    %v2791 = vshrl.u32 %v2790, 7
    %v2792 = vsub.s32 1, %v2791
    %v2793 = vrot.slane %v1970, %v2792
    %v2794 = vlaneseq
    %v2795 = vshrl.u32 %v2794, 7
    %v2796 = vsub.s32 2, %v2795
    %v2797 = vrot.slane %v1970, %v2796
    %2801 = vmatprep.subr.mxu0 %v1922
    %2802 = vmatpush1.msra.mxu0 %v1921
    %2803 = vmatprep.subr.mxu0 %v1925
    %2804 = vmatpush1.msra.mxu0 %v1924
    %2805 = vmatprep.subr.mxu0 %v1928
    %2806 = vmatpush1.msra.mxu0 %v1927
    %2807 = vmatprep.subr.mxu0 %v1931
    %2808 = vmatpush1.msra.mxu0 %v1930
    %2809 = vmatprep.subr.mxu0 %v1934
    %2810 = vmatpush1.msra.mxu0 %v1933
    %2811 = vmatprep.subr.mxu0 %v1937
    %2812 = vmatpush1.msra.mxu0 %v1936
    %2813 = vmatprep.subr.mxu0 %v1940
    %2814 = vmatpush1.msra.mxu0 %v1939
    %2815 = vmatprep.subr.mxu0 %v1943
    %2816 = vmatpush1.msra.mxu0 %v1942
    %2817 = vmatprep.subr.mxu0 %v1946
    %2818 = vmatpush1.msra.mxu0 %v1945
    %2819 = vmatprep.subr.mxu0 %v1949
    %2820 = vmatpush1.msra.mxu0 %v1948
    %2821 = vmatprep.subr.mxu0 %v1952
    %2822 = vmatpush1.msra.mxu0 %v1951
    %2823 = vmatprep.subr.mxu0 %v1955
    %2824 = vmatpush1.msra.mxu0 %v1954
    %2825 = vmatprep.subr.mxu0 %v1958
    %2826 = vmatpush1.msra.mxu0 %v1957
    %2827 = vmatprep.subr.mxu0 %v1961
    %2828 = vmatpush1.msra.mxu0 %v1960
    %2829 = vmatprep.subr.mxu0 %v1964
    %2830 = vmatpush1.msra.mxu0 %v1963
    %2831 = vmatprep.subr.mxu0 %v1967
    %2832 = vmatpush1.msra.mxu0 %v1966
    %2833 = vmatprep.subr.mxu0 0.0
    %2834 = vmatpush1.msra.mxu0 0.0
    %2835 = vmatprep.subr.mxu0 0.0
    %2836 = vmatpush1.msra.mxu0 0.0
    %2837 = vmatprep.subr.mxu0 0.0
    %2838 = vmatpush1.msra.mxu0 0.0
    %2839 = vmatprep.subr.mxu0 0.0
    %2840 = vmatpush1.msra.mxu0 0.0
    %2841 = vmatprep.subr.mxu0 0.0
    %2842 = vmatpush1.msra.mxu0 0.0
    %2843 = vmatprep.subr.mxu0 0.0
    %2844 = vmatpush1.msra.mxu0 0.0
    %2845 = vmatprep.subr.mxu0 0.0
    %2846 = vmatpush1.msra.mxu0 0.0
    %2847 = vmatprep.subr.mxu0 0.0
    %2848 = vmatpush1.msra.mxu0 0.0
    %2849 = vmatprep.subr.mxu0 0.0
    %2850 = vmatpush1.msra.mxu0 0.0
    %2851 = vmatprep.subr.mxu0 0.0
    %2852 = vmatpush1.msra.mxu0 0.0
    %2853 = vmatprep.subr.mxu0 0.0
    %2854 = vmatpush1.msra.mxu0 0.0
    %2855 = vmatprep.subr.mxu0 0.0
    %2856 = vmatpush1.msra.mxu0 0.0
    %2857 = vmatprep.subr.mxu0 0.0
    %2858 = vmatpush1.msra.mxu0 0.0
    %2859 = vmatprep.subr.mxu0 0.0
    %2860 = vmatpush1.msra.mxu0 0.0
    %2861 = vmatprep.subr.mxu0 0.0
    %2862 = vmatpush1.msra.mxu0 0.0
    %2863 = vmatprep.subr.mxu0 0.0
    %2864 = vmatpush1.msra.mxu0 0.0
    %2865 = vmatprep.mubr.f32.mxu0 0.0
    %2866 = vmatmul.mubr.f32.gmra.mrb[0].mxu0 %v1723
    %v2867 = vpop.f32.mrb[0].mxu0
    %v2868 = vadd.f32 %v2789, %v2867
    %v2869 = vpop.f32.mrb[0].mxu0
    %v2870 = vadd.f32 %v2793, %v2869
    %2871 = vdwg.mxu0
    %2872 = vmatprep.subr.mxu0 0.0
    %2873 = vmatpush1.msra.mxu0 %v1923
    %2874 = vmatprep.subr.mxu0 0.0
    %2875 = vmatpush1.msra.mxu0 %v1926
    %2876 = vmatprep.subr.mxu0 0.0
    %2877 = vmatpush1.msra.mxu0 %v1929
    %2878 = vmatprep.subr.mxu0 0.0
    %2879 = vmatpush1.msra.mxu0 %v1932
    %2880 = vmatprep.subr.mxu0 0.0
    %2881 = vmatpush1.msra.mxu0 %v1935
    %2882 = vmatprep.subr.mxu0 0.0
    %2883 = vmatpush1.msra.mxu0 %v1938
    %2884 = vmatprep.subr.mxu0 0.0
    %2885 = vmatpush1.msra.mxu0 %v1941
    %2886 = vmatprep.subr.mxu0 0.0
    %2887 = vmatpush1.msra.mxu0 %v1944
    %2888 = vmatprep.subr.mxu0 0.0
    %2889 = vmatpush1.msra.mxu0 %v1947
    %2890 = vmatprep.subr.mxu0 0.0
    %2891 = vmatpush1.msra.mxu0 %v1950
    %2892 = vmatprep.subr.mxu0 0.0
    %2893 = vmatpush1.msra.mxu0 %v1953
    %2894 = vmatprep.subr.mxu0 0.0
    %2895 = vmatpush1.msra.mxu0 %v1956
    %2896 = vmatprep.subr.mxu0 0.0
    %2897 = vmatpush1.msra.mxu0 %v1959
    %2898 = vmatprep.subr.mxu0 0.0
    %2899 = vmatpush1.msra.mxu0 %v1962
    %2900 = vmatprep.subr.mxu0 0.0
    %2901 = vmatpush1.msra.mxu0 %v1965
    %2902 = vmatprep.subr.mxu0 0.0
    %2903 = vmatpush1.msra.mxu0 %v1968
    %2904 = vmatprep.subr.mxu0 0.0
    %2905 = vmatpush1.msra.mxu0 0.0
    %2906 = vmatprep.subr.mxu0 0.0
    %2907 = vmatpush1.msra.mxu0 0.0
    %2908 = vmatprep.subr.mxu0 0.0
    %2909 = vmatpush1.msra.mxu0 0.0
    %2910 = vmatprep.subr.mxu0 0.0
    %2911 = vmatpush1.msra.mxu0 0.0
    %2912 = vmatprep.subr.mxu0 0.0
    %2913 = vmatpush1.msra.mxu0 0.0
    %2914 = vmatprep.subr.mxu0 0.0
    %2915 = vmatpush1.msra.mxu0 0.0
    %2916 = vmatprep.subr.mxu0 0.0
    %2917 = vmatpush1.msra.mxu0 0.0
    %2918 = vmatprep.subr.mxu0 0.0
    %2919 = vmatpush1.msra.mxu0 0.0
    %2920 = vmatprep.subr.mxu0 0.0
    %2921 = vmatpush1.msra.mxu0 0.0
    %2922 = vmatprep.subr.mxu0 0.0
    %2923 = vmatpush1.msra.mxu0 0.0
    %2924 = vmatprep.subr.mxu0 0.0
    %2925 = vmatpush1.msra.mxu0 0.0
    %2926 = vmatprep.subr.mxu0 0.0
    %2927 = vmatpush1.msra.mxu0 0.0
    %2928 = vmatprep.subr.mxu0 0.0
    %2929 = vmatpush1.msra.mxu0 0.0
    %2930 = vmatprep.subr.mxu0 0.0
    %2931 = vmatpush1.msra.mxu0 0.0
    %2932 = vmatprep.subr.mxu0 0.0
    %2933 = vmatpush1.msra.mxu0 0.0
    %2934 = vmatprep.subr.mxu0 0.0
    %2935 = vmatpush1.msra.mxu0 0.0
    %2936 = vmatprep.mubr.f32.mxu0 0.0
    %2937 = vmatmul.mubr.f32.gmra.mrb[0].mxu0 %v1723
    %v2938 = vpop.f32.mrb[0].mxu0
    %v2939 = vadd.f32 %v2797, %v2938
    %v2940 = vpop.f32.mrb[0].mxu0
    %2941 = vdwg.mxu0
    %v2942 = vadd.f32 %v2782, %v2868
    %v2943 = vxor.u32 %v2942, 2147483648
    %v2944 = vmul.f32 %v2943, 1.442695
    %v2945 = vpow.pop %v2944
    %v2946 = vadd.f32 %v2945, 1.0
    %v2947 = vrcp.pop %v2946
    %v2948 = vmul.f32 1.0, %v2947
    %v2949 = vadd.f32 %v2783, %v2870
    %v2950 = vxor.u32 %v2949, 2147483648
    %v2951 = vmul.f32 %v2950, 1.442695
    %v2952 = vpow.pop %v2951
    %v2953 = vadd.f32 %v2952, 1.0
    %v2954 = vrcp.pop %v2953
    %v2955 = vmul.f32 1.0, %v2954
    %v2956 = vmul.f32 %v2948, %v2939
    %v2957 = vadd.f32 %v2784, %v2956
    %v2958 = vtanh.pop %v2957
    %v2959 = vsub.f32 1.0, %v2955
    %v2960 = vmul.f32 %v2959, %v2958
    %v2961 = vmul.f32 %v2955, %v1723
    %v2962 = vadd.f32 %v2960, %v2961
    %2963 = vmatprep.subr.mxu0 0.0
    %2964 = vmatpush1.msra.mxu0 %v1987
    %2965 = vmatprep.subr.mxu0 0.0
    %2966 = vmatpush1.msra.mxu0 %v1988
    %2967 = vmatprep.subr.mxu0 0.0
    %2968 = vmatpush1.msra.mxu0 %v1989
    %2969 = vmatprep.subr.mxu0 0.0
    %2970 = vmatpush1.msra.mxu0 %v1990
    %2971 = vmatprep.subr.mxu0 0.0
    %2972 = vmatpush1.msra.mxu0 %v1991
    %2973 = vmatprep.subr.mxu0 0.0
    %2974 = vmatpush1.msra.mxu0 %v1992
    %2975 = vmatprep.subr.mxu0 0.0
    %2976 = vmatpush1.msra.mxu0 %v1993
    %2977 = vmatprep.subr.mxu0 0.0
    %2978 = vmatpush1.msra.mxu0 %v1994
    %2979 = vmatprep.subr.mxu0 0.0
    %2980 = vmatpush1.msra.mxu0 %v1995
    %2981 = vmatprep.subr.mxu0 0.0
    %2982 = vmatpush1.msra.mxu0 %v1996
    %2983 = vmatprep.subr.mxu0 0.0
    %2984 = vmatpush1.msra.mxu0 %v1997
    %2985 = vmatprep.subr.mxu0 0.0
    %2986 = vmatpush1.msra.mxu0 %v1998
    %2987 = vmatprep.subr.mxu0 0.0
    %2988 = vmatpush1.msra.mxu0 %v1999
    %2989 = vmatprep.subr.mxu0 0.0
    %2990 = vmatpush1.msra.mxu0 %v2000
    %2991 = vmatprep.subr.mxu0 0.0
    %2992 = vmatpush1.msra.mxu0 %v2001
    %2993 = vmatprep.subr.mxu0 0.0
    %2994 = vmatpush1.msra.mxu0 %v2002
    %2995 = vmatprep.subr.mxu0 0.0
    %2996 = vmatpush1.msra.mxu0 0.0
    %2997 = vmatprep.subr.mxu0 0.0
    %2998 = vmatpush1.msra.mxu0 0.0
    %2999 = vmatprep.subr.mxu0 0.0
    %3000 = vmatpush1.msra.mxu0 0.0
    %3001 = vmatprep.subr.mxu0 0.0
    %3002 = vmatpush1.msra.mxu0 0.0
    %3003 = vmatprep.subr.mxu0 0.0
    %3004 = vmatpush1.msra.mxu0 0.0
    %3005 = vmatprep.subr.mxu0 0.0
    %3006 = vmatpush1.msra.mxu0 0.0
    %3007 = vmatprep.subr.mxu0 0.0
    %3008 = vmatpush1.msra.mxu0 0.0
    %3009 = vmatprep.subr.mxu0 0.0
    %3010 = vmatpush1.msra.mxu0 0.0
    %3011 = vmatprep.subr.mxu0 0.0
    %3012 = vmatpush1.msra.mxu0 0.0
    %3013 = vmatprep.subr.mxu0 0.0
    %3014 = vmatpush1.msra.mxu0 0.0
    %3015 = vmatprep.subr.mxu0 0.0
    %3016 = vmatpush1.msra.mxu0 0.0
    %3017 = vmatprep.subr.mxu0 0.0
    %3018 = vmatpush1.msra.mxu0 0.0
    %3019 = vmatprep.subr.mxu0 0.0
    %3020 = vmatpush1.msra.mxu0 0.0
    %3021 = vmatprep.subr.mxu0 0.0
    %3022 = vmatpush1.msra.mxu0 0.0
    %3023 = vmatprep.subr.mxu0 0.0
    %3024 = vmatpush1.msra.mxu0 0.0
    %3025 = vmatprep.subr.mxu0 0.0
    %3026 = vmatpush1.msra.mxu0 0.0
    %3027 = vmatprep.mubr.f32.mxu0 0.0
    %3028 = vmatmul.mubr.f32.gmra.mrb[0].mxu0 %v2479
    %v3029 = vpop.f32.mrb[0].mxu0
    %v3030 = vadd.f32 0.0, %v3029
    %v3031 = vpop.f32.mrb[0].mxu0
    %3032 = vdwg.mxu0
    %3033 = vmatprep.subr.mxu0 0.0
    %3034 = vmatpush1.msra.mxu0 %v1971
    %3035 = vmatprep.subr.mxu0 0.0
    %3036 = vmatpush1.msra.mxu0 %v1972
    %3037 = vmatprep.subr.mxu0 0.0
    %3038 = vmatpush1.msra.mxu0 %v1973
    %3039 = vmatprep.subr.mxu0 0.0
    %3040 = vmatpush1.msra.mxu0 %v1974
    %3041 = vmatprep.subr.mxu0 0.0
    %3042 = vmatpush1.msra.mxu0 %v1975
    %3043 = vmatprep.subr.mxu0 0.0
    %3044 = vmatpush1.msra.mxu0 %v1976
    %3045 = vmatprep.subr.mxu0 0.0
    %3046 = vmatpush1.msra.mxu0 %v1977
    %3047 = vmatprep.subr.mxu0 0.0
    %3048 = vmatpush1.msra.mxu0 %v1978
    %3049 = vmatprep.subr.mxu0 0.0
    %3050 = vmatpush1.msra.mxu0 %v1979
    %3051 = vmatprep.subr.mxu0 0.0
    %3052 = vmatpush1.msra.mxu0 %v1980
    %3053 = vmatprep.subr.mxu0 0.0
    %3054 = vmatpush1.msra.mxu0 %v1981
    %3055 = vmatprep.subr.mxu0 0.0
    %3056 = vmatpush1.msra.mxu0 %v1982
    %3057 = vmatprep.subr.mxu0 0.0
    %3058 = vmatpush1.msra.mxu0 %v1983
    %3059 = vmatprep.subr.mxu0 0.0
    %3060 = vmatpush1.msra.mxu0 %v1984
    %3061 = vmatprep.subr.mxu0 0.0
    %3062 = vmatpush1.msra.mxu0 %v1985
    %3063 = vmatprep.subr.mxu0 0.0
    %3064 = vmatpush1.msra.mxu0 %v1986
    %3065 = vmatprep.subr.mxu0 0.0
    %3066 = vmatpush1.msra.mxu0 0.0
    %3067 = vmatprep.subr.mxu0 0.0
    %3068 = vmatpush1.msra.mxu0 0.0
    %3069 = vmatprep.subr.mxu0 0.0
    %3070 = vmatpush1.msra.mxu0 0.0
    %3071 = vmatprep.subr.mxu0 0.0
    %3072 = vmatpush1.msra.mxu0 0.0
    %3073 = vmatprep.subr.mxu0 0.0
    %3074 = vmatpush1.msra.mxu0 0.0
    %3075 = vmatprep.subr.mxu0 0.0
    %3076 = vmatpush1.msra.mxu0 0.0
    %3077 = vmatprep.subr.mxu0 0.0
    %3078 = vmatpush1.msra.mxu0 0.0
    %3079 = vmatprep.subr.mxu0 0.0
    %3080 = vmatpush1.msra.mxu0 0.0
    %3081 = vmatprep.subr.mxu0 0.0
    %3082 = vmatpush1.msra.mxu0 0.0
    %3083 = vmatprep.subr.mxu0 0.0
    %3084 = vmatpush1.msra.mxu0 0.0
    %3085 = vmatprep.subr.mxu0 0.0
    %3086 = vmatpush1.msra.mxu0 0.0
    %3087 = vmatprep.subr.mxu0 0.0
    %3088 = vmatpush1.msra.mxu0 0.0
    %3089 = vmatprep.subr.mxu0 0.0
    %3090 = vmatpush1.msra.mxu0 0.0
    %3091 = vmatprep.subr.mxu0 0.0
    %3092 = vmatpush1.msra.mxu0 0.0
    %3093 = vmatprep.subr.mxu0 0.0
    %3094 = vmatpush1.msra.mxu0 0.0
    %3095 = vmatprep.subr.mxu0 0.0
    %3096 = vmatpush1.msra.mxu0 0.0
    %3097 = vmatprep.mubr.f32.mxu0 0.0
    %3098 = vmatmul.mubr.f32.gmra.mrb[0].mxu0 %v2962
    %v3099 = vpop.f32.mrb[0].mxu0
    %v3100 = vadd.f32 %v3030, %v3099
    %v3101 = vpop.f32.mrb[0].mxu0
    %3102 = vdwg.mxu0
    %v3104 = vlaneseq
    %v3105 = vshrl.u32 %v3104, 7
    %v3106 = vsub.s32 0, %v3105
    %v3107 = vrot.slane %v2003, %v3106
    %v3109 = vadd.f32 %v3100, %v3107
    %3110 = vst [vmem:[#allocation8] sm:$0xff] %v3109
    %s3111 = sld [smem:[#allocation3]]
    %s3112 = scvt.s32.f32 %s3111
    %v3113 = vld [vmem:[%s2] sm:$0xff]
    %v3114 = vstv %s3112
    %v3115 = vmul.f32 %v3114, %v3113
    %s3116 = ssub.f32 1.0, %s3112
    %v3117 = vstv %s3116
    %v3118 = vmul.f32 %v3117, %v3109
    %v3119 = vadd.f32 %v3115, %v3118
    %v3121 = vcombine.high %v2962, %v2962
    %v3123 = vunpack.c.l.s4 1966171168
    %v3124 = vunpack.c.0.s8 %v3123
    %v3125 = vlaneseq
    %v3126 = vshrl.u32 %v3125, 7
    %v3127 = vsub.s32 %v3124, %v3126
    %v3128 = vrot.slane %v2962, %v3127
    %v3130 = vunpack.c.l.s4 1966171168
    %v3131 = vunpack.c.0.s8 %v3130
    %v3132 = vlaneseq
    %v3133 = vshrl.u32 %v3132, 7
    %v3134 = vsub.s32 %v3131, %v3133
    %v3135 = vrot.slane %v3121, %v3134
    %v3136 = vcombine.high %v3128, %v3128
    %v3137 = vcombine.high %v3135, %v3135
    %v3139 = vunpack.c.l.s4 1966171168
    %v3140 = vunpack.c.0.s8 %v3139
    %v3141 = vlaneseq
    %v3142 = vshrl.u32 %v3141, 7
    %v3143 = vsub.s32 %v3140, %v3142
    %v3144 = vrot.slane %v3128, %v3143
    %v3146 = vunpack.c.l.s4 1966171168
    %v3147 = vunpack.c.0.s8 %v3146
    %v3148 = vlaneseq
    %v3149 = vshrl.u32 %v3148, 7
    %v3150 = vsub.s32 %v3147, %v3149
    %v3151 = vrot.slane %v3135, %v3150
    %v3153 = vunpack.c.l.s4 1966171168
    %v3154 = vunpack.c.0.s8 %v3153
    %v3155 = vlaneseq
    %v3156 = vshrl.u32 %v3155, 7
    %v3157 = vsub.s32 %v3154, %v3156
    %v3158 = vrot.slane %v3136, %v3157
    %v3160 = vunpack.c.l.s4 1966171168
    %v3161 = vunpack.c.0.s8 %v3160
    %v3162 = vlaneseq
    %v3163 = vshrl.u32 %v3162, 7
    %v3164 = vsub.s32 %v3161, %v3163
    %v3165 = vrot.slane %v3137, %v3164
    %v3166 = vcombine.high %v3144, %v3144
    %v3167 = vcombine.high %v3151, %v3151
    %v3168 = vcombine.high %v3158, %v3158
    %v3169 = vcombine.high %v3165, %v3165
    %v3170 = vlaneseq
    %v3171 = vshrl.u32 %v3170, 7
    %v3172 = vsub.s32 0, %v3171
    %v3173 = vrot.slane %v3144, %v3172
    %v3174 = vlaneseq
    %v3175 = vshrl.u32 %v3174, 7
    %v3176 = vsub.s32 0, %v3175
    %v3177 = vrot.slane %v3158, %v3176
    %v3178 = vlaneseq
    %v3179 = vshrl.u32 %v3178, 7
    %v3180 = vsub.s32 0, %v3179
    %v3181 = vrot.slane %v3166, %v3180
    %v3182 = vlaneseq
    %v3183 = vshrl.u32 %v3182, 7
    %v3184 = vsub.s32 0, %v3183
    %v3185 = vrot.slane %v3168, %v3184
    %v3186 = vlaneseq
    %v3187 = vshrl.u32 %v3186, 7
    %v3188 = vsub.s32 0, %v3187
    %v3189 = vrot.slane %v3151, %v3188
    %v3190 = vlaneseq
    %v3191 = vshrl.u32 %v3190, 7
    %v3192 = vsub.s32 0, %v3191
    %v3193 = vrot.slane %v3165, %v3192
    %v3194 = vlaneseq
    %v3195 = vshrl.u32 %v3194, 7
    %v3196 = vsub.s32 0, %v3195
    %v3197 = vrot.slane %v3167, %v3196
    %v3198 = vlaneseq
    %v3199 = vshrl.u32 %v3198, 7
    %v3200 = vsub.s32 0, %v3199
    %v3201 = vrot.slane %v3169, %v3200
    %v3210 = vmul.f32 %v1862, %v3173
    %v3211 = vmul.f32 %v1863, %v3177
    %v3212 = vmul.f32 %v1864, %v3181
    %v3213 = vmul.f32 %v1865, %v3185
    %v3214 = vmul.f32 %v1866, %v3189
    %v3215 = vmul.f32 %v1867, %v3193
    %v3216 = vmul.f32 %v1868, %v3197
    %v3217 = vmul.f32 %v1869, %v3201
    %3218 = vadd.xlane.f32.xlu0 %v3210
    %v3219 = vpop.xlane.xlu0 %3218
    %3220 = vadd.xlane.f32.xlu0 %v3211
    %v3221 = vpop.xlane.xlu0 %3220
    %3222 = vadd.xlane.f32.xlu0 %v3212
    %v3223 = vpop.xlane.xlu0 %3222
    %3224 = vadd.xlane.f32.xlu0 %v3213
    %v3225 = vpop.xlane.xlu0 %3224
    %3226 = vadd.xlane.f32.xlu0 %v3214
    %v3227 = vpop.xlane.xlu0 %3226
    %3228 = vadd.xlane.f32.xlu0 %v3215
    %v3229 = vpop.xlane.xlu0 %3228
    %3230 = vadd.xlane.f32.xlu0 %v3216
    %v3231 = vpop.xlane.xlu0 %3230
    %3232 = vadd.xlane.f32.xlu0 %v3217
    %v3233 = vpop.xlane.xlu0 %3232
    %v3242 = vlaneseq
    %v3243 = vshrl.u32 %v3242, 7
    %v3244 = vsub.s32 %v2128, %v3243
    %v3245 = vrot.slane %v3219, %v3244
    %v3246 = vlaneseq
    %v3247 = vshrl.u32 %v3246, 7
    %v3248 = vsub.s32 %v2128, %v3247
    %v3249 = vrot.slane %v3221, %v3248
    %v3250 = vlaneseq
    %v3251 = vshrl.u32 %v3250, 7
    %v3252 = vsub.s32 %v2128, %v3251
    %v3253 = vrot.slane %v3223, %v3252
    %v3254 = vlaneseq
    %v3255 = vshrl.u32 %v3254, 7
    %v3256 = vsub.s32 %v2128, %v3255
    %v3257 = vrot.slane %v3225, %v3256
    %v3258 = vlaneseq
    %v3259 = vshrl.u32 %v3258, 7
    %v3260 = vsub.s32 %v2128, %v3259
    %v3261 = vrot.slane %v3227, %v3260
    %v3262 = vlaneseq
    %v3263 = vshrl.u32 %v3262, 7
    %v3264 = vsub.s32 %v2128, %v3263
    %v3265 = vrot.slane %v3229, %v3264
    %v3266 = vlaneseq
    %v3267 = vshrl.u32 %v3266, 7
    %v3268 = vsub.s32 %v2128, %v3267
    %v3269 = vrot.slane %v3231, %v3268
    %v3270 = vlaneseq
    %v3271 = vshrl.u32 %v3270, 7
    %v3272 = vsub.s32 %v2128, %v3271
    %v3273 = vrot.slane %v3233, %v3272
    %v3274 = vsel %vm2161, %v3249, %v3245
    %v3275 = vsel %vm2163, %v3253, %v3274
    %v3276 = vsel %vm2165, %v3257, %v3275
    %v3277 = vsel %vm2167, %v3261, %v3276
    %v3278 = vsel %vm2169, %v3265, %v3277
    %v3279 = vsel %vm2171, %v3269, %v3278
    %v3280 = vsel %vm2173, %v3273, %v3279
    %v3282 = vsel %vm156, %v3280, -inf
    %3283 = vmax.xlane.f32.xlu0 %v3282
    %v3284 = vpop.xlane.xlu0 %3283
    %v3286 = vlaneseq
    %v3287 = vshrl.u32 %v3286, 7
    %v3288 = vsub.s32 0, %v3287
    %v3289 = vrot.slane %v3284, %v3288
    %v3290 = vlaneseq
    %v3291 = vshrl.u32 %v3290, 7
    %v3292 = vsub.s32 1, %v3291
    %v3293 = vrot.slane %v3284, %v3292
    %v3294 = vlaneseq
    %v3295 = vshrl.u32 %v3294, 7
    %v3296 = vsub.s32 2, %v3295
    %v3297 = vrot.slane %v3284, %v3296
    %v3298 = vlaneseq
    %v3299 = vshrl.u32 %v3298, 7
    %v3300 = vsub.s32 3, %v3299
    %v3301 = vrot.slane %v3284, %v3300
    %v3302 = vlaneseq
    %v3303 = vshrl.u32 %v3302, 7
    %v3304 = vsub.s32 4, %v3303
    %v3305 = vrot.slane %v3284, %v3304
    %v3306 = vlaneseq
    %v3307 = vshrl.u32 %v3306, 7
    %v3308 = vsub.s32 5, %v3307
    %v3309 = vrot.slane %v3284, %v3308
    %v3310 = vlaneseq
    %v3311 = vshrl.u32 %v3310, 7
    %v3312 = vsub.s32 6, %v3311
    %v3313 = vrot.slane %v3284, %v3312
    %v3314 = vlaneseq
    %v3315 = vshrl.u32 %v3314, 7
    %v3316 = vsub.s32 7, %v3315
    %v3317 = vrot.slane %v3284, %v3316
    %v3326 = vsub.f32 %v3219, %v3289
    %v3327 = vsub.f32 %v3221, %v3293
    %v3328 = vsub.f32 %v3223, %v3297
    %v3329 = vsub.f32 %v3225, %v3301
    %v3330 = vsub.f32 %v3227, %v3305
    %v3331 = vsub.f32 %v3229, %v3309
    %v3332 = vsub.f32 %v3231, %v3313
    %v3333 = vsub.f32 %v3233, %v3317
    %v3334 = vmul.f32 %v3326, 1.442695
    %v3335 = vpow.pop %v3334
    %v3336 = vmul.f32 %v3327, 1.442695
    %v3337 = vpow.pop %v3336
    %v3338 = vmul.f32 %v3328, 1.442695
    %v3339 = vpow.pop %v3338
    %v3340 = vmul.f32 %v3329, 1.442695
    %v3341 = vpow.pop %v3340
    %v3342 = vmul.f32 %v3330, 1.442695
    %v3343 = vpow.pop %v3342
    %v3344 = vmul.f32 %v3331, 1.442695
    %v3345 = vpow.pop %v3344
    %v3346 = vmul.f32 %v3332, 1.442695
    %v3347 = vpow.pop %v3346
    %v3348 = vmul.f32 %v3333, 1.442695
    %v3349 = vpow.pop %v3348
    %3358 = vset.pattern.permute.xlu0 0
    %3359 = vperm.xlu0 %3358, %v3335
    %v3360 = vpop.permute.xlu0 %3359
    %3361 = vset.pattern.permute.xlu0 0
    %3362 = vperm.xlu0 %3361, %v3337
    %v3363 = vpop.permute.xlu0 %3362
    %3364 = vset.pattern.permute.xlu0 0
    %3365 = vperm.xlu0 %3364, %v3339
    %v3366 = vpop.permute.xlu0 %3365
    %3367 = vset.pattern.permute.xlu0 0
    %3368 = vperm.xlu0 %3367, %v3341
    %v3369 = vpop.permute.xlu0 %3368
    %3370 = vset.pattern.permute.xlu0 0
    %3371 = vperm.xlu0 %3370, %v3343
    %v3372 = vpop.permute.xlu0 %3371
    %3373 = vset.pattern.permute.xlu0 0
    %3374 = vperm.xlu0 %3373, %v3345
    %v3375 = vpop.permute.xlu0 %3374
    %3376 = vset.pattern.permute.xlu0 0
    %3377 = vperm.xlu0 %3376, %v3347
    %v3378 = vpop.permute.xlu0 %3377
    %3379 = vset.pattern.permute.xlu0 0
    %3380 = vperm.xlu0 %3379, %v3349
    %v3381 = vpop.permute.xlu0 %3380
    %v3382 = vlaneseq
    %v3383 = vshrl.u32 %v3382, 7
    %v3384 = vsub.s32 %v2128, %v3383
    %v3385 = vrot.slane %v3360, %v3384
    %v3386 = vlaneseq
    %v3387 = vshrl.u32 %v3386, 7
    %v3388 = vsub.s32 %v2128, %v3387
    %v3389 = vrot.slane %v3363, %v3388
    %v3390 = vlaneseq
    %v3391 = vshrl.u32 %v3390, 7
    %v3392 = vsub.s32 %v2128, %v3391
    %v3393 = vrot.slane %v3366, %v3392
    %v3394 = vlaneseq
    %v3395 = vshrl.u32 %v3394, 7
    %v3396 = vsub.s32 %v2128, %v3395
    %v3397 = vrot.slane %v3369, %v3396
    %v3398 = vlaneseq
    %v3399 = vshrl.u32 %v3398, 7
    %v3400 = vsub.s32 %v2128, %v3399
    %v3401 = vrot.slane %v3372, %v3400
    %v3402 = vlaneseq
    %v3403 = vshrl.u32 %v3402, 7
    %v3404 = vsub.s32 %v2128, %v3403
    %v3405 = vrot.slane %v3375, %v3404
    %v3406 = vlaneseq
    %v3407 = vshrl.u32 %v3406, 7
    %v3408 = vsub.s32 %v2128, %v3407
    %v3409 = vrot.slane %v3378, %v3408
    %v3410 = vlaneseq
    %v3411 = vshrl.u32 %v3410, 7
    %v3412 = vsub.s32 %v2128, %v3411
    %v3413 = vrot.slane %v3381, %v3412
    %v3414 = vsel %vm2161, %v3389, %v3385
    %v3415 = vsel %vm2163, %v3393, %v3414
    %v3416 = vsel %vm2165, %v3397, %v3415
    %v3417 = vsel %vm2167, %v3401, %v3416
    %v3418 = vsel %vm2169, %v3405, %v3417
    %v3419 = vsel %vm2171, %v3409, %v3418
    %v3420 = vsel %vm2173, %v3413, %v3419
    %v3422 = vsel %vm156, %v3420, 0.0
    %3423 = vadd.xlane.f32.xlu0 %v3422
    %v3424 = vpop.xlane.xlu0 %3423
    %v3425 = vrcp.pop %v3424
    %v3427 = vlaneseq
    %v3428 = vshrl.u32 %v3427, 7
    %v3429 = vsub.s32 0, %v3428
    %v3430 = vrot.slane %v3425, %v3429
    %v3431 = vlaneseq
    %v3432 = vshrl.u32 %v3431, 7
    %v3433 = vsub.s32 1, %v3432
    %v3434 = vrot.slane %v3425, %v3433
    %v3435 = vlaneseq
    %v3436 = vshrl.u32 %v3435, 7
    %v3437 = vsub.s32 2, %v3436
    %v3438 = vrot.slane %v3425, %v3437
    %v3439 = vlaneseq
    %v3440 = vshrl.u32 %v3439, 7
    %v3441 = vsub.s32 3, %v3440
    %v3442 = vrot.slane %v3425, %v3441
    %v3443 = vlaneseq
    %v3444 = vshrl.u32 %v3443, 7
    %v3445 = vsub.s32 4, %v3444
    %v3446 = vrot.slane %v3425, %v3445
    %v3447 = vlaneseq
    %v3448 = vshrl.u32 %v3447, 7
    %v3449 = vsub.s32 5, %v3448
    %v3450 = vrot.slane %v3425, %v3449
    %v3451 = vlaneseq
    %v3452 = vshrl.u32 %v3451, 7
    %v3453 = vsub.s32 6, %v3452
    %v3454 = vrot.slane %v3425, %v3453
    %v3455 = vlaneseq
    %v3456 = vshrl.u32 %v3455, 7
    %v3457 = vsub.s32 7, %v3456
    %v3458 = vrot.slane %v3425, %v3457
    %v3467 = vmul.f32 %v3335, %v3430
    %v3468 = vmul.f32 %v3337, %v3434
    %v3469 = vmul.f32 %v3339, %v3438
    %v3470 = vmul.f32 %v3341, %v3442
    %v3471 = vmul.f32 %v3343, %v3446
    %v3472 = vmul.f32 %v3345, %v3450
    %v3473 = vmul.f32 %v3347, %v3454
    %v3474 = vmul.f32 %v3349, %v3458
    %3476 = vset.pattern.permute.xlu0 0
    %3477 = vperm.xlu0 %3476, %v3467
    %v3478 = vpop.permute.xlu0 %3477
    %3481 = vset.pattern.permute.xlu0 0
    %3482 = vperm.xlu0 %3481, %v3468
    %v3483 = vpop.permute.xlu0 %3482
    %3486 = vset.pattern.permute.xlu0 0
    %3487 = vperm.xlu0 %3486, %v3469
    %v3488 = vpop.permute.xlu0 %3487
    %3491 = vset.pattern.permute.xlu0 0
    %3492 = vperm.xlu0 %3491, %v3470
    %v3493 = vpop.permute.xlu0 %3492
    %3496 = vset.pattern.permute.xlu0 0
    %3497 = vperm.xlu0 %3496, %v3471
    %v3498 = vpop.permute.xlu0 %3497
    %3501 = vset.pattern.permute.xlu0 0
    %3502 = vperm.xlu0 %3501, %v3472
    %v3503 = vpop.permute.xlu0 %3502
    %3506 = vset.pattern.permute.xlu0 0
    %3507 = vperm.xlu0 %3506, %v3473
    %v3508 = vpop.permute.xlu0 %3507
    %3511 = vset.pattern.permute.xlu0 0
    %3512 = vperm.xlu0 %3511, %v3474
    %v3513 = vpop.permute.xlu0 %3512
    %v3515 = vmul.f32 %v3478, %v1862
    %v3516 = vmul.f32 %v3483, %v1863
    %v3517 = vmul.f32 %v3488, %v1864
    %v3518 = vmul.f32 %v3493, %v1865
    %v3519 = vmul.f32 %v3498, %v1866
    %v3520 = vmul.f32 %v3503, %v1867
    %v3521 = vmul.f32 %v3508, %v1868
    %v3522 = vmul.f32 %v3513, %v1869
    %v3523 = vrot.slane %v3515, 4
    %v3524 = vadd.f32 %v3515, %v3523
    %v3525 = vrot.slane %v3524, 2
    %v3526 = vadd.f32 %v3524, %v3525
    %v3527 = vrot.slane %v3526, 1
    %v3528 = vadd.f32 %v3526, %v3527
    %v3529 = vrot.slane %v3516, 4
    %v3530 = vadd.f32 %v3516, %v3529
    %v3531 = vrot.slane %v3530, 2
    %v3532 = vadd.f32 %v3530, %v3531
    %v3533 = vrot.slane %v3532, 1
    %v3534 = vadd.f32 %v3532, %v3533
    %v3535 = vrot.slane %v3517, 4
    %v3536 = vadd.f32 %v3517, %v3535
    %v3537 = vrot.slane %v3536, 2
    %v3538 = vadd.f32 %v3536, %v3537
    %v3539 = vrot.slane %v3538, 1
    %v3540 = vadd.f32 %v3538, %v3539
    %v3541 = vrot.slane %v3518, 4
    %v3542 = vadd.f32 %v3518, %v3541
    %v3543 = vrot.slane %v3542, 2
    %v3544 = vadd.f32 %v3542, %v3543
    %v3545 = vrot.slane %v3544, 1
    %v3546 = vadd.f32 %v3544, %v3545
    %v3547 = vrot.slane %v3519, 4
    %v3548 = vadd.f32 %v3519, %v3547
    %v3549 = vrot.slane %v3548, 2
    %v3550 = vadd.f32 %v3548, %v3549
    %v3551 = vrot.slane %v3550, 1
    %v3552 = vadd.f32 %v3550, %v3551
    %v3553 = vrot.slane %v3520, 4
    %v3554 = vadd.f32 %v3520, %v3553
    %v3555 = vrot.slane %v3554, 2
    %v3556 = vadd.f32 %v3554, %v3555
    %v3557 = vrot.slane %v3556, 1
    %v3558 = vadd.f32 %v3556, %v3557
    %v3559 = vrot.slane %v3521, 4
    %v3560 = vadd.f32 %v3521, %v3559
    %v3561 = vrot.slane %v3560, 2
    %v3562 = vadd.f32 %v3560, %v3561
    %v3563 = vrot.slane %v3562, 1
    %v3564 = vadd.f32 %v3562, %v3563
    %v3565 = vrot.slane %v3522, 4
    %v3566 = vadd.f32 %v3522, %v3565
    %v3567 = vrot.slane %v3566, 2
    %v3568 = vadd.f32 %v3566, %v3567
    %v3569 = vrot.slane %v3568, 1
    %v3570 = vadd.f32 %v3568, %v3569
    %v3579 = vsel %vm2161, %v3534, %v3528
    %v3580 = vsel %vm2163, %v3540, %v3579
    %v3581 = vsel %vm2165, %v3546, %v3580
    %v3582 = vsel %vm2167, %v3552, %v3581
    %v3583 = vsel %vm2169, %v3558, %v3582
    %v3584 = vsel %vm2171, %v3564, %v3583
    %v3585 = vsel %vm2173, %v3570, %v3584
    %3587 = vmatprep.subr.mxu0 %v1874
    %3588 = vmatpush1.msra.mxu0 %v1873
    %3589 = vmatprep.subr.mxu0 %v1877
    %3590 = vmatpush1.msra.mxu0 %v1876
    %3591 = vmatprep.subr.mxu0 %v1880
    %3592 = vmatpush1.msra.mxu0 %v1879
    %3593 = vmatprep.subr.mxu0 %v1883
    %3594 = vmatpush1.msra.mxu0 %v1882
    %3595 = vmatprep.subr.mxu0 %v1886
    %3596 = vmatpush1.msra.mxu0 %v1885
    %3597 = vmatprep.subr.mxu0 %v1889
    %3598 = vmatpush1.msra.mxu0 %v1888
    %3599 = vmatprep.subr.mxu0 %v1892
    %3600 = vmatpush1.msra.mxu0 %v1891
    %3601 = vmatprep.subr.mxu0 %v1895
    %3602 = vmatpush1.msra.mxu0 %v1894
    %3603 = vmatprep.subr.mxu0 %v1898
    %3604 = vmatpush1.msra.mxu0 %v1897
    %3605 = vmatprep.subr.mxu0 %v1901
    %3606 = vmatpush1.msra.mxu0 %v1900
    %3607 = vmatprep.subr.mxu0 %v1904
    %3608 = vmatpush1.msra.mxu0 %v1903
    %3609 = vmatprep.subr.mxu0 %v1907
    %3610 = vmatpush1.msra.mxu0 %v1906
    %3611 = vmatprep.subr.mxu0 %v1910
    %3612 = vmatpush1.msra.mxu0 %v1909
    %3613 = vmatprep.subr.mxu0 %v1913
    %3614 = vmatpush1.msra.mxu0 %v1912
    %3615 = vmatprep.subr.mxu0 %v1916
    %3616 = vmatpush1.msra.mxu0 %v1915
    %3617 = vmatprep.subr.mxu0 %v1919
    %3618 = vmatpush1.msra.mxu0 %v1918
    %3619 = vmatprep.subr.mxu0 0.0
    %3620 = vmatpush1.msra.mxu0 0.0
    %3621 = vmatprep.subr.mxu0 0.0
    %3622 = vmatpush1.msra.mxu0 0.0
    %3623 = vmatprep.subr.mxu0 0.0
    %3624 = vmatpush1.msra.mxu0 0.0
    %3625 = vmatprep.subr.mxu0 0.0
    %3626 = vmatpush1.msra.mxu0 0.0
    %3627 = vmatprep.subr.mxu0 0.0
    %3628 = vmatpush1.msra.mxu0 0.0
    %3629 = vmatprep.subr.mxu0 0.0
    %3630 = vmatpush1.msra.mxu0 0.0
    %3631 = vmatprep.subr.mxu0 0.0
    %3632 = vmatpush1.msra.mxu0 0.0
    %3633 = vmatprep.subr.mxu0 0.0
    %3634 = vmatpush1.msra.mxu0 0.0
    %3635 = vmatprep.subr.mxu0 0.0
    %3636 = vmatpush1.msra.mxu0 0.0
    %3637 = vmatprep.subr.mxu0 0.0
    %3638 = vmatpush1.msra.mxu0 0.0
    %3639 = vmatprep.subr.mxu0 0.0
    %3640 = vmatpush1.msra.mxu0 0.0
    %3641 = vmatprep.subr.mxu0 0.0
    %3642 = vmatpush1.msra.mxu0 0.0
    %3643 = vmatprep.subr.mxu0 0.0
    %3644 = vmatpush1.msra.mxu0 0.0
    %3645 = vmatprep.subr.mxu0 0.0
    %3646 = vmatpush1.msra.mxu0 0.0
    %3647 = vmatprep.subr.mxu0 0.0
    %3648 = vmatpush1.msra.mxu0 0.0
    %3649 = vmatprep.subr.mxu0 0.0
    %3650 = vmatpush1.msra.mxu0 0.0
    %3651 = vmatprep.mubr.f32.mxu0 0.0
    %3652 = vmatmul.mubr.f32.gmra.mrb[0].mxu0 %v3585
    %v3653 = vpop.f32.mrb[0].mxu0
    %v3654 = vadd.f32 0.0, %v3653
    %v3655 = vpop.f32.mrb[0].mxu0
    %v3656 = vadd.f32 0.0, %v3655
    %3657 = vdwg.mxu0
    %3658 = vmatprep.subr.mxu0 0.0
    %3659 = vmatpush1.msra.mxu0 %v1875
    %3660 = vmatprep.subr.mxu0 0.0
    %3661 = vmatpush1.msra.mxu0 %v1878
    %3662 = vmatprep.subr.mxu0 0.0
    %3663 = vmatpush1.msra.mxu0 %v1881
    %3664 = vmatprep.subr.mxu0 0.0
    %3665 = vmatpush1.msra.mxu0 %v1884
    %3666 = vmatprep.subr.mxu0 0.0
    %3667 = vmatpush1.msra.mxu0 %v1887
    %3668 = vmatprep.subr.mxu0 0.0
    %3669 = vmatpush1.msra.mxu0 %v1890
    %3670 = vmatprep.subr.mxu0 0.0
    %3671 = vmatpush1.msra.mxu0 %v1893
    %3672 = vmatprep.subr.mxu0 0.0
    %3673 = vmatpush1.msra.mxu0 %v1896
    %3674 = vmatprep.subr.mxu0 0.0
    %3675 = vmatpush1.msra.mxu0 %v1899
    %3676 = vmatprep.subr.mxu0 0.0
    %3677 = vmatpush1.msra.mxu0 %v1902
    %3678 = vmatprep.subr.mxu0 0.0
    %3679 = vmatpush1.msra.mxu0 %v1905
    %3680 = vmatprep.subr.mxu0 0.0
    %3681 = vmatpush1.msra.mxu0 %v1908
    %3682 = vmatprep.subr.mxu0 0.0
    %3683 = vmatpush1.msra.mxu0 %v1911
    %3684 = vmatprep.subr.mxu0 0.0
    %3685 = vmatpush1.msra.mxu0 %v1914
    %3686 = vmatprep.subr.mxu0 0.0
    %3687 = vmatpush1.msra.mxu0 %v1917
    %3688 = vmatprep.subr.mxu0 0.0
    %3689 = vmatpush1.msra.mxu0 %v1920
    %3690 = vmatprep.subr.mxu0 0.0
    %3691 = vmatpush1.msra.mxu0 0.0
    %3692 = vmatprep.subr.mxu0 0.0
    %3693 = vmatpush1.msra.mxu0 0.0
    %3694 = vmatprep.subr.mxu0 0.0
    %3695 = vmatpush1.msra.mxu0 0.0
    %3696 = vmatprep.subr.mxu0 0.0
    %3697 = vmatpush1.msra.mxu0 0.0
    %3698 = vmatprep.subr.mxu0 0.0
    %3699 = vmatpush1.msra.mxu0 0.0
    %3700 = vmatprep.subr.mxu0 0.0
    %3701 = vmatpush1.msra.mxu0 0.0
    %3702 = vmatprep.subr.mxu0 0.0
    %3703 = vmatpush1.msra.mxu0 0.0
    %3704 = vmatprep.subr.mxu0 0.0
    %3705 = vmatpush1.msra.mxu0 0.0
    %3706 = vmatprep.subr.mxu0 0.0
    %3707 = vmatpush1.msra.mxu0 0.0
    %3708 = vmatprep.subr.mxu0 0.0
    %3709 = vmatpush1.msra.mxu0 0.0
    %3710 = vmatprep.subr.mxu0 0.0
    %3711 = vmatpush1.msra.mxu0 0.0
    %3712 = vmatprep.subr.mxu0 0.0
    %3713 = vmatpush1.msra.mxu0 0.0
    %3714 = vmatprep.subr.mxu0 0.0
    %3715 = vmatpush1.msra.mxu0 0.0
    %3716 = vmatprep.subr.mxu0 0.0
    %3717 = vmatpush1.msra.mxu0 0.0
    %3718 = vmatprep.subr.mxu0 0.0
    %3719 = vmatpush1.msra.mxu0 0.0
    %3720 = vmatprep.subr.mxu0 0.0
    %3721 = vmatpush1.msra.mxu0 0.0
    %3722 = vmatprep.mubr.f32.mxu0 0.0
    %3723 = vmatmul.mubr.f32.gmra.mrb[0].mxu0 %v3585
    %v3724 = vpop.f32.mrb[0].mxu0
    %v3725 = vadd.f32 0.0, %v3724
    %v3726 = vpop.f32.mrb[0].mxu0
    %3727 = vdwg.mxu0
    %v3729 = vsel %vm156, %v3119, 0
    %3731 = vmatprep.subr.mxu0 %v1871
    %3732 = vmatpush1.msra.mxu0 %v1870
    %3733 = vmatprep.subr.mxu0 0.0
    %3734 = vmatpush1.msra.mxu0 0.0
    %3735 = vmatprep.subr.mxu0 0.0
    %3736 = vmatpush1.msra.mxu0 0.0
    %3737 = vmatprep.subr.mxu0 0.0
    %3738 = vmatpush1.msra.mxu0 0.0
    %3739 = vmatprep.subr.mxu0 0.0
    %3740 = vmatpush1.msra.mxu0 0.0
    %3741 = vmatprep.subr.mxu0 0.0
    %3742 = vmatpush1.msra.mxu0 0.0
    %3743 = vmatprep.subr.mxu0 0.0
    %3744 = vmatpush1.msra.mxu0 0.0
    %3745 = vmatprep.subr.mxu0 0.0
    %3746 = vmatpush1.msra.mxu0 0.0
    %3747 = vmatprep.subr.mxu0 0.0
    %3748 = vmatpush1.msra.mxu0 0.0
    %3749 = vmatprep.subr.mxu0 0.0
    %3750 = vmatpush1.msra.mxu0 0.0
    %3751 = vmatprep.subr.mxu0 0.0
    %3752 = vmatpush1.msra.mxu0 0.0
    %3753 = vmatprep.subr.mxu0 0.0
    %3754 = vmatpush1.msra.mxu0 0.0
    %3755 = vmatprep.subr.mxu0 0.0
    %3756 = vmatpush1.msra.mxu0 0.0
    %3757 = vmatprep.subr.mxu0 0.0
    %3758 = vmatpush1.msra.mxu0 0.0
    %3759 = vmatprep.subr.mxu0 0.0
    %3760 = vmatpush1.msra.mxu0 0.0
    %3761 = vmatprep.subr.mxu0 0.0
    %3762 = vmatpush1.msra.mxu0 0.0
    %3763 = vmatprep.subr.mxu0 0.0
    %3764 = vmatpush1.msra.mxu0 0.0
    %3765 = vmatprep.subr.mxu0 0.0
    %3766 = vmatpush1.msra.mxu0 0.0
    %3767 = vmatprep.subr.mxu0 0.0
    %3768 = vmatpush1.msra.mxu0 0.0
    %3769 = vmatprep.subr.mxu0 0.0
    %3770 = vmatpush1.msra.mxu0 0.0
    %3771 = vmatprep.subr.mxu0 0.0
    %3772 = vmatpush1.msra.mxu0 0.0
    %3773 = vmatprep.subr.mxu0 0.0
    %3774 = vmatpush1.msra.mxu0 0.0
    %3775 = vmatprep.subr.mxu0 0.0
    %3776 = vmatpush1.msra.mxu0 0.0
    %3777 = vmatprep.subr.mxu0 0.0
    %3778 = vmatpush1.msra.mxu0 0.0
    %3779 = vmatprep.subr.mxu0 0.0
    %3780 = vmatpush1.msra.mxu0 0.0
    %3781 = vmatprep.subr.mxu0 0.0
    %3782 = vmatpush1.msra.mxu0 0.0
    %3783 = vmatprep.subr.mxu0 0.0
    %3784 = vmatpush1.msra.mxu0 0.0
    %3785 = vmatprep.subr.mxu0 0.0
    %3786 = vmatpush1.msra.mxu0 0.0
    %3787 = vmatprep.subr.mxu0 0.0
    %3788 = vmatpush1.msra.mxu0 0.0
    %3789 = vmatprep.subr.mxu0 0.0
    %3790 = vmatpush1.msra.mxu0 0.0
    %3791 = vmatprep.subr.mxu0 0.0
    %3792 = vmatpush1.msra.mxu0 0.0
    %3793 = vmatprep.subr.mxu0 0.0
    %3794 = vmatpush1.msra.mxu0 0.0
    %3795 = vmatprep.mubr.f32.mxu0 0.0
    %3796 = vmatmul.mubr.f32.gmra.mrb[0].mxu0 %v3729
    %v3797 = vpop.f32.mrb[0].mxu0
    %v3798 = vadd.f32 %v3654, %v3797
    %v3799 = vpop.f32.mrb[0].mxu0
    %v3800 = vadd.f32 %v3656, %v3799
    %3801 = vdwg.mxu0
    %3802 = vmatprep.subr.mxu0 0.0
    %3803 = vmatpush1.msra.mxu0 %v1872
    %3804 = vmatprep.subr.mxu0 0.0
    %3805 = vmatpush1.msra.mxu0 0.0
    %3806 = vmatprep.subr.mxu0 0.0
    %3807 = vmatpush1.msra.mxu0 0.0
    %3808 = vmatprep.subr.mxu0 0.0
    %3809 = vmatpush1.msra.mxu0 0.0
    %3810 = vmatprep.subr.mxu0 0.0
    %3811 = vmatpush1.msra.mxu0 0.0
    %3812 = vmatprep.subr.mxu0 0.0
    %3813 = vmatpush1.msra.mxu0 0.0
    %3814 = vmatprep.subr.mxu0 0.0
    %3815 = vmatpush1.msra.mxu0 0.0
    %3816 = vmatprep.subr.mxu0 0.0
    %3817 = vmatpush1.msra.mxu0 0.0
    %3818 = vmatprep.subr.mxu0 0.0
    %3819 = vmatpush1.msra.mxu0 0.0
    %3820 = vmatprep.subr.mxu0 0.0
    %3821 = vmatpush1.msra.mxu0 0.0
    %3822 = vmatprep.subr.mxu0 0.0
    %3823 = vmatpush1.msra.mxu0 0.0
    %3824 = vmatprep.subr.mxu0 0.0
    %3825 = vmatpush1.msra.mxu0 0.0
    %3826 = vmatprep.subr.mxu0 0.0
    %3827 = vmatpush1.msra.mxu0 0.0
    %3828 = vmatprep.subr.mxu0 0.0
    %3829 = vmatpush1.msra.mxu0 0.0
    %3830 = vmatprep.subr.mxu0 0.0
    %3831 = vmatpush1.msra.mxu0 0.0
    %3832 = vmatprep.subr.mxu0 0.0
    %3833 = vmatpush1.msra.mxu0 0.0
    %3834 = vmatprep.subr.mxu0 0.0
    %3835 = vmatpush1.msra.mxu0 0.0
    %3836 = vmatprep.subr.mxu0 0.0
    %3837 = vmatpush1.msra.mxu0 0.0
    %3838 = vmatprep.subr.mxu0 0.0
    %3839 = vmatpush1.msra.mxu0 0.0
    %3840 = vmatprep.subr.mxu0 0.0
    %3841 = vmatpush1.msra.mxu0 0.0
    %3842 = vmatprep.subr.mxu0 0.0
    %3843 = vmatpush1.msra.mxu0 0.0
    %3844 = vmatprep.subr.mxu0 0.0
    %3845 = vmatpush1.msra.mxu0 0.0
    %3846 = vmatprep.subr.mxu0 0.0
    %3847 = vmatpush1.msra.mxu0 0.0
    %3848 = vmatprep.subr.mxu0 0.0
    %3849 = vmatpush1.msra.mxu0 0.0
    %3850 = vmatprep.subr.mxu0 0.0
    %3851 = vmatpush1.msra.mxu0 0.0
    %3852 = vmatprep.subr.mxu0 0.0
    %3853 = vmatpush1.msra.mxu0 0.0
    %3854 = vmatprep.subr.mxu0 0.0
    %3855 = vmatpush1.msra.mxu0 0.0
    %3856 = vmatprep.subr.mxu0 0.0
    %3857 = vmatpush1.msra.mxu0 0.0
    %3858 = vmatprep.subr.mxu0 0.0
    %3859 = vmatpush1.msra.mxu0 0.0
    %3860 = vmatprep.subr.mxu0 0.0
    %3861 = vmatpush1.msra.mxu0 0.0
    %3862 = vmatprep.subr.mxu0 0.0
    %3863 = vmatpush1.msra.mxu0 0.0
    %3864 = vmatprep.subr.mxu0 0.0
    %3865 = vmatpush1.msra.mxu0 0.0
    %3866 = vmatprep.mubr.f32.mxu0 0.0
    %3867 = vmatmul.mubr.f32.gmra.mrb[0].mxu0 %v3729
    %v3868 = vpop.f32.mrb[0].mxu0
    %v3869 = vadd.f32 %v3725, %v3868
    %v3870 = vpop.f32.mrb[0].mxu0
    %3871 = vdwg.mxu0
    %v3872 = vadd.f32 %v3798, %v2770
    %v3873 = vadd.f32 %v3800, %v2774
    %v3874 = vadd.f32 %v3869, %v2778
    %3875 = vmatprep.subr.mxu0 %v1922
    %3876 = vmatpush1.msra.mxu0 %v1921
    %3877 = vmatprep.subr.mxu0 %v1925
    %3878 = vmatpush1.msra.mxu0 %v1924
    %3879 = vmatprep.subr.mxu0 %v1928
    %3880 = vmatpush1.msra.mxu0 %v1927
    %3881 = vmatprep.subr.mxu0 %v1931
    %3882 = vmatpush1.msra.mxu0 %v1930
    %3883 = vmatprep.subr.mxu0 %v1934
    %3884 = vmatpush1.msra.mxu0 %v1933
    %3885 = vmatprep.subr.mxu0 %v1937
    %3886 = vmatpush1.msra.mxu0 %v1936
    %3887 = vmatprep.subr.mxu0 %v1940
    %3888 = vmatpush1.msra.mxu0 %v1939
    %3889 = vmatprep.subr.mxu0 %v1943
    %3890 = vmatpush1.msra.mxu0 %v1942
    %3891 = vmatprep.subr.mxu0 %v1946
    %3892 = vmatpush1.msra.mxu0 %v1945
    %3893 = vmatprep.subr.mxu0 %v1949
    %3894 = vmatpush1.msra.mxu0 %v1948
    %3895 = vmatprep.subr.mxu0 %v1952
    %3896 = vmatpush1.msra.mxu0 %v1951
    %3897 = vmatprep.subr.mxu0 %v1955
    %3898 = vmatpush1.msra.mxu0 %v1954
    %3899 = vmatprep.subr.mxu0 %v1958
    %3900 = vmatpush1.msra.mxu0 %v1957
    %3901 = vmatprep.subr.mxu0 %v1961
    %3902 = vmatpush1.msra.mxu0 %v1960
    %3903 = vmatprep.subr.mxu0 %v1964
    %3904 = vmatpush1.msra.mxu0 %v1963
    %3905 = vmatprep.subr.mxu0 %v1967
    %3906 = vmatpush1.msra.mxu0 %v1966
    %3907 = vmatprep.subr.mxu0 0.0
    %3908 = vmatpush1.msra.mxu0 0.0
    %3909 = vmatprep.subr.mxu0 0.0
    %3910 = vmatpush1.msra.mxu0 0.0
    %3911 = vmatprep.subr.mxu0 0.0
    %3912 = vmatpush1.msra.mxu0 0.0
    %3913 = vmatprep.subr.mxu0 0.0
    %3914 = vmatpush1.msra.mxu0 0.0
    %3915 = vmatprep.subr.mxu0 0.0
    %3916 = vmatpush1.msra.mxu0 0.0
    %3917 = vmatprep.subr.mxu0 0.0
    %3918 = vmatpush1.msra.mxu0 0.0
    %3919 = vmatprep.subr.mxu0 0.0
    %3920 = vmatpush1.msra.mxu0 0.0
    %3921 = vmatprep.subr.mxu0 0.0
    %3922 = vmatpush1.msra.mxu0 0.0
    %3923 = vmatprep.subr.mxu0 0.0
    %3924 = vmatpush1.msra.mxu0 0.0
    %3925 = vmatprep.subr.mxu0 0.0
    %3926 = vmatpush1.msra.mxu0 0.0
    %3927 = vmatprep.subr.mxu0 0.0
    %3928 = vmatpush1.msra.mxu0 0.0
    %3929 = vmatprep.subr.mxu0 0.0
    %3930 = vmatpush1.msra.mxu0 0.0
    %3931 = vmatprep.subr.mxu0 0.0
    %3932 = vmatpush1.msra.mxu0 0.0
    %3933 = vmatprep.subr.mxu0 0.0
    %3934 = vmatpush1.msra.mxu0 0.0
    %3935 = vmatprep.subr.mxu0 0.0
    %3936 = vmatpush1.msra.mxu0 0.0
    %3937 = vmatprep.subr.mxu0 0.0
    %3938 = vmatpush1.msra.mxu0 0.0
    %3939 = vmatprep.mubr.f32.mxu0 0.0
    %3940 = vmatmul.mubr.f32.gmra.mrb[0].mxu0 %v2962
    %v3941 = vpop.f32.mrb[0].mxu0
    %v3942 = vadd.f32 %v2789, %v3941
    %v3943 = vpop.f32.mrb[0].mxu0
    %v3944 = vadd.f32 %v2793, %v3943
    %3945 = vdwg.mxu0
    %3946 = vmatprep.subr.mxu0 0.0
    %3947 = vmatpush1.msra.mxu0 %v1923
    %3948 = vmatprep.subr.mxu0 0.0
    %3949 = vmatpush1.msra.mxu0 %v1926
    %3950 = vmatprep.subr.mxu0 0.0
    %3951 = vmatpush1.msra.mxu0 %v1929
    %3952 = vmatprep.subr.mxu0 0.0
    %3953 = vmatpush1.msra.mxu0 %v1932
    %3954 = vmatprep.subr.mxu0 0.0
    %3955 = vmatpush1.msra.mxu0 %v1935
    %3956 = vmatprep.subr.mxu0 0.0
    %3957 = vmatpush1.msra.mxu0 %v1938
    %3958 = vmatprep.subr.mxu0 0.0
    %3959 = vmatpush1.msra.mxu0 %v1941
    %3960 = vmatprep.subr.mxu0 0.0
    %3961 = vmatpush1.msra.mxu0 %v1944
    %3962 = vmatprep.subr.mxu0 0.0
    %3963 = vmatpush1.msra.mxu0 %v1947
    %3964 = vmatprep.subr.mxu0 0.0
    %3965 = vmatpush1.msra.mxu0 %v1950
    %3966 = vmatprep.subr.mxu0 0.0
    %3967 = vmatpush1.msra.mxu0 %v1953
    %3968 = vmatprep.subr.mxu0 0.0
    %3969 = vmatpush1.msra.mxu0 %v1956
    %3970 = vmatprep.subr.mxu0 0.0
    %3971 = vmatpush1.msra.mxu0 %v1959
    %3972 = vmatprep.subr.mxu0 0.0
    %3973 = vmatpush1.msra.mxu0 %v1962
    %3974 = vmatprep.subr.mxu0 0.0
    %3975 = vmatpush1.msra.mxu0 %v1965
    %3976 = vmatprep.subr.mxu0 0.0
    %3977 = vmatpush1.msra.mxu0 %v1968
    %3978 = vmatprep.subr.mxu0 0.0
    %3979 = vmatpush1.msra.mxu0 0.0
    %3980 = vmatprep.subr.mxu0 0.0
    %3981 = vmatpush1.msra.mxu0 0.0
    %3982 = vmatprep.subr.mxu0 0.0
    %3983 = vmatpush1.msra.mxu0 0.0
    %3984 = vmatprep.subr.mxu0 0.0
    %3985 = vmatpush1.msra.mxu0 0.0
    %3986 = vmatprep.subr.mxu0 0.0
    %3987 = vmatpush1.msra.mxu0 0.0
    %3988 = vmatprep.subr.mxu0 0.0
    %3989 = vmatpush1.msra.mxu0 0.0
    %3990 = vmatprep.subr.mxu0 0.0
    %3991 = vmatpush1.msra.mxu0 0.0
    %3992 = vmatprep.subr.mxu0 0.0
    %3993 = vmatpush1.msra.mxu0 0.0
    %3994 = vmatprep.subr.mxu0 0.0
    %3995 = vmatpush1.msra.mxu0 0.0
    %3996 = vmatprep.subr.mxu0 0.0
    %3997 = vmatpush1.msra.mxu0 0.0
    %3998 = vmatprep.subr.mxu0 0.0
    %3999 = vmatpush1.msra.mxu0 0.0
    %4000 = vmatprep.subr.mxu0 0.0
    %4001 = vmatpush1.msra.mxu0 0.0
    %4002 = vmatprep.subr.mxu0 0.0
    %4003 = vmatpush1.msra.mxu0 0.0
    %4004 = vmatprep.subr.mxu0 0.0
    %4005 = vmatpush1.msra.mxu0 0.0
    %4006 = vmatprep.subr.mxu0 0.0
    %4007 = vmatpush1.msra.mxu0 0.0
    %4008 = vmatprep.subr.mxu0 0.0
    %4009 = vmatpush1.msra.mxu0 0.0
    %4010 = vmatprep.mubr.f32.mxu0 0.0
    %4011 = vmatmul.mubr.f32.gmra.mrb[0].mxu0 %v2962
    %v4012 = vpop.f32.mrb[0].mxu0
    %v4013 = vadd.f32 %v2797, %v4012
    %v4014 = vpop.f32.mrb[0].mxu0
    %4015 = vdwg.mxu0
    %v4016 = vadd.f32 %v3872, %v3942
    %v4017 = vxor.u32 %v4016, 2147483648
    %v4018 = vmul.f32 %v4017, 1.442695
    %v4019 = vpow.pop %v4018
    %v4020 = vadd.f32 %v4019, 1.0
    %v4021 = vrcp.pop %v4020
    %v4022 = vmul.f32 1.0, %v4021
    %v4023 = vadd.f32 %v3873, %v3944
    %v4024 = vxor.u32 %v4023, 2147483648
    %v4025 = vmul.f32 %v4024, 1.442695
    %v4026 = vpow.pop %v4025
    %v4027 = vadd.f32 %v4026, 1.0
    %v4028 = vrcp.pop %v4027
    %v4029 = vmul.f32 1.0, %v4028
    %v4030 = vmul.f32 %v4022, %v4013
    %v4031 = vadd.f32 %v3874, %v4030
    %v4032 = vtanh.pop %v4031
    %v4033 = vsub.f32 1.0, %v4029
    %v4034 = vmul.f32 %v4033, %v4032
    %v4035 = vmul.f32 %v4029, %v2962
    %v4036 = vadd.f32 %v4034, %v4035
    %4037 = vmatprep.subr.mxu0 0.0
    %4038 = vmatpush1.msra.mxu0 %v1987
    %4039 = vmatprep.subr.mxu0 0.0
    %4040 = vmatpush1.msra.mxu0 %v1988
    %4041 = vmatprep.subr.mxu0 0.0
    %4042 = vmatpush1.msra.mxu0 %v1989
    %4043 = vmatprep.subr.mxu0 0.0
    %4044 = vmatpush1.msra.mxu0 %v1990
    %4045 = vmatprep.subr.mxu0 0.0
    %4046 = vmatpush1.msra.mxu0 %v1991
    %4047 = vmatprep.subr.mxu0 0.0
    %4048 = vmatpush1.msra.mxu0 %v1992
    %4049 = vmatprep.subr.mxu0 0.0
    %4050 = vmatpush1.msra.mxu0 %v1993
    %4051 = vmatprep.subr.mxu0 0.0
    %4052 = vmatpush1.msra.mxu0 %v1994
    %4053 = vmatprep.subr.mxu0 0.0
    %4054 = vmatpush1.msra.mxu0 %v1995
    %4055 = vmatprep.subr.mxu0 0.0
    %4056 = vmatpush1.msra.mxu0 %v1996
    %4057 = vmatprep.subr.mxu0 0.0
    %4058 = vmatpush1.msra.mxu0 %v1997
    %4059 = vmatprep.subr.mxu0 0.0
    %4060 = vmatpush1.msra.mxu0 %v1998
    %4061 = vmatprep.subr.mxu0 0.0
    %4062 = vmatpush1.msra.mxu0 %v1999
    %4063 = vmatprep.subr.mxu0 0.0
    %4064 = vmatpush1.msra.mxu0 %v2000
    %4065 = vmatprep.subr.mxu0 0.0
    %4066 = vmatpush1.msra.mxu0 %v2001
    %4067 = vmatprep.subr.mxu0 0.0
    %4068 = vmatpush1.msra.mxu0 %v2002
    %4069 = vmatprep.subr.mxu0 0.0
    %4070 = vmatpush1.msra.mxu0 0.0
    %4071 = vmatprep.subr.mxu0 0.0
    %4072 = vmatpush1.msra.mxu0 0.0
    %4073 = vmatprep.subr.mxu0 0.0
    %4074 = vmatpush1.msra.mxu0 0.0
    %4075 = vmatprep.subr.mxu0 0.0
    %4076 = vmatpush1.msra.mxu0 0.0
    %4077 = vmatprep.subr.mxu0 0.0
    %4078 = vmatpush1.msra.mxu0 0.0
    %4079 = vmatprep.subr.mxu0 0.0
    %4080 = vmatpush1.msra.mxu0 0.0
    %4081 = vmatprep.subr.mxu0 0.0
    %4082 = vmatpush1.msra.mxu0 0.0
    %4083 = vmatprep.subr.mxu0 0.0
    %4084 = vmatpush1.msra.mxu0 0.0
    %4085 = vmatprep.subr.mxu0 0.0
    %4086 = vmatpush1.msra.mxu0 0.0
    %4087 = vmatprep.subr.mxu0 0.0
    %4088 = vmatpush1.msra.mxu0 0.0
    %4089 = vmatprep.subr.mxu0 0.0
    %4090 = vmatpush1.msra.mxu0 0.0
    %4091 = vmatprep.subr.mxu0 0.0
    %4092 = vmatpush1.msra.mxu0 0.0
    %4093 = vmatprep.subr.mxu0 0.0
    %4094 = vmatpush1.msra.mxu0 0.0
    %4095 = vmatprep.subr.mxu0 0.0
    %4096 = vmatpush1.msra.mxu0 0.0
    %4097 = vmatprep.subr.mxu0 0.0
    %4098 = vmatpush1.msra.mxu0 0.0
    %4099 = vmatprep.subr.mxu0 0.0
    %4100 = vmatpush1.msra.mxu0 0.0
    %4101 = vmatprep.mubr.f32.mxu0 0.0
    %4102 = vmatmul.mubr.f32.gmra.mrb[0].mxu0 %v3585
    %v4103 = vpop.f32.mrb[0].mxu0
    %v4104 = vadd.f32 0.0, %v4103
    %v4105 = vpop.f32.mrb[0].mxu0
    %4106 = vdwg.mxu0
    %4107 = vmatprep.subr.mxu0 0.0
    %4108 = vmatpush1.msra.mxu0 %v1971
    %4109 = vmatprep.subr.mxu0 0.0
    %4110 = vmatpush1.msra.mxu0 %v1972
    %4111 = vmatprep.subr.mxu0 0.0
    %4112 = vmatpush1.msra.mxu0 %v1973
    %4113 = vmatprep.subr.mxu0 0.0
    %4114 = vmatpush1.msra.mxu0 %v1974
    %4115 = vmatprep.subr.mxu0 0.0
    %4116 = vmatpush1.msra.mxu0 %v1975
    %4117 = vmatprep.subr.mxu0 0.0
    %4118 = vmatpush1.msra.mxu0 %v1976
    %4119 = vmatprep.subr.mxu0 0.0
    %4120 = vmatpush1.msra.mxu0 %v1977
    %4121 = vmatprep.subr.mxu0 0.0
    %4122 = vmatpush1.msra.mxu0 %v1978
    %4123 = vmatprep.subr.mxu0 0.0
    %4124 = vmatpush1.msra.mxu0 %v1979
    %4125 = vmatprep.subr.mxu0 0.0
    %4126 = vmatpush1.msra.mxu0 %v1980
    %4127 = vmatprep.subr.mxu0 0.0
    %4128 = vmatpush1.msra.mxu0 %v1981
    %4129 = vmatprep.subr.mxu0 0.0
    %4130 = vmatpush1.msra.mxu0 %v1982
    %4131 = vmatprep.subr.mxu0 0.0
    %4132 = vmatpush1.msra.mxu0 %v1983
    %4133 = vmatprep.subr.mxu0 0.0
    %4134 = vmatpush1.msra.mxu0 %v1984
    %4135 = vmatprep.subr.mxu0 0.0
    %4136 = vmatpush1.msra.mxu0 %v1985
    %4137 = vmatprep.subr.mxu0 0.0
    %4138 = vmatpush1.msra.mxu0 %v1986
    %4139 = vmatprep.subr.mxu0 0.0
    %4140 = vmatpush1.msra.mxu0 0.0
    %4141 = vmatprep.subr.mxu0 0.0
    %4142 = vmatpush1.msra.mxu0 0.0
    %4143 = vmatprep.subr.mxu0 0.0
    %4144 = vmatpush1.msra.mxu0 0.0
    %4145 = vmatprep.subr.mxu0 0.0
    %4146 = vmatpush1.msra.mxu0 0.0
    %4147 = vmatprep.subr.mxu0 0.0
    %4148 = vmatpush1.msra.mxu0 0.0
    %4149 = vmatprep.subr.mxu0 0.0
    %4150 = vmatpush1.msra.mxu0 0.0
    %4151 = vmatprep.subr.mxu0 0.0
    %4152 = vmatpush1.msra.mxu0 0.0
    %4153 = vmatprep.subr.mxu0 0.0
    %4154 = vmatpush1.msra.mxu0 0.0
    %4155 = vmatprep.subr.mxu0 0.0
    %4156 = vmatpush1.msra.mxu0 0.0
    %4157 = vmatprep.subr.mxu0 0.0
    %4158 = vmatpush1.msra.mxu0 0.0
    %4159 = vmatprep.subr.mxu0 0.0
    %4160 = vmatpush1.msra.mxu0 0.0
    %4161 = vmatprep.subr.mxu0 0.0
    %4162 = vmatpush1.msra.mxu0 0.0
    %4163 = vmatprep.subr.mxu0 0.0
    %4164 = vmatpush1.msra.mxu0 0.0
    %4165 = vmatprep.subr.mxu0 0.0
    %4166 = vmatpush1.msra.mxu0 0.0
    %4167 = vmatprep.subr.mxu0 0.0
    %4168 = vmatpush1.msra.mxu0 0.0
    %4169 = vmatprep.subr.mxu0 0.0
    %4170 = vmatpush1.msra.mxu0 0.0
    %4171 = vmatprep.mubr.f32.mxu0 0.0
    %4172 = vmatmul.mubr.f32.gmra.mrb[0].mxu0 %v4036
    %v4173 = vpop.f32.mrb[0].mxu0
    %v4174 = vadd.f32 %v4104, %v4173
    %v4175 = vpop.f32.mrb[0].mxu0
    %4176 = vdwg.mxu0
    %v4177 = vadd.f32 %v4174, %v3107
    %s4178 = scalar_lea.vmem [#allocation8], 8
    %4179 = vst [vmem:[%s4178] sm:$0xff] %v4177
    %s4180 = sld [smem:[#allocation3 + $0x1]]
    %s4181 = scvt.s32.f32 %s4180
    %s4182 = scalar_lea.vmem %s2, 8
    %v4183 = vld [vmem:[%s4182] sm:$0xff]
    %v4184 = vstv %s4181
    %v4185 = vmul.f32 %v4184, %v4183
    %s4186 = ssub.f32 1.0, %s4181
    %v4187 = vstv %s4186
    %v4188 = vmul.f32 %v4187, %v4177
    %v4189 = vadd.f32 %v4185, %v4188
    %v4191 = vcombine.high %v4036, %v4036
    %v4193 = vunpack.c.l.s4 1966171168
    %v4194 = vunpack.c.0.s8 %v4193
    %v4195 = vlaneseq
    %v4196 = vshrl.u32 %v4195, 7
    %v4197 = vsub.s32 %v4194, %v4196
    %v4198 = vrot.slane %v4036, %v4197
    %v4200 = vunpack.c.l.s4 1966171168
    %v4201 = vunpack.c.0.s8 %v4200
    %v4202 = vlaneseq
    %v4203 = vshrl.u32 %v4202, 7
    %v4204 = vsub.s32 %v4201, %v4203
    %v4205 = vrot.slane %v4191, %v4204
    %v4206 = vcombine.high %v4198, %v4198
    %v4207 = vcombine.high %v4205, %v4205
    %v4209 = vunpack.c.l.s4 1966171168
    %v4210 = vunpack.c.0.s8 %v4209
    %v4211 = vlaneseq
    %v4212 = vshrl.u32 %v4211, 7
    %v4213 = vsub.s32 %v4210, %v4212
    %v4214 = vrot.slane %v4198, %v4213
    %v4216 = vunpack.c.l.s4 1966171168
    %v4217 = vunpack.c.0.s8 %v4216
    %v4218 = vlaneseq
    %v4219 = vshrl.u32 %v4218, 7
    %v4220 = vsub.s32 %v4217, %v4219
    %v4221 = vrot.slane %v4205, %v4220
    %v4223 = vunpack.c.l.s4 1966171168
    %v4224 = vunpack.c.0.s8 %v4223
    %v4225 = vlaneseq
    %v4226 = vshrl.u32 %v4225, 7
    %v4227 = vsub.s32 %v4224, %v4226
    %v4228 = vrot.slane %v4206, %v4227
    %v4230 = vunpack.c.l.s4 1966171168
    %v4231 = vunpack.c.0.s8 %v4230
    %v4232 = vlaneseq
    %v4233 = vshrl.u32 %v4232, 7
    %v4234 = vsub.s32 %v4231, %v4233
    %v4235 = vrot.slane %v4207, %v4234
    %v4236 = vcombine.high %v4214, %v4214
    %v4237 = vcombine.high %v4221, %v4221
    %v4238 = vcombine.high %v4228, %v4228
    %v4239 = vcombine.high %v4235, %v4235
    %v4240 = vlaneseq
    %v4241 = vshrl.u32 %v4240, 7
    %v4242 = vsub.s32 0, %v4241
    %v4243 = vrot.slane %v4214, %v4242
    %v4244 = vlaneseq
    %v4245 = vshrl.u32 %v4244, 7
    %v4246 = vsub.s32 0, %v4245
    %v4247 = vrot.slane %v4228, %v4246
    %v4248 = vlaneseq
    %v4249 = vshrl.u32 %v4248, 7
    %v4250 = vsub.s32 0, %v4249
    %v4251 = vrot.slane %v4236, %v4250
    %v4252 = vlaneseq
    %v4253 = vshrl.u32 %v4252, 7
    %v4254 = vsub.s32 0, %v4253
    %v4255 = vrot.slane %v4238, %v4254
    %v4256 = vlaneseq
    %v4257 = vshrl.u32 %v4256, 7
    %v4258 = vsub.s32 0, %v4257
    %v4259 = vrot.slane %v4221, %v4258
    %v4260 = vlaneseq
    %v4261 = vshrl.u32 %v4260, 7
    %v4262 = vsub.s32 0, %v4261
    %v4263 = vrot.slane %v4235, %v4262
    %v4264 = vlaneseq
    %v4265 = vshrl.u32 %v4264, 7
    %v4266 = vsub.s32 0, %v4265
    %v4267 = vrot.slane %v4237, %v4266
    %v4268 = vlaneseq
    %v4269 = vshrl.u32 %v4268, 7
    %v4270 = vsub.s32 0, %v4269
    %v4271 = vrot.slane %v4239, %v4270
    %v4280 = vmul.f32 %v1862, %v4243
    %v4281 = vmul.f32 %v1863, %v4247
    %v4282 = vmul.f32 %v1864, %v4251
    %v4283 = vmul.f32 %v1865, %v4255
    %v4284 = vmul.f32 %v1866, %v4259
    %v4285 = vmul.f32 %v1867, %v4263
    %v4286 = vmul.f32 %v1868, %v4267
    %v4287 = vmul.f32 %v1869, %v4271
    %4288 = vadd.xlane.f32.xlu0 %v4280
    %v4289 = vpop.xlane.xlu0 %4288
    %4290 = vadd.xlane.f32.xlu0 %v4281
    %v4291 = vpop.xlane.xlu0 %4290
    %4292 = vadd.xlane.f32.xlu0 %v4282
    %v4293 = vpop.xlane.xlu0 %4292
    %4294 = vadd.xlane.f32.xlu0 %v4283
    %v4295 = vpop.xlane.xlu0 %4294
    %4296 = vadd.xlane.f32.xlu0 %v4284
    %v4297 = vpop.xlane.xlu0 %4296
    %4298 = vadd.xlane.f32.xlu0 %v4285
    %v4299 = vpop.xlane.xlu0 %4298
    %4300 = vadd.xlane.f32.xlu0 %v4286
    %v4301 = vpop.xlane.xlu0 %4300
    %4302 = vadd.xlane.f32.xlu0 %v4287
    %v4303 = vpop.xlane.xlu0 %4302
    %v4312 = vlaneseq
    %v4313 = vshrl.u32 %v4312, 7
    %v4314 = vsub.s32 %v2128, %v4313
    %v4315 = vrot.slane %v4289, %v4314
    %v4316 = vlaneseq
    %v4317 = vshrl.u32 %v4316, 7
    %v4318 = vsub.s32 %v2128, %v4317
    %v4319 = vrot.slane %v4291, %v4318
    %v4320 = vlaneseq
    %v4321 = vshrl.u32 %v4320, 7
    %v4322 = vsub.s32 %v2128, %v4321
    %v4323 = vrot.slane %v4293, %v4322
    %v4324 = vlaneseq
    %v4325 = vshrl.u32 %v4324, 7
    %v4326 = vsub.s32 %v2128, %v4325
    %v4327 = vrot.slane %v4295, %v4326
    %v4328 = vlaneseq
    %v4329 = vshrl.u32 %v4328, 7
    %v4330 = vsub.s32 %v2128, %v4329
    %v4331 = vrot.slane %v4297, %v4330
    %v4332 = vlaneseq
    %v4333 = vshrl.u32 %v4332, 7
    %v4334 = vsub.s32 %v2128, %v4333
    %v4335 = vrot.slane %v4299, %v4334
    %v4336 = vlaneseq
    %v4337 = vshrl.u32 %v4336, 7
    %v4338 = vsub.s32 %v2128, %v4337
    %v4339 = vrot.slane %v4301, %v4338
    %v4340 = vlaneseq
    %v4341 = vshrl.u32 %v4340, 7
    %v4342 = vsub.s32 %v2128, %v4341
    %v4343 = vrot.slane %v4303, %v4342
    %v4344 = vsel %vm2161, %v4319, %v4315
    %v4345 = vsel %vm2163, %v4323, %v4344
    %v4346 = vsel %vm2165, %v4327, %v4345
    %v4347 = vsel %vm2167, %v4331, %v4346
    %v4348 = vsel %vm2169, %v4335, %v4347
    %v4349 = vsel %vm2171, %v4339, %v4348
    %v4350 = vsel %vm2173, %v4343, %v4349
    %v4352 = vsel %vm156, %v4350, -inf
    %4353 = vmax.xlane.f32.xlu0 %v4352
    %v4354 = vpop.xlane.xlu0 %4353
    %v4356 = vlaneseq
    %v4357 = vshrl.u32 %v4356, 7
    %v4358 = vsub.s32 0, %v4357
    %v4359 = vrot.slane %v4354, %v4358
    %v4360 = vlaneseq
    %v4361 = vshrl.u32 %v4360, 7
    %v4362 = vsub.s32 1, %v4361
    %v4363 = vrot.slane %v4354, %v4362
    %v4364 = vlaneseq
    %v4365 = vshrl.u32 %v4364, 7
    %v4366 = vsub.s32 2, %v4365
    %v4367 = vrot.slane %v4354, %v4366
    %v4368 = vlaneseq
    %v4369 = vshrl.u32 %v4368, 7
    %v4370 = vsub.s32 3, %v4369
    %v4371 = vrot.slane %v4354, %v4370
    %v4372 = vlaneseq
    %v4373 = vshrl.u32 %v4372, 7
    %v4374 = vsub.s32 4, %v4373
    %v4375 = vrot.slane %v4354, %v4374
    %v4376 = vlaneseq
    %v4377 = vshrl.u32 %v4376, 7
    %v4378 = vsub.s32 5, %v4377
    %v4379 = vrot.slane %v4354, %v4378
    %v4380 = vlaneseq
    %v4381 = vshrl.u32 %v4380, 7
    %v4382 = vsub.s32 6, %v4381
    %v4383 = vrot.slane %v4354, %v4382
    %v4384 = vlaneseq
    %v4385 = vshrl.u32 %v4384, 7
    %v4386 = vsub.s32 7, %v4385
    %v4387 = vrot.slane %v4354, %v4386
    %v4396 = vsub.f32 %v4289, %v4359
    %v4397 = vsub.f32 %v4291, %v4363
    %v4398 = vsub.f32 %v4293, %v4367
    %v4399 = vsub.f32 %v4295, %v4371
    %v4400 = vsub.f32 %v4297, %v4375
    %v4401 = vsub.f32 %v4299, %v4379
    %v4402 = vsub.f32 %v4301, %v4383
    %v4403 = vsub.f32 %v4303, %v4387
    %v4404 = vmul.f32 %v4396, 1.442695
    %v4405 = vpow.pop %v4404
    %v4406 = vmul.f32 %v4397, 1.442695
    %v4407 = vpow.pop %v4406
    %v4408 = vmul.f32 %v4398, 1.442695
    %v4409 = vpow.pop %v4408
    %v4410 = vmul.f32 %v4399, 1.442695
    %v4411 = vpow.pop %v4410
    %v4412 = vmul.f32 %v4400, 1.442695
    %v4413 = vpow.pop %v4412
    %v4414 = vmul.f32 %v4401, 1.442695
    %v4415 = vpow.pop %v4414
    %v4416 = vmul.f32 %v4402, 1.442695
    %v4417 = vpow.pop %v4416
    %v4418 = vmul.f32 %v4403, 1.442695
    %v4419 = vpow.pop %v4418
    %4428 = vset.pattern.permute.xlu0 0
    %4429 = vperm.xlu0 %4428, %v4405
    %v4430 = vpop.permute.xlu0 %4429
    %4431 = vset.pattern.permute.xlu0 0
    %4432 = vperm.xlu0 %4431, %v4407
    %v4433 = vpop.permute.xlu0 %4432
    %4434 = vset.pattern.permute.xlu0 0
    %4435 = vperm.xlu0 %4434, %v4409
    %v4436 = vpop.permute.xlu0 %4435
    %4437 = vset.pattern.permute.xlu0 0
    %4438 = vperm.xlu0 %4437, %v4411
    %v4439 = vpop.permute.xlu0 %4438
    %4440 = vset.pattern.permute.xlu0 0
    %4441 = vperm.xlu0 %4440, %v4413
    %v4442 = vpop.permute.xlu0 %4441
    %4443 = vset.pattern.permute.xlu0 0
    %4444 = vperm.xlu0 %4443, %v4415
    %v4445 = vpop.permute.xlu0 %4444
    %4446 = vset.pattern.permute.xlu0 0
    %4447 = vperm.xlu0 %4446, %v4417
    %v4448 = vpop.permute.xlu0 %4447
    %4449 = vset.pattern.permute.xlu0 0
    %4450 = vperm.xlu0 %4449, %v4419
    %v4451 = vpop.permute.xlu0 %4450
    %v4452 = vlaneseq
    %v4453 = vshrl.u32 %v4452, 7
    %v4454 = vsub.s32 %v2128, %v4453
    %v4455 = vrot.slane %v4430, %v4454
    %v4456 = vlaneseq
    %v4457 = vshrl.u32 %v4456, 7
    %v4458 = vsub.s32 %v2128, %v4457
    %v4459 = vrot.slane %v4433, %v4458
    %v4460 = vlaneseq
    %v4461 = vshrl.u32 %v4460, 7
    %v4462 = vsub.s32 %v2128, %v4461
    %v4463 = vrot.slane %v4436, %v4462
    %v4464 = vlaneseq
    %v4465 = vshrl.u32 %v4464, 7
    %v4466 = vsub.s32 %v2128, %v4465
    %v4467 = vrot.slane %v4439, %v4466
    %v4468 = vlaneseq
    %v4469 = vshrl.u32 %v4468, 7
    %v4470 = vsub.s32 %v2128, %v4469
    %v4471 = vrot.slane %v4442, %v4470
    %v4472 = vlaneseq
    %v4473 = vshrl.u32 %v4472, 7
    %v4474 = vsub.s32 %v2128, %v4473
    %v4475 = vrot.slane %v4445, %v4474
    %v4476 = vlaneseq
    %v4477 = vshrl.u32 %v4476, 7
    %v4478 = vsub.s32 %v2128, %v4477
    %v4479 = vrot.slane %v4448, %v4478
    %v4480 = vlaneseq
    %v4481 = vshrl.u32 %v4480, 7
    %v4482 = vsub.s32 %v2128, %v4481
    %v4483 = vrot.slane %v4451, %v4482
    %v4484 = vsel %vm2161, %v4459, %v4455
    %v4485 = vsel %vm2163, %v4463, %v4484
    %v4486 = vsel %vm2165, %v4467, %v4485
    %v4487 = vsel %vm2167, %v4471, %v4486
    %v4488 = vsel %vm2169, %v4475, %v4487
    %v4489 = vsel %vm2171, %v4479, %v4488
    %v4490 = vsel %vm2173, %v4483, %v4489
    %v4492 = vsel %vm156, %v4490, 0.0
    %4493 = vadd.xlane.f32.xlu0 %v4492
    %v4494 = vpop.xlane.xlu0 %4493
    %v4495 = vrcp.pop %v4494
    %v4497 = vlaneseq
    %v4498 = vshrl.u32 %v4497, 7
    %v4499 = vsub.s32 0, %v4498
    %v4500 = vrot.slane %v4495, %v4499
    %v4501 = vlaneseq
    %v4502 = vshrl.u32 %v4501, 7
    %v4503 = vsub.s32 1, %v4502
    %v4504 = vrot.slane %v4495, %v4503
    %v4505 = vlaneseq
    %v4506 = vshrl.u32 %v4505, 7
    %v4507 = vsub.s32 2, %v4506
    %v4508 = vrot.slane %v4495, %v4507
    %v4509 = vlaneseq
    %v4510 = vshrl.u32 %v4509, 7
    %v4511 = vsub.s32 3, %v4510
    %v4512 = vrot.slane %v4495, %v4511
    %v4513 = vlaneseq
    %v4514 = vshrl.u32 %v4513, 7
    %v4515 = vsub.s32 4, %v4514
    %v4516 = vrot.slane %v4495, %v4515
    %v4517 = vlaneseq
    %v4518 = vshrl.u32 %v4517, 7
    %v4519 = vsub.s32 5, %v4518
    %v4520 = vrot.slane %v4495, %v4519
    %v4521 = vlaneseq
    %v4522 = vshrl.u32 %v4521, 7
    %v4523 = vsub.s32 6, %v4522
    %v4524 = vrot.slane %v4495, %v4523
    %v4525 = vlaneseq
    %v4526 = vshrl.u32 %v4525, 7
    %v4527 = vsub.s32 7, %v4526
    %v4528 = vrot.slane %v4495, %v4527
    %v4537 = vmul.f32 %v4405, %v4500
    %v4538 = vmul.f32 %v4407, %v4504
    %v4539 = vmul.f32 %v4409, %v4508
    %v4540 = vmul.f32 %v4411, %v4512
    %v4541 = vmul.f32 %v4413, %v4516
    %v4542 = vmul.f32 %v4415, %v4520
    %v4543 = vmul.f32 %v4417, %v4524
    %v4544 = vmul.f32 %v4419, %v4528
    %4546 = vset.pattern.permute.xlu0 0
    %4547 = vperm.xlu0 %4546, %v4537
    %v4548 = vpop.permute.xlu0 %4547
    %4551 = vset.pattern.permute.xlu0 0
    %4552 = vperm.xlu0 %4551, %v4538
    %v4553 = vpop.permute.xlu0 %4552
    %4556 = vset.pattern.permute.xlu0 0
    %4557 = vperm.xlu0 %4556, %v4539
    %v4558 = vpop.permute.xlu0 %4557
    %4561 = vset.pattern.permute.xlu0 0
    %4562 = vperm.xlu0 %4561, %v4540
    %v4563 = vpop.permute.xlu0 %4562
    %4566 = vset.pattern.permute.xlu0 0
    %4567 = vperm.xlu0 %4566, %v4541
    %v4568 = vpop.permute.xlu0 %4567
    %4571 = vset.pattern.permute.xlu0 0
    %4572 = vperm.xlu0 %4571, %v4542
    %v4573 = vpop.permute.xlu0 %4572
    %4576 = vset.pattern.permute.xlu0 0
    %4577 = vperm.xlu0 %4576, %v4543
    %v4578 = vpop.permute.xlu0 %4577
    %4581 = vset.pattern.permute.xlu0 0
    %4582 = vperm.xlu0 %4581, %v4544
    %v4583 = vpop.permute.xlu0 %4582
    %v4585 = vmul.f32 %v4548, %v1862
    %v4586 = vmul.f32 %v4553, %v1863
    %v4587 = vmul.f32 %v4558, %v1864
    %v4588 = vmul.f32 %v4563, %v1865
    %v4589 = vmul.f32 %v4568, %v1866
    %v4590 = vmul.f32 %v4573, %v1867
    %v4591 = vmul.f32 %v4578, %v1868
    %v4592 = vmul.f32 %v4583, %v1869
    %v4593 = vrot.slane %v4585, 4
    %v4594 = vadd.f32 %v4585, %v4593
    %v4595 = vrot.slane %v4594, 2
    %v4596 = vadd.f32 %v4594, %v4595
    %v4597 = vrot.slane %v4596, 1
    %v4598 = vadd.f32 %v4596, %v4597
    %v4599 = vrot.slane %v4586, 4
    %v4600 = vadd.f32 %v4586, %v4599
    %v4601 = vrot.slane %v4600, 2
    %v4602 = vadd.f32 %v4600, %v4601
    %v4603 = vrot.slane %v4602, 1
    %v4604 = vadd.f32 %v4602, %v4603
    %v4605 = vrot.slane %v4587, 4
    %v4606 = vadd.f32 %v4587, %v4605
    %v4607 = vrot.slane %v4606, 2
    %v4608 = vadd.f32 %v4606, %v4607
    %v4609 = vrot.slane %v4608, 1
    %v4610 = vadd.f32 %v4608, %v4609
    %v4611 = vrot.slane %v4588, 4
    %v4612 = vadd.f32 %v4588, %v4611
    %v4613 = vrot.slane %v4612, 2
    %v4614 = vadd.f32 %v4612, %v4613
    %v4615 = vrot.slane %v4614, 1
    %v4616 = vadd.f32 %v4614, %v4615
    %v4617 = vrot.slane %v4589, 4
    %v4618 = vadd.f32 %v4589, %v4617
    %v4619 = vrot.slane %v4618, 2
    %v4620 = vadd.f32 %v4618, %v4619
    %v4621 = vrot.slane %v4620, 1
    %v4622 = vadd.f32 %v4620, %v4621
    %v4623 = vrot.slane %v4590, 4
    %v4624 = vadd.f32 %v4590, %v4623
    %v4625 = vrot.slane %v4624, 2
    %v4626 = vadd.f32 %v4624, %v4625
    %v4627 = vrot.slane %v4626, 1
    %v4628 = vadd.f32 %v4626, %v4627
    %v4629 = vrot.slane %v4591, 4
    %v4630 = vadd.f32 %v4591, %v4629
    %v4631 = vrot.slane %v4630, 2
    %v4632 = vadd.f32 %v4630, %v4631
    %v4633 = vrot.slane %v4632, 1
    %v4634 = vadd.f32 %v4632, %v4633
    %v4635 = vrot.slane %v4592, 4
    %v4636 = vadd.f32 %v4592, %v4635
    %v4637 = vrot.slane %v4636, 2
    %v4638 = vadd.f32 %v4636, %v4637
    %v4639 = vrot.slane %v4638, 1
    %v4640 = vadd.f32 %v4638, %v4639
    %v4649 = vsel %vm2161, %v4604, %v4598
    %v4650 = vsel %vm2163, %v4610, %v4649
    %v4651 = vsel %vm2165, %v4616, %v4650
    %v4652 = vsel %vm2167, %v4622, %v4651
    %v4653 = vsel %vm2169, %v4628, %v4652
    %v4654 = vsel %vm2171, %v4634, %v4653
    %v4655 = vsel %vm2173, %v4640, %v4654
    %4657 = vmatprep.subr.mxu0 %v1874
    %4658 = vmatpush1.msra.mxu0 %v1873
    %4659 = vmatprep.subr.mxu0 %v1877
    %4660 = vmatpush1.msra.mxu0 %v1876
    %4661 = vmatprep.subr.mxu0 %v1880
    %4662 = vmatpush1.msra.mxu0 %v1879
    %4663 = vmatprep.subr.mxu0 %v1883
    %4664 = vmatpush1.msra.mxu0 %v1882
    %4665 = vmatprep.subr.mxu0 %v1886
    %4666 = vmatpush1.msra.mxu0 %v1885
    %4667 = vmatprep.subr.mxu0 %v1889
    %4668 = vmatpush1.msra.mxu0 %v1888
    %4669 = vmatprep.subr.mxu0 %v1892
    %4670 = vmatpush1.msra.mxu0 %v1891
    %4671 = vmatprep.subr.mxu0 %v1895
    %4672 = vmatpush1.msra.mxu0 %v1894
    %4673 = vmatprep.subr.mxu0 %v1898
    %4674 = vmatpush1.msra.mxu0 %v1897
    %4675 = vmatprep.subr.mxu0 %v1901
    %4676 = vmatpush1.msra.mxu0 %v1900
    %4677 = vmatprep.subr.mxu0 %v1904
    %4678 = vmatpush1.msra.mxu0 %v1903
    %4679 = vmatprep.subr.mxu0 %v1907
    %4680 = vmatpush1.msra.mxu0 %v1906
    %4681 = vmatprep.subr.mxu0 %v1910
    %4682 = vmatpush1.msra.mxu0 %v1909
    %4683 = vmatprep.subr.mxu0 %v1913
    %4684 = vmatpush1.msra.mxu0 %v1912
    %4685 = vmatprep.subr.mxu0 %v1916
    %4686 = vmatpush1.msra.mxu0 %v1915
    %4687 = vmatprep.subr.mxu0 %v1919
    %4688 = vmatpush1.msra.mxu0 %v1918
    %4689 = vmatprep.subr.mxu0 0.0
    %4690 = vmatpush1.msra.mxu0 0.0
    %4691 = vmatprep.subr.mxu0 0.0
    %4692 = vmatpush1.msra.mxu0 0.0
    %4693 = vmatprep.subr.mxu0 0.0
    %4694 = vmatpush1.msra.mxu0 0.0
    %4695 = vmatprep.subr.mxu0 0.0
    %4696 = vmatpush1.msra.mxu0 0.0
    %4697 = vmatprep.subr.mxu0 0.0
    %4698 = vmatpush1.msra.mxu0 0.0
    %4699 = vmatprep.subr.mxu0 0.0
    %4700 = vmatpush1.msra.mxu0 0.0
    %4701 = vmatprep.subr.mxu0 0.0
    %4702 = vmatpush1.msra.mxu0 0.0
    %4703 = vmatprep.subr.mxu0 0.0
    %4704 = vmatpush1.msra.mxu0 0.0
    %4705 = vmatprep.subr.mxu0 0.0
    %4706 = vmatpush1.msra.mxu0 0.0
    %4707 = vmatprep.subr.mxu0 0.0
    %4708 = vmatpush1.msra.mxu0 0.0
    %4709 = vmatprep.subr.mxu0 0.0
    %4710 = vmatpush1.msra.mxu0 0.0
    %4711 = vmatprep.subr.mxu0 0.0
    %4712 = vmatpush1.msra.mxu0 0.0
    %4713 = vmatprep.subr.mxu0 0.0
    %4714 = vmatpush1.msra.mxu0 0.0
    %4715 = vmatprep.subr.mxu0 0.0
    %4716 = vmatpush1.msra.mxu0 0.0
    %4717 = vmatprep.subr.mxu0 0.0
    %4718 = vmatpush1.msra.mxu0 0.0
    %4719 = vmatprep.subr.mxu0 0.0
    %4720 = vmatpush1.msra.mxu0 0.0
    %4721 = vmatprep.mubr.f32.mxu0 0.0
    %4722 = vmatmul.mubr.f32.gmra.mrb[0].mxu0 %v4655
    %v4723 = vpop.f32.mrb[0].mxu0
    %v4724 = vadd.f32 0.0, %v4723
    %v4725 = vpop.f32.mrb[0].mxu0
    %v4726 = vadd.f32 0.0, %v4725
    %4727 = vdwg.mxu0
    %4728 = vmatprep.subr.mxu0 0.0
    %4729 = vmatpush1.msra.mxu0 %v1875
    %4730 = vmatprep.subr.mxu0 0.0
    %4731 = vmatpush1.msra.mxu0 %v1878
    %4732 = vmatprep.subr.mxu0 0.0
    %4733 = vmatpush1.msra.mxu0 %v1881
    %4734 = vmatprep.subr.mxu0 0.0
    %4735 = vmatpush1.msra.mxu0 %v1884
    %4736 = vmatprep.subr.mxu0 0.0
    %4737 = vmatpush1.msra.mxu0 %v1887
    %4738 = vmatprep.subr.mxu0 0.0
    %4739 = vmatpush1.msra.mxu0 %v1890
    %4740 = vmatprep.subr.mxu0 0.0
    %4741 = vmatpush1.msra.mxu0 %v1893
    %4742 = vmatprep.subr.mxu0 0.0
    %4743 = vmatpush1.msra.mxu0 %v1896
    %4744 = vmatprep.subr.mxu0 0.0
    %4745 = vmatpush1.msra.mxu0 %v1899
    %4746 = vmatprep.subr.mxu0 0.0
    %4747 = vmatpush1.msra.mxu0 %v1902
    %4748 = vmatprep.subr.mxu0 0.0
    %4749 = vmatpush1.msra.mxu0 %v1905
    %4750 = vmatprep.subr.mxu0 0.0
    %4751 = vmatpush1.msra.mxu0 %v1908
    %4752 = vmatprep.subr.mxu0 0.0
    %4753 = vmatpush1.msra.mxu0 %v1911
    %4754 = vmatprep.subr.mxu0 0.0
    %4755 = vmatpush1.msra.mxu0 %v1914
    %4756 = vmatprep.subr.mxu0 0.0
    %4757 = vmatpush1.msra.mxu0 %v1917
    %4758 = vmatprep.subr.mxu0 0.0
    %4759 = vmatpush1.msra.mxu0 %v1920
    %4760 = vmatprep.subr.mxu0 0.0
    %4761 = vmatpush1.msra.mxu0 0.0
    %4762 = vmatprep.subr.mxu0 0.0
    %4763 = vmatpush1.msra.mxu0 0.0
    %4764 = vmatprep.subr.mxu0 0.0
    %4765 = vmatpush1.msra.mxu0 0.0
    %4766 = vmatprep.subr.mxu0 0.0
    %4767 = vmatpush1.msra.mxu0 0.0
    %4768 = vmatprep.subr.mxu0 0.0
    %4769 = vmatpush1.msra.mxu0 0.0
    %4770 = vmatprep.subr.mxu0 0.0
    %4771 = vmatpush1.msra.mxu0 0.0
    %4772 = vmatprep.subr.mxu0 0.0
    %4773 = vmatpush1.msra.mxu0 0.0
    %4774 = vmatprep.subr.mxu0 0.0
    %4775 = vmatpush1.msra.mxu0 0.0
    %4776 = vmatprep.subr.mxu0 0.0
    %4777 = vmatpush1.msra.mxu0 0.0
    %4778 = vmatprep.subr.mxu0 0.0
    %4779 = vmatpush1.msra.mxu0 0.0
    %4780 = vmatprep.subr.mxu0 0.0
    %4781 = vmatpush1.msra.mxu0 0.0
    %4782 = vmatprep.subr.mxu0 0.0
    %4783 = vmatpush1.msra.mxu0 0.0
    %4784 = vmatprep.subr.mxu0 0.0
    %4785 = vmatpush1.msra.mxu0 0.0
    %4786 = vmatprep.subr.mxu0 0.0
    %4787 = vmatpush1.msra.mxu0 0.0
    %4788 = vmatprep.subr.mxu0 0.0
    %4789 = vmatpush1.msra.mxu0 0.0
    %4790 = vmatprep.subr.mxu0 0.0
    %4791 = vmatpush1.msra.mxu0 0.0
    %4792 = vmatprep.mubr.f32.mxu0 0.0
    %4793 = vmatmul.mubr.f32.gmra.mrb[0].mxu0 %v4655
    %v4794 = vpop.f32.mrb[0].mxu0
    %v4795 = vadd.f32 0.0, %v4794
    %v4796 = vpop.f32.mrb[0].mxu0
    %4797 = vdwg.mxu0
    %v4799 = vsel %vm156, %v4189, 0
    %4801 = vmatprep.subr.mxu0 %v1871
    %4802 = vmatpush1.msra.mxu0 %v1870
    %4803 = vmatprep.subr.mxu0 0.0
    %4804 = vmatpush1.msra.mxu0 0.0
    %4805 = vmatprep.subr.mxu0 0.0
    %4806 = vmatpush1.msra.mxu0 0.0
    %4807 = vmatprep.subr.mxu0 0.0
    %4808 = vmatpush1.msra.mxu0 0.0
    %4809 = vmatprep.subr.mxu0 0.0
    %4810 = vmatpush1.msra.mxu0 0.0
    %4811 = vmatprep.subr.mxu0 0.0
    %4812 = vmatpush1.msra.mxu0 0.0
    %4813 = vmatprep.subr.mxu0 0.0
    %4814 = vmatpush1.msra.mxu0 0.0
    %4815 = vmatprep.subr.mxu0 0.0
    %4816 = vmatpush1.msra.mxu0 0.0
    %4817 = vmatprep.subr.mxu0 0.0
    %4818 = vmatpush1.msra.mxu0 0.0
    %4819 = vmatprep.subr.mxu0 0.0
    %4820 = vmatpush1.msra.mxu0 0.0
    %4821 = vmatprep.subr.mxu0 0.0
    %4822 = vmatpush1.msra.mxu0 0.0
    %4823 = vmatprep.subr.mxu0 0.0
    %4824 = vmatpush1.msra.mxu0 0.0
    %4825 = vmatprep.subr.mxu0 0.0
    %4826 = vmatpush1.msra.mxu0 0.0
    %4827 = vmatprep.subr.mxu0 0.0
    %4828 = vmatpush1.msra.mxu0 0.0
    %4829 = vmatprep.subr.mxu0 0.0
    %4830 = vmatpush1.msra.mxu0 0.0
    %4831 = vmatprep.subr.mxu0 0.0
    %4832 = vmatpush1.msra.mxu0 0.0
    %4833 = vmatprep.subr.mxu0 0.0
    %4834 = vmatpush1.msra.mxu0 0.0
    %4835 = vmatprep.subr.mxu0 0.0
    %4836 = vmatpush1.msra.mxu0 0.0
    %4837 = vmatprep.subr.mxu0 0.0
    %4838 = vmatpush1.msra.mxu0 0.0
    %4839 = vmatprep.subr.mxu0 0.0
    %4840 = vmatpush1.msra.mxu0 0.0
    %4841 = vmatprep.subr.mxu0 0.0
    %4842 = vmatpush1.msra.mxu0 0.0
    %4843 = vmatprep.subr.mxu0 0.0
    %4844 = vmatpush1.msra.mxu0 0.0
    %4845 = vmatprep.subr.mxu0 0.0
    %4846 = vmatpush1.msra.mxu0 0.0
    %4847 = vmatprep.subr.mxu0 0.0
    %4848 = vmatpush1.msra.mxu0 0.0
    %4849 = vmatprep.subr.mxu0 0.0
    %4850 = vmatpush1.msra.mxu0 0.0
    %4851 = vmatprep.subr.mxu0 0.0
    %4852 = vmatpush1.msra.mxu0 0.0
    %4853 = vmatprep.subr.mxu0 0.0
    %4854 = vmatpush1.msra.mxu0 0.0
    %4855 = vmatprep.subr.mxu0 0.0
    %4856 = vmatpush1.msra.mxu0 0.0
    %4857 = vmatprep.subr.mxu0 0.0
    %4858 = vmatpush1.msra.mxu0 0.0
    %4859 = vmatprep.subr.mxu0 0.0
    %4860 = vmatpush1.msra.mxu0 0.0
    %4861 = vmatprep.subr.mxu0 0.0
    %4862 = vmatpush1.msra.mxu0 0.0
    %4863 = vmatprep.subr.mxu0 0.0
    %4864 = vmatpush1.msra.mxu0 0.0
    %4865 = vmatprep.mubr.f32.mxu0 0.0
    %4866 = vmatmul.mubr.f32.gmra.mrb[0].mxu0 %v4799
    %v4867 = vpop.f32.mrb[0].mxu0
    %v4868 = vadd.f32 %v4724, %v4867
    %v4869 = vpop.f32.mrb[0].mxu0
    %v4870 = vadd.f32 %v4726, %v4869
    %4871 = vdwg.mxu0
    %4872 = vmatprep.subr.mxu0 0.0
    %4873 = vmatpush1.msra.mxu0 %v1872
    %4874 = vmatprep.subr.mxu0 0.0
    %4875 = vmatpush1.msra.mxu0 0.0
    %4876 = vmatprep.subr.mxu0 0.0
    %4877 = vmatpush1.msra.mxu0 0.0
    %4878 = vmatprep.subr.mxu0 0.0
    %4879 = vmatpush1.msra.mxu0 0.0
    %4880 = vmatprep.subr.mxu0 0.0
    %4881 = vmatpush1.msra.mxu0 0.0
    %4882 = vmatprep.subr.mxu0 0.0
    %4883 = vmatpush1.msra.mxu0 0.0
    %4884 = vmatprep.subr.mxu0 0.0
    %4885 = vmatpush1.msra.mxu0 0.0
    %4886 = vmatprep.subr.mxu0 0.0
    %4887 = vmatpush1.msra.mxu0 0.0
    %4888 = vmatprep.subr.mxu0 0.0
    %4889 = vmatpush1.msra.mxu0 0.0
    %4890 = vmatprep.subr.mxu0 0.0
    %4891 = vmatpush1.msra.mxu0 0.0
    %4892 = vmatprep.subr.mxu0 0.0
    %4893 = vmatpush1.msra.mxu0 0.0
    %4894 = vmatprep.subr.mxu0 0.0
    %4895 = vmatpush1.msra.mxu0 0.0
    %4896 = vmatprep.subr.mxu0 0.0
    %4897 = vmatpush1.msra.mxu0 0.0
    %4898 = vmatprep.subr.mxu0 0.0
    %4899 = vmatpush1.msra.mxu0 0.0
    %4900 = vmatprep.subr.mxu0 0.0
    %4901 = vmatpush1.msra.mxu0 0.0
    %4902 = vmatprep.subr.mxu0 0.0
    %4903 = vmatpush1.msra.mxu0 0.0
    %4904 = vmatprep.subr.mxu0 0.0
    %4905 = vmatpush1.msra.mxu0 0.0
    %4906 = vmatprep.subr.mxu0 0.0
    %4907 = vmatpush1.msra.mxu0 0.0
    %4908 = vmatprep.subr.mxu0 0.0
    %4909 = vmatpush1.msra.mxu0 0.0
    %4910 = vmatprep.subr.mxu0 0.0
    %4911 = vmatpush1.msra.mxu0 0.0
    %4912 = vmatprep.subr.mxu0 0.0
    %4913 = vmatpush1.msra.mxu0 0.0
    %4914 = vmatprep.subr.mxu0 0.0
    %4915 = vmatpush1.msra.mxu0 0.0
    %4916 = vmatprep.subr.mxu0 0.0
    %4917 = vmatpush1.msra.mxu0 0.0
    %4918 = vmatprep.subr.mxu0 0.0
    %4919 = vmatpush1.msra.mxu0 0.0
    %4920 = vmatprep.subr.mxu0 0.0
    %4921 = vmatpush1.msra.mxu0 0.0
    %4922 = vmatprep.subr.mxu0 0.0
    %4923 = vmatpush1.msra.mxu0 0.0
    %4924 = vmatprep.subr.mxu0 0.0
    %4925 = vmatpush1.msra.mxu0 0.0
    %4926 = vmatprep.subr.mxu0 0.0
    %4927 = vmatpush1.msra.mxu0 0.0
    %4928 = vmatprep.subr.mxu0 0.0
    %4929 = vmatpush1.msra.mxu0 0.0
    %4930 = vmatprep.subr.mxu0 0.0
    %4931 = vmatpush1.msra.mxu0 0.0
    %4932 = vmatprep.subr.mxu0 0.0
    %4933 = vmatpush1.msra.mxu0 0.0
    %4934 = vmatprep.subr.mxu0 0.0
    %4935 = vmatpush1.msra.mxu0 0.0
    %4936 = vmatprep.mubr.f32.mxu0 0.0
    %4937 = vmatmul.mubr.f32.gmra.mrb[0].mxu0 %v4799
    %v4938 = vpop.f32.mrb[0].mxu0
    %v4939 = vadd.f32 %v4795, %v4938
    %v4940 = vpop.f32.mrb[0].mxu0
    %4941 = vdwg.mxu0
    %v4942 = vadd.f32 %v4868, %v2770
    %v4943 = vadd.f32 %v4870, %v2774
    %v4944 = vadd.f32 %v4939, %v2778
    %4945 = vmatprep.subr.mxu0 %v1922
    %4946 = vmatpush1.msra.mxu0 %v1921
    %4947 = vmatprep.subr.mxu0 %v1925
    %4948 = vmatpush1.msra.mxu0 %v1924
    %4949 = vmatprep.subr.mxu0 %v1928
    %4950 = vmatpush1.msra.mxu0 %v1927
    %4951 = vmatprep.subr.mxu0 %v1931
    %4952 = vmatpush1.msra.mxu0 %v1930
    %4953 = vmatprep.subr.mxu0 %v1934
    %4954 = vmatpush1.msra.mxu0 %v1933
    %4955 = vmatprep.subr.mxu0 %v1937
    %4956 = vmatpush1.msra.mxu0 %v1936
    %4957 = vmatprep.subr.mxu0 %v1940
    %4958 = vmatpush1.msra.mxu0 %v1939
    %4959 = vmatprep.subr.mxu0 %v1943
    %4960 = vmatpush1.msra.mxu0 %v1942
    %4961 = vmatprep.subr.mxu0 %v1946
    %4962 = vmatpush1.msra.mxu0 %v1945
    %4963 = vmatprep.subr.mxu0 %v1949
    %4964 = vmatpush1.msra.mxu0 %v1948
    %4965 = vmatprep.subr.mxu0 %v1952
    %4966 = vmatpush1.msra.mxu0 %v1951
    %4967 = vmatprep.subr.mxu0 %v1955
    %4968 = vmatpush1.msra.mxu0 %v1954
    %4969 = vmatprep.subr.mxu0 %v1958
    %4970 = vmatpush1.msra.mxu0 %v1957
    %4971 = vmatprep.subr.mxu0 %v1961
    %4972 = vmatpush1.msra.mxu0 %v1960
    %4973 = vmatprep.subr.mxu0 %v1964
    %4974 = vmatpush1.msra.mxu0 %v1963
    %4975 = vmatprep.subr.mxu0 %v1967
    %4976 = vmatpush1.msra.mxu0 %v1966
    %4977 = vmatprep.subr.mxu0 0.0
    %4978 = vmatpush1.msra.mxu0 0.0
    %4979 = vmatprep.subr.mxu0 0.0
    %4980 = vmatpush1.msra.mxu0 0.0
    %4981 = vmatprep.subr.mxu0 0.0
    %4982 = vmatpush1.msra.mxu0 0.0
    %4983 = vmatprep.subr.mxu0 0.0
    %4984 = vmatpush1.msra.mxu0 0.0
    %4985 = vmatprep.subr.mxu0 0.0
    %4986 = vmatpush1.msra.mxu0 0.0
    %4987 = vmatprep.subr.mxu0 0.0
    %4988 = vmatpush1.msra.mxu0 0.0
    %4989 = vmatprep.subr.mxu0 0.0
    %4990 = vmatpush1.msra.mxu0 0.0
    %4991 = vmatprep.subr.mxu0 0.0
    %4992 = vmatpush1.msra.mxu0 0.0
    %4993 = vmatprep.subr.mxu0 0.0
    %4994 = vmatpush1.msra.mxu0 0.0
    %4995 = vmatprep.subr.mxu0 0.0
    %4996 = vmatpush1.msra.mxu0 0.0
    %4997 = vmatprep.subr.mxu0 0.0
    %4998 = vmatpush1.msra.mxu0 0.0
    %4999 = vmatprep.subr.mxu0 0.0
    %5000 = vmatpush1.msra.mxu0 0.0
    %5001 = vmatprep.subr.mxu0 0.0
    %5002 = vmatpush1.msra.mxu0 0.0
    %5003 = vmatprep.subr.mxu0 0.0
    %5004 = vmatpush1.msra.mxu0 0.0
    %5005 = vmatprep.subr.mxu0 0.0
    %5006 = vmatpush1.msra.mxu0 0.0
    %5007 = vmatprep.subr.mxu0 0.0
    %5008 = vmatpush1.msra.mxu0 0.0
    %5009 = vmatprep.mubr.f32.mxu0 0.0
    %5010 = vmatmul.mubr.f32.gmra.mrb[0].mxu0 %v4036
    %v5011 = vpop.f32.mrb[0].mxu0
    %v5012 = vadd.f32 %v2789, %v5011
    %v5013 = vpop.f32.mrb[0].mxu0
    %v5014 = vadd.f32 %v2793, %v5013
    %5015 = vdwg.mxu0
    %5016 = vmatprep.subr.mxu0 0.0
    %5017 = vmatpush1.msra.mxu0 %v1923
    %5018 = vmatprep.subr.mxu0 0.0
    %5019 = vmatpush1.msra.mxu0 %v1926
    %5020 = vmatprep.subr.mxu0 0.0
    %5021 = vmatpush1.msra.mxu0 %v1929
    %5022 = vmatprep.subr.mxu0 0.0
    %5023 = vmatpush1.msra.mxu0 %v1932
    %5024 = vmatprep.subr.mxu0 0.0
    %5025 = vmatpush1.msra.mxu0 %v1935
    %5026 = vmatprep.subr.mxu0 0.0
    %5027 = vmatpush1.msra.mxu0 %v1938
    %5028 = vmatprep.subr.mxu0 0.0
    %5029 = vmatpush1.msra.mxu0 %v1941
    %5030 = vmatprep.subr.mxu0 0.0
    %5031 = vmatpush1.msra.mxu0 %v1944
    %5032 = vmatprep.subr.mxu0 0.0
    %5033 = vmatpush1.msra.mxu0 %v1947
    %5034 = vmatprep.subr.mxu0 0.0
    %5035 = vmatpush1.msra.mxu0 %v1950
    %5036 = vmatprep.subr.mxu0 0.0
    %5037 = vmatpush1.msra.mxu0 %v1953
    %5038 = vmatprep.subr.mxu0 0.0
    %5039 = vmatpush1.msra.mxu0 %v1956
    %5040 = vmatprep.subr.mxu0 0.0
    %5041 = vmatpush1.msra.mxu0 %v1959
    %5042 = vmatprep.subr.mxu0 0.0
    %5043 = vmatpush1.msra.mxu0 %v1962
    %5044 = vmatprep.subr.mxu0 0.0
    %5045 = vmatpush1.msra.mxu0 %v1965
    %5046 = vmatprep.subr.mxu0 0.0
    %5047 = vmatpush1.msra.mxu0 %v1968
    %5048 = vmatprep.subr.mxu0 0.0
    %5049 = vmatpush1.msra.mxu0 0.0
    %5050 = vmatprep.subr.mxu0 0.0
    %5051 = vmatpush1.msra.mxu0 0.0
    %5052 = vmatprep.subr.mxu0 0.0
    %5053 = vmatpush1.msra.mxu0 0.0
    %5054 = vmatprep.subr.mxu0 0.0
    %5055 = vmatpush1.msra.mxu0 0.0
    %5056 = vmatprep.subr.mxu0 0.0
    %5057 = vmatpush1.msra.mxu0 0.0
    %5058 = vmatprep.subr.mxu0 0.0
    %5059 = vmatpush1.msra.mxu0 0.0
    %5060 = vmatprep.subr.mxu0 0.0
    %5061 = vmatpush1.msra.mxu0 0.0
    %5062 = vmatprep.subr.mxu0 0.0
    %5063 = vmatpush1.msra.mxu0 0.0
    %5064 = vmatprep.subr.mxu0 0.0
    %5065 = vmatpush1.msra.mxu0 0.0
    %5066 = vmatprep.subr.mxu0 0.0
    %5067 = vmatpush1.msra.mxu0 0.0
    %5068 = vmatprep.subr.mxu0 0.0
    %5069 = vmatpush1.msra.mxu0 0.0
    %5070 = vmatprep.subr.mxu0 0.0
    %5071 = vmatpush1.msra.mxu0 0.0
    %5072 = vmatprep.subr.mxu0 0.0
    %5073 = vmatpush1.msra.mxu0 0.0
    %5074 = vmatprep.subr.mxu0 0.0
    %5075 = vmatpush1.msra.mxu0 0.0
    %5076 = vmatprep.subr.mxu0 0.0
    %5077 = vmatpush1.msra.mxu0 0.0
    %5078 = vmatprep.subr.mxu0 0.0
    %5079 = vmatpush1.msra.mxu0 0.0
    %5080 = vmatprep.mubr.f32.mxu0 0.0
    %5081 = vmatmul.mubr.f32.gmra.mrb[0].mxu0 %v4036
    %v5082 = vpop.f32.mrb[0].mxu0
    %v5083 = vadd.f32 %v2797, %v5082
    %v5084 = vpop.f32.mrb[0].mxu0
    %5085 = vdwg.mxu0
    %v5086 = vadd.f32 %v4942, %v5012
    %v5087 = vxor.u32 %v5086, 2147483648
    %v5088 = vmul.f32 %v5087, 1.442695
    %v5089 = vpow.pop %v5088
    %v5090 = vadd.f32 %v5089, 1.0
    %v5091 = vrcp.pop %v5090
    %v5092 = vmul.f32 1.0, %v5091
    %v5093 = vadd.f32 %v4943, %v5014
    %v5094 = vxor.u32 %v5093, 2147483648
    %v5095 = vmul.f32 %v5094, 1.442695
    %v5096 = vpow.pop %v5095
    %v5097 = vadd.f32 %v5096, 1.0
    %v5098 = vrcp.pop %v5097
    %v5099 = vmul.f32 1.0, %v5098
    %v5100 = vmul.f32 %v5092, %v5083
    %v5101 = vadd.f32 %v4944, %v5100
    %v5102 = vtanh.pop %v5101
    %v5103 = vsub.f32 1.0, %v5099
    %v5104 = vmul.f32 %v5103, %v5102
    %v5105 = vmul.f32 %v5099, %v4036
    %v5106 = vadd.f32 %v5104, %v5105
    %5107 = vmatprep.subr.mxu0 0.0
    %5108 = vmatpush1.msra.mxu0 %v1987
    %5109 = vmatprep.subr.mxu0 0.0
    %5110 = vmatpush1.msra.mxu0 %v1988
    %5111 = vmatprep.subr.mxu0 0.0
    %5112 = vmatpush1.msra.mxu0 %v1989
    %5113 = vmatprep.subr.mxu0 0.0
    %5114 = vmatpush1.msra.mxu0 %v1990
    %5115 = vmatprep.subr.mxu0 0.0
    %5116 = vmatpush1.msra.mxu0 %v1991
    %5117 = vmatprep.subr.mxu0 0.0
    %5118 = vmatpush1.msra.mxu0 %v1992
    %5119 = vmatprep.subr.mxu0 0.0
    %5120 = vmatpush1.msra.mxu0 %v1993
    %5121 = vmatprep.subr.mxu0 0.0
    %5122 = vmatpush1.msra.mxu0 %v1994
    %5123 = vmatprep.subr.mxu0 0.0
    %5124 = vmatpush1.msra.mxu0 %v1995
    %5125 = vmatprep.subr.mxu0 0.0
    %5126 = vmatpush1.msra.mxu0 %v1996
    %5127 = vmatprep.subr.mxu0 0.0
    %5128 = vmatpush1.msra.mxu0 %v1997
    %5129 = vmatprep.subr.mxu0 0.0
    %5130 = vmatpush1.msra.mxu0 %v1998
    %5131 = vmatprep.subr.mxu0 0.0
    %5132 = vmatpush1.msra.mxu0 %v1999
    %5133 = vmatprep.subr.mxu0 0.0
    %5134 = vmatpush1.msra.mxu0 %v2000
    %5135 = vmatprep.subr.mxu0 0.0
    %5136 = vmatpush1.msra.mxu0 %v2001
    %5137 = vmatprep.subr.mxu0 0.0
    %5138 = vmatpush1.msra.mxu0 %v2002
    %5139 = vmatprep.subr.mxu0 0.0
    %5140 = vmatpush1.msra.mxu0 0.0
    %5141 = vmatprep.subr.mxu0 0.0
    %5142 = vmatpush1.msra.mxu0 0.0
    %5143 = vmatprep.subr.mxu0 0.0
    %5144 = vmatpush1.msra.mxu0 0.0
    %5145 = vmatprep.subr.mxu0 0.0
    %5146 = vmatpush1.msra.mxu0 0.0
    %5147 = vmatprep.subr.mxu0 0.0
    %5148 = vmatpush1.msra.mxu0 0.0
    %5149 = vmatprep.subr.mxu0 0.0
    %5150 = vmatpush1.msra.mxu0 0.0
    %5151 = vmatprep.subr.mxu0 0.0
    %5152 = vmatpush1.msra.mxu0 0.0
    %5153 = vmatprep.subr.mxu0 0.0
    %5154 = vmatpush1.msra.mxu0 0.0
    %5155 = vmatprep.subr.mxu0 0.0
    %5156 = vmatpush1.msra.mxu0 0.0
    %5157 = vmatprep.subr.mxu0 0.0
    %5158 = vmatpush1.msra.mxu0 0.0
    %5159 = vmatprep.subr.mxu0 0.0
    %5160 = vmatpush1.msra.mxu0 0.0
    %5161 = vmatprep.subr.mxu0 0.0
    %5162 = vmatpush1.msra.mxu0 0.0
    %5163 = vmatprep.subr.mxu0 0.0
    %5164 = vmatpush1.msra.mxu0 0.0
    %5165 = vmatprep.subr.mxu0 0.0
    %5166 = vmatpush1.msra.mxu0 0.0
    %5167 = vmatprep.subr.mxu0 0.0
    %5168 = vmatpush1.msra.mxu0 0.0
    %5169 = vmatprep.subr.mxu0 0.0
    %5170 = vmatpush1.msra.mxu0 0.0
    %5171 = vmatprep.mubr.f32.mxu0 0.0
    %5172 = vmatmul.mubr.f32.gmra.mrb[0].mxu0 %v4655
    %v5173 = vpop.f32.mrb[0].mxu0
    %v5174 = vadd.f32 0.0, %v5173
    %v5175 = vpop.f32.mrb[0].mxu0
    %5176 = vdwg.mxu0
    %5177 = vmatprep.subr.mxu0 0.0
    %5178 = vmatpush1.msra.mxu0 %v1971
    %5179 = vmatprep.subr.mxu0 0.0
    %5180 = vmatpush1.msra.mxu0 %v1972
    %5181 = vmatprep.subr.mxu0 0.0
    %5182 = vmatpush1.msra.mxu0 %v1973
    %5183 = vmatprep.subr.mxu0 0.0
    %5184 = vmatpush1.msra.mxu0 %v1974
    %5185 = vmatprep.subr.mxu0 0.0
    %5186 = vmatpush1.msra.mxu0 %v1975
    %5187 = vmatprep.subr.mxu0 0.0
    %5188 = vmatpush1.msra.mxu0 %v1976
    %5189 = vmatprep.subr.mxu0 0.0
    %5190 = vmatpush1.msra.mxu0 %v1977
    %5191 = vmatprep.subr.mxu0 0.0
    %5192 = vmatpush1.msra.mxu0 %v1978
    %5193 = vmatprep.subr.mxu0 0.0
    %5194 = vmatpush1.msra.mxu0 %v1979
    %5195 = vmatprep.subr.mxu0 0.0
    %5196 = vmatpush1.msra.mxu0 %v1980
    %5197 = vmatprep.subr.mxu0 0.0
    %5198 = vmatpush1.msra.mxu0 %v1981
    %5199 = vmatprep.subr.mxu0 0.0
    %5200 = vmatpush1.msra.mxu0 %v1982
    %5201 = vmatprep.subr.mxu0 0.0
    %5202 = vmatpush1.msra.mxu0 %v1983
    %5203 = vmatprep.subr.mxu0 0.0
    %5204 = vmatpush1.msra.mxu0 %v1984
    %5205 = vmatprep.subr.mxu0 0.0
    %5206 = vmatpush1.msra.mxu0 %v1985
    %5207 = vmatprep.subr.mxu0 0.0
    %5208 = vmatpush1.msra.mxu0 %v1986
    %5209 = vmatprep.subr.mxu0 0.0
    %5210 = vmatpush1.msra.mxu0 0.0
    %5211 = vmatprep.subr.mxu0 0.0
    %5212 = vmatpush1.msra.mxu0 0.0
    %5213 = vmatprep.subr.mxu0 0.0
    %5214 = vmatpush1.msra.mxu0 0.0
    %5215 = vmatprep.subr.mxu0 0.0
    %5216 = vmatpush1.msra.mxu0 0.0
    %5217 = vmatprep.subr.mxu0 0.0
    %5218 = vmatpush1.msra.mxu0 0.0
    %5219 = vmatprep.subr.mxu0 0.0
    %5220 = vmatpush1.msra.mxu0 0.0
    %5221 = vmatprep.subr.mxu0 0.0
    %5222 = vmatpush1.msra.mxu0 0.0
    %5223 = vmatprep.subr.mxu0 0.0
    %5224 = vmatpush1.msra.mxu0 0.0
    %5225 = vmatprep.subr.mxu0 0.0
    %5226 = vmatpush1.msra.mxu0 0.0
    %5227 = vmatprep.subr.mxu0 0.0
    %5228 = vmatpush1.msra.mxu0 0.0
    %5229 = vmatprep.subr.mxu0 0.0
    %5230 = vmatpush1.msra.mxu0 0.0
    %5231 = vmatprep.subr.mxu0 0.0
    %5232 = vmatpush1.msra.mxu0 0.0
    %5233 = vmatprep.subr.mxu0 0.0
    %5234 = vmatpush1.msra.mxu0 0.0
    %5235 = vmatprep.subr.mxu0 0.0
    %5236 = vmatpush1.msra.mxu0 0.0
    %5237 = vmatprep.subr.mxu0 0.0
    %5238 = vmatpush1.msra.mxu0 0.0
    %5239 = vmatprep.subr.mxu0 0.0
    %5240 = vmatpush1.msra.mxu0 0.0
    %5241 = vmatprep.mubr.f32.mxu0 0.0
    %5242 = vmatmul.mubr.f32.gmra.mrb[0].mxu0 %v5106
    %v5243 = vpop.f32.mrb[0].mxu0
    %v5244 = vadd.f32 %v5174, %v5243
    %v5245 = vpop.f32.mrb[0].mxu0
    %5246 = vdwg.mxu0
    %v5247 = vadd.f32 %v5244, %v3107
    %s5248 = scalar_lea.vmem [#allocation8], 16
    %5249 = vst [vmem:[%s5248] sm:$0xff] %v5247
    %s5250 = sld [smem:[#allocation3 + $0x2]]
    %s5251 = scvt.s32.f32 %s5250
    %s5252 = scalar_lea.vmem %s2, 16
    %v5253 = vld [vmem:[%s5252] sm:$0xff]
    %v5254 = vstv %s5251
    %v5255 = vmul.f32 %v5254, %v5253
    %s5256 = ssub.f32 1.0, %s5251
    %v5257 = vstv %s5256
    %v5258 = vmul.f32 %v5257, %v5247
    %v5259 = vadd.f32 %v5255, %v5258
    %v5261 = vcombine.high %v5106, %v5106
    %v5263 = vunpack.c.l.s4 1966171168
    %v5264 = vunpack.c.0.s8 %v5263
    %v5265 = vlaneseq
    %v5266 = vshrl.u32 %v5265, 7
    %v5267 = vsub.s32 %v5264, %v5266
    %v5268 = vrot.slane %v5106, %v5267
    %v5270 = vunpack.c.l.s4 1966171168
    %v5271 = vunpack.c.0.s8 %v5270
    %v5272 = vlaneseq
    %v5273 = vshrl.u32 %v5272, 7
    %v5274 = vsub.s32 %v5271, %v5273
    %v5275 = vrot.slane %v5261, %v5274
    %v5276 = vcombine.high %v5268, %v5268
    %v5277 = vcombine.high %v5275, %v5275
    %v5279 = vunpack.c.l.s4 1966171168
    %v5280 = vunpack.c.0.s8 %v5279
    %v5281 = vlaneseq
    %v5282 = vshrl.u32 %v5281, 7
    %v5283 = vsub.s32 %v5280, %v5282
    %v5284 = vrot.slane %v5268, %v5283
    %v5286 = vunpack.c.l.s4 1966171168
    %v5287 = vunpack.c.0.s8 %v5286
    %v5288 = vlaneseq
    %v5289 = vshrl.u32 %v5288, 7
    %v5290 = vsub.s32 %v5287, %v5289
    %v5291 = vrot.slane %v5275, %v5290
    %v5293 = vunpack.c.l.s4 1966171168
    %v5294 = vunpack.c.0.s8 %v5293
    %v5295 = vlaneseq
    %v5296 = vshrl.u32 %v5295, 7
    %v5297 = vsub.s32 %v5294, %v5296
    %v5298 = vrot.slane %v5276, %v5297
    %v5300 = vunpack.c.l.s4 1966171168
    %v5301 = vunpack.c.0.s8 %v5300
    %v5302 = vlaneseq
    %v5303 = vshrl.u32 %v5302, 7
    %v5304 = vsub.s32 %v5301, %v5303
    %v5305 = vrot.slane %v5277, %v5304
    %v5306 = vcombine.high %v5284, %v5284
    %v5307 = vcombine.high %v5291, %v5291
    %v5308 = vcombine.high %v5298, %v5298
    %v5309 = vcombine.high %v5305, %v5305
    %v5310 = vlaneseq
    %v5311 = vshrl.u32 %v5310, 7
    %v5312 = vsub.s32 0, %v5311
    %v5313 = vrot.slane %v5284, %v5312
    %v5314 = vlaneseq
    %v5315 = vshrl.u32 %v5314, 7
    %v5316 = vsub.s32 0, %v5315
    %v5317 = vrot.slane %v5298, %v5316
    %v5318 = vlaneseq
    %v5319 = vshrl.u32 %v5318, 7
    %v5320 = vsub.s32 0, %v5319
    %v5321 = vrot.slane %v5306, %v5320
    %v5322 = vlaneseq
    %v5323 = vshrl.u32 %v5322, 7
    %v5324 = vsub.s32 0, %v5323
    %v5325 = vrot.slane %v5308, %v5324
    %v5326 = vlaneseq
    %v5327 = vshrl.u32 %v5326, 7
    %v5328 = vsub.s32 0, %v5327
    %v5329 = vrot.slane %v5291, %v5328
    %v5330 = vlaneseq
    %v5331 = vshrl.u32 %v5330, 7
    %v5332 = vsub.s32 0, %v5331
    %v5333 = vrot.slane %v5305, %v5332
    %v5334 = vlaneseq
    %v5335 = vshrl.u32 %v5334, 7
    %v5336 = vsub.s32 0, %v5335
    %v5337 = vrot.slane %v5307, %v5336
    %v5338 = vlaneseq
    %v5339 = vshrl.u32 %v5338, 7
    %v5340 = vsub.s32 0, %v5339
    %v5341 = vrot.slane %v5309, %v5340
    %v5350 = vmul.f32 %v1862, %v5313
    %v5351 = vmul.f32 %v1863, %v5317
    %v5352 = vmul.f32 %v1864, %v5321
    %v5353 = vmul.f32 %v1865, %v5325
    %v5354 = vmul.f32 %v1866, %v5329
    %v5355 = vmul.f32 %v1867, %v5333
    %v5356 = vmul.f32 %v1868, %v5337
    %v5357 = vmul.f32 %v1869, %v5341
    %5358 = vadd.xlane.f32.xlu0 %v5350
    %v5359 = vpop.xlane.xlu0 %5358
    %5360 = vadd.xlane.f32.xlu0 %v5351
    %v5361 = vpop.xlane.xlu0 %5360
    %5362 = vadd.xlane.f32.xlu0 %v5352
    %v5363 = vpop.xlane.xlu0 %5362
    %5364 = vadd.xlane.f32.xlu0 %v5353
    %v5365 = vpop.xlane.xlu0 %5364
    %5366 = vadd.xlane.f32.xlu0 %v5354
    %v5367 = vpop.xlane.xlu0 %5366
    %5368 = vadd.xlane.f32.xlu0 %v5355
    %v5369 = vpop.xlane.xlu0 %5368
    %5370 = vadd.xlane.f32.xlu0 %v5356
    %v5371 = vpop.xlane.xlu0 %5370
    %5372 = vadd.xlane.f32.xlu0 %v5357
    %v5373 = vpop.xlane.xlu0 %5372
    %v5382 = vlaneseq
    %v5383 = vshrl.u32 %v5382, 7
    %v5384 = vsub.s32 %v2128, %v5383
    %v5385 = vrot.slane %v5359, %v5384
    %v5386 = vlaneseq
    %v5387 = vshrl.u32 %v5386, 7
    %v5388 = vsub.s32 %v2128, %v5387
    %v5389 = vrot.slane %v5361, %v5388
    %v5390 = vlaneseq
    %v5391 = vshrl.u32 %v5390, 7
    %v5392 = vsub.s32 %v2128, %v5391
    %v5393 = vrot.slane %v5363, %v5392
    %v5394 = vlaneseq
    %v5395 = vshrl.u32 %v5394, 7
    %v5396 = vsub.s32 %v2128, %v5395
    %v5397 = vrot.slane %v5365, %v5396
    %v5398 = vlaneseq
    %v5399 = vshrl.u32 %v5398, 7
    %v5400 = vsub.s32 %v2128, %v5399
    %v5401 = vrot.slane %v5367, %v5400
    %v5402 = vlaneseq
    %v5403 = vshrl.u32 %v5402, 7
    %v5404 = vsub.s32 %v2128, %v5403
    %v5405 = vrot.slane %v5369, %v5404
    %v5406 = vlaneseq
    %v5407 = vshrl.u32 %v5406, 7
    %v5408 = vsub.s32 %v2128, %v5407
    %v5409 = vrot.slane %v5371, %v5408
    %v5410 = vlaneseq
    %v5411 = vshrl.u32 %v5410, 7
    %v5412 = vsub.s32 %v2128, %v5411
    %v5413 = vrot.slane %v5373, %v5412
    %v5414 = vsel %vm2161, %v5389, %v5385
    %v5415 = vsel %vm2163, %v5393, %v5414
    %v5416 = vsel %vm2165, %v5397, %v5415
    %v5417 = vsel %vm2167, %v5401, %v5416
    %v5418 = vsel %vm2169, %v5405, %v5417
    %v5419 = vsel %vm2171, %v5409, %v5418
    %v5420 = vsel %vm2173, %v5413, %v5419
    %v5422 = vsel %vm156, %v5420, -inf
    %5423 = vmax.xlane.f32.xlu0 %v5422
    %v5424 = vpop.xlane.xlu0 %5423
    %v5426 = vlaneseq
    %v5427 = vshrl.u32 %v5426, 7
    %v5428 = vsub.s32 0, %v5427
    %v5429 = vrot.slane %v5424, %v5428
    %v5430 = vlaneseq
    %v5431 = vshrl.u32 %v5430, 7
    %v5432 = vsub.s32 1, %v5431
    %v5433 = vrot.slane %v5424, %v5432
    %v5434 = vlaneseq
    %v5435 = vshrl.u32 %v5434, 7
    %v5436 = vsub.s32 2, %v5435
    %v5437 = vrot.slane %v5424, %v5436
    %v5438 = vlaneseq
    %v5439 = vshrl.u32 %v5438, 7
    %v5440 = vsub.s32 3, %v5439
    %v5441 = vrot.slane %v5424, %v5440
    %v5442 = vlaneseq
    %v5443 = vshrl.u32 %v5442, 7
    %v5444 = vsub.s32 4, %v5443
    %v5445 = vrot.slane %v5424, %v5444
    %v5446 = vlaneseq
    %v5447 = vshrl.u32 %v5446, 7
    %v5448 = vsub.s32 5, %v5447
    %v5449 = vrot.slane %v5424, %v5448
    %v5450 = vlaneseq
    %v5451 = vshrl.u32 %v5450, 7
    %v5452 = vsub.s32 6, %v5451
    %v5453 = vrot.slane %v5424, %v5452
    %v5454 = vlaneseq
    %v5455 = vshrl.u32 %v5454, 7
    %v5456 = vsub.s32 7, %v5455
    %v5457 = vrot.slane %v5424, %v5456
    %v5466 = vsub.f32 %v5359, %v5429
    %v5467 = vsub.f32 %v5361, %v5433
    %v5468 = vsub.f32 %v5363, %v5437
    %v5469 = vsub.f32 %v5365, %v5441
    %v5470 = vsub.f32 %v5367, %v5445
    %v5471 = vsub.f32 %v5369, %v5449
    %v5472 = vsub.f32 %v5371, %v5453
    %v5473 = vsub.f32 %v5373, %v5457
    %v5474 = vmul.f32 %v5466, 1.442695
    %v5475 = vpow.pop %v5474
    %v5476 = vmul.f32 %v5467, 1.442695
    %v5477 = vpow.pop %v5476
    %v5478 = vmul.f32 %v5468, 1.442695
    %v5479 = vpow.pop %v5478
    %v5480 = vmul.f32 %v5469, 1.442695
    %v5481 = vpow.pop %v5480
    %v5482 = vmul.f32 %v5470, 1.442695
    %v5483 = vpow.pop %v5482
    %v5484 = vmul.f32 %v5471, 1.442695
    %v5485 = vpow.pop %v5484
    %v5486 = vmul.f32 %v5472, 1.442695
    %v5487 = vpow.pop %v5486
    %v5488 = vmul.f32 %v5473, 1.442695
    %v5489 = vpow.pop %v5488
    %5498 = vset.pattern.permute.xlu0 0
    %5499 = vperm.xlu0 %5498, %v5475
    %v5500 = vpop.permute.xlu0 %5499
    %5501 = vset.pattern.permute.xlu0 0
    %5502 = vperm.xlu0 %5501, %v5477
    %v5503 = vpop.permute.xlu0 %5502
    %5504 = vset.pattern.permute.xlu0 0
    %5505 = vperm.xlu0 %5504, %v5479
    %v5506 = vpop.permute.xlu0 %5505
    %5507 = vset.pattern.permute.xlu0 0
    %5508 = vperm.xlu0 %5507, %v5481
    %v5509 = vpop.permute.xlu0 %5508
    %5510 = vset.pattern.permute.xlu0 0
    %5511 = vperm.xlu0 %5510, %v5483
    %v5512 = vpop.permute.xlu0 %5511
    %5513 = vset.pattern.permute.xlu0 0
    %5514 = vperm.xlu0 %5513, %v5485
    %v5515 = vpop.permute.xlu0 %5514
    %5516 = vset.pattern.permute.xlu0 0
    %5517 = vperm.xlu0 %5516, %v5487
    %v5518 = vpop.permute.xlu0 %5517
    %5519 = vset.pattern.permute.xlu0 0
    %5520 = vperm.xlu0 %5519, %v5489
    %v5521 = vpop.permute.xlu0 %5520
    %v5522 = vlaneseq
    %v5523 = vshrl.u32 %v5522, 7
    %v5524 = vsub.s32 %v2128, %v5523
    %v5525 = vrot.slane %v5500, %v5524
    %v5526 = vlaneseq
    %v5527 = vshrl.u32 %v5526, 7
    %v5528 = vsub.s32 %v2128, %v5527
    %v5529 = vrot.slane %v5503, %v5528
    %v5530 = vlaneseq
    %v5531 = vshrl.u32 %v5530, 7
    %v5532 = vsub.s32 %v2128, %v5531
    %v5533 = vrot.slane %v5506, %v5532
    %v5534 = vlaneseq
    %v5535 = vshrl.u32 %v5534, 7
    %v5536 = vsub.s32 %v2128, %v5535
    %v5537 = vrot.slane %v5509, %v5536
    %v5538 = vlaneseq
    %v5539 = vshrl.u32 %v5538, 7
    %v5540 = vsub.s32 %v2128, %v5539
    %v5541 = vrot.slane %v5512, %v5540
    %v5542 = vlaneseq
    %v5543 = vshrl.u32 %v5542, 7
    %v5544 = vsub.s32 %v2128, %v5543
    %v5545 = vrot.slane %v5515, %v5544
    %v5546 = vlaneseq
    %v5547 = vshrl.u32 %v5546, 7
    %v5548 = vsub.s32 %v2128, %v5547
    %v5549 = vrot.slane %v5518, %v5548
    %v5550 = vlaneseq
    %v5551 = vshrl.u32 %v5550, 7
    %v5552 = vsub.s32 %v2128, %v5551
    %v5553 = vrot.slane %v5521, %v5552
    %v5554 = vsel %vm2161, %v5529, %v5525
    %v5555 = vsel %vm2163, %v5533, %v5554
    %v5556 = vsel %vm2165, %v5537, %v5555
    %v5557 = vsel %vm2167, %v5541, %v5556
    %v5558 = vsel %vm2169, %v5545, %v5557
    %v5559 = vsel %vm2171, %v5549, %v5558
    %v5560 = vsel %vm2173, %v5553, %v5559
    %v5562 = vsel %vm156, %v5560, 0.0
    %5563 = vadd.xlane.f32.xlu0 %v5562
    %v5564 = vpop.xlane.xlu0 %5563
    %v5565 = vrcp.pop %v5564
    %v5567 = vlaneseq
    %v5568 = vshrl.u32 %v5567, 7
    %v5569 = vsub.s32 0, %v5568
    %v5570 = vrot.slane %v5565, %v5569
    %v5571 = vlaneseq
    %v5572 = vshrl.u32 %v5571, 7
    %v5573 = vsub.s32 1, %v5572
    %v5574 = vrot.slane %v5565, %v5573
    %v5575 = vlaneseq
    %v5576 = vshrl.u32 %v5575, 7
    %v5577 = vsub.s32 2, %v5576
    %v5578 = vrot.slane %v5565, %v5577
    %v5579 = vlaneseq
    %v5580 = vshrl.u32 %v5579, 7
    %v5581 = vsub.s32 3, %v5580
    %v5582 = vrot.slane %v5565, %v5581
    %v5583 = vlaneseq
    %v5584 = vshrl.u32 %v5583, 7
    %v5585 = vsub.s32 4, %v5584
    %v5586 = vrot.slane %v5565, %v5585
    %v5587 = vlaneseq
    %v5588 = vshrl.u32 %v5587, 7
    %v5589 = vsub.s32 5, %v5588
    %v5590 = vrot.slane %v5565, %v5589
    %v5591 = vlaneseq
    %v5592 = vshrl.u32 %v5591, 7
    %v5593 = vsub.s32 6, %v5592
    %v5594 = vrot.slane %v5565, %v5593
    %v5595 = vlaneseq
    %v5596 = vshrl.u32 %v5595, 7
    %v5597 = vsub.s32 7, %v5596
    %v5598 = vrot.slane %v5565, %v5597
    %v5607 = vmul.f32 %v5475, %v5570
    %v5608 = vmul.f32 %v5477, %v5574
    %v5609 = vmul.f32 %v5479, %v5578
    %v5610 = vmul.f32 %v5481, %v5582
    %v5611 = vmul.f32 %v5483, %v5586
    %v5612 = vmul.f32 %v5485, %v5590
    %v5613 = vmul.f32 %v5487, %v5594
    %v5614 = vmul.f32 %v5489, %v5598
    %5616 = vset.pattern.permute.xlu0 0
    %5617 = vperm.xlu0 %5616, %v5607
    %v5618 = vpop.permute.xlu0 %5617
    %5621 = vset.pattern.permute.xlu0 0
    %5622 = vperm.xlu0 %5621, %v5608
    %v5623 = vpop.permute.xlu0 %5622
    %5626 = vset.pattern.permute.xlu0 0
    %5627 = vperm.xlu0 %5626, %v5609
    %v5628 = vpop.permute.xlu0 %5627
    %5631 = vset.pattern.permute.xlu0 0
    %5632 = vperm.xlu0 %5631, %v5610
    %v5633 = vpop.permute.xlu0 %5632
    %5636 = vset.pattern.permute.xlu0 0
    %5637 = vperm.xlu0 %5636, %v5611
    %v5638 = vpop.permute.xlu0 %5637
    %5641 = vset.pattern.permute.xlu0 0
    %5642 = vperm.xlu0 %5641, %v5612
    %v5643 = vpop.permute.xlu0 %5642
    %5646 = vset.pattern.permute.xlu0 0
    %5647 = vperm.xlu0 %5646, %v5613
    %v5648 = vpop.permute.xlu0 %5647
    %5651 = vset.pattern.permute.xlu0 0
    %5652 = vperm.xlu0 %5651, %v5614
    %v5653 = vpop.permute.xlu0 %5652
    %v5655 = vmul.f32 %v5618, %v1862
    %v5656 = vmul.f32 %v5623, %v1863
    %v5657 = vmul.f32 %v5628, %v1864
    %v5658 = vmul.f32 %v5633, %v1865
    %v5659 = vmul.f32 %v5638, %v1866
    %v5660 = vmul.f32 %v5643, %v1867
    %v5661 = vmul.f32 %v5648, %v1868
    %v5662 = vmul.f32 %v5653, %v1869
    %v5663 = vrot.slane %v5655, 4
    %v5664 = vadd.f32 %v5655, %v5663
    %v5665 = vrot.slane %v5664, 2
    %v5666 = vadd.f32 %v5664, %v5665
    %v5667 = vrot.slane %v5666, 1
    %v5668 = vadd.f32 %v5666, %v5667
    %v5669 = vrot.slane %v5656, 4
    %v5670 = vadd.f32 %v5656, %v5669
    %v5671 = vrot.slane %v5670, 2
    %v5672 = vadd.f32 %v5670, %v5671
    %v5673 = vrot.slane %v5672, 1
    %v5674 = vadd.f32 %v5672, %v5673
    %v5675 = vrot.slane %v5657, 4
    %v5676 = vadd.f32 %v5657, %v5675
    %v5677 = vrot.slane %v5676, 2
    %v5678 = vadd.f32 %v5676, %v5677
    %v5679 = vrot.slane %v5678, 1
    %v5680 = vadd.f32 %v5678, %v5679
    %v5681 = vrot.slane %v5658, 4
    %v5682 = vadd.f32 %v5658, %v5681
    %v5683 = vrot.slane %v5682, 2
    %v5684 = vadd.f32 %v5682, %v5683
    %v5685 = vrot.slane %v5684, 1
    %v5686 = vadd.f32 %v5684, %v5685
    %v5687 = vrot.slane %v5659, 4
    %v5688 = vadd.f32 %v5659, %v5687
    %v5689 = vrot.slane %v5688, 2
    %v5690 = vadd.f32 %v5688, %v5689
    %v5691 = vrot.slane %v5690, 1
    %v5692 = vadd.f32 %v5690, %v5691
    %v5693 = vrot.slane %v5660, 4
    %v5694 = vadd.f32 %v5660, %v5693
    %v5695 = vrot.slane %v5694, 2
    %v5696 = vadd.f32 %v5694, %v5695
    %v5697 = vrot.slane %v5696, 1
    %v5698 = vadd.f32 %v5696, %v5697
    %v5699 = vrot.slane %v5661, 4
    %v5700 = vadd.f32 %v5661, %v5699
    %v5701 = vrot.slane %v5700, 2
    %v5702 = vadd.f32 %v5700, %v5701
    %v5703 = vrot.slane %v5702, 1
    %v5704 = vadd.f32 %v5702, %v5703
    %v5705 = vrot.slane %v5662, 4
    %v5706 = vadd.f32 %v5662, %v5705
    %v5707 = vrot.slane %v5706, 2
    %v5708 = vadd.f32 %v5706, %v5707
    %v5709 = vrot.slane %v5708, 1
    %v5710 = vadd.f32 %v5708, %v5709
    %v5719 = vsel %vm2161, %v5674, %v5668
    %v5720 = vsel %vm2163, %v5680, %v5719
    %v5721 = vsel %vm2165, %v5686, %v5720
    %v5722 = vsel %vm2167, %v5692, %v5721
    %v5723 = vsel %vm2169, %v5698, %v5722
    %v5724 = vsel %vm2171, %v5704, %v5723
    %v5725 = vsel %vm2173, %v5710, %v5724
    %5727 = vmatprep.subr.mxu0 %v1874
    %5728 = vmatpush1.msra.mxu0 %v1873
    %5729 = vmatprep.subr.mxu0 %v1877
    %5730 = vmatpush1.msra.mxu0 %v1876
    %5731 = vmatprep.subr.mxu0 %v1880
    %5732 = vmatpush1.msra.mxu0 %v1879
    %5733 = vmatprep.subr.mxu0 %v1883
    %5734 = vmatpush1.msra.mxu0 %v1882
    %5735 = vmatprep.subr.mxu0 %v1886
    %5736 = vmatpush1.msra.mxu0 %v1885
    %5737 = vmatprep.subr.mxu0 %v1889
    %5738 = vmatpush1.msra.mxu0 %v1888
    %5739 = vmatprep.subr.mxu0 %v1892
    %5740 = vmatpush1.msra.mxu0 %v1891
    %5741 = vmatprep.subr.mxu0 %v1895
    %5742 = vmatpush1.msra.mxu0 %v1894
    %5743 = vmatprep.subr.mxu0 %v1898
    %5744 = vmatpush1.msra.mxu0 %v1897
    %5745 = vmatprep.subr.mxu0 %v1901
    %5746 = vmatpush1.msra.mxu0 %v1900
    %5747 = vmatprep.subr.mxu0 %v1904
    %5748 = vmatpush1.msra.mxu0 %v1903
    %5749 = vmatprep.subr.mxu0 %v1907
    %5750 = vmatpush1.msra.mxu0 %v1906
    %5751 = vmatprep.subr.mxu0 %v1910
    %5752 = vmatpush1.msra.mxu0 %v1909
    %5753 = vmatprep.subr.mxu0 %v1913
    %5754 = vmatpush1.msra.mxu0 %v1912
    %5755 = vmatprep.subr.mxu0 %v1916
    %5756 = vmatpush1.msra.mxu0 %v1915
    %5757 = vmatprep.subr.mxu0 %v1919
    %5758 = vmatpush1.msra.mxu0 %v1918
    %5759 = vmatprep.subr.mxu0 0.0
    %5760 = vmatpush1.msra.mxu0 0.0
    %5761 = vmatprep.subr.mxu0 0.0
    %5762 = vmatpush1.msra.mxu0 0.0
    %5763 = vmatprep.subr.mxu0 0.0
    %5764 = vmatpush1.msra.mxu0 0.0
    %5765 = vmatprep.subr.mxu0 0.0
    %5766 = vmatpush1.msra.mxu0 0.0
    %5767 = vmatprep.subr.mxu0 0.0
    %5768 = vmatpush1.msra.mxu0 0.0
    %5769 = vmatprep.subr.mxu0 0.0
    %5770 = vmatpush1.msra.mxu0 0.0
    %5771 = vmatprep.subr.mxu0 0.0
    %5772 = vmatpush1.msra.mxu0 0.0
    %5773 = vmatprep.subr.mxu0 0.0
    %5774 = vmatpush1.msra.mxu0 0.0
    %5775 = vmatprep.subr.mxu0 0.0
    %5776 = vmatpush1.msra.mxu0 0.0
    %5777 = vmatprep.subr.mxu0 0.0
    %5778 = vmatpush1.msra.mxu0 0.0
    %5779 = vmatprep.subr.mxu0 0.0
    %5780 = vmatpush1.msra.mxu0 0.0
    %5781 = vmatprep.subr.mxu0 0.0
    %5782 = vmatpush1.msra.mxu0 0.0
    %5783 = vmatprep.subr.mxu0 0.0
    %5784 = vmatpush1.msra.mxu0 0.0
    %5785 = vmatprep.subr.mxu0 0.0
    %5786 = vmatpush1.msra.mxu0 0.0
    %5787 = vmatprep.subr.mxu0 0.0
    %5788 = vmatpush1.msra.mxu0 0.0
    %5789 = vmatprep.subr.mxu0 0.0
    %5790 = vmatpush1.msra.mxu0 0.0
    %5791 = vmatprep.mubr.f32.mxu0 0.0
    %5792 = vmatmul.mubr.f32.gmra.mrb[0].mxu0 %v5725
    %v5793 = vpop.f32.mrb[0].mxu0
    %v5794 = vadd.f32 0.0, %v5793
    %v5795 = vpop.f32.mrb[0].mxu0
    %v5796 = vadd.f32 0.0, %v5795
    %5797 = vdwg.mxu0
    %5798 = vmatprep.subr.mxu0 0.0
    %5799 = vmatpush1.msra.mxu0 %v1875
    %5800 = vmatprep.subr.mxu0 0.0
    %5801 = vmatpush1.msra.mxu0 %v1878
    %5802 = vmatprep.subr.mxu0 0.0
    %5803 = vmatpush1.msra.mxu0 %v1881
    %5804 = vmatprep.subr.mxu0 0.0
    %5805 = vmatpush1.msra.mxu0 %v1884
    %5806 = vmatprep.subr.mxu0 0.0
    %5807 = vmatpush1.msra.mxu0 %v1887
    %5808 = vmatprep.subr.mxu0 0.0
    %5809 = vmatpush1.msra.mxu0 %v1890
    %5810 = vmatprep.subr.mxu0 0.0
    %5811 = vmatpush1.msra.mxu0 %v1893
    %5812 = vmatprep.subr.mxu0 0.0
    %5813 = vmatpush1.msra.mxu0 %v1896
    %5814 = vmatprep.subr.mxu0 0.0
    %5815 = vmatpush1.msra.mxu0 %v1899
    %5816 = vmatprep.subr.mxu0 0.0
    %5817 = vmatpush1.msra.mxu0 %v1902
    %5818 = vmatprep.subr.mxu0 0.0
    %5819 = vmatpush1.msra.mxu0 %v1905
    %5820 = vmatprep.subr.mxu0 0.0
    %5821 = vmatpush1.msra.mxu0 %v1908
    %5822 = vmatprep.subr.mxu0 0.0
    %5823 = vmatpush1.msra.mxu0 %v1911
    %5824 = vmatprep.subr.mxu0 0.0
    %5825 = vmatpush1.msra.mxu0 %v1914
    %5826 = vmatprep.subr.mxu0 0.0
    %5827 = vmatpush1.msra.mxu0 %v1917
    %5828 = vmatprep.subr.mxu0 0.0
    %5829 = vmatpush1.msra.mxu0 %v1920
    %5830 = vmatprep.subr.mxu0 0.0
    %5831 = vmatpush1.msra.mxu0 0.0
    %5832 = vmatprep.subr.mxu0 0.0
    %5833 = vmatpush1.msra.mxu0 0.0
    %5834 = vmatprep.subr.mxu0 0.0
    %5835 = vmatpush1.msra.mxu0 0.0
    %5836 = vmatprep.subr.mxu0 0.0
    %5837 = vmatpush1.msra.mxu0 0.0
    %5838 = vmatprep.subr.mxu0 0.0
    %5839 = vmatpush1.msra.mxu0 0.0
    %5840 = vmatprep.subr.mxu0 0.0
    %5841 = vmatpush1.msra.mxu0 0.0
    %5842 = vmatprep.subr.mxu0 0.0
    %5843 = vmatpush1.msra.mxu0 0.0
    %5844 = vmatprep.subr.mxu0 0.0
    %5845 = vmatpush1.msra.mxu0 0.0
    %5846 = vmatprep.subr.mxu0 0.0
    %5847 = vmatpush1.msra.mxu0 0.0
    %5848 = vmatprep.subr.mxu0 0.0
    %5849 = vmatpush1.msra.mxu0 0.0
    %5850 = vmatprep.subr.mxu0 0.0
    %5851 = vmatpush1.msra.mxu0 0.0
    %5852 = vmatprep.subr.mxu0 0.0
    %5853 = vmatpush1.msra.mxu0 0.0
    %5854 = vmatprep.subr.mxu0 0.0
    %5855 = vmatpush1.msra.mxu0 0.0
    %5856 = vmatprep.subr.mxu0 0.0
    %5857 = vmatpush1.msra.mxu0 0.0
    %5858 = vmatprep.subr.mxu0 0.0
    %5859 = vmatpush1.msra.mxu0 0.0
    %5860 = vmatprep.subr.mxu0 0.0
    %5861 = vmatpush1.msra.mxu0 0.0
    %5862 = vmatprep.mubr.f32.mxu0 0.0
    %5863 = vmatmul.mubr.f32.gmra.mrb[0].mxu0 %v5725
    %v5864 = vpop.f32.mrb[0].mxu0
    %v5865 = vadd.f32 0.0, %v5864
    %v5866 = vpop.f32.mrb[0].mxu0
    %5867 = vdwg.mxu0
    %v5869 = vsel %vm156, %v5259, 0
    %5871 = vmatprep.subr.mxu0 %v1871
    %5872 = vmatpush1.msra.mxu0 %v1870
    %5873 = vmatprep.subr.mxu0 0.0
    %5874 = vmatpush1.msra.mxu0 0.0
    %5875 = vmatprep.subr.mxu0 0.0
    %5876 = vmatpush1.msra.mxu0 0.0
    %5877 = vmatprep.subr.mxu0 0.0
    %5878 = vmatpush1.msra.mxu0 0.0
    %5879 = vmatprep.subr.mxu0 0.0
    %5880 = vmatpush1.msra.mxu0 0.0
    %5881 = vmatprep.subr.mxu0 0.0
    %5882 = vmatpush1.msra.mxu0 0.0
    %5883 = vmatprep.subr.mxu0 0.0
    %5884 = vmatpush1.msra.mxu0 0.0
    %5885 = vmatprep.subr.mxu0 0.0
    %5886 = vmatpush1.msra.mxu0 0.0
    %5887 = vmatprep.subr.mxu0 0.0
    %5888 = vmatpush1.msra.mxu0 0.0
    %5889 = vmatprep.subr.mxu0 0.0
    %5890 = vmatpush1.msra.mxu0 0.0
    %5891 = vmatprep.subr.mxu0 0.0
    %5892 = vmatpush1.msra.mxu0 0.0
    %5893 = vmatprep.subr.mxu0 0.0
    %5894 = vmatpush1.msra.mxu0 0.0
    %5895 = vmatprep.subr.mxu0 0.0
    %5896 = vmatpush1.msra.mxu0 0.0
    %5897 = vmatprep.subr.mxu0 0.0
    %5898 = vmatpush1.msra.mxu0 0.0
    %5899 = vmatprep.subr.mxu0 0.0
    %5900 = vmatpush1.msra.mxu0 0.0
    %5901 = vmatprep.subr.mxu0 0.0
    %5902 = vmatpush1.msra.mxu0 0.0
    %5903 = vmatprep.subr.mxu0 0.0
    %5904 = vmatpush1.msra.mxu0 0.0
    %5905 = vmatprep.subr.mxu0 0.0
    %5906 = vmatpush1.msra.mxu0 0.0
    %5907 = vmatprep.subr.mxu0 0.0
    %5908 = vmatpush1.msra.mxu0 0.0
    %5909 = vmatprep.subr.mxu0 0.0
    %5910 = vmatpush1.msra.mxu0 0.0
    %5911 = vmatprep.subr.mxu0 0.0
    %5912 = vmatpush1.msra.mxu0 0.0
    %5913 = vmatprep.subr.mxu0 0.0
    %5914 = vmatpush1.msra.mxu0 0.0
    %5915 = vmatprep.subr.mxu0 0.0
    %5916 = vmatpush1.msra.mxu0 0.0
    %5917 = vmatprep.subr.mxu0 0.0
    %5918 = vmatpush1.msra.mxu0 0.0
    %5919 = vmatprep.subr.mxu0 0.0
    %5920 = vmatpush1.msra.mxu0 0.0
    %5921 = vmatprep.subr.mxu0 0.0
    %5922 = vmatpush1.msra.mxu0 0.0
    %5923 = vmatprep.subr.mxu0 0.0
    %5924 = vmatpush1.msra.mxu0 0.0
    %5925 = vmatprep.subr.mxu0 0.0
    %5926 = vmatpush1.msra.mxu0 0.0
    %5927 = vmatprep.subr.mxu0 0.0
    %5928 = vmatpush1.msra.mxu0 0.0
    %5929 = vmatprep.subr.mxu0 0.0
    %5930 = vmatpush1.msra.mxu0 0.0
    %5931 = vmatprep.subr.mxu0 0.0
    %5932 = vmatpush1.msra.mxu0 0.0
    %5933 = vmatprep.subr.mxu0 0.0
    %5934 = vmatpush1.msra.mxu0 0.0
    %5935 = vmatprep.mubr.f32.mxu0 0.0
    %5936 = vmatmul.mubr.f32.gmra.mrb[0].mxu0 %v5869
    %v5937 = vpop.f32.mrb[0].mxu0
    %v5938 = vadd.f32 %v5794, %v5937
    %v5939 = vpop.f32.mrb[0].mxu0
    %v5940 = vadd.f32 %v5796, %v5939
    %5941 = vdwg.mxu0
    %5942 = vmatprep.subr.mxu0 0.0
    %5943 = vmatpush1.msra.mxu0 %v1872
    %5944 = vmatprep.subr.mxu0 0.0
    %5945 = vmatpush1.msra.mxu0 0.0
    %5946 = vmatprep.subr.mxu0 0.0
    %5947 = vmatpush1.msra.mxu0 0.0
    %5948 = vmatprep.subr.mxu0 0.0
    %5949 = vmatpush1.msra.mxu0 0.0
    %5950 = vmatprep.subr.mxu0 0.0
    %5951 = vmatpush1.msra.mxu0 0.0
    %5952 = vmatprep.subr.mxu0 0.0
    %5953 = vmatpush1.msra.mxu0 0.0
    %5954 = vmatprep.subr.mxu0 0.0
    %5955 = vmatpush1.msra.mxu0 0.0
    %5956 = vmatprep.subr.mxu0 0.0
    %5957 = vmatpush1.msra.mxu0 0.0
    %5958 = vmatprep.subr.mxu0 0.0
    %5959 = vmatpush1.msra.mxu0 0.0
    %5960 = vmatprep.subr.mxu0 0.0
    %5961 = vmatpush1.msra.mxu0 0.0
    %5962 = vmatprep.subr.mxu0 0.0
    %5963 = vmatpush1.msra.mxu0 0.0
    %5964 = vmatprep.subr.mxu0 0.0
    %5965 = vmatpush1.msra.mxu0 0.0
    %5966 = vmatprep.subr.mxu0 0.0
    %5967 = vmatpush1.msra.mxu0 0.0
    %5968 = vmatprep.subr.mxu0 0.0
    %5969 = vmatpush1.msra.mxu0 0.0
    %5970 = vmatprep.subr.mxu0 0.0
    %5971 = vmatpush1.msra.mxu0 0.0
    %5972 = vmatprep.subr.mxu0 0.0
    %5973 = vmatpush1.msra.mxu0 0.0
    %5974 = vmatprep.subr.mxu0 0.0
    %5975 = vmatpush1.msra.mxu0 0.0
    %5976 = vmatprep.subr.mxu0 0.0
    %5977 = vmatpush1.msra.mxu0 0.0
    %5978 = vmatprep.subr.mxu0 0.0
    %5979 = vmatpush1.msra.mxu0 0.0
    %5980 = vmatprep.subr.mxu0 0.0
    %5981 = vmatpush1.msra.mxu0 0.0
    %5982 = vmatprep.subr.mxu0 0.0
    %5983 = vmatpush1.msra.mxu0 0.0
    %5984 = vmatprep.subr.mxu0 0.0
    %5985 = vmatpush1.msra.mxu0 0.0
    %5986 = vmatprep.subr.mxu0 0.0
    %5987 = vmatpush1.msra.mxu0 0.0
    %5988 = vmatprep.subr.mxu0 0.0
    %5989 = vmatpush1.msra.mxu0 0.0
    %5990 = vmatprep.subr.mxu0 0.0
    %5991 = vmatpush1.msra.mxu0 0.0
    %5992 = vmatprep.subr.mxu0 0.0
    %5993 = vmatpush1.msra.mxu0 0.0
    %5994 = vmatprep.subr.mxu0 0.0
    %5995 = vmatpush1.msra.mxu0 0.0
    %5996 = vmatprep.subr.mxu0 0.0
    %5997 = vmatpush1.msra.mxu0 0.0
    %5998 = vmatprep.subr.mxu0 0.0
    %5999 = vmatpush1.msra.mxu0 0.0
    %6000 = vmatprep.subr.mxu0 0.0
    %6001 = vmatpush1.msra.mxu0 0.0
    %6002 = vmatprep.subr.mxu0 0.0
    %6003 = vmatpush1.msra.mxu0 0.0
    %6004 = vmatprep.subr.mxu0 0.0
    %6005 = vmatpush1.msra.mxu0 0.0
    %6006 = vmatprep.mubr.f32.mxu0 0.0
    %6007 = vmatmul.mubr.f32.gmra.mrb[0].mxu0 %v5869
    %v6008 = vpop.f32.mrb[0].mxu0
    %v6009 = vadd.f32 %v5865, %v6008
    %v6010 = vpop.f32.mrb[0].mxu0
    %6011 = vdwg.mxu0
    %v6012 = vadd.f32 %v5938, %v2770
    %v6013 = vadd.f32 %v5940, %v2774
    %v6014 = vadd.f32 %v6009, %v2778
    %6015 = vmatprep.subr.mxu0 %v1922
    %6016 = vmatpush1.msra.mxu0 %v1921
    %6017 = vmatprep.subr.mxu0 %v1925
    %6018 = vmatpush1.msra.mxu0 %v1924
    %6019 = vmatprep.subr.mxu0 %v1928
    %6020 = vmatpush1.msra.mxu0 %v1927
    %6021 = vmatprep.subr.mxu0 %v1931
    %6022 = vmatpush1.msra.mxu0 %v1930
    %6023 = vmatprep.subr.mxu0 %v1934
    %6024 = vmatpush1.msra.mxu0 %v1933
    %6025 = vmatprep.subr.mxu0 %v1937
    %6026 = vmatpush1.msra.mxu0 %v1936
    %6027 = vmatprep.subr.mxu0 %v1940
    %6028 = vmatpush1.msra.mxu0 %v1939
    %6029 = vmatprep.subr.mxu0 %v1943
    %6030 = vmatpush1.msra.mxu0 %v1942
    %6031 = vmatprep.subr.mxu0 %v1946
    %6032 = vmatpush1.msra.mxu0 %v1945
    %6033 = vmatprep.subr.mxu0 %v1949
    %6034 = vmatpush1.msra.mxu0 %v1948
    %6035 = vmatprep.subr.mxu0 %v1952
    %6036 = vmatpush1.msra.mxu0 %v1951
    %6037 = vmatprep.subr.mxu0 %v1955
    %6038 = vmatpush1.msra.mxu0 %v1954
    %6039 = vmatprep.subr.mxu0 %v1958
    %6040 = vmatpush1.msra.mxu0 %v1957
    %6041 = vmatprep.subr.mxu0 %v1961
    %6042 = vmatpush1.msra.mxu0 %v1960
    %6043 = vmatprep.subr.mxu0 %v1964
    %6044 = vmatpush1.msra.mxu0 %v1963
    %6045 = vmatprep.subr.mxu0 %v1967
    %6046 = vmatpush1.msra.mxu0 %v1966
    %6047 = vmatprep.subr.mxu0 0.0
    %6048 = vmatpush1.msra.mxu0 0.0
    %6049 = vmatprep.subr.mxu0 0.0
    %6050 = vmatpush1.msra.mxu0 0.0
    %6051 = vmatprep.subr.mxu0 0.0
    %6052 = vmatpush1.msra.mxu0 0.0
    %6053 = vmatprep.subr.mxu0 0.0
    %6054 = vmatpush1.msra.mxu0 0.0
    %6055 = vmatprep.subr.mxu0 0.0
    %6056 = vmatpush1.msra.mxu0 0.0
    %6057 = vmatprep.subr.mxu0 0.0
    %6058 = vmatpush1.msra.mxu0 0.0
    %6059 = vmatprep.subr.mxu0 0.0
    %6060 = vmatpush1.msra.mxu0 0.0
    %6061 = vmatprep.subr.mxu0 0.0
    %6062 = vmatpush1.msra.mxu0 0.0
    %6063 = vmatprep.subr.mxu0 0.0
    %6064 = vmatpush1.msra.mxu0 0.0
    %6065 = vmatprep.subr.mxu0 0.0
    %6066 = vmatpush1.msra.mxu0 0.0
    %6067 = vmatprep.subr.mxu0 0.0
    %6068 = vmatpush1.msra.mxu0 0.0
    %6069 = vmatprep.subr.mxu0 0.0
    %6070 = vmatpush1.msra.mxu0 0.0
    %6071 = vmatprep.subr.mxu0 0.0
    %6072 = vmatpush1.msra.mxu0 0.0
    %6073 = vmatprep.subr.mxu0 0.0
    %6074 = vmatpush1.msra.mxu0 0.0
    %6075 = vmatprep.subr.mxu0 0.0
    %6076 = vmatpush1.msra.mxu0 0.0
    %6077 = vmatprep.subr.mxu0 0.0
    %6078 = vmatpush1.msra.mxu0 0.0
    %6079 = vmatprep.mubr.f32.mxu0 0.0
    %6080 = vmatmul.mubr.f32.gmra.mrb[0].mxu0 %v5106
    %v6081 = vpop.f32.mrb[0].mxu0
    %v6082 = vadd.f32 %v2789, %v6081
    %v6083 = vpop.f32.mrb[0].mxu0
    %v6084 = vadd.f32 %v2793, %v6083
    %6085 = vdwg.mxu0
    %6086 = vmatprep.subr.mxu0 0.0
    %6087 = vmatpush1.msra.mxu0 %v1923
    %6088 = vmatprep.subr.mxu0 0.0
    %6089 = vmatpush1.msra.mxu0 %v1926
    %6090 = vmatprep.subr.mxu0 0.0
    %6091 = vmatpush1.msra.mxu0 %v1929
    %6092 = vmatprep.subr.mxu0 0.0
    %6093 = vmatpush1.msra.mxu0 %v1932
    %6094 = vmatprep.subr.mxu0 0.0
    %6095 = vmatpush1.msra.mxu0 %v1935
    %6096 = vmatprep.subr.mxu0 0.0
    %6097 = vmatpush1.msra.mxu0 %v1938
    %6098 = vmatprep.subr.mxu0 0.0
    %6099 = vmatpush1.msra.mxu0 %v1941
    %6100 = vmatprep.subr.mxu0 0.0
    %6101 = vmatpush1.msra.mxu0 %v1944
    %6102 = vmatprep.subr.mxu0 0.0
    %6103 = vmatpush1.msra.mxu0 %v1947
    %6104 = vmatprep.subr.mxu0 0.0
    %6105 = vmatpush1.msra.mxu0 %v1950
    %6106 = vmatprep.subr.mxu0 0.0
    %6107 = vmatpush1.msra.mxu0 %v1953
    %6108 = vmatprep.subr.mxu0 0.0
    %6109 = vmatpush1.msra.mxu0 %v1956
    %6110 = vmatprep.subr.mxu0 0.0
    %6111 = vmatpush1.msra.mxu0 %v1959
    %6112 = vmatprep.subr.mxu0 0.0
    %6113 = vmatpush1.msra.mxu0 %v1962
    %6114 = vmatprep.subr.mxu0 0.0
    %6115 = vmatpush1.msra.mxu0 %v1965
    %6116 = vmatprep.subr.mxu0 0.0
    %6117 = vmatpush1.msra.mxu0 %v1968
    %6118 = vmatprep.subr.mxu0 0.0
    %6119 = vmatpush1.msra.mxu0 0.0
    %6120 = vmatprep.subr.mxu0 0.0
    %6121 = vmatpush1.msra.mxu0 0.0
    %6122 = vmatprep.subr.mxu0 0.0
    %6123 = vmatpush1.msra.mxu0 0.0
    %6124 = vmatprep.subr.mxu0 0.0
    %6125 = vmatpush1.msra.mxu0 0.0
    %6126 = vmatprep.subr.mxu0 0.0
    %6127 = vmatpush1.msra.mxu0 0.0
    %6128 = vmatprep.subr.mxu0 0.0
    %6129 = vmatpush1.msra.mxu0 0.0
    %6130 = vmatprep.subr.mxu0 0.0
    %6131 = vmatpush1.msra.mxu0 0.0
    %6132 = vmatprep.subr.mxu0 0.0
    %6133 = vmatpush1.msra.mxu0 0.0
    %6134 = vmatprep.subr.mxu0 0.0
    %6135 = vmatpush1.msra.mxu0 0.0
    %6136 = vmatprep.subr.mxu0 0.0
    %6137 = vmatpush1.msra.mxu0 0.0
    %6138 = vmatprep.subr.mxu0 0.0
    %6139 = vmatpush1.msra.mxu0 0.0
    %6140 = vmatprep.subr.mxu0 0.0
    %6141 = vmatpush1.msra.mxu0 0.0
    %6142 = vmatprep.subr.mxu0 0.0
    %6143 = vmatpush1.msra.mxu0 0.0
    %6144 = vmatprep.subr.mxu0 0.0
    %6145 = vmatpush1.msra.mxu0 0.0
    %6146 = vmatprep.subr.mxu0 0.0
    %6147 = vmatpush1.msra.mxu0 0.0
    %6148 = vmatprep.subr.mxu0 0.0
    %6149 = vmatpush1.msra.mxu0 0.0
    %6150 = vmatprep.mubr.f32.mxu0 0.0
    %6151 = vmatmul.mubr.f32.gmra.mrb[0].mxu0 %v5106
    %v6152 = vpop.f32.mrb[0].mxu0
    %v6153 = vadd.f32 %v2797, %v6152
    %v6154 = vpop.f32.mrb[0].mxu0
    %6155 = vdwg.mxu0
    %v6156 = vadd.f32 %v6012, %v6082
    %v6157 = vxor.u32 %v6156, 2147483648
    %v6158 = vmul.f32 %v6157, 1.442695
    %v6159 = vpow.pop %v6158
    %v6160 = vadd.f32 %v6159, 1.0
    %v6161 = vrcp.pop %v6160
    %v6162 = vmul.f32 1.0, %v6161
    %v6163 = vadd.f32 %v6013, %v6084
    %v6164 = vxor.u32 %v6163, 2147483648
    %v6165 = vmul.f32 %v6164, 1.442695
    %v6166 = vpow.pop %v6165
    %v6167 = vadd.f32 %v6166, 1.0
    %v6168 = vrcp.pop %v6167
    %v6169 = vmul.f32 1.0, %v6168
    %v6170 = vmul.f32 %v6162, %v6153
    %v6171 = vadd.f32 %v6014, %v6170
    %v6172 = vtanh.pop %v6171
    %v6173 = vsub.f32 1.0, %v6169
    %v6174 = vmul.f32 %v6173, %v6172
    %v6175 = vmul.f32 %v6169, %v5106
    %v6176 = vadd.f32 %v6174, %v6175
    %6177 = vmatprep.subr.mxu0 0.0
    %6178 = vmatpush1.msra.mxu0 %v1987
    %6179 = vmatprep.subr.mxu0 0.0
    %6180 = vmatpush1.msra.mxu0 %v1988
    %6181 = vmatprep.subr.mxu0 0.0
    %6182 = vmatpush1.msra.mxu0 %v1989
    %6183 = vmatprep.subr.mxu0 0.0
    %6184 = vmatpush1.msra.mxu0 %v1990
    %6185 = vmatprep.subr.mxu0 0.0
    %6186 = vmatpush1.msra.mxu0 %v1991
    %6187 = vmatprep.subr.mxu0 0.0
    %6188 = vmatpush1.msra.mxu0 %v1992
    %6189 = vmatprep.subr.mxu0 0.0
    %6190 = vmatpush1.msra.mxu0 %v1993
    %6191 = vmatprep.subr.mxu0 0.0
    %6192 = vmatpush1.msra.mxu0 %v1994
    %6193 = vmatprep.subr.mxu0 0.0
    %6194 = vmatpush1.msra.mxu0 %v1995
    %6195 = vmatprep.subr.mxu0 0.0
    %6196 = vmatpush1.msra.mxu0 %v1996
    %6197 = vmatprep.subr.mxu0 0.0
    %6198 = vmatpush1.msra.mxu0 %v1997
    %6199 = vmatprep.subr.mxu0 0.0
    %6200 = vmatpush1.msra.mxu0 %v1998
    %6201 = vmatprep.subr.mxu0 0.0
    %6202 = vmatpush1.msra.mxu0 %v1999
    %6203 = vmatprep.subr.mxu0 0.0
    %6204 = vmatpush1.msra.mxu0 %v2000
    %6205 = vmatprep.subr.mxu0 0.0
    %6206 = vmatpush1.msra.mxu0 %v2001
    %6207 = vmatprep.subr.mxu0 0.0
    %6208 = vmatpush1.msra.mxu0 %v2002
    %6209 = vmatprep.subr.mxu0 0.0
    %6210 = vmatpush1.msra.mxu0 0.0
    %6211 = vmatprep.subr.mxu0 0.0
    %6212 = vmatpush1.msra.mxu0 0.0
    %6213 = vmatprep.subr.mxu0 0.0
    %6214 = vmatpush1.msra.mxu0 0.0
    %6215 = vmatprep.subr.mxu0 0.0
    %6216 = vmatpush1.msra.mxu0 0.0
    %6217 = vmatprep.subr.mxu0 0.0
    %6218 = vmatpush1.msra.mxu0 0.0
    %6219 = vmatprep.subr.mxu0 0.0
    %6220 = vmatpush1.msra.mxu0 0.0
    %6221 = vmatprep.subr.mxu0 0.0
    %6222 = vmatpush1.msra.mxu0 0.0
    %6223 = vmatprep.subr.mxu0 0.0
    %6224 = vmatpush1.msra.mxu0 0.0
    %6225 = vmatprep.subr.mxu0 0.0
    %6226 = vmatpush1.msra.mxu0 0.0
    %6227 = vmatprep.subr.mxu0 0.0
    %6228 = vmatpush1.msra.mxu0 0.0
    %6229 = vmatprep.subr.mxu0 0.0
    %6230 = vmatpush1.msra.mxu0 0.0
    %6231 = vmatprep.subr.mxu0 0.0
    %6232 = vmatpush1.msra.mxu0 0.0
    %6233 = vmatprep.subr.mxu0 0.0
    %6234 = vmatpush1.msra.mxu0 0.0
    %6235 = vmatprep.subr.mxu0 0.0
    %6236 = vmatpush1.msra.mxu0 0.0
    %6237 = vmatprep.subr.mxu0 0.0
    %6238 = vmatpush1.msra.mxu0 0.0
    %6239 = vmatprep.subr.mxu0 0.0
    %6240 = vmatpush1.msra.mxu0 0.0
    %6241 = vmatprep.mubr.f32.mxu0 0.0
    %6242 = vmatmul.mubr.f32.gmra.mrb[0].mxu0 %v5725
    %v6243 = vpop.f32.mrb[0].mxu0
    %v6244 = vadd.f32 0.0, %v6243
    %v6245 = vpop.f32.mrb[0].mxu0
    %6246 = vdwg.mxu0
    %6247 = vmatprep.subr.mxu0 0.0
    %6248 = vmatpush1.msra.mxu0 %v1971
    %6249 = vmatprep.subr.mxu0 0.0
    %6250 = vmatpush1.msra.mxu0 %v1972
    %6251 = vmatprep.subr.mxu0 0.0
    %6252 = vmatpush1.msra.mxu0 %v1973
    %6253 = vmatprep.subr.mxu0 0.0
    %6254 = vmatpush1.msra.mxu0 %v1974
    %6255 = vmatprep.subr.mxu0 0.0
    %6256 = vmatpush1.msra.mxu0 %v1975
    %6257 = vmatprep.subr.mxu0 0.0
    %6258 = vmatpush1.msra.mxu0 %v1976
    %6259 = vmatprep.subr.mxu0 0.0
    %6260 = vmatpush1.msra.mxu0 %v1977
    %6261 = vmatprep.subr.mxu0 0.0
    %6262 = vmatpush1.msra.mxu0 %v1978
    %6263 = vmatprep.subr.mxu0 0.0
    %6264 = vmatpush1.msra.mxu0 %v1979
    %6265 = vmatprep.subr.mxu0 0.0
    %6266 = vmatpush1.msra.mxu0 %v1980
    %6267 = vmatprep.subr.mxu0 0.0
    %6268 = vmatpush1.msra.mxu0 %v1981
    %6269 = vmatprep.subr.mxu0 0.0
    %6270 = vmatpush1.msra.mxu0 %v1982
    %6271 = vmatprep.subr.mxu0 0.0
    %6272 = vmatpush1.msra.mxu0 %v1983
    %6273 = vmatprep.subr.mxu0 0.0
    %6274 = vmatpush1.msra.mxu0 %v1984
    %6275 = vmatprep.subr.mxu0 0.0
    %6276 = vmatpush1.msra.mxu0 %v1985
    %6277 = vmatprep.subr.mxu0 0.0
    %6278 = vmatpush1.msra.mxu0 %v1986
    %6279 = vmatprep.subr.mxu0 0.0
    %6280 = vmatpush1.msra.mxu0 0.0
    %6281 = vmatprep.subr.mxu0 0.0
    %6282 = vmatpush1.msra.mxu0 0.0
    %6283 = vmatprep.subr.mxu0 0.0
    %6284 = vmatpush1.msra.mxu0 0.0
    %6285 = vmatprep.subr.mxu0 0.0
    %6286 = vmatpush1.msra.mxu0 0.0
    %6287 = vmatprep.subr.mxu0 0.0
    %6288 = vmatpush1.msra.mxu0 0.0
    %6289 = vmatprep.subr.mxu0 0.0
    %6290 = vmatpush1.msra.mxu0 0.0
    %6291 = vmatprep.subr.mxu0 0.0
    %6292 = vmatpush1.msra.mxu0 0.0
    %6293 = vmatprep.subr.mxu0 0.0
    %6294 = vmatpush1.msra.mxu0 0.0
    %6295 = vmatprep.subr.mxu0 0.0
    %6296 = vmatpush1.msra.mxu0 0.0
    %6297 = vmatprep.subr.mxu0 0.0
    %6298 = vmatpush1.msra.mxu0 0.0
    %6299 = vmatprep.subr.mxu0 0.0
    %6300 = vmatpush1.msra.mxu0 0.0
    %6301 = vmatprep.subr.mxu0 0.0
    %6302 = vmatpush1.msra.mxu0 0.0
    %6303 = vmatprep.subr.mxu0 0.0
    %6304 = vmatpush1.msra.mxu0 0.0
    %6305 = vmatprep.subr.mxu0 0.0
    %6306 = vmatpush1.msra.mxu0 0.0
    %6307 = vmatprep.subr.mxu0 0.0
    %6308 = vmatpush1.msra.mxu0 0.0
    %6309 = vmatprep.subr.mxu0 0.0
    %6310 = vmatpush1.msra.mxu0 0.0
    %6311 = vmatprep.mubr.f32.mxu0 0.0
    %6312 = vmatmul.mubr.f32.gmra.mrb[0].mxu0 %v6176
    %v6313 = vpop.f32.mrb[0].mxu0
    %v6314 = vadd.f32 %v6244, %v6313
    %v6315 = vpop.f32.mrb[0].mxu0
    %6316 = vdwg.mxu0
    %v6317 = vadd.f32 %v6314, %v3107
    %s6318 = scalar_lea.vmem [#allocation8], 24
    %6319 = vst [vmem:[%s6318] sm:$0xff] %v6317
    %s6320 = sld [smem:[#allocation3 + $0x3]]
    %s6321 = scvt.s32.f32 %s6320
    %s6322 = scalar_lea.vmem %s2, 24
    %v6323 = vld [vmem:[%s6322] sm:$0xff]
    %v6324 = vstv %s6321
    %v6325 = vmul.f32 %v6324, %v6323
    %s6326 = ssub.f32 1.0, %s6321
    %v6327 = vstv %s6326
    %v6328 = vmul.f32 %v6327, %v6317
    %v6329 = vadd.f32 %v6325, %v6328
    %v6331 = vcombine.high %v6176, %v6176
    %v6333 = vunpack.c.l.s4 1966171168
    %v6334 = vunpack.c.0.s8 %v6333
    %v6335 = vlaneseq
    %v6336 = vshrl.u32 %v6335, 7
    %v6337 = vsub.s32 %v6334, %v6336
    %v6338 = vrot.slane %v6176, %v6337
    %v6340 = vunpack.c.l.s4 1966171168
    %v6341 = vunpack.c.0.s8 %v6340
    %v6342 = vlaneseq
    %v6343 = vshrl.u32 %v6342, 7
    %v6344 = vsub.s32 %v6341, %v6343
    %v6345 = vrot.slane %v6331, %v6344
    %v6346 = vcombine.high %v6338, %v6338
    %v6347 = vcombine.high %v6345, %v6345
    %v6349 = vunpack.c.l.s4 1966171168
    %v6350 = vunpack.c.0.s8 %v6349
    %v6351 = vlaneseq
    %v6352 = vshrl.u32 %v6351, 7
    %v6353 = vsub.s32 %v6350, %v6352
    %v6354 = vrot.slane %v6338, %v6353
    %v6356 = vunpack.c.l.s4 1966171168
    %v6357 = vunpack.c.0.s8 %v6356
    %v6358 = vlaneseq
    %v6359 = vshrl.u32 %v6358, 7
    %v6360 = vsub.s32 %v6357, %v6359
    %v6361 = vrot.slane %v6345, %v6360
    %v6363 = vunpack.c.l.s4 1966171168
    %v6364 = vunpack.c.0.s8 %v6363
    %v6365 = vlaneseq
    %v6366 = vshrl.u32 %v6365, 7
    %v6367 = vsub.s32 %v6364, %v6366
    %v6368 = vrot.slane %v6346, %v6367
    %v6370 = vunpack.c.l.s4 1966171168
    %v6371 = vunpack.c.0.s8 %v6370
    %v6372 = vlaneseq
    %v6373 = vshrl.u32 %v6372, 7
    %v6374 = vsub.s32 %v6371, %v6373
    %v6375 = vrot.slane %v6347, %v6374
    %v6376 = vcombine.high %v6354, %v6354
    %v6377 = vcombine.high %v6361, %v6361
    %v6378 = vcombine.high %v6368, %v6368
    %v6379 = vcombine.high %v6375, %v6375
    %v6380 = vlaneseq
    %v6381 = vshrl.u32 %v6380, 7
    %v6382 = vsub.s32 0, %v6381
    %v6383 = vrot.slane %v6354, %v6382
    %v6384 = vlaneseq
    %v6385 = vshrl.u32 %v6384, 7
    %v6386 = vsub.s32 0, %v6385
    %v6387 = vrot.slane %v6368, %v6386
    %v6388 = vlaneseq
    %v6389 = vshrl.u32 %v6388, 7
    %v6390 = vsub.s32 0, %v6389
    %v6391 = vrot.slane %v6376, %v6390
    %v6392 = vlaneseq
    %v6393 = vshrl.u32 %v6392, 7
    %v6394 = vsub.s32 0, %v6393
    %v6395 = vrot.slane %v6378, %v6394
    %v6396 = vlaneseq
    %v6397 = vshrl.u32 %v6396, 7
    %v6398 = vsub.s32 0, %v6397
    %v6399 = vrot.slane %v6361, %v6398
    %v6400 = vlaneseq
    %v6401 = vshrl.u32 %v6400, 7
    %v6402 = vsub.s32 0, %v6401
    %v6403 = vrot.slane %v6375, %v6402
    %v6404 = vlaneseq
    %v6405 = vshrl.u32 %v6404, 7
    %v6406 = vsub.s32 0, %v6405
    %v6407 = vrot.slane %v6377, %v6406
    %v6408 = vlaneseq
    %v6409 = vshrl.u32 %v6408, 7
    %v6410 = vsub.s32 0, %v6409
    %v6411 = vrot.slane %v6379, %v6410
    %v6420 = vmul.f32 %v1862, %v6383
    %v6421 = vmul.f32 %v1863, %v6387
    %v6422 = vmul.f32 %v1864, %v6391
    %v6423 = vmul.f32 %v1865, %v6395
    %v6424 = vmul.f32 %v1866, %v6399
    %v6425 = vmul.f32 %v1867, %v6403
    %v6426 = vmul.f32 %v1868, %v6407
    %v6427 = vmul.f32 %v1869, %v6411
    %6428 = vadd.xlane.f32.xlu0 %v6420
    %v6429 = vpop.xlane.xlu0 %6428
    %6430 = vadd.xlane.f32.xlu0 %v6421
    %v6431 = vpop.xlane.xlu0 %6430
    %6432 = vadd.xlane.f32.xlu0 %v6422
    %v6433 = vpop.xlane.xlu0 %6432
    %6434 = vadd.xlane.f32.xlu0 %v6423
    %v6435 = vpop.xlane.xlu0 %6434
    %6436 = vadd.xlane.f32.xlu0 %v6424
    %v6437 = vpop.xlane.xlu0 %6436
    %6438 = vadd.xlane.f32.xlu0 %v6425
    %v6439 = vpop.xlane.xlu0 %6438
    %6440 = vadd.xlane.f32.xlu0 %v6426
    %v6441 = vpop.xlane.xlu0 %6440
    %6442 = vadd.xlane.f32.xlu0 %v6427
    %v6443 = vpop.xlane.xlu0 %6442
    %v6452 = vlaneseq
    %v6453 = vshrl.u32 %v6452, 7
    %v6454 = vsub.s32 %v2128, %v6453
    %v6455 = vrot.slane %v6429, %v6454
    %v6456 = vlaneseq
    %v6457 = vshrl.u32 %v6456, 7
    %v6458 = vsub.s32 %v2128, %v6457
    %v6459 = vrot.slane %v6431, %v6458
    %v6460 = vlaneseq
    %v6461 = vshrl.u32 %v6460, 7
    %v6462 = vsub.s32 %v2128, %v6461
    %v6463 = vrot.slane %v6433, %v6462
    %v6464 = vlaneseq
    %v6465 = vshrl.u32 %v6464, 7
    %v6466 = vsub.s32 %v2128, %v6465
    %v6467 = vrot.slane %v6435, %v6466
    %v6468 = vlaneseq
    %v6469 = vshrl.u32 %v6468, 7
    %v6470 = vsub.s32 %v2128, %v6469
    %v6471 = vrot.slane %v6437, %v6470
    %v6472 = vlaneseq
    %v6473 = vshrl.u32 %v6472, 7
    %v6474 = vsub.s32 %v2128, %v6473
    %v6475 = vrot.slane %v6439, %v6474
    %v6476 = vlaneseq
    %v6477 = vshrl.u32 %v6476, 7
    %v6478 = vsub.s32 %v2128, %v6477
    %v6479 = vrot.slane %v6441, %v6478
    %v6480 = vlaneseq
    %v6481 = vshrl.u32 %v6480, 7
    %v6482 = vsub.s32 %v2128, %v6481
    %v6483 = vrot.slane %v6443, %v6482
    %v6484 = vsel %vm2161, %v6459, %v6455
    %v6485 = vsel %vm2163, %v6463, %v6484
    %v6486 = vsel %vm2165, %v6467, %v6485
    %v6487 = vsel %vm2167, %v6471, %v6486
    %v6488 = vsel %vm2169, %v6475, %v6487
    %v6489 = vsel %vm2171, %v6479, %v6488
    %v6490 = vsel %vm2173, %v6483, %v6489
    %v6492 = vsel %vm156, %v6490, -inf
    %6493 = vmax.xlane.f32.xlu0 %v6492
    %v6494 = vpop.xlane.xlu0 %6493
    %v6496 = vlaneseq
    %v6497 = vshrl.u32 %v6496, 7
    %v6498 = vsub.s32 0, %v6497
    %v6499 = vrot.slane %v6494, %v6498
    %v6500 = vlaneseq
    %v6501 = vshrl.u32 %v6500, 7
    %v6502 = vsub.s32 1, %v6501
    %v6503 = vrot.slane %v6494, %v6502
    %v6504 = vlaneseq
    %v6505 = vshrl.u32 %v6504, 7
    %v6506 = vsub.s32 2, %v6505
    %v6507 = vrot.slane %v6494, %v6506
    %v6508 = vlaneseq
    %v6509 = vshrl.u32 %v6508, 7
    %v6510 = vsub.s32 3, %v6509
    %v6511 = vrot.slane %v6494, %v6510
    %v6512 = vlaneseq
    %v6513 = vshrl.u32 %v6512, 7
    %v6514 = vsub.s32 4, %v6513
    %v6515 = vrot.slane %v6494, %v6514
    %v6516 = vlaneseq
    %v6517 = vshrl.u32 %v6516, 7
    %v6518 = vsub.s32 5, %v6517
    %v6519 = vrot.slane %v6494, %v6518
    %v6520 = vlaneseq
    %v6521 = vshrl.u32 %v6520, 7
    %v6522 = vsub.s32 6, %v6521
    %v6523 = vrot.slane %v6494, %v6522
    %v6524 = vlaneseq
    %v6525 = vshrl.u32 %v6524, 7
    %v6526 = vsub.s32 7, %v6525
    %v6527 = vrot.slane %v6494, %v6526
    %v6536 = vsub.f32 %v6429, %v6499
    %v6537 = vsub.f32 %v6431, %v6503
    %v6538 = vsub.f32 %v6433, %v6507
    %v6539 = vsub.f32 %v6435, %v6511
    %v6540 = vsub.f32 %v6437, %v6515
    %v6541 = vsub.f32 %v6439, %v6519
    %v6542 = vsub.f32 %v6441, %v6523
    %v6543 = vsub.f32 %v6443, %v6527
    %v6544 = vmul.f32 %v6536, 1.442695
    %v6545 = vpow.pop %v6544
    %v6546 = vmul.f32 %v6537, 1.442695
    %v6547 = vpow.pop %v6546
    %v6548 = vmul.f32 %v6538, 1.442695
    %v6549 = vpow.pop %v6548
    %v6550 = vmul.f32 %v6539, 1.442695
    %v6551 = vpow.pop %v6550
    %v6552 = vmul.f32 %v6540, 1.442695
    %v6553 = vpow.pop %v6552
    %v6554 = vmul.f32 %v6541, 1.442695
    %v6555 = vpow.pop %v6554
    %v6556 = vmul.f32 %v6542, 1.442695
    %v6557 = vpow.pop %v6556
    %v6558 = vmul.f32 %v6543, 1.442695
    %v6559 = vpow.pop %v6558
    %6568 = vset.pattern.permute.xlu0 0
    %6569 = vperm.xlu0 %6568, %v6545
    %v6570 = vpop.permute.xlu0 %6569
    %6571 = vset.pattern.permute.xlu0 0
    %6572 = vperm.xlu0 %6571, %v6547
    %v6573 = vpop.permute.xlu0 %6572
    %6574 = vset.pattern.permute.xlu0 0
    %6575 = vperm.xlu0 %6574, %v6549
    %v6576 = vpop.permute.xlu0 %6575
    %6577 = vset.pattern.permute.xlu0 0
    %6578 = vperm.xlu0 %6577, %v6551
    %v6579 = vpop.permute.xlu0 %6578
    %6580 = vset.pattern.permute.xlu0 0
    %6581 = vperm.xlu0 %6580, %v6553
    %v6582 = vpop.permute.xlu0 %6581
    %6583 = vset.pattern.permute.xlu0 0
    %6584 = vperm.xlu0 %6583, %v6555
    %v6585 = vpop.permute.xlu0 %6584
    %6586 = vset.pattern.permute.xlu0 0
    %6587 = vperm.xlu0 %6586, %v6557
    %v6588 = vpop.permute.xlu0 %6587
    %6589 = vset.pattern.permute.xlu0 0
    %6590 = vperm.xlu0 %6589, %v6559
    %v6591 = vpop.permute.xlu0 %6590
    %v6592 = vlaneseq
    %v6593 = vshrl.u32 %v6592, 7
    %v6594 = vsub.s32 %v2128, %v6593
    %v6595 = vrot.slane %v6570, %v6594
    %v6596 = vlaneseq
    %v6597 = vshrl.u32 %v6596, 7
    %v6598 = vsub.s32 %v2128, %v6597
    %v6599 = vrot.slane %v6573, %v6598
    %v6600 = vlaneseq
    %v6601 = vshrl.u32 %v6600, 7
    %v6602 = vsub.s32 %v2128, %v6601
    %v6603 = vrot.slane %v6576, %v6602
    %v6604 = vlaneseq
    %v6605 = vshrl.u32 %v6604, 7
    %v6606 = vsub.s32 %v2128, %v6605
    %v6607 = vrot.slane %v6579, %v6606
    %v6608 = vlaneseq
    %v6609 = vshrl.u32 %v6608, 7
    %v6610 = vsub.s32 %v2128, %v6609
    %v6611 = vrot.slane %v6582, %v6610
    %v6612 = vlaneseq
    %v6613 = vshrl.u32 %v6612, 7
    %v6614 = vsub.s32 %v2128, %v6613
    %v6615 = vrot.slane %v6585, %v6614
    %v6616 = vlaneseq
    %v6617 = vshrl.u32 %v6616, 7
    %v6618 = vsub.s32 %v2128, %v6617
    %v6619 = vrot.slane %v6588, %v6618
    %v6620 = vlaneseq
    %v6621 = vshrl.u32 %v6620, 7
    %v6622 = vsub.s32 %v2128, %v6621
    %v6623 = vrot.slane %v6591, %v6622
    %v6624 = vsel %vm2161, %v6599, %v6595
    %v6625 = vsel %vm2163, %v6603, %v6624
    %v6626 = vsel %vm2165, %v6607, %v6625
    %v6627 = vsel %vm2167, %v6611, %v6626
    %v6628 = vsel %vm2169, %v6615, %v6627
    %v6629 = vsel %vm2171, %v6619, %v6628
    %v6630 = vsel %vm2173, %v6623, %v6629
    %v6632 = vsel %vm156, %v6630, 0.0
    %6633 = vadd.xlane.f32.xlu0 %v6632
    %v6634 = vpop.xlane.xlu0 %6633
    %v6635 = vrcp.pop %v6634
    %v6637 = vlaneseq
    %v6638 = vshrl.u32 %v6637, 7
    %v6639 = vsub.s32 0, %v6638
    %v6640 = vrot.slane %v6635, %v6639
    %v6641 = vlaneseq
    %v6642 = vshrl.u32 %v6641, 7
    %v6643 = vsub.s32 1, %v6642
    %v6644 = vrot.slane %v6635, %v6643
    %v6645 = vlaneseq
    %v6646 = vshrl.u32 %v6645, 7
    %v6647 = vsub.s32 2, %v6646
    %v6648 = vrot.slane %v6635, %v6647
    %v6649 = vlaneseq
    %v6650 = vshrl.u32 %v6649, 7
    %v6651 = vsub.s32 3, %v6650
    %v6652 = vrot.slane %v6635, %v6651
    %v6653 = vlaneseq
    %v6654 = vshrl.u32 %v6653, 7
    %v6655 = vsub.s32 4, %v6654
    %v6656 = vrot.slane %v6635, %v6655
    %v6657 = vlaneseq
    %v6658 = vshrl.u32 %v6657, 7
    %v6659 = vsub.s32 5, %v6658
    %v6660 = vrot.slane %v6635, %v6659
    %v6661 = vlaneseq
    %v6662 = vshrl.u32 %v6661, 7
    %v6663 = vsub.s32 6, %v6662
    %v6664 = vrot.slane %v6635, %v6663
    %v6665 = vlaneseq
    %v6666 = vshrl.u32 %v6665, 7
    %v6667 = vsub.s32 7, %v6666
    %v6668 = vrot.slane %v6635, %v6667
    %v6677 = vmul.f32 %v6545, %v6640
    %v6678 = vmul.f32 %v6547, %v6644
    %v6679 = vmul.f32 %v6549, %v6648
    %v6680 = vmul.f32 %v6551, %v6652
    %v6681 = vmul.f32 %v6553, %v6656
    %v6682 = vmul.f32 %v6555, %v6660
    %v6683 = vmul.f32 %v6557, %v6664
    %v6684 = vmul.f32 %v6559, %v6668
    %6686 = vset.pattern.permute.xlu0 0
    %6687 = vperm.xlu0 %6686, %v6677
    %v6688 = vpop.permute.xlu0 %6687
    %6691 = vset.pattern.permute.xlu0 0
    %6692 = vperm.xlu0 %6691, %v6678
    %v6693 = vpop.permute.xlu0 %6692
    %6696 = vset.pattern.permute.xlu0 0
    %6697 = vperm.xlu0 %6696, %v6679
    %v6698 = vpop.permute.xlu0 %6697
    %6701 = vset.pattern.permute.xlu0 0
    %6702 = vperm.xlu0 %6701, %v6680
    %v6703 = vpop.permute.xlu0 %6702
    %6706 = vset.pattern.permute.xlu0 0
    %6707 = vperm.xlu0 %6706, %v6681
    %v6708 = vpop.permute.xlu0 %6707
    %6711 = vset.pattern.permute.xlu0 0
    %6712 = vperm.xlu0 %6711, %v6682
    %v6713 = vpop.permute.xlu0 %6712
    %6716 = vset.pattern.permute.xlu0 0
    %6717 = vperm.xlu0 %6716, %v6683
    %v6718 = vpop.permute.xlu0 %6717
    %6721 = vset.pattern.permute.xlu0 0
    %6722 = vperm.xlu0 %6721, %v6684
    %v6723 = vpop.permute.xlu0 %6722
    %v6725 = vmul.f32 %v6688, %v1862
    %v6726 = vmul.f32 %v6693, %v1863
    %v6727 = vmul.f32 %v6698, %v1864
    %v6728 = vmul.f32 %v6703, %v1865
    %v6729 = vmul.f32 %v6708, %v1866
    %v6730 = vmul.f32 %v6713, %v1867
    %v6731 = vmul.f32 %v6718, %v1868
    %v6732 = vmul.f32 %v6723, %v1869
    %v6733 = vrot.slane %v6725, 4
    %v6734 = vadd.f32 %v6725, %v6733
    %v6735 = vrot.slane %v6734, 2
    %v6736 = vadd.f32 %v6734, %v6735
    %v6737 = vrot.slane %v6736, 1
    %v6738 = vadd.f32 %v6736, %v6737
    %v6739 = vrot.slane %v6726, 4
    %v6740 = vadd.f32 %v6726, %v6739
    %v6741 = vrot.slane %v6740, 2
    %v6742 = vadd.f32 %v6740, %v6741
    %v6743 = vrot.slane %v6742, 1
    %v6744 = vadd.f32 %v6742, %v6743
    %v6745 = vrot.slane %v6727, 4
    %v6746 = vadd.f32 %v6727, %v6745
    %v6747 = vrot.slane %v6746, 2
    %v6748 = vadd.f32 %v6746, %v6747
    %v6749 = vrot.slane %v6748, 1
    %v6750 = vadd.f32 %v6748, %v6749
    %v6751 = vrot.slane %v6728, 4
    %v6752 = vadd.f32 %v6728, %v6751
    %v6753 = vrot.slane %v6752, 2
    %v6754 = vadd.f32 %v6752, %v6753
    %v6755 = vrot.slane %v6754, 1
    %v6756 = vadd.f32 %v6754, %v6755
    %v6757 = vrot.slane %v6729, 4
    %v6758 = vadd.f32 %v6729, %v6757
    %v6759 = vrot.slane %v6758, 2
    %v6760 = vadd.f32 %v6758, %v6759
    %v6761 = vrot.slane %v6760, 1
    %v6762 = vadd.f32 %v6760, %v6761
    %v6763 = vrot.slane %v6730, 4
    %v6764 = vadd.f32 %v6730, %v6763
    %v6765 = vrot.slane %v6764, 2
    %v6766 = vadd.f32 %v6764, %v6765
    %v6767 = vrot.slane %v6766, 1
    %v6768 = vadd.f32 %v6766, %v6767
    %v6769 = vrot.slane %v6731, 4
    %v6770 = vadd.f32 %v6731, %v6769
    %v6771 = vrot.slane %v6770, 2
    %v6772 = vadd.f32 %v6770, %v6771
    %v6773 = vrot.slane %v6772, 1
    %v6774 = vadd.f32 %v6772, %v6773
    %v6775 = vrot.slane %v6732, 4
    %v6776 = vadd.f32 %v6732, %v6775
    %v6777 = vrot.slane %v6776, 2
    %v6778 = vadd.f32 %v6776, %v6777
    %v6779 = vrot.slane %v6778, 1
    %v6780 = vadd.f32 %v6778, %v6779
    %v6789 = vsel %vm2161, %v6744, %v6738
    %v6790 = vsel %vm2163, %v6750, %v6789
    %v6791 = vsel %vm2165, %v6756, %v6790
    %v6792 = vsel %vm2167, %v6762, %v6791
    %v6793 = vsel %vm2169, %v6768, %v6792
    %v6794 = vsel %vm2171, %v6774, %v6793
    %v6795 = vsel %vm2173, %v6780, %v6794
    %6797 = vmatprep.subr.mxu0 %v1874
    %6798 = vmatpush1.msra.mxu0 %v1873
    %6799 = vmatprep.subr.mxu0 %v1877
    %6800 = vmatpush1.msra.mxu0 %v1876
    %6801 = vmatprep.subr.mxu0 %v1880
    %6802 = vmatpush1.msra.mxu0 %v1879
    %6803 = vmatprep.subr.mxu0 %v1883
    %6804 = vmatpush1.msra.mxu0 %v1882
    %6805 = vmatprep.subr.mxu0 %v1886
    %6806 = vmatpush1.msra.mxu0 %v1885
    %6807 = vmatprep.subr.mxu0 %v1889
    %6808 = vmatpush1.msra.mxu0 %v1888
    %6809 = vmatprep.subr.mxu0 %v1892
    %6810 = vmatpush1.msra.mxu0 %v1891
    %6811 = vmatprep.subr.mxu0 %v1895
    %6812 = vmatpush1.msra.mxu0 %v1894
    %6813 = vmatprep.subr.mxu0 %v1898
    %6814 = vmatpush1.msra.mxu0 %v1897
    %6815 = vmatprep.subr.mxu0 %v1901
    %6816 = vmatpush1.msra.mxu0 %v1900
    %6817 = vmatprep.subr.mxu0 %v1904
    %6818 = vmatpush1.msra.mxu0 %v1903
    %6819 = vmatprep.subr.mxu0 %v1907
    %6820 = vmatpush1.msra.mxu0 %v1906
    %6821 = vmatprep.subr.mxu0 %v1910
    %6822 = vmatpush1.msra.mxu0 %v1909
    %6823 = vmatprep.subr.mxu0 %v1913
    %6824 = vmatpush1.msra.mxu0 %v1912
    %6825 = vmatprep.subr.mxu0 %v1916
    %6826 = vmatpush1.msra.mxu0 %v1915
    %6827 = vmatprep.subr.mxu0 %v1919
    %6828 = vmatpush1.msra.mxu0 %v1918
    %6829 = vmatprep.subr.mxu0 0.0
    %6830 = vmatpush1.msra.mxu0 0.0
    %6831 = vmatprep.subr.mxu0 0.0
    %6832 = vmatpush1.msra.mxu0 0.0
    %6833 = vmatprep.subr.mxu0 0.0
    %6834 = vmatpush1.msra.mxu0 0.0
    %6835 = vmatprep.subr.mxu0 0.0
    %6836 = vmatpush1.msra.mxu0 0.0
    %6837 = vmatprep.subr.mxu0 0.0
    %6838 = vmatpush1.msra.mxu0 0.0
    %6839 = vmatprep.subr.mxu0 0.0
    %6840 = vmatpush1.msra.mxu0 0.0
    %6841 = vmatprep.subr.mxu0 0.0
    %6842 = vmatpush1.msra.mxu0 0.0
    %6843 = vmatprep.subr.mxu0 0.0
    %6844 = vmatpush1.msra.mxu0 0.0
    %6845 = vmatprep.subr.mxu0 0.0
    %6846 = vmatpush1.msra.mxu0 0.0
    %6847 = vmatprep.subr.mxu0 0.0
    %6848 = vmatpush1.msra.mxu0 0.0
    %6849 = vmatprep.subr.mxu0 0.0
    %6850 = vmatpush1.msra.mxu0 0.0
    %6851 = vmatprep.subr.mxu0 0.0
    %6852 = vmatpush1.msra.mxu0 0.0
    %6853 = vmatprep.subr.mxu0 0.0
    %6854 = vmatpush1.msra.mxu0 0.0
    %6855 = vmatprep.subr.mxu0 0.0
    %6856 = vmatpush1.msra.mxu0 0.0
    %6857 = vmatprep.subr.mxu0 0.0
    %6858 = vmatpush1.msra.mxu0 0.0
    %6859 = vmatprep.subr.mxu0 0.0
    %6860 = vmatpush1.msra.mxu0 0.0
    %6861 = vmatprep.mubr.f32.mxu0 0.0
    %6862 = vmatmul.mubr.f32.gmra.mrb[0].mxu0 %v6795
    %v6863 = vpop.f32.mrb[0].mxu0
    %v6864 = vadd.f32 0.0, %v6863
    %v6865 = vpop.f32.mrb[0].mxu0
    %v6866 = vadd.f32 0.0, %v6865
    %6867 = vdwg.mxu0
    %6868 = vmatprep.subr.mxu0 0.0
    %6869 = vmatpush1.msra.mxu0 %v1875
    %6870 = vmatprep.subr.mxu0 0.0
    %6871 = vmatpush1.msra.mxu0 %v1878
    %6872 = vmatprep.subr.mxu0 0.0
    %6873 = vmatpush1.msra.mxu0 %v1881
    %6874 = vmatprep.subr.mxu0 0.0
    %6875 = vmatpush1.msra.mxu0 %v1884
    %6876 = vmatprep.subr.mxu0 0.0
    %6877 = vmatpush1.msra.mxu0 %v1887
    %6878 = vmatprep.subr.mxu0 0.0
    %6879 = vmatpush1.msra.mxu0 %v1890
    %6880 = vmatprep.subr.mxu0 0.0
    %6881 = vmatpush1.msra.mxu0 %v1893
    %6882 = vmatprep.subr.mxu0 0.0
    %6883 = vmatpush1.msra.mxu0 %v1896
    %6884 = vmatprep.subr.mxu0 0.0
    %6885 = vmatpush1.msra.mxu0 %v1899
    %6886 = vmatprep.subr.mxu0 0.0
    %6887 = vmatpush1.msra.mxu0 %v1902
    %6888 = vmatprep.subr.mxu0 0.0
    %6889 = vmatpush1.msra.mxu0 %v1905
    %6890 = vmatprep.subr.mxu0 0.0
    %6891 = vmatpush1.msra.mxu0 %v1908
    %6892 = vmatprep.subr.mxu0 0.0
    %6893 = vmatpush1.msra.mxu0 %v1911
    %6894 = vmatprep.subr.mxu0 0.0
    %6895 = vmatpush1.msra.mxu0 %v1914
    %6896 = vmatprep.subr.mxu0 0.0
    %6897 = vmatpush1.msra.mxu0 %v1917
    %6898 = vmatprep.subr.mxu0 0.0
    %6899 = vmatpush1.msra.mxu0 %v1920
    %6900 = vmatprep.subr.mxu0 0.0
    %6901 = vmatpush1.msra.mxu0 0.0
    %6902 = vmatprep.subr.mxu0 0.0
    %6903 = vmatpush1.msra.mxu0 0.0
    %6904 = vmatprep.subr.mxu0 0.0
    %6905 = vmatpush1.msra.mxu0 0.0
    %6906 = vmatprep.subr.mxu0 0.0
    %6907 = vmatpush1.msra.mxu0 0.0
    %6908 = vmatprep.subr.mxu0 0.0
    %6909 = vmatpush1.msra.mxu0 0.0
    %6910 = vmatprep.subr.mxu0 0.0
    %6911 = vmatpush1.msra.mxu0 0.0
    %6912 = vmatprep.subr.mxu0 0.0
    %6913 = vmatpush1.msra.mxu0 0.0
    %6914 = vmatprep.subr.mxu0 0.0
    %6915 = vmatpush1.msra.mxu0 0.0
    %6916 = vmatprep.subr.mxu0 0.0
    %6917 = vmatpush1.msra.mxu0 0.0
    %6918 = vmatprep.subr.mxu0 0.0
    %6919 = vmatpush1.msra.mxu0 0.0
    %6920 = vmatprep.subr.mxu0 0.0
    %6921 = vmatpush1.msra.mxu0 0.0
    %6922 = vmatprep.subr.mxu0 0.0
    %6923 = vmatpush1.msra.mxu0 0.0
    %6924 = vmatprep.subr.mxu0 0.0
    %6925 = vmatpush1.msra.mxu0 0.0
    %6926 = vmatprep.subr.mxu0 0.0
    %6927 = vmatpush1.msra.mxu0 0.0
    %6928 = vmatprep.subr.mxu0 0.0
    %6929 = vmatpush1.msra.mxu0 0.0
    %6930 = vmatprep.subr.mxu0 0.0
    %6931 = vmatpush1.msra.mxu0 0.0
    %6932 = vmatprep.mubr.f32.mxu0 0.0
    %6933 = vmatmul.mubr.f32.gmra.mrb[0].mxu0 %v6795
    %v6934 = vpop.f32.mrb[0].mxu0
    %v6935 = vadd.f32 0.0, %v6934
    %v6936 = vpop.f32.mrb[0].mxu0
    %6937 = vdwg.mxu0
    %v6939 = vsel %vm156, %v6329, 0
    %6941 = vmatprep.subr.mxu0 %v1871
    %6942 = vmatpush1.msra.mxu0 %v1870
    %6943 = vmatprep.subr.mxu0 0.0
    %6944 = vmatpush1.msra.mxu0 0.0
    %6945 = vmatprep.subr.mxu0 0.0
    %6946 = vmatpush1.msra.mxu0 0.0
    %6947 = vmatprep.subr.mxu0 0.0
    %6948 = vmatpush1.msra.mxu0 0.0
    %6949 = vmatprep.subr.mxu0 0.0
    %6950 = vmatpush1.msra.mxu0 0.0
    %6951 = vmatprep.subr.mxu0 0.0
    %6952 = vmatpush1.msra.mxu0 0.0
    %6953 = vmatprep.subr.mxu0 0.0
    %6954 = vmatpush1.msra.mxu0 0.0
    %6955 = vmatprep.subr.mxu0 0.0
    %6956 = vmatpush1.msra.mxu0 0.0
    %6957 = vmatprep.subr.mxu0 0.0
    %6958 = vmatpush1.msra.mxu0 0.0
    %6959 = vmatprep.subr.mxu0 0.0
    %6960 = vmatpush1.msra.mxu0 0.0
    %6961 = vmatprep.subr.mxu0 0.0
    %6962 = vmatpush1.msra.mxu0 0.0
    %6963 = vmatprep.subr.mxu0 0.0
    %6964 = vmatpush1.msra.mxu0 0.0
    %6965 = vmatprep.subr.mxu0 0.0
    %6966 = vmatpush1.msra.mxu0 0.0
    %6967 = vmatprep.subr.mxu0 0.0
    %6968 = vmatpush1.msra.mxu0 0.0
    %6969 = vmatprep.subr.mxu0 0.0
    %6970 = vmatpush1.msra.mxu0 0.0
    %6971 = vmatprep.subr.mxu0 0.0
    %6972 = vmatpush1.msra.mxu0 0.0
    %6973 = vmatprep.subr.mxu0 0.0
    %6974 = vmatpush1.msra.mxu0 0.0
    %6975 = vmatprep.subr.mxu0 0.0
    %6976 = vmatpush1.msra.mxu0 0.0
    %6977 = vmatprep.subr.mxu0 0.0
    %6978 = vmatpush1.msra.mxu0 0.0
    %6979 = vmatprep.subr.mxu0 0.0
    %6980 = vmatpush1.msra.mxu0 0.0
    %6981 = vmatprep.subr.mxu0 0.0
    %6982 = vmatpush1.msra.mxu0 0.0
    %6983 = vmatprep.subr.mxu0 0.0
    %6984 = vmatpush1.msra.mxu0 0.0
    %6985 = vmatprep.subr.mxu0 0.0
    %6986 = vmatpush1.msra.mxu0 0.0
    %6987 = vmatprep.subr.mxu0 0.0
    %6988 = vmatpush1.msra.mxu0 0.0
    %6989 = vmatprep.subr.mxu0 0.0
    %6990 = vmatpush1.msra.mxu0 0.0
    %6991 = vmatprep.subr.mxu0 0.0
    %6992 = vmatpush1.msra.mxu0 0.0
    %6993 = vmatprep.subr.mxu0 0.0
    %6994 = vmatpush1.msra.mxu0 0.0
    %6995 = vmatprep.subr.mxu0 0.0
    %6996 = vmatpush1.msra.mxu0 0.0
    %6997 = vmatprep.subr.mxu0 0.0
    %6998 = vmatpush1.msra.mxu0 0.0
    %6999 = vmatprep.subr.mxu0 0.0
    %7000 = vmatpush1.msra.mxu0 0.0
    %7001 = vmatprep.subr.mxu0 0.0
    %7002 = vmatpush1.msra.mxu0 0.0
    %7003 = vmatprep.subr.mxu0 0.0
    %7004 = vmatpush1.msra.mxu0 0.0
    %7005 = vmatprep.mubr.f32.mxu0 0.0
    %7006 = vmatmul.mubr.f32.gmra.mrb[0].mxu0 %v6939
    %v7007 = vpop.f32.mrb[0].mxu0
    %v7008 = vadd.f32 %v6864, %v7007
    %v7009 = vpop.f32.mrb[0].mxu0
    %v7010 = vadd.f32 %v6866, %v7009
    %7011 = vdwg.mxu0
    %7012 = vmatprep.subr.mxu0 0.0
    %7013 = vmatpush1.msra.mxu0 %v1872
    %7014 = vmatprep.subr.mxu0 0.0
    %7015 = vmatpush1.msra.mxu0 0.0
    %7016 = vmatprep.subr.mxu0 0.0
    %7017 = vmatpush1.msra.mxu0 0.0
    %7018 = vmatprep.subr.mxu0 0.0
    %7019 = vmatpush1.msra.mxu0 0.0
    %7020 = vmatprep.subr.mxu0 0.0
    %7021 = vmatpush1.msra.mxu0 0.0
    %7022 = vmatprep.subr.mxu0 0.0
    %7023 = vmatpush1.msra.mxu0 0.0
    %7024 = vmatprep.subr.mxu0 0.0
    %7025 = vmatpush1.msra.mxu0 0.0
    %7026 = vmatprep.subr.mxu0 0.0
    %7027 = vmatpush1.msra.mxu0 0.0
    %7028 = vmatprep.subr.mxu0 0.0
    %7029 = vmatpush1.msra.mxu0 0.0
    %7030 = vmatprep.subr.mxu0 0.0
    %7031 = vmatpush1.msra.mxu0 0.0
    %7032 = vmatprep.subr.mxu0 0.0
    %7033 = vmatpush1.msra.mxu0 0.0
    %7034 = vmatprep.subr.mxu0 0.0
    %7035 = vmatpush1.msra.mxu0 0.0
    %7036 = vmatprep.subr.mxu0 0.0
    %7037 = vmatpush1.msra.mxu0 0.0
    %7038 = vmatprep.subr.mxu0 0.0
    %7039 = vmatpush1.msra.mxu0 0.0
    %7040 = vmatprep.subr.mxu0 0.0
    %7041 = vmatpush1.msra.mxu0 0.0
    %7042 = vmatprep.subr.mxu0 0.0
    %7043 = vmatpush1.msra.mxu0 0.0
    %7044 = vmatprep.subr.mxu0 0.0
    %7045 = vmatpush1.msra.mxu0 0.0
    %7046 = vmatprep.subr.mxu0 0.0
    %7047 = vmatpush1.msra.mxu0 0.0
    %7048 = vmatprep.subr.mxu0 0.0
    %7049 = vmatpush1.msra.mxu0 0.0
    %7050 = vmatprep.subr.mxu0 0.0
    %7051 = vmatpush1.msra.mxu0 0.0
    %7052 = vmatprep.subr.mxu0 0.0
    %7053 = vmatpush1.msra.mxu0 0.0
    %7054 = vmatprep.subr.mxu0 0.0
    %7055 = vmatpush1.msra.mxu0 0.0
    %7056 = vmatprep.subr.mxu0 0.0
    %7057 = vmatpush1.msra.mxu0 0.0
    %7058 = vmatprep.subr.mxu0 0.0
    %7059 = vmatpush1.msra.mxu0 0.0
    %7060 = vmatprep.subr.mxu0 0.0
    %7061 = vmatpush1.msra.mxu0 0.0
    %7062 = vmatprep.subr.mxu0 0.0
    %7063 = vmatpush1.msra.mxu0 0.0
    %7064 = vmatprep.subr.mxu0 0.0
    %7065 = vmatpush1.msra.mxu0 0.0
    %7066 = vmatprep.subr.mxu0 0.0
    %7067 = vmatpush1.msra.mxu0 0.0
    %7068 = vmatprep.subr.mxu0 0.0
    %7069 = vmatpush1.msra.mxu0 0.0
    %7070 = vmatprep.subr.mxu0 0.0
    %7071 = vmatpush1.msra.mxu0 0.0
    %7072 = vmatprep.subr.mxu0 0.0
    %7073 = vmatpush1.msra.mxu0 0.0
    %7074 = vmatprep.subr.mxu0 0.0
    %7075 = vmatpush1.msra.mxu0 0.0
    %7076 = vmatprep.mubr.f32.mxu0 0.0
    %7077 = vmatmul.mubr.f32.gmra.mrb[0].mxu0 %v6939
    %v7078 = vpop.f32.mrb[0].mxu0
    %v7079 = vadd.f32 %v6935, %v7078
    %v7080 = vpop.f32.mrb[0].mxu0
    %7081 = vdwg.mxu0
    %v7082 = vadd.f32 %v7008, %v2770
    %v7083 = vadd.f32 %v7010, %v2774
    %v7084 = vadd.f32 %v7079, %v2778
    %7085 = vmatprep.subr.mxu0 %v1922
    %7086 = vmatpush1.msra.mxu0 %v1921
    %7087 = vmatprep.subr.mxu0 %v1925
    %7088 = vmatpush1.msra.mxu0 %v1924
    %7089 = vmatprep.subr.mxu0 %v1928
    %7090 = vmatpush1.msra.mxu0 %v1927
    %7091 = vmatprep.subr.mxu0 %v1931
    %7092 = vmatpush1.msra.mxu0 %v1930
    %7093 = vmatprep.subr.mxu0 %v1934
    %7094 = vmatpush1.msra.mxu0 %v1933
    %7095 = vmatprep.subr.mxu0 %v1937
    %7096 = vmatpush1.msra.mxu0 %v1936
    %7097 = vmatprep.subr.mxu0 %v1940
    %7098 = vmatpush1.msra.mxu0 %v1939
    %7099 = vmatprep.subr.mxu0 %v1943
    %7100 = vmatpush1.msra.mxu0 %v1942
    %7101 = vmatprep.subr.mxu0 %v1946
    %7102 = vmatpush1.msra.mxu0 %v1945
    %7103 = vmatprep.subr.mxu0 %v1949
    %7104 = vmatpush1.msra.mxu0 %v1948
    %7105 = vmatprep.subr.mxu0 %v1952
    %7106 = vmatpush1.msra.mxu0 %v1951
    %7107 = vmatprep.subr.mxu0 %v1955
    %7108 = vmatpush1.msra.mxu0 %v1954
    %7109 = vmatprep.subr.mxu0 %v1958
    %7110 = vmatpush1.msra.mxu0 %v1957
    %7111 = vmatprep.subr.mxu0 %v1961
    %7112 = vmatpush1.msra.mxu0 %v1960
    %7113 = vmatprep.subr.mxu0 %v1964
    %7114 = vmatpush1.msra.mxu0 %v1963
    %7115 = vmatprep.subr.mxu0 %v1967
    %7116 = vmatpush1.msra.mxu0 %v1966
    %7117 = vmatprep.subr.mxu0 0.0
    %7118 = vmatpush1.msra.mxu0 0.0
    %7119 = vmatprep.subr.mxu0 0.0
    %7120 = vmatpush1.msra.mxu0 0.0
    %7121 = vmatprep.subr.mxu0 0.0
    %7122 = vmatpush1.msra.mxu0 0.0
    %7123 = vmatprep.subr.mxu0 0.0
    %7124 = vmatpush1.msra.mxu0 0.0
    %7125 = vmatprep.subr.mxu0 0.0
    %7126 = vmatpush1.msra.mxu0 0.0
    %7127 = vmatprep.subr.mxu0 0.0
    %7128 = vmatpush1.msra.mxu0 0.0
    %7129 = vmatprep.subr.mxu0 0.0
    %7130 = vmatpush1.msra.mxu0 0.0
    %7131 = vmatprep.subr.mxu0 0.0
    %7132 = vmatpush1.msra.mxu0 0.0
    %7133 = vmatprep.subr.mxu0 0.0
    %7134 = vmatpush1.msra.mxu0 0.0
    %7135 = vmatprep.subr.mxu0 0.0
    %7136 = vmatpush1.msra.mxu0 0.0
    %7137 = vmatprep.subr.mxu0 0.0
    %7138 = vmatpush1.msra.mxu0 0.0
    %7139 = vmatprep.subr.mxu0 0.0
    %7140 = vmatpush1.msra.mxu0 0.0
    %7141 = vmatprep.subr.mxu0 0.0
    %7142 = vmatpush1.msra.mxu0 0.0
    %7143 = vmatprep.subr.mxu0 0.0
    %7144 = vmatpush1.msra.mxu0 0.0
    %7145 = vmatprep.subr.mxu0 0.0
    %7146 = vmatpush1.msra.mxu0 0.0
    %7147 = vmatprep.subr.mxu0 0.0
    %7148 = vmatpush1.msra.mxu0 0.0
    %7149 = vmatprep.mubr.f32.mxu0 0.0
    %7150 = vmatmul.mubr.f32.gmra.mrb[0].mxu0 %v6176
    %v7151 = vpop.f32.mrb[0].mxu0
    %v7152 = vadd.f32 %v2789, %v7151
    %v7153 = vpop.f32.mrb[0].mxu0
    %v7154 = vadd.f32 %v2793, %v7153
    %7155 = vdwg.mxu0
    %7156 = vmatprep.subr.mxu0 0.0
    %7157 = vmatpush1.msra.mxu0 %v1923
    %7158 = vmatprep.subr.mxu0 0.0
    %7159 = vmatpush1.msra.mxu0 %v1926
    %7160 = vmatprep.subr.mxu0 0.0
    %7161 = vmatpush1.msra.mxu0 %v1929
    %7162 = vmatprep.subr.mxu0 0.0
    %7163 = vmatpush1.msra.mxu0 %v1932
    %7164 = vmatprep.subr.mxu0 0.0
    %7165 = vmatpush1.msra.mxu0 %v1935
    %7166 = vmatprep.subr.mxu0 0.0
    %7167 = vmatpush1.msra.mxu0 %v1938
    %7168 = vmatprep.subr.mxu0 0.0
    %7169 = vmatpush1.msra.mxu0 %v1941
    %7170 = vmatprep.subr.mxu0 0.0
    %7171 = vmatpush1.msra.mxu0 %v1944
    %7172 = vmatprep.subr.mxu0 0.0
    %7173 = vmatpush1.msra.mxu0 %v1947
    %7174 = vmatprep.subr.mxu0 0.0
    %7175 = vmatpush1.msra.mxu0 %v1950
    %7176 = vmatprep.subr.mxu0 0.0
    %7177 = vmatpush1.msra.mxu0 %v1953
    %7178 = vmatprep.subr.mxu0 0.0
    %7179 = vmatpush1.msra.mxu0 %v1956
    %7180 = vmatprep.subr.mxu0 0.0
    %7181 = vmatpush1.msra.mxu0 %v1959
    %7182 = vmatprep.subr.mxu0 0.0
    %7183 = vmatpush1.msra.mxu0 %v1962
    %7184 = vmatprep.subr.mxu0 0.0
    %7185 = vmatpush1.msra.mxu0 %v1965
    %7186 = vmatprep.subr.mxu0 0.0
    %7187 = vmatpush1.msra.mxu0 %v1968
    %7188 = vmatprep.subr.mxu0 0.0
    %7189 = vmatpush1.msra.mxu0 0.0
    %7190 = vmatprep.subr.mxu0 0.0
    %7191 = vmatpush1.msra.mxu0 0.0
    %7192 = vmatprep.subr.mxu0 0.0
    %7193 = vmatpush1.msra.mxu0 0.0
    %7194 = vmatprep.subr.mxu0 0.0
    %7195 = vmatpush1.msra.mxu0 0.0
    %7196 = vmatprep.subr.mxu0 0.0
    %7197 = vmatpush1.msra.mxu0 0.0
    %7198 = vmatprep.subr.mxu0 0.0
    %7199 = vmatpush1.msra.mxu0 0.0
    %7200 = vmatprep.subr.mxu0 0.0
    %7201 = vmatpush1.msra.mxu0 0.0
    %7202 = vmatprep.subr.mxu0 0.0
    %7203 = vmatpush1.msra.mxu0 0.0
    %7204 = vmatprep.subr.mxu0 0.0
    %7205 = vmatpush1.msra.mxu0 0.0
    %7206 = vmatprep.subr.mxu0 0.0
    %7207 = vmatpush1.msra.mxu0 0.0
    %7208 = vmatprep.subr.mxu0 0.0
    %7209 = vmatpush1.msra.mxu0 0.0
    %7210 = vmatprep.subr.mxu0 0.0
    %7211 = vmatpush1.msra.mxu0 0.0
    %7212 = vmatprep.subr.mxu0 0.0
    %7213 = vmatpush1.msra.mxu0 0.0
    %7214 = vmatprep.subr.mxu0 0.0
    %7215 = vmatpush1.msra.mxu0 0.0
    %7216 = vmatprep.subr.mxu0 0.0
    %7217 = vmatpush1.msra.mxu0 0.0
    %7218 = vmatprep.subr.mxu0 0.0
    %7219 = vmatpush1.msra.mxu0 0.0
    %7220 = vmatprep.mubr.f32.mxu0 0.0
    %7221 = vmatmul.mubr.f32.gmra.mrb[0].mxu0 %v6176
    %v7222 = vpop.f32.mrb[0].mxu0
    %v7223 = vadd.f32 %v2797, %v7222
    %v7224 = vpop.f32.mrb[0].mxu0
    %7225 = vdwg.mxu0
    %v7226 = vadd.f32 %v7082, %v7152
    %v7227 = vxor.u32 %v7226, 2147483648
    %v7228 = vmul.f32 %v7227, 1.442695
    %v7229 = vpow.pop %v7228
    %v7230 = vadd.f32 %v7229, 1.0
    %v7231 = vrcp.pop %v7230
    %v7232 = vmul.f32 1.0, %v7231
    %v7233 = vadd.f32 %v7083, %v7154
    %v7234 = vxor.u32 %v7233, 2147483648
    %v7235 = vmul.f32 %v7234, 1.442695
    %v7236 = vpow.pop %v7235
    %v7237 = vadd.f32 %v7236, 1.0
    %v7238 = vrcp.pop %v7237
    %v7239 = vmul.f32 1.0, %v7238
    %v7240 = vmul.f32 %v7232, %v7223
    %v7241 = vadd.f32 %v7084, %v7240
    %v7242 = vtanh.pop %v7241
    %v7243 = vsub.f32 1.0, %v7239
    %v7244 = vmul.f32 %v7243, %v7242
    %v7245 = vmul.f32 %v7239, %v6176
    %v7246 = vadd.f32 %v7244, %v7245
    %7247 = vmatprep.subr.mxu0 0.0
    %7248 = vmatpush1.msra.mxu0 %v1987
    %7249 = vmatprep.subr.mxu0 0.0
    %7250 = vmatpush1.msra.mxu0 %v1988
    %7251 = vmatprep.subr.mxu0 0.0
    %7252 = vmatpush1.msra.mxu0 %v1989
    %7253 = vmatprep.subr.mxu0 0.0
    %7254 = vmatpush1.msra.mxu0 %v1990
    %7255 = vmatprep.subr.mxu0 0.0
    %7256 = vmatpush1.msra.mxu0 %v1991
    %7257 = vmatprep.subr.mxu0 0.0
    %7258 = vmatpush1.msra.mxu0 %v1992
    %7259 = vmatprep.subr.mxu0 0.0
    %7260 = vmatpush1.msra.mxu0 %v1993
    %7261 = vmatprep.subr.mxu0 0.0
    %7262 = vmatpush1.msra.mxu0 %v1994
    %7263 = vmatprep.subr.mxu0 0.0
    %7264 = vmatpush1.msra.mxu0 %v1995
    %7265 = vmatprep.subr.mxu0 0.0
    %7266 = vmatpush1.msra.mxu0 %v1996
    %7267 = vmatprep.subr.mxu0 0.0
    %7268 = vmatpush1.msra.mxu0 %v1997
    %7269 = vmatprep.subr.mxu0 0.0
    %7270 = vmatpush1.msra.mxu0 %v1998
    %7271 = vmatprep.subr.mxu0 0.0
    %7272 = vmatpush1.msra.mxu0 %v1999
    %7273 = vmatprep.subr.mxu0 0.0
    %7274 = vmatpush1.msra.mxu0 %v2000
    %7275 = vmatprep.subr.mxu0 0.0
    %7276 = vmatpush1.msra.mxu0 %v2001
    %7277 = vmatprep.subr.mxu0 0.0
    %7278 = vmatpush1.msra.mxu0 %v2002
    %7279 = vmatprep.subr.mxu0 0.0
    %7280 = vmatpush1.msra.mxu0 0.0
    %7281 = vmatprep.subr.mxu0 0.0
    %7282 = vmatpush1.msra.mxu0 0.0
    %7283 = vmatprep.subr.mxu0 0.0
    %7284 = vmatpush1.msra.mxu0 0.0
    %7285 = vmatprep.subr.mxu0 0.0
    %7286 = vmatpush1.msra.mxu0 0.0
    %7287 = vmatprep.subr.mxu0 0.0
    %7288 = vmatpush1.msra.mxu0 0.0
    %7289 = vmatprep.subr.mxu0 0.0
    %7290 = vmatpush1.msra.mxu0 0.0
    %7291 = vmatprep.subr.mxu0 0.0
    %7292 = vmatpush1.msra.mxu0 0.0
    %7293 = vmatprep.subr.mxu0 0.0
    %7294 = vmatpush1.msra.mxu0 0.0
    %7295 = vmatprep.subr.mxu0 0.0
    %7296 = vmatpush1.msra.mxu0 0.0
    %7297 = vmatprep.subr.mxu0 0.0
    %7298 = vmatpush1.msra.mxu0 0.0
    %7299 = vmatprep.subr.mxu0 0.0
    %7300 = vmatpush1.msra.mxu0 0.0
    %7301 = vmatprep.subr.mxu0 0.0
    %7302 = vmatpush1.msra.mxu0 0.0
    %7303 = vmatprep.subr.mxu0 0.0
    %7304 = vmatpush1.msra.mxu0 0.0
    %7305 = vmatprep.subr.mxu0 0.0
    %7306 = vmatpush1.msra.mxu0 0.0
    %7307 = vmatprep.subr.mxu0 0.0
    %7308 = vmatpush1.msra.mxu0 0.0
    %7309 = vmatprep.subr.mxu0 0.0
    %7310 = vmatpush1.msra.mxu0 0.0
    %7311 = vmatprep.mubr.f32.mxu0 0.0
    %7312 = vmatmul.mubr.f32.gmra.mrb[0].mxu0 %v6795
    %v7313 = vpop.f32.mrb[0].mxu0
    %v7314 = vadd.f32 0.0, %v7313
    %v7315 = vpop.f32.mrb[0].mxu0
    %7316 = vdwg.mxu0
    %7317 = vmatprep.subr.mxu0 0.0
    %7318 = vmatpush1.msra.mxu0 %v1971
    %7319 = vmatprep.subr.mxu0 0.0
    %7320 = vmatpush1.msra.mxu0 %v1972
    %7321 = vmatprep.subr.mxu0 0.0
    %7322 = vmatpush1.msra.mxu0 %v1973
    %7323 = vmatprep.subr.mxu0 0.0
    %7324 = vmatpush1.msra.mxu0 %v1974
    %7325 = vmatprep.subr.mxu0 0.0
    %7326 = vmatpush1.msra.mxu0 %v1975
    %7327 = vmatprep.subr.mxu0 0.0
    %7328 = vmatpush1.msra.mxu0 %v1976
    %7329 = vmatprep.subr.mxu0 0.0
    %7330 = vmatpush1.msra.mxu0 %v1977
    %7331 = vmatprep.subr.mxu0 0.0
    %7332 = vmatpush1.msra.mxu0 %v1978
    %7333 = vmatprep.subr.mxu0 0.0
    %7334 = vmatpush1.msra.mxu0 %v1979
    %7335 = vmatprep.subr.mxu0 0.0
    %7336 = vmatpush1.msra.mxu0 %v1980
    %7337 = vmatprep.subr.mxu0 0.0
    %7338 = vmatpush1.msra.mxu0 %v1981
    %7339 = vmatprep.subr.mxu0 0.0
    %7340 = vmatpush1.msra.mxu0 %v1982
    %7341 = vmatprep.subr.mxu0 0.0
    %7342 = vmatpush1.msra.mxu0 %v1983
    %7343 = vmatprep.subr.mxu0 0.0
    %7344 = vmatpush1.msra.mxu0 %v1984
    %7345 = vmatprep.subr.mxu0 0.0
    %7346 = vmatpush1.msra.mxu0 %v1985
    %7347 = vmatprep.subr.mxu0 0.0
    %7348 = vmatpush1.msra.mxu0 %v1986
    %7349 = vmatprep.subr.mxu0 0.0
    %7350 = vmatpush1.msra.mxu0 0.0
    %7351 = vmatprep.subr.mxu0 0.0
    %7352 = vmatpush1.msra.mxu0 0.0
    %7353 = vmatprep.subr.mxu0 0.0
    %7354 = vmatpush1.msra.mxu0 0.0
    %7355 = vmatprep.subr.mxu0 0.0
    %7356 = vmatpush1.msra.mxu0 0.0
    %7357 = vmatprep.subr.mxu0 0.0
    %7358 = vmatpush1.msra.mxu0 0.0
    %7359 = vmatprep.subr.mxu0 0.0
    %7360 = vmatpush1.msra.mxu0 0.0
    %7361 = vmatprep.subr.mxu0 0.0
    %7362 = vmatpush1.msra.mxu0 0.0
    %7363 = vmatprep.subr.mxu0 0.0
    %7364 = vmatpush1.msra.mxu0 0.0
    %7365 = vmatprep.subr.mxu0 0.0
    %7366 = vmatpush1.msra.mxu0 0.0
    %7367 = vmatprep.subr.mxu0 0.0
    %7368 = vmatpush1.msra.mxu0 0.0
    %7369 = vmatprep.subr.mxu0 0.0
    %7370 = vmatpush1.msra.mxu0 0.0
    %7371 = vmatprep.subr.mxu0 0.0
    %7372 = vmatpush1.msra.mxu0 0.0
    %7373 = vmatprep.subr.mxu0 0.0
    %7374 = vmatpush1.msra.mxu0 0.0
    %7375 = vmatprep.subr.mxu0 0.0
    %7376 = vmatpush1.msra.mxu0 0.0
    %7377 = vmatprep.subr.mxu0 0.0
    %7378 = vmatpush1.msra.mxu0 0.0
    %7379 = vmatprep.subr.mxu0 0.0
    %7380 = vmatpush1.msra.mxu0 0.0
    %7381 = vmatprep.mubr.f32.mxu0 0.0
    %7382 = vmatmul.mubr.f32.gmra.mrb[0].mxu0 %v7246
    %v7383 = vpop.f32.mrb[0].mxu0
    %v7384 = vadd.f32 %v7314, %v7383
    %v7385 = vpop.f32.mrb[0].mxu0
    %7386 = vdwg.mxu0
    %v7387 = vadd.f32 %v7384, %v3107
    %s7388 = scalar_lea.vmem [#allocation8], 32
    %7389 = vst [vmem:[%s7388] sm:$0xff] %v7387
    %s7390 = sld [smem:[#allocation3 + $0x4]]
    %s7391 = scvt.s32.f32 %s7390
    %s7392 = scalar_lea.vmem %s2, 32
    %v7393 = vld [vmem:[%s7392] sm:$0xff]
    %v7394 = vstv %s7391
    %v7395 = vmul.f32 %v7394, %v7393
    %s7396 = ssub.f32 1.0, %s7391
    %v7397 = vstv %s7396
    %v7398 = vmul.f32 %v7397, %v7387
    %v7399 = vadd.f32 %v7395, %v7398
    %v7401 = vcombine.high %v7246, %v7246
    %v7403 = vunpack.c.l.s4 1966171168
    %v7404 = vunpack.c.0.s8 %v7403
    %v7405 = vlaneseq
    %v7406 = vshrl.u32 %v7405, 7
    %v7407 = vsub.s32 %v7404, %v7406
    %v7408 = vrot.slane %v7246, %v7407
    %v7410 = vunpack.c.l.s4 1966171168
    %v7411 = vunpack.c.0.s8 %v7410
    %v7412 = vlaneseq
    %v7413 = vshrl.u32 %v7412, 7
    %v7414 = vsub.s32 %v7411, %v7413
    %v7415 = vrot.slane %v7401, %v7414
    %v7416 = vcombine.high %v7408, %v7408
    %v7417 = vcombine.high %v7415, %v7415
    %v7419 = vunpack.c.l.s4 1966171168
    %v7420 = vunpack.c.0.s8 %v7419
    %v7421 = vlaneseq
    %v7422 = vshrl.u32 %v7421, 7
    %v7423 = vsub.s32 %v7420, %v7422
    %v7424 = vrot.slane %v7408, %v7423
    %v7426 = vunpack.c.l.s4 1966171168
    %v7427 = vunpack.c.0.s8 %v7426
    %v7428 = vlaneseq
    %v7429 = vshrl.u32 %v7428, 7
    %v7430 = vsub.s32 %v7427, %v7429
    %v7431 = vrot.slane %v7415, %v7430
    %v7433 = vunpack.c.l.s4 1966171168
    %v7434 = vunpack.c.0.s8 %v7433
    %v7435 = vlaneseq
    %v7436 = vshrl.u32 %v7435, 7
    %v7437 = vsub.s32 %v7434, %v7436
    %v7438 = vrot.slane %v7416, %v7437
    %v7440 = vunpack.c.l.s4 1966171168
    %v7441 = vunpack.c.0.s8 %v7440
    %v7442 = vlaneseq
    %v7443 = vshrl.u32 %v7442, 7
    %v7444 = vsub.s32 %v7441, %v7443
    %v7445 = vrot.slane %v7417, %v7444
    %v7446 = vcombine.high %v7424, %v7424
    %v7447 = vcombine.high %v7431, %v7431
    %v7448 = vcombine.high %v7438, %v7438
    %v7449 = vcombine.high %v7445, %v7445
    %v7450 = vlaneseq
    %v7451 = vshrl.u32 %v7450, 7
    %v7452 = vsub.s32 0, %v7451
    %v7453 = vrot.slane %v7424, %v7452
    %v7454 = vlaneseq
    %v7455 = vshrl.u32 %v7454, 7
    %v7456 = vsub.s32 0, %v7455
    %v7457 = vrot.slane %v7438, %v7456
    %v7458 = vlaneseq
    %v7459 = vshrl.u32 %v7458, 7
    %v7460 = vsub.s32 0, %v7459
    %v7461 = vrot.slane %v7446, %v7460
    %v7462 = vlaneseq
    %v7463 = vshrl.u32 %v7462, 7
    %v7464 = vsub.s32 0, %v7463
    %v7465 = vrot.slane %v7448, %v7464
    %v7466 = vlaneseq
    %v7467 = vshrl.u32 %v7466, 7
    %v7468 = vsub.s32 0, %v7467
    %v7469 = vrot.slane %v7431, %v7468
    %v7470 = vlaneseq
    %v7471 = vshrl.u32 %v7470, 7
    %v7472 = vsub.s32 0, %v7471
    %v7473 = vrot.slane %v7445, %v7472
    %v7474 = vlaneseq
    %v7475 = vshrl.u32 %v7474, 7
    %v7476 = vsub.s32 0, %v7475
    %v7477 = vrot.slane %v7447, %v7476
    %v7478 = vlaneseq
    %v7479 = vshrl.u32 %v7478, 7
    %v7480 = vsub.s32 0, %v7479
    %v7481 = vrot.slane %v7449, %v7480
    %v7490 = vmul.f32 %v1862, %v7453
    %v7491 = vmul.f32 %v1863, %v7457
    %v7492 = vmul.f32 %v1864, %v7461
    %v7493 = vmul.f32 %v1865, %v7465
    %v7494 = vmul.f32 %v1866, %v7469
    %v7495 = vmul.f32 %v1867, %v7473
    %v7496 = vmul.f32 %v1868, %v7477
    %v7497 = vmul.f32 %v1869, %v7481
    %7498 = vadd.xlane.f32.xlu0 %v7490
    %v7499 = vpop.xlane.xlu0 %7498
    %7500 = vadd.xlane.f32.xlu0 %v7491
    %v7501 = vpop.xlane.xlu0 %7500
    %7502 = vadd.xlane.f32.xlu0 %v7492
    %v7503 = vpop.xlane.xlu0 %7502
    %7504 = vadd.xlane.f32.xlu0 %v7493
    %v7505 = vpop.xlane.xlu0 %7504
    %7506 = vadd.xlane.f32.xlu0 %v7494
    %v7507 = vpop.xlane.xlu0 %7506
    %7508 = vadd.xlane.f32.xlu0 %v7495
    %v7509 = vpop.xlane.xlu0 %7508
    %7510 = vadd.xlane.f32.xlu0 %v7496
    %v7511 = vpop.xlane.xlu0 %7510
    %7512 = vadd.xlane.f32.xlu0 %v7497
    %v7513 = vpop.xlane.xlu0 %7512
    %v7522 = vlaneseq
    %v7523 = vshrl.u32 %v7522, 7
    %v7524 = vsub.s32 %v2128, %v7523
    %v7525 = vrot.slane %v7499, %v7524
    %v7526 = vlaneseq
    %v7527 = vshrl.u32 %v7526, 7
    %v7528 = vsub.s32 %v2128, %v7527
    %v7529 = vrot.slane %v7501, %v7528
    %v7530 = vlaneseq
    %v7531 = vshrl.u32 %v7530, 7
    %v7532 = vsub.s32 %v2128, %v7531
    %v7533 = vrot.slane %v7503, %v7532
    %v7534 = vlaneseq
    %v7535 = vshrl.u32 %v7534, 7
    %v7536 = vsub.s32 %v2128, %v7535
    %v7537 = vrot.slane %v7505, %v7536
    %v7538 = vlaneseq
    %v7539 = vshrl.u32 %v7538, 7
    %v7540 = vsub.s32 %v2128, %v7539
    %v7541 = vrot.slane %v7507, %v7540
    %v7542 = vlaneseq
    %v7543 = vshrl.u32 %v7542, 7
    %v7544 = vsub.s32 %v2128, %v7543
    %v7545 = vrot.slane %v7509, %v7544
    %v7546 = vlaneseq
    %v7547 = vshrl.u32 %v7546, 7
    %v7548 = vsub.s32 %v2128, %v7547
    %v7549 = vrot.slane %v7511, %v7548
    %v7550 = vlaneseq
    %v7551 = vshrl.u32 %v7550, 7
    %v7552 = vsub.s32 %v2128, %v7551
    %v7553 = vrot.slane %v7513, %v7552
    %v7554 = vsel %vm2161, %v7529, %v7525
    %v7555 = vsel %vm2163, %v7533, %v7554
    %v7556 = vsel %vm2165, %v7537, %v7555
    %v7557 = vsel %vm2167, %v7541, %v7556
    %v7558 = vsel %vm2169, %v7545, %v7557
    %v7559 = vsel %vm2171, %v7549, %v7558
    %v7560 = vsel %vm2173, %v7553, %v7559
    %v7562 = vsel %vm156, %v7560, -inf
    %7563 = vmax.xlane.f32.xlu0 %v7562
    %v7564 = vpop.xlane.xlu0 %7563
    %v7566 = vlaneseq
    %v7567 = vshrl.u32 %v7566, 7
    %v7568 = vsub.s32 0, %v7567
    %v7569 = vrot.slane %v7564, %v7568
    %v7570 = vlaneseq
    %v7571 = vshrl.u32 %v7570, 7
    %v7572 = vsub.s32 1, %v7571
    %v7573 = vrot.slane %v7564, %v7572
    %v7574 = vlaneseq
    %v7575 = vshrl.u32 %v7574, 7
    %v7576 = vsub.s32 2, %v7575
    %v7577 = vrot.slane %v7564, %v7576
    %v7578 = vlaneseq
    %v7579 = vshrl.u32 %v7578, 7
    %v7580 = vsub.s32 3, %v7579
    %v7581 = vrot.slane %v7564, %v7580
    %v7582 = vlaneseq
    %v7583 = vshrl.u32 %v7582, 7
    %v7584 = vsub.s32 4, %v7583
    %v7585 = vrot.slane %v7564, %v7584
    %v7586 = vlaneseq
    %v7587 = vshrl.u32 %v7586, 7
    %v7588 = vsub.s32 5, %v7587
    %v7589 = vrot.slane %v7564, %v7588
    %v7590 = vlaneseq
    %v7591 = vshrl.u32 %v7590, 7
    %v7592 = vsub.s32 6, %v7591
    %v7593 = vrot.slane %v7564, %v7592
    %v7594 = vlaneseq
    %v7595 = vshrl.u32 %v7594, 7
    %v7596 = vsub.s32 7, %v7595
    %v7597 = vrot.slane %v7564, %v7596
    %v7606 = vsub.f32 %v7499, %v7569
    %v7607 = vsub.f32 %v7501, %v7573
    %v7608 = vsub.f32 %v7503, %v7577
    %v7609 = vsub.f32 %v7505, %v7581
    %v7610 = vsub.f32 %v7507, %v7585
    %v7611 = vsub.f32 %v7509, %v7589
    %v7612 = vsub.f32 %v7511, %v7593
    %v7613 = vsub.f32 %v7513, %v7597
    %v7614 = vmul.f32 %v7606, 1.442695
    %v7615 = vpow.pop %v7614
    %v7616 = vmul.f32 %v7607, 1.442695
    %v7617 = vpow.pop %v7616
    %v7618 = vmul.f32 %v7608, 1.442695
    %v7619 = vpow.pop %v7618
    %v7620 = vmul.f32 %v7609, 1.442695
    %v7621 = vpow.pop %v7620
    %v7622 = vmul.f32 %v7610, 1.442695
    %v7623 = vpow.pop %v7622
    %v7624 = vmul.f32 %v7611, 1.442695
    %v7625 = vpow.pop %v7624
    %v7626 = vmul.f32 %v7612, 1.442695
    %v7627 = vpow.pop %v7626
    %v7628 = vmul.f32 %v7613, 1.442695
    %v7629 = vpow.pop %v7628
    %7638 = vset.pattern.permute.xlu0 0
    %7639 = vperm.xlu0 %7638, %v7615
    %v7640 = vpop.permute.xlu0 %7639
    %7641 = vset.pattern.permute.xlu0 0
    %7642 = vperm.xlu0 %7641, %v7617
    %v7643 = vpop.permute.xlu0 %7642
    %7644 = vset.pattern.permute.xlu0 0
    %7645 = vperm.xlu0 %7644, %v7619
    %v7646 = vpop.permute.xlu0 %7645
    %7647 = vset.pattern.permute.xlu0 0
    %7648 = vperm.xlu0 %7647, %v7621
    %v7649 = vpop.permute.xlu0 %7648
    %7650 = vset.pattern.permute.xlu0 0
    %7651 = vperm.xlu0 %7650, %v7623
    %v7652 = vpop.permute.xlu0 %7651
    %7653 = vset.pattern.permute.xlu0 0
    %7654 = vperm.xlu0 %7653, %v7625
    %v7655 = vpop.permute.xlu0 %7654
    %7656 = vset.pattern.permute.xlu0 0
    %7657 = vperm.xlu0 %7656, %v7627
    %v7658 = vpop.permute.xlu0 %7657
    %7659 = vset.pattern.permute.xlu0 0
    %7660 = vperm.xlu0 %7659, %v7629
    %v7661 = vpop.permute.xlu0 %7660
    %v7662 = vlaneseq
    %v7663 = vshrl.u32 %v7662, 7
    %v7664 = vsub.s32 %v2128, %v7663
    %v7665 = vrot.slane %v7640, %v7664
    %v7666 = vlaneseq
    %v7667 = vshrl.u32 %v7666, 7
    %v7668 = vsub.s32 %v2128, %v7667
    %v7669 = vrot.slane %v7643, %v7668
    %v7670 = vlaneseq
    %v7671 = vshrl.u32 %v7670, 7
    %v7672 = vsub.s32 %v2128, %v7671
    %v7673 = vrot.slane %v7646, %v7672
    %v7674 = vlaneseq
    %v7675 = vshrl.u32 %v7674, 7
    %v7676 = vsub.s32 %v2128, %v7675
    %v7677 = vrot.slane %v7649, %v7676
    %v7678 = vlaneseq
    %v7679 = vshrl.u32 %v7678, 7
    %v7680 = vsub.s32 %v2128, %v7679
    %v7681 = vrot.slane %v7652, %v7680
    %v7682 = vlaneseq
    %v7683 = vshrl.u32 %v7682, 7
    %v7684 = vsub.s32 %v2128, %v7683
    %v7685 = vrot.slane %v7655, %v7684
    %v7686 = vlaneseq
    %v7687 = vshrl.u32 %v7686, 7
    %v7688 = vsub.s32 %v2128, %v7687
    %v7689 = vrot.slane %v7658, %v7688
    %v7690 = vlaneseq
    %v7691 = vshrl.u32 %v7690, 7
    %v7692 = vsub.s32 %v2128, %v7691
    %v7693 = vrot.slane %v7661, %v7692
    %v7694 = vsel %vm2161, %v7669, %v7665
    %v7695 = vsel %vm2163, %v7673, %v7694
    %v7696 = vsel %vm2165, %v7677, %v7695
    %v7697 = vsel %vm2167, %v7681, %v7696
    %v7698 = vsel %vm2169, %v7685, %v7697
    %v7699 = vsel %vm2171, %v7689, %v7698
    %v7700 = vsel %vm2173, %v7693, %v7699
    %v7702 = vsel %vm156, %v7700, 0.0
    %7703 = vadd.xlane.f32.xlu0 %v7702
    %v7704 = vpop.xlane.xlu0 %7703
    %v7705 = vrcp.pop %v7704
    %v7707 = vlaneseq
    %v7708 = vshrl.u32 %v7707, 7
    %v7709 = vsub.s32 0, %v7708
    %v7710 = vrot.slane %v7705, %v7709
    %v7711 = vlaneseq
    %v7712 = vshrl.u32 %v7711, 7
    %v7713 = vsub.s32 1, %v7712
    %v7714 = vrot.slane %v7705, %v7713
    %v7715 = vlaneseq
    %v7716 = vshrl.u32 %v7715, 7
    %v7717 = vsub.s32 2, %v7716
    %v7718 = vrot.slane %v7705, %v7717
    %v7719 = vlaneseq
    %v7720 = vshrl.u32 %v7719, 7
    %v7721 = vsub.s32 3, %v7720
    %v7722 = vrot.slane %v7705, %v7721
    %v7723 = vlaneseq
    %v7724 = vshrl.u32 %v7723, 7
    %v7725 = vsub.s32 4, %v7724
    %v7726 = vrot.slane %v7705, %v7725
    %v7727 = vlaneseq
    %v7728 = vshrl.u32 %v7727, 7
    %v7729 = vsub.s32 5, %v7728
    %v7730 = vrot.slane %v7705, %v7729
    %v7731 = vlaneseq
    %v7732 = vshrl.u32 %v7731, 7
    %v7733 = vsub.s32 6, %v7732
    %v7734 = vrot.slane %v7705, %v7733
    %v7735 = vlaneseq
    %v7736 = vshrl.u32 %v7735, 7
    %v7737 = vsub.s32 7, %v7736
    %v7738 = vrot.slane %v7705, %v7737
    %v7747 = vmul.f32 %v7615, %v7710
    %v7748 = vmul.f32 %v7617, %v7714
    %v7749 = vmul.f32 %v7619, %v7718
    %v7750 = vmul.f32 %v7621, %v7722
    %v7751 = vmul.f32 %v7623, %v7726
    %v7752 = vmul.f32 %v7625, %v7730
    %v7753 = vmul.f32 %v7627, %v7734
    %v7754 = vmul.f32 %v7629, %v7738
    %7756 = vset.pattern.permute.xlu0 0
    %7757 = vperm.xlu0 %7756, %v7747
    %v7758 = vpop.permute.xlu0 %7757
    %7761 = vset.pattern.permute.xlu0 0
    %7762 = vperm.xlu0 %7761, %v7748
    %v7763 = vpop.permute.xlu0 %7762
    %7766 = vset.pattern.permute.xlu0 0
    %7767 = vperm.xlu0 %7766, %v7749
    %v7768 = vpop.permute.xlu0 %7767
    %7771 = vset.pattern.permute.xlu0 0
    %7772 = vperm.xlu0 %7771, %v7750
    %v7773 = vpop.permute.xlu0 %7772
    %7776 = vset.pattern.permute.xlu0 0
    %7777 = vperm.xlu0 %7776, %v7751
    %v7778 = vpop.permute.xlu0 %7777
    %7781 = vset.pattern.permute.xlu0 0
    %7782 = vperm.xlu0 %7781, %v7752
    %v7783 = vpop.permute.xlu0 %7782
    %7786 = vset.pattern.permute.xlu0 0
    %7787 = vperm.xlu0 %7786, %v7753
    %v7788 = vpop.permute.xlu0 %7787
    %7791 = vset.pattern.permute.xlu0 0
    %7792 = vperm.xlu0 %7791, %v7754
    %v7793 = vpop.permute.xlu0 %7792
    %v7795 = vmul.f32 %v7758, %v1862
    %v7796 = vmul.f32 %v7763, %v1863
    %v7797 = vmul.f32 %v7768, %v1864
    %v7798 = vmul.f32 %v7773, %v1865
    %v7799 = vmul.f32 %v7778, %v1866
    %v7800 = vmul.f32 %v7783, %v1867
    %v7801 = vmul.f32 %v7788, %v1868
    %v7802 = vmul.f32 %v7793, %v1869
    %v7803 = vrot.slane %v7795, 4
    %v7804 = vadd.f32 %v7795, %v7803
    %v7805 = vrot.slane %v7804, 2
    %v7806 = vadd.f32 %v7804, %v7805
    %v7807 = vrot.slane %v7806, 1
    %v7808 = vadd.f32 %v7806, %v7807
    %v7809 = vrot.slane %v7796, 4
    %v7810 = vadd.f32 %v7796, %v7809
    %v7811 = vrot.slane %v7810, 2
    %v7812 = vadd.f32 %v7810, %v7811
    %v7813 = vrot.slane %v7812, 1
    %v7814 = vadd.f32 %v7812, %v7813
    %v7815 = vrot.slane %v7797, 4
    %v7816 = vadd.f32 %v7797, %v7815
    %v7817 = vrot.slane %v7816, 2
    %v7818 = vadd.f32 %v7816, %v7817
    %v7819 = vrot.slane %v7818, 1
    %v7820 = vadd.f32 %v7818, %v7819
    %v7821 = vrot.slane %v7798, 4
    %v7822 = vadd.f32 %v7798, %v7821
    %v7823 = vrot.slane %v7822, 2
    %v7824 = vadd.f32 %v7822, %v7823
    %v7825 = vrot.slane %v7824, 1
    %v7826 = vadd.f32 %v7824, %v7825
    %v7827 = vrot.slane %v7799, 4
    %v7828 = vadd.f32 %v7799, %v7827
    %v7829 = vrot.slane %v7828, 2
    %v7830 = vadd.f32 %v7828, %v7829
    %v7831 = vrot.slane %v7830, 1
    %v7832 = vadd.f32 %v7830, %v7831
    %v7833 = vrot.slane %v7800, 4
    %v7834 = vadd.f32 %v7800, %v7833
    %v7835 = vrot.slane %v7834, 2
    %v7836 = vadd.f32 %v7834, %v7835
    %v7837 = vrot.slane %v7836, 1
    %v7838 = vadd.f32 %v7836, %v7837
    %v7839 = vrot.slane %v7801, 4
    %v7840 = vadd.f32 %v7801, %v7839
    %v7841 = vrot.slane %v7840, 2
    %v7842 = vadd.f32 %v7840, %v7841
    %v7843 = vrot.slane %v7842, 1
    %v7844 = vadd.f32 %v7842, %v7843
    %v7845 = vrot.slane %v7802, 4
    %v7846 = vadd.f32 %v7802, %v7845
    %v7847 = vrot.slane %v7846, 2
    %v7848 = vadd.f32 %v7846, %v7847
    %v7849 = vrot.slane %v7848, 1
    %v7850 = vadd.f32 %v7848, %v7849
    %v7859 = vsel %vm2161, %v7814, %v7808
    %v7860 = vsel %vm2163, %v7820, %v7859
    %v7861 = vsel %vm2165, %v7826, %v7860
    %v7862 = vsel %vm2167, %v7832, %v7861
    %v7863 = vsel %vm2169, %v7838, %v7862
    %v7864 = vsel %vm2171, %v7844, %v7863
    %v7865 = vsel %vm2173, %v7850, %v7864
    %7867 = vmatprep.subr.mxu0 %v1874
    %7868 = vmatpush1.msra.mxu0 %v1873
    %7869 = vmatprep.subr.mxu0 %v1877
    %7870 = vmatpush1.msra.mxu0 %v1876
    %7871 = vmatprep.subr.mxu0 %v1880
    %7872 = vmatpush1.msra.mxu0 %v1879
    %7873 = vmatprep.subr.mxu0 %v1883
    %7874 = vmatpush1.msra.mxu0 %v1882
    %7875 = vmatprep.subr.mxu0 %v1886
    %7876 = vmatpush1.msra.mxu0 %v1885
    %7877 = vmatprep.subr.mxu0 %v1889
    %7878 = vmatpush1.msra.mxu0 %v1888
    %7879 = vmatprep.subr.mxu0 %v1892
    %7880 = vmatpush1.msra.mxu0 %v1891
    %7881 = vmatprep.subr.mxu0 %v1895
    %7882 = vmatpush1.msra.mxu0 %v1894
    %7883 = vmatprep.subr.mxu0 %v1898
    %7884 = vmatpush1.msra.mxu0 %v1897
    %7885 = vmatprep.subr.mxu0 %v1901
    %7886 = vmatpush1.msra.mxu0 %v1900
    %7887 = vmatprep.subr.mxu0 %v1904
    %7888 = vmatpush1.msra.mxu0 %v1903
    %7889 = vmatprep.subr.mxu0 %v1907
    %7890 = vmatpush1.msra.mxu0 %v1906
    %7891 = vmatprep.subr.mxu0 %v1910
    %7892 = vmatpush1.msra.mxu0 %v1909
    %7893 = vmatprep.subr.mxu0 %v1913
    %7894 = vmatpush1.msra.mxu0 %v1912
    %7895 = vmatprep.subr.mxu0 %v1916
    %7896 = vmatpush1.msra.mxu0 %v1915
    %7897 = vmatprep.subr.mxu0 %v1919
    %7898 = vmatpush1.msra.mxu0 %v1918
    %7899 = vmatprep.subr.mxu0 0.0
    %7900 = vmatpush1.msra.mxu0 0.0
    %7901 = vmatprep.subr.mxu0 0.0
    %7902 = vmatpush1.msra.mxu0 0.0
    %7903 = vmatprep.subr.mxu0 0.0
    %7904 = vmatpush1.msra.mxu0 0.0
    %7905 = vmatprep.subr.mxu0 0.0
    %7906 = vmatpush1.msra.mxu0 0.0
    %7907 = vmatprep.subr.mxu0 0.0
    %7908 = vmatpush1.msra.mxu0 0.0
    %7909 = vmatprep.subr.mxu0 0.0
    %7910 = vmatpush1.msra.mxu0 0.0
    %7911 = vmatprep.subr.mxu0 0.0
    %7912 = vmatpush1.msra.mxu0 0.0
    %7913 = vmatprep.subr.mxu0 0.0
    %7914 = vmatpush1.msra.mxu0 0.0
    %7915 = vmatprep.subr.mxu0 0.0
    %7916 = vmatpush1.msra.mxu0 0.0
    %7917 = vmatprep.subr.mxu0 0.0
    %7918 = vmatpush1.msra.mxu0 0.0
    %7919 = vmatprep.subr.mxu0 0.0
    %7920 = vmatpush1.msra.mxu0 0.0
    %7921 = vmatprep.subr.mxu0 0.0
    %7922 = vmatpush1.msra.mxu0 0.0
    %7923 = vmatprep.subr.mxu0 0.0
    %7924 = vmatpush1.msra.mxu0 0.0
    %7925 = vmatprep.subr.mxu0 0.0
    %7926 = vmatpush1.msra.mxu0 0.0
    %7927 = vmatprep.subr.mxu0 0.0
    %7928 = vmatpush1.msra.mxu0 0.0
    %7929 = vmatprep.subr.mxu0 0.0
    %7930 = vmatpush1.msra.mxu0 0.0
    %7931 = vmatprep.mubr.f32.mxu0 0.0
    %7932 = vmatmul.mubr.f32.gmra.mrb[0].mxu0 %v7865
    %v7933 = vpop.f32.mrb[0].mxu0
    %v7934 = vadd.f32 0.0, %v7933
    %v7935 = vpop.f32.mrb[0].mxu0
    %v7936 = vadd.f32 0.0, %v7935
    %7937 = vdwg.mxu0
    %7938 = vmatprep.subr.mxu0 0.0
    %7939 = vmatpush1.msra.mxu0 %v1875
    %7940 = vmatprep.subr.mxu0 0.0
    %7941 = vmatpush1.msra.mxu0 %v1878
    %7942 = vmatprep.subr.mxu0 0.0
    %7943 = vmatpush1.msra.mxu0 %v1881
    %7944 = vmatprep.subr.mxu0 0.0
    %7945 = vmatpush1.msra.mxu0 %v1884
    %7946 = vmatprep.subr.mxu0 0.0
    %7947 = vmatpush1.msra.mxu0 %v1887
    %7948 = vmatprep.subr.mxu0 0.0
    %7949 = vmatpush1.msra.mxu0 %v1890
    %7950 = vmatprep.subr.mxu0 0.0
    %7951 = vmatpush1.msra.mxu0 %v1893
    %7952 = vmatprep.subr.mxu0 0.0
    %7953 = vmatpush1.msra.mxu0 %v1896
    %7954 = vmatprep.subr.mxu0 0.0
    %7955 = vmatpush1.msra.mxu0 %v1899
    %7956 = vmatprep.subr.mxu0 0.0
    %7957 = vmatpush1.msra.mxu0 %v1902
    %7958 = vmatprep.subr.mxu0 0.0
    %7959 = vmatpush1.msra.mxu0 %v1905
    %7960 = vmatprep.subr.mxu0 0.0
    %7961 = vmatpush1.msra.mxu0 %v1908
    %7962 = vmatprep.subr.mxu0 0.0
    %7963 = vmatpush1.msra.mxu0 %v1911
    %7964 = vmatprep.subr.mxu0 0.0
    %7965 = vmatpush1.msra.mxu0 %v1914
    %7966 = vmatprep.subr.mxu0 0.0
    %7967 = vmatpush1.msra.mxu0 %v1917
    %7968 = vmatprep.subr.mxu0 0.0
    %7969 = vmatpush1.msra.mxu0 %v1920
    %7970 = vmatprep.subr.mxu0 0.0
    %7971 = vmatpush1.msra.mxu0 0.0
    %7972 = vmatprep.subr.mxu0 0.0
    %7973 = vmatpush1.msra.mxu0 0.0
    %7974 = vmatprep.subr.mxu0 0.0
    %7975 = vmatpush1.msra.mxu0 0.0
    %7976 = vmatprep.subr.mxu0 0.0
    %7977 = vmatpush1.msra.mxu0 0.0
    %7978 = vmatprep.subr.mxu0 0.0
    %7979 = vmatpush1.msra.mxu0 0.0
    %7980 = vmatprep.subr.mxu0 0.0
    %7981 = vmatpush1.msra.mxu0 0.0
    %7982 = vmatprep.subr.mxu0 0.0
    %7983 = vmatpush1.msra.mxu0 0.0
    %7984 = vmatprep.subr.mxu0 0.0
    %7985 = vmatpush1.msra.mxu0 0.0
    %7986 = vmatprep.subr.mxu0 0.0
    %7987 = vmatpush1.msra.mxu0 0.0
    %7988 = vmatprep.subr.mxu0 0.0
    %7989 = vmatpush1.msra.mxu0 0.0
    %7990 = vmatprep.subr.mxu0 0.0
    %7991 = vmatpush1.msra.mxu0 0.0
    %7992 = vmatprep.subr.mxu0 0.0
    %7993 = vmatpush1.msra.mxu0 0.0
    %7994 = vmatprep.subr.mxu0 0.0
    %7995 = vmatpush1.msra.mxu0 0.0
    %7996 = vmatprep.subr.mxu0 0.0
    %7997 = vmatpush1.msra.mxu0 0.0
    %7998 = vmatprep.subr.mxu0 0.0
    %7999 = vmatpush1.msra.mxu0 0.0
    %8000 = vmatprep.subr.mxu0 0.0
    %8001 = vmatpush1.msra.mxu0 0.0
    %8002 = vmatprep.mubr.f32.mxu0 0.0
    %8003 = vmatmul.mubr.f32.gmra.mrb[0].mxu0 %v7865
    %v8004 = vpop.f32.mrb[0].mxu0
    %v8005 = vadd.f32 0.0, %v8004
    %v8006 = vpop.f32.mrb[0].mxu0
    %8007 = vdwg.mxu0
    %v8009 = vsel %vm156, %v7399, 0
    %8011 = vmatprep.subr.mxu0 %v1871
    %8012 = vmatpush1.msra.mxu0 %v1870
    %8013 = vmatprep.subr.mxu0 0.0
    %8014 = vmatpush1.msra.mxu0 0.0
    %8015 = vmatprep.subr.mxu0 0.0
    %8016 = vmatpush1.msra.mxu0 0.0
    %8017 = vmatprep.subr.mxu0 0.0
    %8018 = vmatpush1.msra.mxu0 0.0
    %8019 = vmatprep.subr.mxu0 0.0
    %8020 = vmatpush1.msra.mxu0 0.0
    %8021 = vmatprep.subr.mxu0 0.0
    %8022 = vmatpush1.msra.mxu0 0.0
    %8023 = vmatprep.subr.mxu0 0.0
    %8024 = vmatpush1.msra.mxu0 0.0
    %8025 = vmatprep.subr.mxu0 0.0
    %8026 = vmatpush1.msra.mxu0 0.0
    %8027 = vmatprep.subr.mxu0 0.0
    %8028 = vmatpush1.msra.mxu0 0.0
    %8029 = vmatprep.subr.mxu0 0.0
    %8030 = vmatpush1.msra.mxu0 0.0
    %8031 = vmatprep.subr.mxu0 0.0
    %8032 = vmatpush1.msra.mxu0 0.0
    %8033 = vmatprep.subr.mxu0 0.0
    %8034 = vmatpush1.msra.mxu0 0.0
    %8035 = vmatprep.subr.mxu0 0.0
    %8036 = vmatpush1.msra.mxu0 0.0
    %8037 = vmatprep.subr.mxu0 0.0
    %8038 = vmatpush1.msra.mxu0 0.0
    %8039 = vmatprep.subr.mxu0 0.0
    %8040 = vmatpush1.msra.mxu0 0.0
    %8041 = vmatprep.subr.mxu0 0.0
    %8042 = vmatpush1.msra.mxu0 0.0
    %8043 = vmatprep.subr.mxu0 0.0
    %8044 = vmatpush1.msra.mxu0 0.0
    %8045 = vmatprep.subr.mxu0 0.0
    %8046 = vmatpush1.msra.mxu0 0.0
    %8047 = vmatprep.subr.mxu0 0.0
    %8048 = vmatpush1.msra.mxu0 0.0
    %8049 = vmatprep.subr.mxu0 0.0
    %8050 = vmatpush1.msra.mxu0 0.0
    %8051 = vmatprep.subr.mxu0 0.0
    %8052 = vmatpush1.msra.mxu0 0.0
    %8053 = vmatprep.subr.mxu0 0.0
    %8054 = vmatpush1.msra.mxu0 0.0
    %8055 = vmatprep.subr.mxu0 0.0
    %8056 = vmatpush1.msra.mxu0 0.0
    %8057 = vmatprep.subr.mxu0 0.0
    %8058 = vmatpush1.msra.mxu0 0.0
    %8059 = vmatprep.subr.mxu0 0.0
    %8060 = vmatpush1.msra.mxu0 0.0
    %8061 = vmatprep.subr.mxu0 0.0
    %8062 = vmatpush1.msra.mxu0 0.0
    %8063 = vmatprep.subr.mxu0 0.0
    %8064 = vmatpush1.msra.mxu0 0.0
    %8065 = vmatprep.subr.mxu0 0.0
    %8066 = vmatpush1.msra.mxu0 0.0
    %8067 = vmatprep.subr.mxu0 0.0
    %8068 = vmatpush1.msra.mxu0 0.0
    %8069 = vmatprep.subr.mxu0 0.0
    %8070 = vmatpush1.msra.mxu0 0.0
    %8071 = vmatprep.subr.mxu0 0.0
    %8072 = vmatpush1.msra.mxu0 0.0
    %8073 = vmatprep.subr.mxu0 0.0
    %8074 = vmatpush1.msra.mxu0 0.0
    %8075 = vmatprep.mubr.f32.mxu0 0.0
    %8076 = vmatmul.mubr.f32.gmra.mrb[0].mxu0 %v8009
    %v8077 = vpop.f32.mrb[0].mxu0
    %v8078 = vadd.f32 %v7934, %v8077
    %v8079 = vpop.f32.mrb[0].mxu0
    %v8080 = vadd.f32 %v7936, %v8079
    %8081 = vdwg.mxu0
    %8082 = vmatprep.subr.mxu0 0.0
    %8083 = vmatpush1.msra.mxu0 %v1872
    %8084 = vmatprep.subr.mxu0 0.0
    %8085 = vmatpush1.msra.mxu0 0.0
    %8086 = vmatprep.subr.mxu0 0.0
    %8087 = vmatpush1.msra.mxu0 0.0
    %8088 = vmatprep.subr.mxu0 0.0
    %8089 = vmatpush1.msra.mxu0 0.0
    %8090 = vmatprep.subr.mxu0 0.0
    %8091 = vmatpush1.msra.mxu0 0.0
    %8092 = vmatprep.subr.mxu0 0.0
    %8093 = vmatpush1.msra.mxu0 0.0
    %8094 = vmatprep.subr.mxu0 0.0
    %8095 = vmatpush1.msra.mxu0 0.0
    %8096 = vmatprep.subr.mxu0 0.0
    %8097 = vmatpush1.msra.mxu0 0.0
    %8098 = vmatprep.subr.mxu0 0.0
    %8099 = vmatpush1.msra.mxu0 0.0
    %8100 = vmatprep.subr.mxu0 0.0
    %8101 = vmatpush1.msra.mxu0 0.0
    %8102 = vmatprep.subr.mxu0 0.0
    %8103 = vmatpush1.msra.mxu0 0.0
    %8104 = vmatprep.subr.mxu0 0.0
    %8105 = vmatpush1.msra.mxu0 0.0
    %8106 = vmatprep.subr.mxu0 0.0
    %8107 = vmatpush1.msra.mxu0 0.0
    %8108 = vmatprep.subr.mxu0 0.0
    %8109 = vmatpush1.msra.mxu0 0.0
    %8110 = vmatprep.subr.mxu0 0.0
    %8111 = vmatpush1.msra.mxu0 0.0
    %8112 = vmatprep.subr.mxu0 0.0
    %8113 = vmatpush1.msra.mxu0 0.0
    %8114 = vmatprep.subr.mxu0 0.0
    %8115 = vmatpush1.msra.mxu0 0.0
    %8116 = vmatprep.subr.mxu0 0.0
    %8117 = vmatpush1.msra.mxu0 0.0
    %8118 = vmatprep.subr.mxu0 0.0
    %8119 = vmatpush1.msra.mxu0 0.0
    %8120 = vmatprep.subr.mxu0 0.0
    %8121 = vmatpush1.msra.mxu0 0.0
    %8122 = vmatprep.subr.mxu0 0.0
    %8123 = vmatpush1.msra.mxu0 0.0
    %8124 = vmatprep.subr.mxu0 0.0
    %8125 = vmatpush1.msra.mxu0 0.0
    %8126 = vmatprep.subr.mxu0 0.0
    %8127 = vmatpush1.msra.mxu0 0.0
    %8128 = vmatprep.subr.mxu0 0.0
    %8129 = vmatpush1.msra.mxu0 0.0
    %8130 = vmatprep.subr.mxu0 0.0
    %8131 = vmatpush1.msra.mxu0 0.0
    %8132 = vmatprep.subr.mxu0 0.0
    %8133 = vmatpush1.msra.mxu0 0.0
    %8134 = vmatprep.subr.mxu0 0.0
    %8135 = vmatpush1.msra.mxu0 0.0
    %8136 = vmatprep.subr.mxu0 0.0
    %8137 = vmatpush1.msra.mxu0 0.0
    %8138 = vmatprep.subr.mxu0 0.0
    %8139 = vmatpush1.msra.mxu0 0.0
    %8140 = vmatprep.subr.mxu0 0.0
    %8141 = vmatpush1.msra.mxu0 0.0
    %8142 = vmatprep.subr.mxu0 0.0
    %8143 = vmatpush1.msra.mxu0 0.0
    %8144 = vmatprep.subr.mxu0 0.0
    %8145 = vmatpush1.msra.mxu0 0.0
    %8146 = vmatprep.mubr.f32.mxu0 0.0
    %8147 = vmatmul.mubr.f32.gmra.mrb[0].mxu0 %v8009
    %v8148 = vpop.f32.mrb[0].mxu0
    %v8149 = vadd.f32 %v8005, %v8148
    %v8150 = vpop.f32.mrb[0].mxu0
    %8151 = vdwg.mxu0
    %v8152 = vadd.f32 %v8078, %v2770
    %v8153 = vadd.f32 %v8080, %v2774
    %v8154 = vadd.f32 %v8149, %v2778
    %8155 = vmatprep.subr.mxu0 %v1922
    %8156 = vmatpush1.msra.mxu0 %v1921
    %8157 = vmatprep.subr.mxu0 %v1925
    %8158 = vmatpush1.msra.mxu0 %v1924
    %8159 = vmatprep.subr.mxu0 %v1928
    %8160 = vmatpush1.msra.mxu0 %v1927
    %8161 = vmatprep.subr.mxu0 %v1931
    %8162 = vmatpush1.msra.mxu0 %v1930
    %8163 = vmatprep.subr.mxu0 %v1934
    %8164 = vmatpush1.msra.mxu0 %v1933
    %8165 = vmatprep.subr.mxu0 %v1937
    %8166 = vmatpush1.msra.mxu0 %v1936
    %8167 = vmatprep.subr.mxu0 %v1940
    %8168 = vmatpush1.msra.mxu0 %v1939
    %8169 = vmatprep.subr.mxu0 %v1943
    %8170 = vmatpush1.msra.mxu0 %v1942
    %8171 = vmatprep.subr.mxu0 %v1946
    %8172 = vmatpush1.msra.mxu0 %v1945
    %8173 = vmatprep.subr.mxu0 %v1949
    %8174 = vmatpush1.msra.mxu0 %v1948
    %8175 = vmatprep.subr.mxu0 %v1952
    %8176 = vmatpush1.msra.mxu0 %v1951
    %8177 = vmatprep.subr.mxu0 %v1955
    %8178 = vmatpush1.msra.mxu0 %v1954
    %8179 = vmatprep.subr.mxu0 %v1958
    %8180 = vmatpush1.msra.mxu0 %v1957
    %8181 = vmatprep.subr.mxu0 %v1961
    %8182 = vmatpush1.msra.mxu0 %v1960
    %8183 = vmatprep.subr.mxu0 %v1964
    %8184 = vmatpush1.msra.mxu0 %v1963
    %8185 = vmatprep.subr.mxu0 %v1967
    %8186 = vmatpush1.msra.mxu0 %v1966
    %8187 = vmatprep.subr.mxu0 0.0
    %8188 = vmatpush1.msra.mxu0 0.0
    %8189 = vmatprep.subr.mxu0 0.0
    %8190 = vmatpush1.msra.mxu0 0.0
    %8191 = vmatprep.subr.mxu0 0.0
    %8192 = vmatpush1.msra.mxu0 0.0
    %8193 = vmatprep.subr.mxu0 0.0
    %8194 = vmatpush1.msra.mxu0 0.0
    %8195 = vmatprep.subr.mxu0 0.0
    %8196 = vmatpush1.msra.mxu0 0.0
    %8197 = vmatprep.subr.mxu0 0.0
    %8198 = vmatpush1.msra.mxu0 0.0
    %8199 = vmatprep.subr.mxu0 0.0
    %8200 = vmatpush1.msra.mxu0 0.0
    %8201 = vmatprep.subr.mxu0 0.0
    %8202 = vmatpush1.msra.mxu0 0.0
    %8203 = vmatprep.subr.mxu0 0.0
    %8204 = vmatpush1.msra.mxu0 0.0
    %8205 = vmatprep.subr.mxu0 0.0
    %8206 = vmatpush1.msra.mxu0 0.0
    %8207 = vmatprep.subr.mxu0 0.0
    %8208 = vmatpush1.msra.mxu0 0.0
    %8209 = vmatprep.subr.mxu0 0.0
    %8210 = vmatpush1.msra.mxu0 0.0
    %8211 = vmatprep.subr.mxu0 0.0
    %8212 = vmatpush1.msra.mxu0 0.0
    %8213 = vmatprep.subr.mxu0 0.0
    %8214 = vmatpush1.msra.mxu0 0.0
    %8215 = vmatprep.subr.mxu0 0.0
    %8216 = vmatpush1.msra.mxu0 0.0
    %8217 = vmatprep.subr.mxu0 0.0
    %8218 = vmatpush1.msra.mxu0 0.0
    %8219 = vmatprep.mubr.f32.mxu0 0.0
    %8220 = vmatmul.mubr.f32.gmra.mrb[0].mxu0 %v7246
    %v8221 = vpop.f32.mrb[0].mxu0
    %v8222 = vadd.f32 %v2789, %v8221
    %v8223 = vpop.f32.mrb[0].mxu0
    %v8224 = vadd.f32 %v2793, %v8223
    %8225 = vdwg.mxu0
    %8226 = vmatprep.subr.mxu0 0.0
    %8227 = vmatpush1.msra.mxu0 %v1923
    %8228 = vmatprep.subr.mxu0 0.0
    %8229 = vmatpush1.msra.mxu0 %v1926
    %8230 = vmatprep.subr.mxu0 0.0
    %8231 = vmatpush1.msra.mxu0 %v1929
    %8232 = vmatprep.subr.mxu0 0.0
    %8233 = vmatpush1.msra.mxu0 %v1932
    %8234 = vmatprep.subr.mxu0 0.0
    %8235 = vmatpush1.msra.mxu0 %v1935
    %8236 = vmatprep.subr.mxu0 0.0
    %8237 = vmatpush1.msra.mxu0 %v1938
    %8238 = vmatprep.subr.mxu0 0.0
    %8239 = vmatpush1.msra.mxu0 %v1941
    %8240 = vmatprep.subr.mxu0 0.0
    %8241 = vmatpush1.msra.mxu0 %v1944
    %8242 = vmatprep.subr.mxu0 0.0
    %8243 = vmatpush1.msra.mxu0 %v1947
    %8244 = vmatprep.subr.mxu0 0.0
    %8245 = vmatpush1.msra.mxu0 %v1950
    %8246 = vmatprep.subr.mxu0 0.0
    %8247 = vmatpush1.msra.mxu0 %v1953
    %8248 = vmatprep.subr.mxu0 0.0
    %8249 = vmatpush1.msra.mxu0 %v1956
    %8250 = vmatprep.subr.mxu0 0.0
    %8251 = vmatpush1.msra.mxu0 %v1959
    %8252 = vmatprep.subr.mxu0 0.0
    %8253 = vmatpush1.msra.mxu0 %v1962
    %8254 = vmatprep.subr.mxu0 0.0
    %8255 = vmatpush1.msra.mxu0 %v1965
    %8256 = vmatprep.subr.mxu0 0.0
    %8257 = vmatpush1.msra.mxu0 %v1968
    %8258 = vmatprep.subr.mxu0 0.0
    %8259 = vmatpush1.msra.mxu0 0.0
    %8260 = vmatprep.subr.mxu0 0.0
    %8261 = vmatpush1.msra.mxu0 0.0
    %8262 = vmatprep.subr.mxu0 0.0
    %8263 = vmatpush1.msra.mxu0 0.0
    %8264 = vmatprep.subr.mxu0 0.0
    %8265 = vmatpush1.msra.mxu0 0.0
    %8266 = vmatprep.subr.mxu0 0.0
    %8267 = vmatpush1.msra.mxu0 0.0
    %8268 = vmatprep.subr.mxu0 0.0
    %8269 = vmatpush1.msra.mxu0 0.0
    %8270 = vmatprep.subr.mxu0 0.0
    %8271 = vmatpush1.msra.mxu0 0.0
    %8272 = vmatprep.subr.mxu0 0.0
    %8273 = vmatpush1.msra.mxu0 0.0
    %8274 = vmatprep.subr.mxu0 0.0
    %8275 = vmatpush1.msra.mxu0 0.0
    %8276 = vmatprep.subr.mxu0 0.0
    %8277 = vmatpush1.msra.mxu0 0.0
    %8278 = vmatprep.subr.mxu0 0.0
    %8279 = vmatpush1.msra.mxu0 0.0
    %8280 = vmatprep.subr.mxu0 0.0
    %8281 = vmatpush1.msra.mxu0 0.0
    %8282 = vmatprep.subr.mxu0 0.0
    %8283 = vmatpush1.msra.mxu0 0.0
    %8284 = vmatprep.subr.mxu0 0.0
    %8285 = vmatpush1.msra.mxu0 0.0
    %8286 = vmatprep.subr.mxu0 0.0
    %8287 = vmatpush1.msra.mxu0 0.0
    %8288 = vmatprep.subr.mxu0 0.0
    %8289 = vmatpush1.msra.mxu0 0.0
    %8290 = vmatprep.mubr.f32.mxu0 0.0
    %8291 = vmatmul.mubr.f32.gmra.mrb[0].mxu0 %v7246
    %v8292 = vpop.f32.mrb[0].mxu0
    %v8293 = vadd.f32 %v2797, %v8292
    %v8294 = vpop.f32.mrb[0].mxu0
    %8295 = vdwg.mxu0
    %v8296 = vadd.f32 %v8152, %v8222
    %v8297 = vxor.u32 %v8296, 2147483648
    %v8298 = vmul.f32 %v8297, 1.442695
    %v8299 = vpow.pop %v8298
    %v8300 = vadd.f32 %v8299, 1.0
    %v8301 = vrcp.pop %v8300
    %v8302 = vmul.f32 1.0, %v8301
    %v8303 = vadd.f32 %v8153, %v8224
    %v8304 = vxor.u32 %v8303, 2147483648
    %v8305 = vmul.f32 %v8304, 1.442695
    %v8306 = vpow.pop %v8305
    %v8307 = vadd.f32 %v8306, 1.0
    %v8308 = vrcp.pop %v8307
    %v8309 = vmul.f32 1.0, %v8308
    %v8310 = vmul.f32 %v8302, %v8293
    %v8311 = vadd.f32 %v8154, %v8310
    %v8312 = vtanh.pop %v8311
    %v8313 = vsub.f32 1.0, %v8309
    %v8314 = vmul.f32 %v8313, %v8312
    %v8315 = vmul.f32 %v8309, %v7246
    %v8316 = vadd.f32 %v8314, %v8315
    %8317 = vmatprep.subr.mxu0 0.0
    %8318 = vmatpush1.msra.mxu0 %v1987
    %8319 = vmatprep.subr.mxu0 0.0
    %8320 = vmatpush1.msra.mxu0 %v1988
    %8321 = vmatprep.subr.mxu0 0.0
    %8322 = vmatpush1.msra.mxu0 %v1989
    %8323 = vmatprep.subr.mxu0 0.0
    %8324 = vmatpush1.msra.mxu0 %v1990
    %8325 = vmatprep.subr.mxu0 0.0
    %8326 = vmatpush1.msra.mxu0 %v1991
    %8327 = vmatprep.subr.mxu0 0.0
    %8328 = vmatpush1.msra.mxu0 %v1992
    %8329 = vmatprep.subr.mxu0 0.0
    %8330 = vmatpush1.msra.mxu0 %v1993
    %8331 = vmatprep.subr.mxu0 0.0
    %8332 = vmatpush1.msra.mxu0 %v1994
    %8333 = vmatprep.subr.mxu0 0.0
    %8334 = vmatpush1.msra.mxu0 %v1995
    %8335 = vmatprep.subr.mxu0 0.0
    %8336 = vmatpush1.msra.mxu0 %v1996
    %8337 = vmatprep.subr.mxu0 0.0
    %8338 = vmatpush1.msra.mxu0 %v1997
    %8339 = vmatprep.subr.mxu0 0.0
    %8340 = vmatpush1.msra.mxu0 %v1998
    %8341 = vmatprep.subr.mxu0 0.0
    %8342 = vmatpush1.msra.mxu0 %v1999
    %8343 = vmatprep.subr.mxu0 0.0
    %8344 = vmatpush1.msra.mxu0 %v2000
    %8345 = vmatprep.subr.mxu0 0.0
    %8346 = vmatpush1.msra.mxu0 %v2001
    %8347 = vmatprep.subr.mxu0 0.0
    %8348 = vmatpush1.msra.mxu0 %v2002
    %8349 = vmatprep.subr.mxu0 0.0
    %8350 = vmatpush1.msra.mxu0 0.0
    %8351 = vmatprep.subr.mxu0 0.0
    %8352 = vmatpush1.msra.mxu0 0.0
    %8353 = vmatprep.subr.mxu0 0.0
    %8354 = vmatpush1.msra.mxu0 0.0
    %8355 = vmatprep.subr.mxu0 0.0
    %8356 = vmatpush1.msra.mxu0 0.0
    %8357 = vmatprep.subr.mxu0 0.0
    %8358 = vmatpush1.msra.mxu0 0.0
    %8359 = vmatprep.subr.mxu0 0.0
    %8360 = vmatpush1.msra.mxu0 0.0
    %8361 = vmatprep.subr.mxu0 0.0
    %8362 = vmatpush1.msra.mxu0 0.0
    %8363 = vmatprep.subr.mxu0 0.0
    %8364 = vmatpush1.msra.mxu0 0.0
    %8365 = vmatprep.subr.mxu0 0.0
    %8366 = vmatpush1.msra.mxu0 0.0
    %8367 = vmatprep.subr.mxu0 0.0
    %8368 = vmatpush1.msra.mxu0 0.0
    %8369 = vmatprep.subr.mxu0 0.0
    %8370 = vmatpush1.msra.mxu0 0.0
    %8371 = vmatprep.subr.mxu0 0.0
    %8372 = vmatpush1.msra.mxu0 0.0
    %8373 = vmatprep.subr.mxu0 0.0
    %8374 = vmatpush1.msra.mxu0 0.0
    %8375 = vmatprep.subr.mxu0 0.0
    %8376 = vmatpush1.msra.mxu0 0.0
    %8377 = vmatprep.subr.mxu0 0.0
    %8378 = vmatpush1.msra.mxu0 0.0
    %8379 = vmatprep.subr.mxu0 0.0
    %8380 = vmatpush1.msra.mxu0 0.0
    %8381 = vmatprep.mubr.f32.mxu0 0.0
    %8382 = vmatmul.mubr.f32.gmra.mrb[0].mxu0 %v7865
    %v8383 = vpop.f32.mrb[0].mxu0
    %v8384 = vadd.f32 0.0, %v8383
    %v8385 = vpop.f32.mrb[0].mxu0
    %8386 = vdwg.mxu0
    %8387 = vmatprep.subr.mxu0 0.0
    %8388 = vmatpush1.msra.mxu0 %v1971
    %8389 = vmatprep.subr.mxu0 0.0
    %8390 = vmatpush1.msra.mxu0 %v1972
    %8391 = vmatprep.subr.mxu0 0.0
    %8392 = vmatpush1.msra.mxu0 %v1973
    %8393 = vmatprep.subr.mxu0 0.0
    %8394 = vmatpush1.msra.mxu0 %v1974
    %8395 = vmatprep.subr.mxu0 0.0
    %8396 = vmatpush1.msra.mxu0 %v1975
    %8397 = vmatprep.subr.mxu0 0.0
    %8398 = vmatpush1.msra.mxu0 %v1976
    %8399 = vmatprep.subr.mxu0 0.0
    %8400 = vmatpush1.msra.mxu0 %v1977
    %8401 = vmatprep.subr.mxu0 0.0
    %8402 = vmatpush1.msra.mxu0 %v1978
    %8403 = vmatprep.subr.mxu0 0.0
    %8404 = vmatpush1.msra.mxu0 %v1979
    %8405 = vmatprep.subr.mxu0 0.0
    %8406 = vmatpush1.msra.mxu0 %v1980
    %8407 = vmatprep.subr.mxu0 0.0
    %8408 = vmatpush1.msra.mxu0 %v1981
    %8409 = vmatprep.subr.mxu0 0.0
    %8410 = vmatpush1.msra.mxu0 %v1982
    %8411 = vmatprep.subr.mxu0 0.0
    %8412 = vmatpush1.msra.mxu0 %v1983
    %8413 = vmatprep.subr.mxu0 0.0
    %8414 = vmatpush1.msra.mxu0 %v1984
    %8415 = vmatprep.subr.mxu0 0.0
    %8416 = vmatpush1.msra.mxu0 %v1985
    %8417 = vmatprep.subr.mxu0 0.0
    %8418 = vmatpush1.msra.mxu0 %v1986
    %8419 = vmatprep.subr.mxu0 0.0
    %8420 = vmatpush1.msra.mxu0 0.0
    %8421 = vmatprep.subr.mxu0 0.0
    %8422 = vmatpush1.msra.mxu0 0.0
    %8423 = vmatprep.subr.mxu0 0.0
    %8424 = vmatpush1.msra.mxu0 0.0
    %8425 = vmatprep.subr.mxu0 0.0
    %8426 = vmatpush1.msra.mxu0 0.0
    %8427 = vmatprep.subr.mxu0 0.0
    %8428 = vmatpush1.msra.mxu0 0.0
    %8429 = vmatprep.subr.mxu0 0.0
    %8430 = vmatpush1.msra.mxu0 0.0
    %8431 = vmatprep.subr.mxu0 0.0
    %8432 = vmatpush1.msra.mxu0 0.0
    %8433 = vmatprep.subr.mxu0 0.0
    %8434 = vmatpush1.msra.mxu0 0.0
    %8435 = vmatprep.subr.mxu0 0.0
    %8436 = vmatpush1.msra.mxu0 0.0
    %8437 = vmatprep.subr.mxu0 0.0
    %8438 = vmatpush1.msra.mxu0 0.0
    %8439 = vmatprep.subr.mxu0 0.0
    %8440 = vmatpush1.msra.mxu0 0.0
    %8441 = vmatprep.subr.mxu0 0.0
    %8442 = vmatpush1.msra.mxu0 0.0
    %8443 = vmatprep.subr.mxu0 0.0
    %8444 = vmatpush1.msra.mxu0 0.0
    %8445 = vmatprep.subr.mxu0 0.0
    %8446 = vmatpush1.msra.mxu0 0.0
    %8447 = vmatprep.subr.mxu0 0.0
    %8448 = vmatpush1.msra.mxu0 0.0
    %8449 = vmatprep.subr.mxu0 0.0
    %8450 = vmatpush1.msra.mxu0 0.0
    %8451 = vmatprep.mubr.f32.mxu0 0.0
    %8452 = vmatmul.mubr.f32.gmra.mrb[0].mxu0 %v8316
    %v8453 = vpop.f32.mrb[0].mxu0
    %v8454 = vadd.f32 %v8384, %v8453
    %v8455 = vpop.f32.mrb[0].mxu0
    %8456 = vdwg.mxu0
    %v8457 = vadd.f32 %v8454, %v3107
    %s8458 = scalar_lea.vmem [#allocation8], 40
    %8459 = vst [vmem:[%s8458] sm:$0xff] %v8457
    %s8460 = sld [smem:[#allocation3 + $0x5]]
    %s8461 = scvt.s32.f32 %s8460
    %s8462 = scalar_lea.vmem %s2, 40
    %v8463 = vld [vmem:[%s8462] sm:$0xff]
    %v8464 = vstv %s8461
    %v8465 = vmul.f32 %v8464, %v8463
    %s8466 = ssub.f32 1.0, %s8461
    %v8467 = vstv %s8466
    %v8468 = vmul.f32 %v8467, %v8457
    %v8469 = vadd.f32 %v8465, %v8468
    %v8471 = vcombine.high %v8316, %v8316
    %v8473 = vunpack.c.l.s4 1966171168
    %v8474 = vunpack.c.0.s8 %v8473
    %v8475 = vlaneseq
    %v8476 = vshrl.u32 %v8475, 7
    %v8477 = vsub.s32 %v8474, %v8476
    %v8478 = vrot.slane %v8316, %v8477
    %v8480 = vunpack.c.l.s4 1966171168
    %v8481 = vunpack.c.0.s8 %v8480
    %v8482 = vlaneseq
    %v8483 = vshrl.u32 %v8482, 7
    %v8484 = vsub.s32 %v8481, %v8483
    %v8485 = vrot.slane %v8471, %v8484
    %v8486 = vcombine.high %v8478, %v8478
    %v8487 = vcombine.high %v8485, %v8485
    %v8489 = vunpack.c.l.s4 1966171168
    %v8490 = vunpack.c.0.s8 %v8489
    %v8491 = vlaneseq
    %v8492 = vshrl.u32 %v8491, 7
    %v8493 = vsub.s32 %v8490, %v8492
    %v8494 = vrot.slane %v8478, %v8493
    %v8496 = vunpack.c.l.s4 1966171168
    %v8497 = vunpack.c.0.s8 %v8496
    %v8498 = vlaneseq
    %v8499 = vshrl.u32 %v8498, 7
    %v8500 = vsub.s32 %v8497, %v8499
    %v8501 = vrot.slane %v8485, %v8500
    %v8503 = vunpack.c.l.s4 1966171168
    %v8504 = vunpack.c.0.s8 %v8503
    %v8505 = vlaneseq
    %v8506 = vshrl.u32 %v8505, 7
    %v8507 = vsub.s32 %v8504, %v8506
    %v8508 = vrot.slane %v8486, %v8507
    %v8510 = vunpack.c.l.s4 1966171168
    %v8511 = vunpack.c.0.s8 %v8510
    %v8512 = vlaneseq
    %v8513 = vshrl.u32 %v8512, 7
    %v8514 = vsub.s32 %v8511, %v8513
    %v8515 = vrot.slane %v8487, %v8514
    %v8516 = vcombine.high %v8494, %v8494
    %v8517 = vcombine.high %v8501, %v8501
    %v8518 = vcombine.high %v8508, %v8508
    %v8519 = vcombine.high %v8515, %v8515
    %v8520 = vlaneseq
    %v8521 = vshrl.u32 %v8520, 7
    %v8522 = vsub.s32 0, %v8521
    %v8523 = vrot.slane %v8494, %v8522
    %v8524 = vlaneseq
    %v8525 = vshrl.u32 %v8524, 7
    %v8526 = vsub.s32 0, %v8525
    %v8527 = vrot.slane %v8508, %v8526
    %v8528 = vlaneseq
    %v8529 = vshrl.u32 %v8528, 7
    %v8530 = vsub.s32 0, %v8529
    %v8531 = vrot.slane %v8516, %v8530
    %v8532 = vlaneseq
    %v8533 = vshrl.u32 %v8532, 7
    %v8534 = vsub.s32 0, %v8533
    %v8535 = vrot.slane %v8518, %v8534
    %v8536 = vlaneseq
    %v8537 = vshrl.u32 %v8536, 7
    %v8538 = vsub.s32 0, %v8537
    %v8539 = vrot.slane %v8501, %v8538
    %v8540 = vlaneseq
    %v8541 = vshrl.u32 %v8540, 7
    %v8542 = vsub.s32 0, %v8541
    %v8543 = vrot.slane %v8515, %v8542
    %v8544 = vlaneseq
    %v8545 = vshrl.u32 %v8544, 7
    %v8546 = vsub.s32 0, %v8545
    %v8547 = vrot.slane %v8517, %v8546
    %v8548 = vlaneseq
    %v8549 = vshrl.u32 %v8548, 7
    %v8550 = vsub.s32 0, %v8549
    %v8551 = vrot.slane %v8519, %v8550
    %v8560 = vmul.f32 %v1862, %v8523
    %v8561 = vmul.f32 %v1863, %v8527
    %v8562 = vmul.f32 %v1864, %v8531
    %v8563 = vmul.f32 %v1865, %v8535
    %v8564 = vmul.f32 %v1866, %v8539
    %v8565 = vmul.f32 %v1867, %v8543
    %v8566 = vmul.f32 %v1868, %v8547
    %v8567 = vmul.f32 %v1869, %v8551
    %8568 = vadd.xlane.f32.xlu0 %v8560
    %v8569 = vpop.xlane.xlu0 %8568
    %8570 = vadd.xlane.f32.xlu0 %v8561
    %v8571 = vpop.xlane.xlu0 %8570
    %8572 = vadd.xlane.f32.xlu0 %v8562
    %v8573 = vpop.xlane.xlu0 %8572
    %8574 = vadd.xlane.f32.xlu0 %v8563
    %v8575 = vpop.xlane.xlu0 %8574
    %8576 = vadd.xlane.f32.xlu0 %v8564
    %v8577 = vpop.xlane.xlu0 %8576
    %8578 = vadd.xlane.f32.xlu0 %v8565
    %v8579 = vpop.xlane.xlu0 %8578
    %8580 = vadd.xlane.f32.xlu0 %v8566
    %v8581 = vpop.xlane.xlu0 %8580
    %8582 = vadd.xlane.f32.xlu0 %v8567
    %v8583 = vpop.xlane.xlu0 %8582
    %v8592 = vlaneseq
    %v8593 = vshrl.u32 %v8592, 7
    %v8594 = vsub.s32 %v2128, %v8593
    %v8595 = vrot.slane %v8569, %v8594
    %v8596 = vlaneseq
    %v8597 = vshrl.u32 %v8596, 7
    %v8598 = vsub.s32 %v2128, %v8597
    %v8599 = vrot.slane %v8571, %v8598
    %v8600 = vlaneseq
    %v8601 = vshrl.u32 %v8600, 7
    %v8602 = vsub.s32 %v2128, %v8601
    %v8603 = vrot.slane %v8573, %v8602
    %v8604 = vlaneseq
    %v8605 = vshrl.u32 %v8604, 7
    %v8606 = vsub.s32 %v2128, %v8605
    %v8607 = vrot.slane %v8575, %v8606
    %v8608 = vlaneseq
    %v8609 = vshrl.u32 %v8608, 7
    %v8610 = vsub.s32 %v2128, %v8609
    %v8611 = vrot.slane %v8577, %v8610
    %v8612 = vlaneseq
    %v8613 = vshrl.u32 %v8612, 7
    %v8614 = vsub.s32 %v2128, %v8613
    %v8615 = vrot.slane %v8579, %v8614
    %v8616 = vlaneseq
    %v8617 = vshrl.u32 %v8616, 7
    %v8618 = vsub.s32 %v2128, %v8617
    %v8619 = vrot.slane %v8581, %v8618
    %v8620 = vlaneseq
    %v8621 = vshrl.u32 %v8620, 7
    %v8622 = vsub.s32 %v2128, %v8621
    %v8623 = vrot.slane %v8583, %v8622
    %v8624 = vsel %vm2161, %v8599, %v8595
    %v8625 = vsel %vm2163, %v8603, %v8624
    %v8626 = vsel %vm2165, %v8607, %v8625
    %v8627 = vsel %vm2167, %v8611, %v8626
    %v8628 = vsel %vm2169, %v8615, %v8627
    %v8629 = vsel %vm2171, %v8619, %v8628
    %v8630 = vsel %vm2173, %v8623, %v8629
    %v8632 = vsel %vm156, %v8630, -inf
    %8633 = vmax.xlane.f32.xlu0 %v8632
    %v8634 = vpop.xlane.xlu0 %8633
    %v8636 = vlaneseq
    %v8637 = vshrl.u32 %v8636, 7
    %v8638 = vsub.s32 0, %v8637
    %v8639 = vrot.slane %v8634, %v8638
    %v8640 = vlaneseq
    %v8641 = vshrl.u32 %v8640, 7
    %v8642 = vsub.s32 1, %v8641
    %v8643 = vrot.slane %v8634, %v8642
    %v8644 = vlaneseq
    %v8645 = vshrl.u32 %v8644, 7
    %v8646 = vsub.s32 2, %v8645
    %v8647 = vrot.slane %v8634, %v8646
    %v8648 = vlaneseq
    %v8649 = vshrl.u32 %v8648, 7
    %v8650 = vsub.s32 3, %v8649
    %v8651 = vrot.slane %v8634, %v8650
    %v8652 = vlaneseq
    %v8653 = vshrl.u32 %v8652, 7
    %v8654 = vsub.s32 4, %v8653
    %v8655 = vrot.slane %v8634, %v8654
    %v8656 = vlaneseq
    %v8657 = vshrl.u32 %v8656, 7
    %v8658 = vsub.s32 5, %v8657
    %v8659 = vrot.slane %v8634, %v8658
    %v8660 = vlaneseq
    %v8661 = vshrl.u32 %v8660, 7
    %v8662 = vsub.s32 6, %v8661
    %v8663 = vrot.slane %v8634, %v8662
    %v8664 = vlaneseq
    %v8665 = vshrl.u32 %v8664, 7
    %v8666 = vsub.s32 7, %v8665
    %v8667 = vrot.slane %v8634, %v8666
    %v8676 = vsub.f32 %v8569, %v8639
    %v8677 = vsub.f32 %v8571, %v8643
    %v8678 = vsub.f32 %v8573, %v8647
    %v8679 = vsub.f32 %v8575, %v8651
    %v8680 = vsub.f32 %v8577, %v8655
    %v8681 = vsub.f32 %v8579, %v8659
    %v8682 = vsub.f32 %v8581, %v8663
    %v8683 = vsub.f32 %v8583, %v8667
    %v8684 = vmul.f32 %v8676, 1.442695
    %v8685 = vpow.pop %v8684
    %v8686 = vmul.f32 %v8677, 1.442695
    %v8687 = vpow.pop %v8686
    %v8688 = vmul.f32 %v8678, 1.442695
    %v8689 = vpow.pop %v8688
    %v8690 = vmul.f32 %v8679, 1.442695
    %v8691 = vpow.pop %v8690
    %v8692 = vmul.f32 %v8680, 1.442695
    %v8693 = vpow.pop %v8692
    %v8694 = vmul.f32 %v8681, 1.442695
    %v8695 = vpow.pop %v8694
    %v8696 = vmul.f32 %v8682, 1.442695
    %v8697 = vpow.pop %v8696
    %v8698 = vmul.f32 %v8683, 1.442695
    %v8699 = vpow.pop %v8698
    %8708 = vset.pattern.permute.xlu0 0
    %8709 = vperm.xlu0 %8708, %v8685
    %v8710 = vpop.permute.xlu0 %8709
    %8711 = vset.pattern.permute.xlu0 0
    %8712 = vperm.xlu0 %8711, %v8687
    %v8713 = vpop.permute.xlu0 %8712
    %8714 = vset.pattern.permute.xlu0 0
    %8715 = vperm.xlu0 %8714, %v8689
    %v8716 = vpop.permute.xlu0 %8715
    %8717 = vset.pattern.permute.xlu0 0
    %8718 = vperm.xlu0 %8717, %v8691
    %v8719 = vpop.permute.xlu0 %8718
    %8720 = vset.pattern.permute.xlu0 0
    %8721 = vperm.xlu0 %8720, %v8693
    %v8722 = vpop.permute.xlu0 %8721
    %8723 = vset.pattern.permute.xlu0 0
    %8724 = vperm.xlu0 %8723, %v8695
    %v8725 = vpop.permute.xlu0 %8724
    %8726 = vset.pattern.permute.xlu0 0
    %8727 = vperm.xlu0 %8726, %v8697
    %v8728 = vpop.permute.xlu0 %8727
    %8729 = vset.pattern.permute.xlu0 0
    %8730 = vperm.xlu0 %8729, %v8699
    %v8731 = vpop.permute.xlu0 %8730
    %v8732 = vlaneseq
    %v8733 = vshrl.u32 %v8732, 7
    %v8734 = vsub.s32 %v2128, %v8733
    %v8735 = vrot.slane %v8710, %v8734
    %v8736 = vlaneseq
    %v8737 = vshrl.u32 %v8736, 7
    %v8738 = vsub.s32 %v2128, %v8737
    %v8739 = vrot.slane %v8713, %v8738
    %v8740 = vlaneseq
    %v8741 = vshrl.u32 %v8740, 7
    %v8742 = vsub.s32 %v2128, %v8741
    %v8743 = vrot.slane %v8716, %v8742
    %v8744 = vlaneseq
    %v8745 = vshrl.u32 %v8744, 7
    %v8746 = vsub.s32 %v2128, %v8745
    %v8747 = vrot.slane %v8719, %v8746
    %v8748 = vlaneseq
    %v8749 = vshrl.u32 %v8748, 7
    %v8750 = vsub.s32 %v2128, %v8749
    %v8751 = vrot.slane %v8722, %v8750
    %v8752 = vlaneseq
    %v8753 = vshrl.u32 %v8752, 7
    %v8754 = vsub.s32 %v2128, %v8753
    %v8755 = vrot.slane %v8725, %v8754
    %v8756 = vlaneseq
    %v8757 = vshrl.u32 %v8756, 7
    %v8758 = vsub.s32 %v2128, %v8757
    %v8759 = vrot.slane %v8728, %v8758
    %v8760 = vlaneseq
    %v8761 = vshrl.u32 %v8760, 7
    %v8762 = vsub.s32 %v2128, %v8761
    %v8763 = vrot.slane %v8731, %v8762
    %v8764 = vsel %vm2161, %v8739, %v8735
    %v8765 = vsel %vm2163, %v8743, %v8764
    %v8766 = vsel %vm2165, %v8747, %v8765
    %v8767 = vsel %vm2167, %v8751, %v8766
    %v8768 = vsel %vm2169, %v8755, %v8767
    %v8769 = vsel %vm2171, %v8759, %v8768
    %v8770 = vsel %vm2173, %v8763, %v8769
    %v8772 = vsel %vm156, %v8770, 0.0
    %8773 = vadd.xlane.f32.xlu0 %v8772
    %v8774 = vpop.xlane.xlu0 %8773
    %v8775 = vrcp.pop %v8774
    %v8777 = vlaneseq
    %v8778 = vshrl.u32 %v8777, 7
    %v8779 = vsub.s32 0, %v8778
    %v8780 = vrot.slane %v8775, %v8779
    %v8781 = vlaneseq
    %v8782 = vshrl.u32 %v8781, 7
    %v8783 = vsub.s32 1, %v8782
    %v8784 = vrot.slane %v8775, %v8783
    %v8785 = vlaneseq
    %v8786 = vshrl.u32 %v8785, 7
    %v8787 = vsub.s32 2, %v8786
    %v8788 = vrot.slane %v8775, %v8787
    %v8789 = vlaneseq
    %v8790 = vshrl.u32 %v8789, 7
    %v8791 = vsub.s32 3, %v8790
    %v8792 = vrot.slane %v8775, %v8791
    %v8793 = vlaneseq
    %v8794 = vshrl.u32 %v8793, 7
    %v8795 = vsub.s32 4, %v8794
    %v8796 = vrot.slane %v8775, %v8795
    %v8797 = vlaneseq
    %v8798 = vshrl.u32 %v8797, 7
    %v8799 = vsub.s32 5, %v8798
    %v8800 = vrot.slane %v8775, %v8799
    %v8801 = vlaneseq
    %v8802 = vshrl.u32 %v8801, 7
    %v8803 = vsub.s32 6, %v8802
    %v8804 = vrot.slane %v8775, %v8803
    %v8805 = vlaneseq
    %v8806 = vshrl.u32 %v8805, 7
    %v8807 = vsub.s32 7, %v8806
    %v8808 = vrot.slane %v8775, %v8807
    %v8817 = vmul.f32 %v8685, %v8780
    %v8818 = vmul.f32 %v8687, %v8784
    %v8819 = vmul.f32 %v8689, %v8788
    %v8820 = vmul.f32 %v8691, %v8792
    %v8821 = vmul.f32 %v8693, %v8796
    %v8822 = vmul.f32 %v8695, %v8800
    %v8823 = vmul.f32 %v8697, %v8804
    %v8824 = vmul.f32 %v8699, %v8808
    %8826 = vset.pattern.permute.xlu0 0
    %8827 = vperm.xlu0 %8826, %v8817
    %v8828 = vpop.permute.xlu0 %8827
    %8831 = vset.pattern.permute.xlu0 0
    %8832 = vperm.xlu0 %8831, %v8818
    %v8833 = vpop.permute.xlu0 %8832
    %8836 = vset.pattern.permute.xlu0 0
    %8837 = vperm.xlu0 %8836, %v8819
    %v8838 = vpop.permute.xlu0 %8837
    %8841 = vset.pattern.permute.xlu0 0
    %8842 = vperm.xlu0 %8841, %v8820
    %v8843 = vpop.permute.xlu0 %8842
    %8846 = vset.pattern.permute.xlu0 0
    %8847 = vperm.xlu0 %8846, %v8821
    %v8848 = vpop.permute.xlu0 %8847
    %8851 = vset.pattern.permute.xlu0 0
    %8852 = vperm.xlu0 %8851, %v8822
    %v8853 = vpop.permute.xlu0 %8852
    %8856 = vset.pattern.permute.xlu0 0
    %8857 = vperm.xlu0 %8856, %v8823
    %v8858 = vpop.permute.xlu0 %8857
    %8861 = vset.pattern.permute.xlu0 0
    %8862 = vperm.xlu0 %8861, %v8824
    %v8863 = vpop.permute.xlu0 %8862
    %v8865 = vmul.f32 %v8828, %v1862
    %v8866 = vmul.f32 %v8833, %v1863
    %v8867 = vmul.f32 %v8838, %v1864
    %v8868 = vmul.f32 %v8843, %v1865
    %v8869 = vmul.f32 %v8848, %v1866
    %v8870 = vmul.f32 %v8853, %v1867
    %v8871 = vmul.f32 %v8858, %v1868
    %v8872 = vmul.f32 %v8863, %v1869
    %v8873 = vrot.slane %v8865, 4
    %v8874 = vadd.f32 %v8865, %v8873
    %v8875 = vrot.slane %v8874, 2
    %v8876 = vadd.f32 %v8874, %v8875
    %v8877 = vrot.slane %v8876, 1
    %v8878 = vadd.f32 %v8876, %v8877
    %v8879 = vrot.slane %v8866, 4
    %v8880 = vadd.f32 %v8866, %v8879
    %v8881 = vrot.slane %v8880, 2
    %v8882 = vadd.f32 %v8880, %v8881
    %v8883 = vrot.slane %v8882, 1
    %v8884 = vadd.f32 %v8882, %v8883
    %v8885 = vrot.slane %v8867, 4
    %v8886 = vadd.f32 %v8867, %v8885
    %v8887 = vrot.slane %v8886, 2
    %v8888 = vadd.f32 %v8886, %v8887
    %v8889 = vrot.slane %v8888, 1
    %v8890 = vadd.f32 %v8888, %v8889
    %v8891 = vrot.slane %v8868, 4
    %v8892 = vadd.f32 %v8868, %v8891
    %v8893 = vrot.slane %v8892, 2
    %v8894 = vadd.f32 %v8892, %v8893
    %v8895 = vrot.slane %v8894, 1
    %v8896 = vadd.f32 %v8894, %v8895
    %v8897 = vrot.slane %v8869, 4
    %v8898 = vadd.f32 %v8869, %v8897
    %v8899 = vrot.slane %v8898, 2
    %v8900 = vadd.f32 %v8898, %v8899
    %v8901 = vrot.slane %v8900, 1
    %v8902 = vadd.f32 %v8900, %v8901
    %v8903 = vrot.slane %v8870, 4
    %v8904 = vadd.f32 %v8870, %v8903
    %v8905 = vrot.slane %v8904, 2
    %v8906 = vadd.f32 %v8904, %v8905
    %v8907 = vrot.slane %v8906, 1
    %v8908 = vadd.f32 %v8906, %v8907
    %v8909 = vrot.slane %v8871, 4
    %v8910 = vadd.f32 %v8871, %v8909
    %v8911 = vrot.slane %v8910, 2
    %v8912 = vadd.f32 %v8910, %v8911
    %v8913 = vrot.slane %v8912, 1
    %v8914 = vadd.f32 %v8912, %v8913
    %v8915 = vrot.slane %v8872, 4
    %v8916 = vadd.f32 %v8872, %v8915
    %v8917 = vrot.slane %v8916, 2
    %v8918 = vadd.f32 %v8916, %v8917
    %v8919 = vrot.slane %v8918, 1
    %v8920 = vadd.f32 %v8918, %v8919
    %v8929 = vsel %vm2161, %v8884, %v8878
    %v8930 = vsel %vm2163, %v8890, %v8929
    %v8931 = vsel %vm2165, %v8896, %v8930
    %v8932 = vsel %vm2167, %v8902, %v8931
    %v8933 = vsel %vm2169, %v8908, %v8932
    %v8934 = vsel %vm2171, %v8914, %v8933
    %v8935 = vsel %vm2173, %v8920, %v8934
    %8937 = vmatprep.subr.mxu0 %v1874
    %8938 = vmatpush1.msra.mxu0 %v1873
    %8939 = vmatprep.subr.mxu0 %v1877
    %8940 = vmatpush1.msra.mxu0 %v1876
    %8941 = vmatprep.subr.mxu0 %v1880
    %8942 = vmatpush1.msra.mxu0 %v1879
    %8943 = vmatprep.subr.mxu0 %v1883
    %8944 = vmatpush1.msra.mxu0 %v1882
    %8945 = vmatprep.subr.mxu0 %v1886
    %8946 = vmatpush1.msra.mxu0 %v1885
    %8947 = vmatprep.subr.mxu0 %v1889
    %8948 = vmatpush1.msra.mxu0 %v1888
    %8949 = vmatprep.subr.mxu0 %v1892
    %8950 = vmatpush1.msra.mxu0 %v1891
    %8951 = vmatprep.subr.mxu0 %v1895
    %8952 = vmatpush1.msra.mxu0 %v1894
    %8953 = vmatprep.subr.mxu0 %v1898
    %8954 = vmatpush1.msra.mxu0 %v1897
    %8955 = vmatprep.subr.mxu0 %v1901
    %8956 = vmatpush1.msra.mxu0 %v1900
    %8957 = vmatprep.subr.mxu0 %v1904
    %8958 = vmatpush1.msra.mxu0 %v1903
    %8959 = vmatprep.subr.mxu0 %v1907
    %8960 = vmatpush1.msra.mxu0 %v1906
    %8961 = vmatprep.subr.mxu0 %v1910
    %8962 = vmatpush1.msra.mxu0 %v1909
    %8963 = vmatprep.subr.mxu0 %v1913
    %8964 = vmatpush1.msra.mxu0 %v1912
    %8965 = vmatprep.subr.mxu0 %v1916
    %8966 = vmatpush1.msra.mxu0 %v1915
    %8967 = vmatprep.subr.mxu0 %v1919
    %8968 = vmatpush1.msra.mxu0 %v1918
    %8969 = vmatprep.subr.mxu0 0.0
    %8970 = vmatpush1.msra.mxu0 0.0
    %8971 = vmatprep.subr.mxu0 0.0
    %8972 = vmatpush1.msra.mxu0 0.0
    %8973 = vmatprep.subr.mxu0 0.0
    %8974 = vmatpush1.msra.mxu0 0.0
    %8975 = vmatprep.subr.mxu0 0.0
    %8976 = vmatpush1.msra.mxu0 0.0
    %8977 = vmatprep.subr.mxu0 0.0
    %8978 = vmatpush1.msra.mxu0 0.0
    %8979 = vmatprep.subr.mxu0 0.0
    %8980 = vmatpush1.msra.mxu0 0.0
    %8981 = vmatprep.subr.mxu0 0.0
    %8982 = vmatpush1.msra.mxu0 0.0
    %8983 = vmatprep.subr.mxu0 0.0
    %8984 = vmatpush1.msra.mxu0 0.0
    %8985 = vmatprep.subr.mxu0 0.0
    %8986 = vmatpush1.msra.mxu0 0.0
    %8987 = vmatprep.subr.mxu0 0.0
    %8988 = vmatpush1.msra.mxu0 0.0
    %8989 = vmatprep.subr.mxu0 0.0
    %8990 = vmatpush1.msra.mxu0 0.0
    %8991 = vmatprep.subr.mxu0 0.0
    %8992 = vmatpush1.msra.mxu0 0.0
    %8993 = vmatprep.subr.mxu0 0.0
    %8994 = vmatpush1.msra.mxu0 0.0
    %8995 = vmatprep.subr.mxu0 0.0
    %8996 = vmatpush1.msra.mxu0 0.0
    %8997 = vmatprep.subr.mxu0 0.0
    %8998 = vmatpush1.msra.mxu0 0.0
    %8999 = vmatprep.subr.mxu0 0.0
    %9000 = vmatpush1.msra.mxu0 0.0
    %9001 = vmatprep.mubr.f32.mxu0 0.0
    %9002 = vmatmul.mubr.f32.gmra.mrb[0].mxu0 %v8935
    %v9003 = vpop.f32.mrb[0].mxu0
    %v9004 = vadd.f32 0.0, %v9003
    %v9005 = vpop.f32.mrb[0].mxu0
    %v9006 = vadd.f32 0.0, %v9005
    %9007 = vdwg.mxu0
    %9008 = vmatprep.subr.mxu0 0.0
    %9009 = vmatpush1.msra.mxu0 %v1875
    %9010 = vmatprep.subr.mxu0 0.0
    %9011 = vmatpush1.msra.mxu0 %v1878
    %9012 = vmatprep.subr.mxu0 0.0
    %9013 = vmatpush1.msra.mxu0 %v1881
    %9014 = vmatprep.subr.mxu0 0.0
    %9015 = vmatpush1.msra.mxu0 %v1884
    %9016 = vmatprep.subr.mxu0 0.0
    %9017 = vmatpush1.msra.mxu0 %v1887
    %9018 = vmatprep.subr.mxu0 0.0
    %9019 = vmatpush1.msra.mxu0 %v1890
    %9020 = vmatprep.subr.mxu0 0.0
    %9021 = vmatpush1.msra.mxu0 %v1893
    %9022 = vmatprep.subr.mxu0 0.0
    %9023 = vmatpush1.msra.mxu0 %v1896
    %9024 = vmatprep.subr.mxu0 0.0
    %9025 = vmatpush1.msra.mxu0 %v1899
    %9026 = vmatprep.subr.mxu0 0.0
    %9027 = vmatpush1.msra.mxu0 %v1902
    %9028 = vmatprep.subr.mxu0 0.0
    %9029 = vmatpush1.msra.mxu0 %v1905
    %9030 = vmatprep.subr.mxu0 0.0
    %9031 = vmatpush1.msra.mxu0 %v1908
    %9032 = vmatprep.subr.mxu0 0.0
    %9033 = vmatpush1.msra.mxu0 %v1911
    %9034 = vmatprep.subr.mxu0 0.0
    %9035 = vmatpush1.msra.mxu0 %v1914
    %9036 = vmatprep.subr.mxu0 0.0
    %9037 = vmatpush1.msra.mxu0 %v1917
    %9038 = vmatprep.subr.mxu0 0.0
    %9039 = vmatpush1.msra.mxu0 %v1920
    %9040 = vmatprep.subr.mxu0 0.0
    %9041 = vmatpush1.msra.mxu0 0.0
    %9042 = vmatprep.subr.mxu0 0.0
    %9043 = vmatpush1.msra.mxu0 0.0
    %9044 = vmatprep.subr.mxu0 0.0
    %9045 = vmatpush1.msra.mxu0 0.0
    %9046 = vmatprep.subr.mxu0 0.0
    %9047 = vmatpush1.msra.mxu0 0.0
    %9048 = vmatprep.subr.mxu0 0.0
    %9049 = vmatpush1.msra.mxu0 0.0
    %9050 = vmatprep.subr.mxu0 0.0
    %9051 = vmatpush1.msra.mxu0 0.0
    %9052 = vmatprep.subr.mxu0 0.0
    %9053 = vmatpush1.msra.mxu0 0.0
    %9054 = vmatprep.subr.mxu0 0.0
    %9055 = vmatpush1.msra.mxu0 0.0
    %9056 = vmatprep.subr.mxu0 0.0
    %9057 = vmatpush1.msra.mxu0 0.0
    %9058 = vmatprep.subr.mxu0 0.0
    %9059 = vmatpush1.msra.mxu0 0.0
    %9060 = vmatprep.subr.mxu0 0.0
    %9061 = vmatpush1.msra.mxu0 0.0
    %9062 = vmatprep.subr.mxu0 0.0
    %9063 = vmatpush1.msra.mxu0 0.0
    %9064 = vmatprep.subr.mxu0 0.0
    %9065 = vmatpush1.msra.mxu0 0.0
    %9066 = vmatprep.subr.mxu0 0.0
    %9067 = vmatpush1.msra.mxu0 0.0
    %9068 = vmatprep.subr.mxu0 0.0
    %9069 = vmatpush1.msra.mxu0 0.0
    %9070 = vmatprep.subr.mxu0 0.0
    %9071 = vmatpush1.msra.mxu0 0.0
    %9072 = vmatprep.mubr.f32.mxu0 0.0
    %9073 = vmatmul.mubr.f32.gmra.mrb[0].mxu0 %v8935
    %v9074 = vpop.f32.mrb[0].mxu0
    %v9075 = vadd.f32 0.0, %v9074
    %v9076 = vpop.f32.mrb[0].mxu0
    %9077 = vdwg.mxu0
    %v9079 = vsel %vm156, %v8469, 0
    %9081 = vmatprep.subr.mxu0 %v1871
    %9082 = vmatpush1.msra.mxu0 %v1870
    %9083 = vmatprep.subr.mxu0 0.0
    %9084 = vmatpush1.msra.mxu0 0.0
    %9085 = vmatprep.subr.mxu0 0.0
    %9086 = vmatpush1.msra.mxu0 0.0
    %9087 = vmatprep.subr.mxu0 0.0
    %9088 = vmatpush1.msra.mxu0 0.0
    %9089 = vmatprep.subr.mxu0 0.0
    %9090 = vmatpush1.msra.mxu0 0.0
    %9091 = vmatprep.subr.mxu0 0.0
    %9092 = vmatpush1.msra.mxu0 0.0
    %9093 = vmatprep.subr.mxu0 0.0
    %9094 = vmatpush1.msra.mxu0 0.0
    %9095 = vmatprep.subr.mxu0 0.0
    %9096 = vmatpush1.msra.mxu0 0.0
    %9097 = vmatprep.subr.mxu0 0.0
    %9098 = vmatpush1.msra.mxu0 0.0
    %9099 = vmatprep.subr.mxu0 0.0
    %9100 = vmatpush1.msra.mxu0 0.0
    %9101 = vmatprep.subr.mxu0 0.0
    %9102 = vmatpush1.msra.mxu0 0.0
    %9103 = vmatprep.subr.mxu0 0.0
    %9104 = vmatpush1.msra.mxu0 0.0
    %9105 = vmatprep.subr.mxu0 0.0
    %9106 = vmatpush1.msra.mxu0 0.0
    %9107 = vmatprep.subr.mxu0 0.0
    %9108 = vmatpush1.msra.mxu0 0.0
    %9109 = vmatprep.subr.mxu0 0.0
    %9110 = vmatpush1.msra.mxu0 0.0
    %9111 = vmatprep.subr.mxu0 0.0
    %9112 = vmatpush1.msra.mxu0 0.0
    %9113 = vmatprep.subr.mxu0 0.0
    %9114 = vmatpush1.msra.mxu0 0.0
    %9115 = vmatprep.subr.mxu0 0.0
    %9116 = vmatpush1.msra.mxu0 0.0
    %9117 = vmatprep.subr.mxu0 0.0
    %9118 = vmatpush1.msra.mxu0 0.0
    %9119 = vmatprep.subr.mxu0 0.0
    %9120 = vmatpush1.msra.mxu0 0.0
    %9121 = vmatprep.subr.mxu0 0.0
    %9122 = vmatpush1.msra.mxu0 0.0
    %9123 = vmatprep.subr.mxu0 0.0
    %9124 = vmatpush1.msra.mxu0 0.0
    %9125 = vmatprep.subr.mxu0 0.0
    %9126 = vmatpush1.msra.mxu0 0.0
    %9127 = vmatprep.subr.mxu0 0.0
    %9128 = vmatpush1.msra.mxu0 0.0
    %9129 = vmatprep.subr.mxu0 0.0
    %9130 = vmatpush1.msra.mxu0 0.0
    %9131 = vmatprep.subr.mxu0 0.0
    %9132 = vmatpush1.msra.mxu0 0.0
    %9133 = vmatprep.subr.mxu0 0.0
    %9134 = vmatpush1.msra.mxu0 0.0
    %9135 = vmatprep.subr.mxu0 0.0
    %9136 = vmatpush1.msra.mxu0 0.0
    %9137 = vmatprep.subr.mxu0 0.0
    %9138 = vmatpush1.msra.mxu0 0.0
    %9139 = vmatprep.subr.mxu0 0.0
    %9140 = vmatpush1.msra.mxu0 0.0
    %9141 = vmatprep.subr.mxu0 0.0
    %9142 = vmatpush1.msra.mxu0 0.0
    %9143 = vmatprep.subr.mxu0 0.0
    %9144 = vmatpush1.msra.mxu0 0.0
    %9145 = vmatprep.mubr.f32.mxu0 0.0
    %9146 = vmatmul.mubr.f32.gmra.mrb[0].mxu0 %v9079
    %v9147 = vpop.f32.mrb[0].mxu0
    %v9148 = vadd.f32 %v9004, %v9147
    %v9149 = vpop.f32.mrb[0].mxu0
    %v9150 = vadd.f32 %v9006, %v9149
    %9151 = vdwg.mxu0
    %9152 = vmatprep.subr.mxu0 0.0
    %9153 = vmatpush1.msra.mxu0 %v1872
    %9154 = vmatprep.subr.mxu0 0.0
    %9155 = vmatpush1.msra.mxu0 0.0
    %9156 = vmatprep.subr.mxu0 0.0
    %9157 = vmatpush1.msra.mxu0 0.0
    %9158 = vmatprep.subr.mxu0 0.0
    %9159 = vmatpush1.msra.mxu0 0.0
    %9160 = vmatprep.subr.mxu0 0.0
    %9161 = vmatpush1.msra.mxu0 0.0
    %9162 = vmatprep.subr.mxu0 0.0
    %9163 = vmatpush1.msra.mxu0 0.0
    %9164 = vmatprep.subr.mxu0 0.0
    %9165 = vmatpush1.msra.mxu0 0.0
    %9166 = vmatprep.subr.mxu0 0.0
    %9167 = vmatpush1.msra.mxu0 0.0
    %9168 = vmatprep.subr.mxu0 0.0
    %9169 = vmatpush1.msra.mxu0 0.0
    %9170 = vmatprep.subr.mxu0 0.0
    %9171 = vmatpush1.msra.mxu0 0.0
    %9172 = vmatprep.subr.mxu0 0.0
    %9173 = vmatpush1.msra.mxu0 0.0
    %9174 = vmatprep.subr.mxu0 0.0
    %9175 = vmatpush1.msra.mxu0 0.0
    %9176 = vmatprep.subr.mxu0 0.0
    %9177 = vmatpush1.msra.mxu0 0.0
    %9178 = vmatprep.subr.mxu0 0.0
    %9179 = vmatpush1.msra.mxu0 0.0
    %9180 = vmatprep.subr.mxu0 0.0
    %9181 = vmatpush1.msra.mxu0 0.0
    %9182 = vmatprep.subr.mxu0 0.0
    %9183 = vmatpush1.msra.mxu0 0.0
    %9184 = vmatprep.subr.mxu0 0.0
    %9185 = vmatpush1.msra.mxu0 0.0
    %9186 = vmatprep.subr.mxu0 0.0
    %9187 = vmatpush1.msra.mxu0 0.0
    %9188 = vmatprep.subr.mxu0 0.0
    %9189 = vmatpush1.msra.mxu0 0.0
    %9190 = vmatprep.subr.mxu0 0.0
    %9191 = vmatpush1.msra.mxu0 0.0
    %9192 = vmatprep.subr.mxu0 0.0
    %9193 = vmatpush1.msra.mxu0 0.0
    %9194 = vmatprep.subr.mxu0 0.0
    %9195 = vmatpush1.msra.mxu0 0.0
    %9196 = vmatprep.subr.mxu0 0.0
    %9197 = vmatpush1.msra.mxu0 0.0
    %9198 = vmatprep.subr.mxu0 0.0
    %9199 = vmatpush1.msra.mxu0 0.0
    %9200 = vmatprep.subr.mxu0 0.0
    %9201 = vmatpush1.msra.mxu0 0.0
    %9202 = vmatprep.subr.mxu0 0.0
    %9203 = vmatpush1.msra.mxu0 0.0
    %9204 = vmatprep.subr.mxu0 0.0
    %9205 = vmatpush1.msra.mxu0 0.0
    %9206 = vmatprep.subr.mxu0 0.0
    %9207 = vmatpush1.msra.mxu0 0.0
    %9208 = vmatprep.subr.mxu0 0.0
    %9209 = vmatpush1.msra.mxu0 0.0
    %9210 = vmatprep.subr.mxu0 0.0
    %9211 = vmatpush1.msra.mxu0 0.0
    %9212 = vmatprep.subr.mxu0 0.0
    %9213 = vmatpush1.msra.mxu0 0.0
    %9214 = vmatprep.subr.mxu0 0.0
    %9215 = vmatpush1.msra.mxu0 0.0
    %9216 = vmatprep.mubr.f32.mxu0 0.0
    %9217 = vmatmul.mubr.f32.gmra.mrb[0].mxu0 %v9079
    %v9218 = vpop.f32.mrb[0].mxu0
    %v9219 = vadd.f32 %v9075, %v9218
    %v9220 = vpop.f32.mrb[0].mxu0
    %9221 = vdwg.mxu0
    %v9222 = vadd.f32 %v9148, %v2770
    %v9223 = vadd.f32 %v9150, %v2774
    %v9224 = vadd.f32 %v9219, %v2778
    %9225 = vmatprep.subr.mxu0 %v1922
    %9226 = vmatpush1.msra.mxu0 %v1921
    %9227 = vmatprep.subr.mxu0 %v1925
    %9228 = vmatpush1.msra.mxu0 %v1924
    %9229 = vmatprep.subr.mxu0 %v1928
    %9230 = vmatpush1.msra.mxu0 %v1927
    %9231 = vmatprep.subr.mxu0 %v1931
    %9232 = vmatpush1.msra.mxu0 %v1930
    %9233 = vmatprep.subr.mxu0 %v1934
    %9234 = vmatpush1.msra.mxu0 %v1933
    %9235 = vmatprep.subr.mxu0 %v1937
    %9236 = vmatpush1.msra.mxu0 %v1936
    %9237 = vmatprep.subr.mxu0 %v1940
    %9238 = vmatpush1.msra.mxu0 %v1939
    %9239 = vmatprep.subr.mxu0 %v1943
    %9240 = vmatpush1.msra.mxu0 %v1942
    %9241 = vmatprep.subr.mxu0 %v1946
    %9242 = vmatpush1.msra.mxu0 %v1945
    %9243 = vmatprep.subr.mxu0 %v1949
    %9244 = vmatpush1.msra.mxu0 %v1948
    %9245 = vmatprep.subr.mxu0 %v1952
    %9246 = vmatpush1.msra.mxu0 %v1951
    %9247 = vmatprep.subr.mxu0 %v1955
    %9248 = vmatpush1.msra.mxu0 %v1954
    %9249 = vmatprep.subr.mxu0 %v1958
    %9250 = vmatpush1.msra.mxu0 %v1957
    %9251 = vmatprep.subr.mxu0 %v1961
    %9252 = vmatpush1.msra.mxu0 %v1960
    %9253 = vmatprep.subr.mxu0 %v1964
    %9254 = vmatpush1.msra.mxu0 %v1963
    %9255 = vmatprep.subr.mxu0 %v1967
    %9256 = vmatpush1.msra.mxu0 %v1966
    %9257 = vmatprep.subr.mxu0 0.0
    %9258 = vmatpush1.msra.mxu0 0.0
    %9259 = vmatprep.subr.mxu0 0.0
    %9260 = vmatpush1.msra.mxu0 0.0
    %9261 = vmatprep.subr.mxu0 0.0
    %9262 = vmatpush1.msra.mxu0 0.0
    %9263 = vmatprep.subr.mxu0 0.0
    %9264 = vmatpush1.msra.mxu0 0.0
    %9265 = vmatprep.subr.mxu0 0.0
    %9266 = vmatpush1.msra.mxu0 0.0
    %9267 = vmatprep.subr.mxu0 0.0
    %9268 = vmatpush1.msra.mxu0 0.0
    %9269 = vmatprep.subr.mxu0 0.0
    %9270 = vmatpush1.msra.mxu0 0.0
    %9271 = vmatprep.subr.mxu0 0.0
    %9272 = vmatpush1.msra.mxu0 0.0
    %9273 = vmatprep.subr.mxu0 0.0
    %9274 = vmatpush1.msra.mxu0 0.0
    %9275 = vmatprep.subr.mxu0 0.0
    %9276 = vmatpush1.msra.mxu0 0.0
    %9277 = vmatprep.subr.mxu0 0.0
    %9278 = vmatpush1.msra.mxu0 0.0
    %9279 = vmatprep.subr.mxu0 0.0
    %9280 = vmatpush1.msra.mxu0 0.0
    %9281 = vmatprep.subr.mxu0 0.0
    %9282 = vmatpush1.msra.mxu0 0.0
    %9283 = vmatprep.subr.mxu0 0.0
    %9284 = vmatpush1.msra.mxu0 0.0
    %9285 = vmatprep.subr.mxu0 0.0
    %9286 = vmatpush1.msra.mxu0 0.0
    %9287 = vmatprep.subr.mxu0 0.0
    %9288 = vmatpush1.msra.mxu0 0.0
    %9289 = vmatprep.mubr.f32.mxu0 0.0
    %9290 = vmatmul.mubr.f32.gmra.mrb[0].mxu0 %v8316
    %v9291 = vpop.f32.mrb[0].mxu0
    %v9292 = vadd.f32 %v2789, %v9291
    %v9293 = vpop.f32.mrb[0].mxu0
    %v9294 = vadd.f32 %v2793, %v9293
    %9295 = vdwg.mxu0
    %9296 = vmatprep.subr.mxu0 0.0
    %9297 = vmatpush1.msra.mxu0 %v1923
    %9298 = vmatprep.subr.mxu0 0.0
    %9299 = vmatpush1.msra.mxu0 %v1926
    %9300 = vmatprep.subr.mxu0 0.0
    %9301 = vmatpush1.msra.mxu0 %v1929
    %9302 = vmatprep.subr.mxu0 0.0
    %9303 = vmatpush1.msra.mxu0 %v1932
    %9304 = vmatprep.subr.mxu0 0.0
    %9305 = vmatpush1.msra.mxu0 %v1935
    %9306 = vmatprep.subr.mxu0 0.0
    %9307 = vmatpush1.msra.mxu0 %v1938
    %9308 = vmatprep.subr.mxu0 0.0
    %9309 = vmatpush1.msra.mxu0 %v1941
    %9310 = vmatprep.subr.mxu0 0.0
    %9311 = vmatpush1.msra.mxu0 %v1944
    %9312 = vmatprep.subr.mxu0 0.0
    %9313 = vmatpush1.msra.mxu0 %v1947
    %9314 = vmatprep.subr.mxu0 0.0
    %9315 = vmatpush1.msra.mxu0 %v1950
    %9316 = vmatprep.subr.mxu0 0.0
    %9317 = vmatpush1.msra.mxu0 %v1953
    %9318 = vmatprep.subr.mxu0 0.0
    %9319 = vmatpush1.msra.mxu0 %v1956
    %9320 = vmatprep.subr.mxu0 0.0
    %9321 = vmatpush1.msra.mxu0 %v1959
    %9322 = vmatprep.subr.mxu0 0.0
    %9323 = vmatpush1.msra.mxu0 %v1962
    %9324 = vmatprep.subr.mxu0 0.0
    %9325 = vmatpush1.msra.mxu0 %v1965
    %9326 = vmatprep.subr.mxu0 0.0
    %9327 = vmatpush1.msra.mxu0 %v1968
    %9328 = vmatprep.subr.mxu0 0.0
    %9329 = vmatpush1.msra.mxu0 0.0
    %9330 = vmatprep.subr.mxu0 0.0
    %9331 = vmatpush1.msra.mxu0 0.0
    %9332 = vmatprep.subr.mxu0 0.0
    %9333 = vmatpush1.msra.mxu0 0.0
    %9334 = vmatprep.subr.mxu0 0.0
    %9335 = vmatpush1.msra.mxu0 0.0
    %9336 = vmatprep.subr.mxu0 0.0
    %9337 = vmatpush1.msra.mxu0 0.0
    %9338 = vmatprep.subr.mxu0 0.0
    %9339 = vmatpush1.msra.mxu0 0.0
    %9340 = vmatprep.subr.mxu0 0.0
    %9341 = vmatpush1.msra.mxu0 0.0
    %9342 = vmatprep.subr.mxu0 0.0
    %9343 = vmatpush1.msra.mxu0 0.0
    %9344 = vmatprep.subr.mxu0 0.0
    %9345 = vmatpush1.msra.mxu0 0.0
    %9346 = vmatprep.subr.mxu0 0.0
    %9347 = vmatpush1.msra.mxu0 0.0
    %9348 = vmatprep.subr.mxu0 0.0
    %9349 = vmatpush1.msra.mxu0 0.0
    %9350 = vmatprep.subr.mxu0 0.0
    %9351 = vmatpush1.msra.mxu0 0.0
    %9352 = vmatprep.subr.mxu0 0.0
    %9353 = vmatpush1.msra.mxu0 0.0
    %9354 = vmatprep.subr.mxu0 0.0
    %9355 = vmatpush1.msra.mxu0 0.0
    %9356 = vmatprep.subr.mxu0 0.0
    %9357 = vmatpush1.msra.mxu0 0.0
    %9358 = vmatprep.subr.mxu0 0.0
    %9359 = vmatpush1.msra.mxu0 0.0
    %9360 = vmatprep.mubr.f32.mxu0 0.0
    %9361 = vmatmul.mubr.f32.gmra.mrb[0].mxu0 %v8316
    %v9362 = vpop.f32.mrb[0].mxu0
    %v9363 = vadd.f32 %v2797, %v9362
    %v9364 = vpop.f32.mrb[0].mxu0
    %9365 = vdwg.mxu0
    %v9366 = vadd.f32 %v9222, %v9292
    %v9367 = vxor.u32 %v9366, 2147483648
    %v9368 = vmul.f32 %v9367, 1.442695
    %v9369 = vpow.pop %v9368
    %v9370 = vadd.f32 %v9369, 1.0
    %v9371 = vrcp.pop %v9370
    %v9372 = vmul.f32 1.0, %v9371
    %v9373 = vadd.f32 %v9223, %v9294
    %v9374 = vxor.u32 %v9373, 2147483648
    %v9375 = vmul.f32 %v9374, 1.442695
    %v9376 = vpow.pop %v9375
    %v9377 = vadd.f32 %v9376, 1.0
    %v9378 = vrcp.pop %v9377
    %v9379 = vmul.f32 1.0, %v9378
    %v9380 = vmul.f32 %v9372, %v9363
    %v9381 = vadd.f32 %v9224, %v9380
    %v9382 = vtanh.pop %v9381
    %v9383 = vsub.f32 1.0, %v9379
    %v9384 = vmul.f32 %v9383, %v9382
    %v9385 = vmul.f32 %v9379, %v8316
    %v9386 = vadd.f32 %v9384, %v9385
    %9387 = vmatprep.subr.mxu0 0.0
    %9388 = vmatpush1.msra.mxu0 %v1987
    %9389 = vmatprep.subr.mxu0 0.0
    %9390 = vmatpush1.msra.mxu0 %v1988
    %9391 = vmatprep.subr.mxu0 0.0
    %9392 = vmatpush1.msra.mxu0 %v1989
    %9393 = vmatprep.subr.mxu0 0.0
    %9394 = vmatpush1.msra.mxu0 %v1990
    %9395 = vmatprep.subr.mxu0 0.0
    %9396 = vmatpush1.msra.mxu0 %v1991
    %9397 = vmatprep.subr.mxu0 0.0
    %9398 = vmatpush1.msra.mxu0 %v1992
    %9399 = vmatprep.subr.mxu0 0.0
    %9400 = vmatpush1.msra.mxu0 %v1993
    %9401 = vmatprep.subr.mxu0 0.0
    %9402 = vmatpush1.msra.mxu0 %v1994
    %9403 = vmatprep.subr.mxu0 0.0
    %9404 = vmatpush1.msra.mxu0 %v1995
    %9405 = vmatprep.subr.mxu0 0.0
    %9406 = vmatpush1.msra.mxu0 %v1996
    %9407 = vmatprep.subr.mxu0 0.0
    %9408 = vmatpush1.msra.mxu0 %v1997
    %9409 = vmatprep.subr.mxu0 0.0
    %9410 = vmatpush1.msra.mxu0 %v1998
    %9411 = vmatprep.subr.mxu0 0.0
    %9412 = vmatpush1.msra.mxu0 %v1999
    %9413 = vmatprep.subr.mxu0 0.0
    %9414 = vmatpush1.msra.mxu0 %v2000
    %9415 = vmatprep.subr.mxu0 0.0
    %9416 = vmatpush1.msra.mxu0 %v2001
    %9417 = vmatprep.subr.mxu0 0.0
    %9418 = vmatpush1.msra.mxu0 %v2002
    %9419 = vmatprep.subr.mxu0 0.0
    %9420 = vmatpush1.msra.mxu0 0.0
    %9421 = vmatprep.subr.mxu0 0.0
    %9422 = vmatpush1.msra.mxu0 0.0
    %9423 = vmatprep.subr.mxu0 0.0
    %9424 = vmatpush1.msra.mxu0 0.0
    %9425 = vmatprep.subr.mxu0 0.0
    %9426 = vmatpush1.msra.mxu0 0.0
    %9427 = vmatprep.subr.mxu0 0.0
    %9428 = vmatpush1.msra.mxu0 0.0
    %9429 = vmatprep.subr.mxu0 0.0
    %9430 = vmatpush1.msra.mxu0 0.0
    %9431 = vmatprep.subr.mxu0 0.0
    %9432 = vmatpush1.msra.mxu0 0.0
    %9433 = vmatprep.subr.mxu0 0.0
    %9434 = vmatpush1.msra.mxu0 0.0
    %9435 = vmatprep.subr.mxu0 0.0
    %9436 = vmatpush1.msra.mxu0 0.0
    %9437 = vmatprep.subr.mxu0 0.0
    %9438 = vmatpush1.msra.mxu0 0.0
    %9439 = vmatprep.subr.mxu0 0.0
    %9440 = vmatpush1.msra.mxu0 0.0
    %9441 = vmatprep.subr.mxu0 0.0
    %9442 = vmatpush1.msra.mxu0 0.0
    %9443 = vmatprep.subr.mxu0 0.0
    %9444 = vmatpush1.msra.mxu0 0.0
    %9445 = vmatprep.subr.mxu0 0.0
    %9446 = vmatpush1.msra.mxu0 0.0
    %9447 = vmatprep.subr.mxu0 0.0
    %9448 = vmatpush1.msra.mxu0 0.0
    %9449 = vmatprep.subr.mxu0 0.0
    %9450 = vmatpush1.msra.mxu0 0.0
    %9451 = vmatprep.mubr.f32.mxu0 0.0
    %9452 = vmatmul.mubr.f32.gmra.mrb[0].mxu0 %v8935
    %v9453 = vpop.f32.mrb[0].mxu0
    %v9454 = vadd.f32 0.0, %v9453
    %v9455 = vpop.f32.mrb[0].mxu0
    %9456 = vdwg.mxu0
    %9457 = vmatprep.subr.mxu0 0.0
    %9458 = vmatpush1.msra.mxu0 %v1971
    %9459 = vmatprep.subr.mxu0 0.0
    %9460 = vmatpush1.msra.mxu0 %v1972
    %9461 = vmatprep.subr.mxu0 0.0
    %9462 = vmatpush1.msra.mxu0 %v1973
    %9463 = vmatprep.subr.mxu0 0.0
    %9464 = vmatpush1.msra.mxu0 %v1974
    %9465 = vmatprep.subr.mxu0 0.0
    %9466 = vmatpush1.msra.mxu0 %v1975
    %9467 = vmatprep.subr.mxu0 0.0
    %9468 = vmatpush1.msra.mxu0 %v1976
    %9469 = vmatprep.subr.mxu0 0.0
    %9470 = vmatpush1.msra.mxu0 %v1977
    %9471 = vmatprep.subr.mxu0 0.0
    %9472 = vmatpush1.msra.mxu0 %v1978
    %9473 = vmatprep.subr.mxu0 0.0
    %9474 = vmatpush1.msra.mxu0 %v1979
    %9475 = vmatprep.subr.mxu0 0.0
    %9476 = vmatpush1.msra.mxu0 %v1980
    %9477 = vmatprep.subr.mxu0 0.0
    %9478 = vmatpush1.msra.mxu0 %v1981
    %9479 = vmatprep.subr.mxu0 0.0
    %9480 = vmatpush1.msra.mxu0 %v1982
    %9481 = vmatprep.subr.mxu0 0.0
    %9482 = vmatpush1.msra.mxu0 %v1983
    %9483 = vmatprep.subr.mxu0 0.0
    %9484 = vmatpush1.msra.mxu0 %v1984
    %9485 = vmatprep.subr.mxu0 0.0
    %9486 = vmatpush1.msra.mxu0 %v1985
    %9487 = vmatprep.subr.mxu0 0.0
    %9488 = vmatpush1.msra.mxu0 %v1986
    %9489 = vmatprep.subr.mxu0 0.0
    %9490 = vmatpush1.msra.mxu0 0.0
    %9491 = vmatprep.subr.mxu0 0.0
    %9492 = vmatpush1.msra.mxu0 0.0
    %9493 = vmatprep.subr.mxu0 0.0
    %9494 = vmatpush1.msra.mxu0 0.0
    %9495 = vmatprep.subr.mxu0 0.0
    %9496 = vmatpush1.msra.mxu0 0.0
    %9497 = vmatprep.subr.mxu0 0.0
    %9498 = vmatpush1.msra.mxu0 0.0
    %9499 = vmatprep.subr.mxu0 0.0
    %9500 = vmatpush1.msra.mxu0 0.0
    %9501 = vmatprep.subr.mxu0 0.0
    %9502 = vmatpush1.msra.mxu0 0.0
    %9503 = vmatprep.subr.mxu0 0.0
    %9504 = vmatpush1.msra.mxu0 0.0
    %9505 = vmatprep.subr.mxu0 0.0
    %9506 = vmatpush1.msra.mxu0 0.0
    %9507 = vmatprep.subr.mxu0 0.0
    %9508 = vmatpush1.msra.mxu0 0.0
    %9509 = vmatprep.subr.mxu0 0.0
    %9510 = vmatpush1.msra.mxu0 0.0
    %9511 = vmatprep.subr.mxu0 0.0
    %9512 = vmatpush1.msra.mxu0 0.0
    %9513 = vmatprep.subr.mxu0 0.0
    %9514 = vmatpush1.msra.mxu0 0.0
    %9515 = vmatprep.subr.mxu0 0.0
    %9516 = vmatpush1.msra.mxu0 0.0
    %9517 = vmatprep.subr.mxu0 0.0
    %9518 = vmatpush1.msra.mxu0 0.0
    %9519 = vmatprep.subr.mxu0 0.0
    %9520 = vmatpush1.msra.mxu0 0.0
    %9521 = vmatprep.mubr.f32.mxu0 0.0
    %9522 = vmatmul.mubr.f32.gmra.mrb[0].mxu0 %v9386
    %v9523 = vpop.f32.mrb[0].mxu0
    %v9524 = vadd.f32 %v9454, %v9523
    %v9525 = vpop.f32.mrb[0].mxu0
    %9526 = vdwg.mxu0
    %v9527 = vadd.f32 %v9524, %v3107
    %s9528 = scalar_lea.vmem [#allocation8], 48
    %9529 = vst [vmem:[%s9528] sm:$0xff] %v9527
    %s9530 = sld [smem:[#allocation3 + $0x6]]
    %s9531 = scvt.s32.f32 %s9530
    %s9532 = scalar_lea.vmem %s2, 48
    %v9533 = vld [vmem:[%s9532] sm:$0xff]
    %v9534 = vstv %s9531
    %v9535 = vmul.f32 %v9534, %v9533
    %s9536 = ssub.f32 1.0, %s9531
    %v9537 = vstv %s9536
    %v9538 = vmul.f32 %v9537, %v9527
    %v9539 = vadd.f32 %v9535, %v9538
    %v9541 = vcombine.high %v9386, %v9386
    %v9543 = vunpack.c.l.s4 1966171168
    %v9544 = vunpack.c.0.s8 %v9543
    %v9545 = vlaneseq
    %v9546 = vshrl.u32 %v9545, 7
    %v9547 = vsub.s32 %v9544, %v9546
    %v9548 = vrot.slane %v9386, %v9547
    %v9550 = vunpack.c.l.s4 1966171168
    %v9551 = vunpack.c.0.s8 %v9550
    %v9552 = vlaneseq
    %v9553 = vshrl.u32 %v9552, 7
    %v9554 = vsub.s32 %v9551, %v9553
    %v9555 = vrot.slane %v9541, %v9554
    %v9556 = vcombine.high %v9548, %v9548
    %v9557 = vcombine.high %v9555, %v9555
    %v9559 = vunpack.c.l.s4 1966171168
    %v9560 = vunpack.c.0.s8 %v9559
    %v9561 = vlaneseq
    %v9562 = vshrl.u32 %v9561, 7
    %v9563 = vsub.s32 %v9560, %v9562
    %v9564 = vrot.slane %v9548, %v9563
    %v9566 = vunpack.c.l.s4 1966171168
    %v9567 = vunpack.c.0.s8 %v9566
    %v9568 = vlaneseq
    %v9569 = vshrl.u32 %v9568, 7
    %v9570 = vsub.s32 %v9567, %v9569
    %v9571 = vrot.slane %v9555, %v9570
    %v9573 = vunpack.c.l.s4 1966171168
    %v9574 = vunpack.c.0.s8 %v9573
    %v9575 = vlaneseq
    %v9576 = vshrl.u32 %v9575, 7
    %v9577 = vsub.s32 %v9574, %v9576
    %v9578 = vrot.slane %v9556, %v9577
    %v9580 = vunpack.c.l.s4 1966171168
    %v9581 = vunpack.c.0.s8 %v9580
    %v9582 = vlaneseq
    %v9583 = vshrl.u32 %v9582, 7
    %v9584 = vsub.s32 %v9581, %v9583
    %v9585 = vrot.slane %v9557, %v9584
    %v9586 = vcombine.high %v9564, %v9564
    %v9587 = vcombine.high %v9571, %v9571
    %v9588 = vcombine.high %v9578, %v9578
    %v9589 = vcombine.high %v9585, %v9585
    %v9590 = vlaneseq
    %v9591 = vshrl.u32 %v9590, 7
    %v9592 = vsub.s32 0, %v9591
    %v9593 = vrot.slane %v9564, %v9592
    %v9594 = vlaneseq
    %v9595 = vshrl.u32 %v9594, 7
    %v9596 = vsub.s32 0, %v9595
    %v9597 = vrot.slane %v9578, %v9596
    %v9598 = vlaneseq
    %v9599 = vshrl.u32 %v9598, 7
    %v9600 = vsub.s32 0, %v9599
    %v9601 = vrot.slane %v9586, %v9600
    %v9602 = vlaneseq
    %v9603 = vshrl.u32 %v9602, 7
    %v9604 = vsub.s32 0, %v9603
    %v9605 = vrot.slane %v9588, %v9604
    %v9606 = vlaneseq
    %v9607 = vshrl.u32 %v9606, 7
    %v9608 = vsub.s32 0, %v9607
    %v9609 = vrot.slane %v9571, %v9608
    %v9610 = vlaneseq
    %v9611 = vshrl.u32 %v9610, 7
    %v9612 = vsub.s32 0, %v9611
    %v9613 = vrot.slane %v9585, %v9612
    %v9614 = vlaneseq
    %v9615 = vshrl.u32 %v9614, 7
    %v9616 = vsub.s32 0, %v9615
    %v9617 = vrot.slane %v9587, %v9616
    %v9618 = vlaneseq
    %v9619 = vshrl.u32 %v9618, 7
    %v9620 = vsub.s32 0, %v9619
    %v9621 = vrot.slane %v9589, %v9620
    %v9630 = vmul.f32 %v1862, %v9593
    %v9631 = vmul.f32 %v1863, %v9597
    %v9632 = vmul.f32 %v1864, %v9601
    %v9633 = vmul.f32 %v1865, %v9605
    %v9634 = vmul.f32 %v1866, %v9609
    %v9635 = vmul.f32 %v1867, %v9613
    %v9636 = vmul.f32 %v1868, %v9617
    %v9637 = vmul.f32 %v1869, %v9621
    %9638 = vadd.xlane.f32.xlu0 %v9630
    %v9639 = vpop.xlane.xlu0 %9638
    %9640 = vadd.xlane.f32.xlu0 %v9631
    %v9641 = vpop.xlane.xlu0 %9640
    %9642 = vadd.xlane.f32.xlu0 %v9632
    %v9643 = vpop.xlane.xlu0 %9642
    %9644 = vadd.xlane.f32.xlu0 %v9633
    %v9645 = vpop.xlane.xlu0 %9644
    %9646 = vadd.xlane.f32.xlu0 %v9634
    %v9647 = vpop.xlane.xlu0 %9646
    %9648 = vadd.xlane.f32.xlu0 %v9635
    %v9649 = vpop.xlane.xlu0 %9648
    %9650 = vadd.xlane.f32.xlu0 %v9636
    %v9651 = vpop.xlane.xlu0 %9650
    %9652 = vadd.xlane.f32.xlu0 %v9637
    %v9653 = vpop.xlane.xlu0 %9652
    %v9662 = vlaneseq
    %v9663 = vshrl.u32 %v9662, 7
    %v9664 = vsub.s32 %v2128, %v9663
    %v9665 = vrot.slane %v9639, %v9664
    %v9666 = vlaneseq
    %v9667 = vshrl.u32 %v9666, 7
    %v9668 = vsub.s32 %v2128, %v9667
    %v9669 = vrot.slane %v9641, %v9668
    %v9670 = vlaneseq
    %v9671 = vshrl.u32 %v9670, 7
    %v9672 = vsub.s32 %v2128, %v9671
    %v9673 = vrot.slane %v9643, %v9672
    %v9674 = vlaneseq
    %v9675 = vshrl.u32 %v9674, 7
    %v9676 = vsub.s32 %v2128, %v9675
    %v9677 = vrot.slane %v9645, %v9676
    %v9678 = vlaneseq
    %v9679 = vshrl.u32 %v9678, 7
    %v9680 = vsub.s32 %v2128, %v9679
    %v9681 = vrot.slane %v9647, %v9680
    %v9682 = vlaneseq
    %v9683 = vshrl.u32 %v9682, 7
    %v9684 = vsub.s32 %v2128, %v9683
    %v9685 = vrot.slane %v9649, %v9684
    %v9686 = vlaneseq
    %v9687 = vshrl.u32 %v9686, 7
    %v9688 = vsub.s32 %v2128, %v9687
    %v9689 = vrot.slane %v9651, %v9688
    %v9690 = vlaneseq
    %v9691 = vshrl.u32 %v9690, 7
    %v9692 = vsub.s32 %v2128, %v9691
    %v9693 = vrot.slane %v9653, %v9692
    %v9694 = vsel %vm2161, %v9669, %v9665
    %v9695 = vsel %vm2163, %v9673, %v9694
    %v9696 = vsel %vm2165, %v9677, %v9695
    %v9697 = vsel %vm2167, %v9681, %v9696
    %v9698 = vsel %vm2169, %v9685, %v9697
    %v9699 = vsel %vm2171, %v9689, %v9698
    %v9700 = vsel %vm2173, %v9693, %v9699
    %v9702 = vsel %vm156, %v9700, -inf
    %9703 = vmax.xlane.f32.xlu0 %v9702
    %v9704 = vpop.xlane.xlu0 %9703
    %v9706 = vlaneseq
    %v9707 = vshrl.u32 %v9706, 7
    %v9708 = vsub.s32 0, %v9707
    %v9709 = vrot.slane %v9704, %v9708
    %v9710 = vlaneseq
    %v9711 = vshrl.u32 %v9710, 7
    %v9712 = vsub.s32 1, %v9711
    %v9713 = vrot.slane %v9704, %v9712
    %v9714 = vlaneseq
    %v9715 = vshrl.u32 %v9714, 7
    %v9716 = vsub.s32 2, %v9715
    %v9717 = vrot.slane %v9704, %v9716
    %v9718 = vlaneseq
    %v9719 = vshrl.u32 %v9718, 7
    %v9720 = vsub.s32 3, %v9719
    %v9721 = vrot.slane %v9704, %v9720
    %v9722 = vlaneseq
    %v9723 = vshrl.u32 %v9722, 7
    %v9724 = vsub.s32 4, %v9723
    %v9725 = vrot.slane %v9704, %v9724
    %v9726 = vlaneseq
    %v9727 = vshrl.u32 %v9726, 7
    %v9728 = vsub.s32 5, %v9727
    %v9729 = vrot.slane %v9704, %v9728
    %v9730 = vlaneseq
    %v9731 = vshrl.u32 %v9730, 7
    %v9732 = vsub.s32 6, %v9731
    %v9733 = vrot.slane %v9704, %v9732
    %v9734 = vlaneseq
    %v9735 = vshrl.u32 %v9734, 7
    %v9736 = vsub.s32 7, %v9735
    %v9737 = vrot.slane %v9704, %v9736
    %v9746 = vsub.f32 %v9639, %v9709
    %v9747 = vsub.f32 %v9641, %v9713
    %v9748 = vsub.f32 %v9643, %v9717
    %v9749 = vsub.f32 %v9645, %v9721
    %v9750 = vsub.f32 %v9647, %v9725
    %v9751 = vsub.f32 %v9649, %v9729
    %v9752 = vsub.f32 %v9651, %v9733
    %v9753 = vsub.f32 %v9653, %v9737
    %v9754 = vmul.f32 %v9746, 1.442695
    %v9755 = vpow.pop %v9754
    %v9756 = vmul.f32 %v9747, 1.442695
    %v9757 = vpow.pop %v9756
    %v9758 = vmul.f32 %v9748, 1.442695
    %v9759 = vpow.pop %v9758
    %v9760 = vmul.f32 %v9749, 1.442695
    %v9761 = vpow.pop %v9760
    %v9762 = vmul.f32 %v9750, 1.442695
    %v9763 = vpow.pop %v9762
    %v9764 = vmul.f32 %v9751, 1.442695
    %v9765 = vpow.pop %v9764
    %v9766 = vmul.f32 %v9752, 1.442695
    %v9767 = vpow.pop %v9766
    %v9768 = vmul.f32 %v9753, 1.442695
    %v9769 = vpow.pop %v9768
    %9778 = vset.pattern.permute.xlu0 0
    %9779 = vperm.xlu0 %9778, %v9755
    %v9780 = vpop.permute.xlu0 %9779
    %9781 = vset.pattern.permute.xlu0 0
    %9782 = vperm.xlu0 %9781, %v9757
    %v9783 = vpop.permute.xlu0 %9782
    %9784 = vset.pattern.permute.xlu0 0
    %9785 = vperm.xlu0 %9784, %v9759
    %v9786 = vpop.permute.xlu0 %9785
    %9787 = vset.pattern.permute.xlu0 0
    %9788 = vperm.xlu0 %9787, %v9761
    %v9789 = vpop.permute.xlu0 %9788
    %9790 = vset.pattern.permute.xlu0 0
    %9791 = vperm.xlu0 %9790, %v9763
    %v9792 = vpop.permute.xlu0 %9791
    %9793 = vset.pattern.permute.xlu0 0
    %9794 = vperm.xlu0 %9793, %v9765
    %v9795 = vpop.permute.xlu0 %9794
    %9796 = vset.pattern.permute.xlu0 0
    %9797 = vperm.xlu0 %9796, %v9767
    %v9798 = vpop.permute.xlu0 %9797
    %9799 = vset.pattern.permute.xlu0 0
    %9800 = vperm.xlu0 %9799, %v9769
    %v9801 = vpop.permute.xlu0 %9800
    %v9802 = vlaneseq
    %v9803 = vshrl.u32 %v9802, 7
    %v9804 = vsub.s32 %v2128, %v9803
    %v9805 = vrot.slane %v9780, %v9804
    %v9806 = vlaneseq
    %v9807 = vshrl.u32 %v9806, 7
    %v9808 = vsub.s32 %v2128, %v9807
    %v9809 = vrot.slane %v9783, %v9808
    %v9810 = vlaneseq
    %v9811 = vshrl.u32 %v9810, 7
    %v9812 = vsub.s32 %v2128, %v9811
    %v9813 = vrot.slane %v9786, %v9812
    %v9814 = vlaneseq
    %v9815 = vshrl.u32 %v9814, 7
    %v9816 = vsub.s32 %v2128, %v9815
    %v9817 = vrot.slane %v9789, %v9816
    %v9818 = vlaneseq
    %v9819 = vshrl.u32 %v9818, 7
    %v9820 = vsub.s32 %v2128, %v9819
    %v9821 = vrot.slane %v9792, %v9820
    %v9822 = vlaneseq
    %v9823 = vshrl.u32 %v9822, 7
    %v9824 = vsub.s32 %v2128, %v9823
    %v9825 = vrot.slane %v9795, %v9824
    %v9826 = vlaneseq
    %v9827 = vshrl.u32 %v9826, 7
    %v9828 = vsub.s32 %v2128, %v9827
    %v9829 = vrot.slane %v9798, %v9828
    %v9830 = vlaneseq
    %v9831 = vshrl.u32 %v9830, 7
    %v9832 = vsub.s32 %v2128, %v9831
    %v9833 = vrot.slane %v9801, %v9832
    %v9834 = vsel %vm2161, %v9809, %v9805
    %v9835 = vsel %vm2163, %v9813, %v9834
    %v9836 = vsel %vm2165, %v9817, %v9835
    %v9837 = vsel %vm2167, %v9821, %v9836
    %v9838 = vsel %vm2169, %v9825, %v9837
    %v9839 = vsel %vm2171, %v9829, %v9838
    %v9840 = vsel %vm2173, %v9833, %v9839
    %v9842 = vsel %vm156, %v9840, 0.0
    %9843 = vadd.xlane.f32.xlu0 %v9842
    %v9844 = vpop.xlane.xlu0 %9843
    %v9845 = vrcp.pop %v9844
    %v9847 = vlaneseq
    %v9848 = vshrl.u32 %v9847, 7
    %v9849 = vsub.s32 0, %v9848
    %v9850 = vrot.slane %v9845, %v9849
    %v9851 = vlaneseq
    %v9852 = vshrl.u32 %v9851, 7
    %v9853 = vsub.s32 1, %v9852
    %v9854 = vrot.slane %v9845, %v9853
    %v9855 = vlaneseq
    %v9856 = vshrl.u32 %v9855, 7
    %v9857 = vsub.s32 2, %v9856
    %v9858 = vrot.slane %v9845, %v9857
    %v9859 = vlaneseq
    %v9860 = vshrl.u32 %v9859, 7
    %v9861 = vsub.s32 3, %v9860
    %v9862 = vrot.slane %v9845, %v9861
    %v9863 = vlaneseq
    %v9864 = vshrl.u32 %v9863, 7
    %v9865 = vsub.s32 4, %v9864
    %v9866 = vrot.slane %v9845, %v9865
    %v9867 = vlaneseq
    %v9868 = vshrl.u32 %v9867, 7
    %v9869 = vsub.s32 5, %v9868
    %v9870 = vrot.slane %v9845, %v9869
    %v9871 = vlaneseq
    %v9872 = vshrl.u32 %v9871, 7
    %v9873 = vsub.s32 6, %v9872
    %v9874 = vrot.slane %v9845, %v9873
    %v9875 = vlaneseq
    %v9876 = vshrl.u32 %v9875, 7
    %v9877 = vsub.s32 7, %v9876
    %v9878 = vrot.slane %v9845, %v9877
    %v9887 = vmul.f32 %v9755, %v9850
    %v9888 = vmul.f32 %v9757, %v9854
    %v9889 = vmul.f32 %v9759, %v9858
    %v9890 = vmul.f32 %v9761, %v9862
    %v9891 = vmul.f32 %v9763, %v9866
    %v9892 = vmul.f32 %v9765, %v9870
    %v9893 = vmul.f32 %v9767, %v9874
    %v9894 = vmul.f32 %v9769, %v9878
    %9896 = vset.pattern.permute.xlu0 0
    %9897 = vperm.xlu0 %9896, %v9887
    %v9898 = vpop.permute.xlu0 %9897
    %9901 = vset.pattern.permute.xlu0 0
    %9902 = vperm.xlu0 %9901, %v9888
    %v9903 = vpop.permute.xlu0 %9902
    %9906 = vset.pattern.permute.xlu0 0
    %9907 = vperm.xlu0 %9906, %v9889
    %v9908 = vpop.permute.xlu0 %9907
    %9911 = vset.pattern.permute.xlu0 0
    %9912 = vperm.xlu0 %9911, %v9890
    %v9913 = vpop.permute.xlu0 %9912
    %9916 = vset.pattern.permute.xlu0 0
    %9917 = vperm.xlu0 %9916, %v9891
    %v9918 = vpop.permute.xlu0 %9917
    %9921 = vset.pattern.permute.xlu0 0
    %9922 = vperm.xlu0 %9921, %v9892
    %v9923 = vpop.permute.xlu0 %9922
    %9926 = vset.pattern.permute.xlu0 0
    %9927 = vperm.xlu0 %9926, %v9893
    %v9928 = vpop.permute.xlu0 %9927
    %9931 = vset.pattern.permute.xlu0 0
    %9932 = vperm.xlu0 %9931, %v9894
    %v9933 = vpop.permute.xlu0 %9932
    %v9935 = vmul.f32 %v9898, %v1862
    %v9936 = vmul.f32 %v9903, %v1863
    %v9937 = vmul.f32 %v9908, %v1864
    %v9938 = vmul.f32 %v9913, %v1865
    %v9939 = vmul.f32 %v9918, %v1866
    %v9940 = vmul.f32 %v9923, %v1867
    %v9941 = vmul.f32 %v9928, %v1868
    %v9942 = vmul.f32 %v9933, %v1869
    %v9943 = vrot.slane %v9935, 4
    %v9944 = vadd.f32 %v9935, %v9943
    %v9945 = vrot.slane %v9944, 2
    %v9946 = vadd.f32 %v9944, %v9945
    %v9947 = vrot.slane %v9946, 1
    %v9948 = vadd.f32 %v9946, %v9947
    %v9949 = vrot.slane %v9936, 4
    %v9950 = vadd.f32 %v9936, %v9949
    %v9951 = vrot.slane %v9950, 2
    %v9952 = vadd.f32 %v9950, %v9951
    %v9953 = vrot.slane %v9952, 1
    %v9954 = vadd.f32 %v9952, %v9953
    %v9955 = vrot.slane %v9937, 4
    %v9956 = vadd.f32 %v9937, %v9955
    %v9957 = vrot.slane %v9956, 2
    %v9958 = vadd.f32 %v9956, %v9957
    %v9959 = vrot.slane %v9958, 1
    %v9960 = vadd.f32 %v9958, %v9959
    %v9961 = vrot.slane %v9938, 4
    %v9962 = vadd.f32 %v9938, %v9961
    %v9963 = vrot.slane %v9962, 2
    %v9964 = vadd.f32 %v9962, %v9963
    %v9965 = vrot.slane %v9964, 1
    %v9966 = vadd.f32 %v9964, %v9965
    %v9967 = vrot.slane %v9939, 4
    %v9968 = vadd.f32 %v9939, %v9967
    %v9969 = vrot.slane %v9968, 2
    %v9970 = vadd.f32 %v9968, %v9969
    %v9971 = vrot.slane %v9970, 1
    %v9972 = vadd.f32 %v9970, %v9971
    %v9973 = vrot.slane %v9940, 4
    %v9974 = vadd.f32 %v9940, %v9973
    %v9975 = vrot.slane %v9974, 2
    %v9976 = vadd.f32 %v9974, %v9975
    %v9977 = vrot.slane %v9976, 1
    %v9978 = vadd.f32 %v9976, %v9977
    %v9979 = vrot.slane %v9941, 4
    %v9980 = vadd.f32 %v9941, %v9979
    %v9981 = vrot.slane %v9980, 2
    %v9982 = vadd.f32 %v9980, %v9981
    %v9983 = vrot.slane %v9982, 1
    %v9984 = vadd.f32 %v9982, %v9983
    %v9985 = vrot.slane %v9942, 4
    %v9986 = vadd.f32 %v9942, %v9985
    %v9987 = vrot.slane %v9986, 2
    %v9988 = vadd.f32 %v9986, %v9987
    %v9989 = vrot.slane %v9988, 1
    %v9990 = vadd.f32 %v9988, %v9989
    %v9999 = vsel %vm2161, %v9954, %v9948
    %v10000 = vsel %vm2163, %v9960, %v9999
    %v10001 = vsel %vm2165, %v9966, %v10000
    %v10002 = vsel %vm2167, %v9972, %v10001
    %v10003 = vsel %vm2169, %v9978, %v10002
    %v10004 = vsel %vm2171, %v9984, %v10003
    %v10005 = vsel %vm2173, %v9990, %v10004
    %10007 = vmatprep.subr.mxu0 %v1874
    %10008 = vmatpush1.msra.mxu0 %v1873
    %10009 = vmatprep.subr.mxu0 %v1877
    %10010 = vmatpush1.msra.mxu0 %v1876
    %10011 = vmatprep.subr.mxu0 %v1880
    %10012 = vmatpush1.msra.mxu0 %v1879
    %10013 = vmatprep.subr.mxu0 %v1883
    %10014 = vmatpush1.msra.mxu0 %v1882
    %10015 = vmatprep.subr.mxu0 %v1886
    %10016 = vmatpush1.msra.mxu0 %v1885
    %10017 = vmatprep.subr.mxu0 %v1889
    %10018 = vmatpush1.msra.mxu0 %v1888
    %10019 = vmatprep.subr.mxu0 %v1892
    %10020 = vmatpush1.msra.mxu0 %v1891
    %10021 = vmatprep.subr.mxu0 %v1895
    %10022 = vmatpush1.msra.mxu0 %v1894
    %10023 = vmatprep.subr.mxu0 %v1898
    %10024 = vmatpush1.msra.mxu0 %v1897
    %10025 = vmatprep.subr.mxu0 %v1901
    %10026 = vmatpush1.msra.mxu0 %v1900
    %10027 = vmatprep.subr.mxu0 %v1904
    %10028 = vmatpush1.msra.mxu0 %v1903
    %10029 = vmatprep.subr.mxu0 %v1907
    %10030 = vmatpush1.msra.mxu0 %v1906
    %10031 = vmatprep.subr.mxu0 %v1910
    %10032 = vmatpush1.msra.mxu0 %v1909
    %10033 = vmatprep.subr.mxu0 %v1913
    %10034 = vmatpush1.msra.mxu0 %v1912
    %10035 = vmatprep.subr.mxu0 %v1916
    %10036 = vmatpush1.msra.mxu0 %v1915
    %10037 = vmatprep.subr.mxu0 %v1919
    %10038 = vmatpush1.msra.mxu0 %v1918
    %10039 = vmatprep.subr.mxu0 0.0
    %10040 = vmatpush1.msra.mxu0 0.0
    %10041 = vmatprep.subr.mxu0 0.0
    %10042 = vmatpush1.msra.mxu0 0.0
    %10043 = vmatprep.subr.mxu0 0.0
    %10044 = vmatpush1.msra.mxu0 0.0
    %10045 = vmatprep.subr.mxu0 0.0
    %10046 = vmatpush1.msra.mxu0 0.0
    %10047 = vmatprep.subr.mxu0 0.0
    %10048 = vmatpush1.msra.mxu0 0.0
    %10049 = vmatprep.subr.mxu0 0.0
    %10050 = vmatpush1.msra.mxu0 0.0
    %10051 = vmatprep.subr.mxu0 0.0
    %10052 = vmatpush1.msra.mxu0 0.0
    %10053 = vmatprep.subr.mxu0 0.0
    %10054 = vmatpush1.msra.mxu0 0.0
    %10055 = vmatprep.subr.mxu0 0.0
    %10056 = vmatpush1.msra.mxu0 0.0
    %10057 = vmatprep.subr.mxu0 0.0
    %10058 = vmatpush1.msra.mxu0 0.0
    %10059 = vmatprep.subr.mxu0 0.0
    %10060 = vmatpush1.msra.mxu0 0.0
    %10061 = vmatprep.subr.mxu0 0.0
    %10062 = vmatpush1.msra.mxu0 0.0
    %10063 = vmatprep.subr.mxu0 0.0
    %10064 = vmatpush1.msra.mxu0 0.0
    %10065 = vmatprep.subr.mxu0 0.0
    %10066 = vmatpush1.msra.mxu0 0.0
    %10067 = vmatprep.subr.mxu0 0.0
    %10068 = vmatpush1.msra.mxu0 0.0
    %10069 = vmatprep.subr.mxu0 0.0
    %10070 = vmatpush1.msra.mxu0 0.0
    %10071 = vmatprep.mubr.f32.mxu0 0.0
    %10072 = vmatmul.mubr.f32.gmra.mrb[0].mxu0 %v10005
    %v10073 = vpop.f32.mrb[0].mxu0
    %v10074 = vadd.f32 0.0, %v10073
    %v10075 = vpop.f32.mrb[0].mxu0
    %v10076 = vadd.f32 0.0, %v10075
    %10077 = vdwg.mxu0
    %10078 = vmatprep.subr.mxu0 0.0
    %10079 = vmatpush1.msra.mxu0 %v1875
    %10080 = vmatprep.subr.mxu0 0.0
    %10081 = vmatpush1.msra.mxu0 %v1878
    %10082 = vmatprep.subr.mxu0 0.0
    %10083 = vmatpush1.msra.mxu0 %v1881
    %10084 = vmatprep.subr.mxu0 0.0
    %10085 = vmatpush1.msra.mxu0 %v1884
    %10086 = vmatprep.subr.mxu0 0.0
    %10087 = vmatpush1.msra.mxu0 %v1887
    %10088 = vmatprep.subr.mxu0 0.0
    %10089 = vmatpush1.msra.mxu0 %v1890
    %10090 = vmatprep.subr.mxu0 0.0
    %10091 = vmatpush1.msra.mxu0 %v1893
    %10092 = vmatprep.subr.mxu0 0.0
    %10093 = vmatpush1.msra.mxu0 %v1896
    %10094 = vmatprep.subr.mxu0 0.0
    %10095 = vmatpush1.msra.mxu0 %v1899
    %10096 = vmatprep.subr.mxu0 0.0
    %10097 = vmatpush1.msra.mxu0 %v1902
    %10098 = vmatprep.subr.mxu0 0.0
    %10099 = vmatpush1.msra.mxu0 %v1905
    %10100 = vmatprep.subr.mxu0 0.0
    %10101 = vmatpush1.msra.mxu0 %v1908
    %10102 = vmatprep.subr.mxu0 0.0
    %10103 = vmatpush1.msra.mxu0 %v1911
    %10104 = vmatprep.subr.mxu0 0.0
    %10105 = vmatpush1.msra.mxu0 %v1914
    %10106 = vmatprep.subr.mxu0 0.0
    %10107 = vmatpush1.msra.mxu0 %v1917
    %10108 = vmatprep.subr.mxu0 0.0
    %10109 = vmatpush1.msra.mxu0 %v1920
    %10110 = vmatprep.subr.mxu0 0.0
    %10111 = vmatpush1.msra.mxu0 0.0
    %10112 = vmatprep.subr.mxu0 0.0
    %10113 = vmatpush1.msra.mxu0 0.0
    %10114 = vmatprep.subr.mxu0 0.0
    %10115 = vmatpush1.msra.mxu0 0.0
    %10116 = vmatprep.subr.mxu0 0.0
    %10117 = vmatpush1.msra.mxu0 0.0
    %10118 = vmatprep.subr.mxu0 0.0
    %10119 = vmatpush1.msra.mxu0 0.0
    %10120 = vmatprep.subr.mxu0 0.0
    %10121 = vmatpush1.msra.mxu0 0.0
    %10122 = vmatprep.subr.mxu0 0.0
    %10123 = vmatpush1.msra.mxu0 0.0
    %10124 = vmatprep.subr.mxu0 0.0
    %10125 = vmatpush1.msra.mxu0 0.0
    %10126 = vmatprep.subr.mxu0 0.0
    %10127 = vmatpush1.msra.mxu0 0.0
    %10128 = vmatprep.subr.mxu0 0.0
    %10129 = vmatpush1.msra.mxu0 0.0
    %10130 = vmatprep.subr.mxu0 0.0
    %10131 = vmatpush1.msra.mxu0 0.0
    %10132 = vmatprep.subr.mxu0 0.0
    %10133 = vmatpush1.msra.mxu0 0.0
    %10134 = vmatprep.subr.mxu0 0.0
    %10135 = vmatpush1.msra.mxu0 0.0
    %10136 = vmatprep.subr.mxu0 0.0
    %10137 = vmatpush1.msra.mxu0 0.0
    %10138 = vmatprep.subr.mxu0 0.0
    %10139 = vmatpush1.msra.mxu0 0.0
    %10140 = vmatprep.subr.mxu0 0.0
    %10141 = vmatpush1.msra.mxu0 0.0
    %10142 = vmatprep.mubr.f32.mxu0 0.0
    %10143 = vmatmul.mubr.f32.gmra.mrb[0].mxu0 %v10005
    %v10144 = vpop.f32.mrb[0].mxu0
    %v10145 = vadd.f32 0.0, %v10144
    %v10146 = vpop.f32.mrb[0].mxu0
    %10147 = vdwg.mxu0
    %v10149 = vsel %vm156, %v9539, 0
    %10151 = vmatprep.subr.mxu0 %v1871
    %10152 = vmatpush1.msra.mxu0 %v1870
    %10153 = vmatprep.subr.mxu0 0.0
    %10154 = vmatpush1.msra.mxu0 0.0
    %10155 = vmatprep.subr.mxu0 0.0
    %10156 = vmatpush1.msra.mxu0 0.0
    %10157 = vmatprep.subr.mxu0 0.0
    %10158 = vmatpush1.msra.mxu0 0.0
    %10159 = vmatprep.subr.mxu0 0.0
    %10160 = vmatpush1.msra.mxu0 0.0
    %10161 = vmatprep.subr.mxu0 0.0
    %10162 = vmatpush1.msra.mxu0 0.0
    %10163 = vmatprep.subr.mxu0 0.0
    %10164 = vmatpush1.msra.mxu0 0.0
    %10165 = vmatprep.subr.mxu0 0.0
    %10166 = vmatpush1.msra.mxu0 0.0
    %10167 = vmatprep.subr.mxu0 0.0
    %10168 = vmatpush1.msra.mxu0 0.0
    %10169 = vmatprep.subr.mxu0 0.0
    %10170 = vmatpush1.msra.mxu0 0.0
    %10171 = vmatprep.subr.mxu0 0.0
    %10172 = vmatpush1.msra.mxu0 0.0
    %10173 = vmatprep.subr.mxu0 0.0
    %10174 = vmatpush1.msra.mxu0 0.0
    %10175 = vmatprep.subr.mxu0 0.0
    %10176 = vmatpush1.msra.mxu0 0.0
    %10177 = vmatprep.subr.mxu0 0.0
    %10178 = vmatpush1.msra.mxu0 0.0
    %10179 = vmatprep.subr.mxu0 0.0
    %10180 = vmatpush1.msra.mxu0 0.0
    %10181 = vmatprep.subr.mxu0 0.0
    %10182 = vmatpush1.msra.mxu0 0.0
    %10183 = vmatprep.subr.mxu0 0.0
    %10184 = vmatpush1.msra.mxu0 0.0
    %10185 = vmatprep.subr.mxu0 0.0
    %10186 = vmatpush1.msra.mxu0 0.0
    %10187 = vmatprep.subr.mxu0 0.0
    %10188 = vmatpush1.msra.mxu0 0.0
    %10189 = vmatprep.subr.mxu0 0.0
    %10190 = vmatpush1.msra.mxu0 0.0
    %10191 = vmatprep.subr.mxu0 0.0
    %10192 = vmatpush1.msra.mxu0 0.0
    %10193 = vmatprep.subr.mxu0 0.0
    %10194 = vmatpush1.msra.mxu0 0.0
    %10195 = vmatprep.subr.mxu0 0.0
    %10196 = vmatpush1.msra.mxu0 0.0
    %10197 = vmatprep.subr.mxu0 0.0
    %10198 = vmatpush1.msra.mxu0 0.0
    %10199 = vmatprep.subr.mxu0 0.0
    %10200 = vmatpush1.msra.mxu0 0.0
    %10201 = vmatprep.subr.mxu0 0.0
    %10202 = vmatpush1.msra.mxu0 0.0
    %10203 = vmatprep.subr.mxu0 0.0
    %10204 = vmatpush1.msra.mxu0 0.0
    %10205 = vmatprep.subr.mxu0 0.0
    %10206 = vmatpush1.msra.mxu0 0.0
    %10207 = vmatprep.subr.mxu0 0.0
    %10208 = vmatpush1.msra.mxu0 0.0
    %10209 = vmatprep.subr.mxu0 0.0
    %10210 = vmatpush1.msra.mxu0 0.0
    %10211 = vmatprep.subr.mxu0 0.0
    %10212 = vmatpush1.msra.mxu0 0.0
    %10213 = vmatprep.subr.mxu0 0.0
    %10214 = vmatpush1.msra.mxu0 0.0
    %10215 = vmatprep.mubr.f32.mxu0 0.0
    %10216 = vmatmul.mubr.f32.gmra.mrb[0].mxu0 %v10149
    %v10217 = vpop.f32.mrb[0].mxu0
    %v10218 = vadd.f32 %v10074, %v10217
    %v10219 = vpop.f32.mrb[0].mxu0
    %v10220 = vadd.f32 %v10076, %v10219
    %10221 = vdwg.mxu0
    %10222 = vmatprep.subr.mxu0 0.0
    %10223 = vmatpush1.msra.mxu0 %v1872
    %10224 = vmatprep.subr.mxu0 0.0
    %10225 = vmatpush1.msra.mxu0 0.0
    %10226 = vmatprep.subr.mxu0 0.0
    %10227 = vmatpush1.msra.mxu0 0.0
    %10228 = vmatprep.subr.mxu0 0.0
    %10229 = vmatpush1.msra.mxu0 0.0
    %10230 = vmatprep.subr.mxu0 0.0
    %10231 = vmatpush1.msra.mxu0 0.0
    %10232 = vmatprep.subr.mxu0 0.0
    %10233 = vmatpush1.msra.mxu0 0.0
    %10234 = vmatprep.subr.mxu0 0.0
    %10235 = vmatpush1.msra.mxu0 0.0
    %10236 = vmatprep.subr.mxu0 0.0
    %10237 = vmatpush1.msra.mxu0 0.0
    %10238 = vmatprep.subr.mxu0 0.0
    %10239 = vmatpush1.msra.mxu0 0.0
    %10240 = vmatprep.subr.mxu0 0.0
    %10241 = vmatpush1.msra.mxu0 0.0
    %10242 = vmatprep.subr.mxu0 0.0
    %10243 = vmatpush1.msra.mxu0 0.0
    %10244 = vmatprep.subr.mxu0 0.0
    %10245 = vmatpush1.msra.mxu0 0.0
    %10246 = vmatprep.subr.mxu0 0.0
    %10247 = vmatpush1.msra.mxu0 0.0
    %10248 = vmatprep.subr.mxu0 0.0
    %10249 = vmatpush1.msra.mxu0 0.0
    %10250 = vmatprep.subr.mxu0 0.0
    %10251 = vmatpush1.msra.mxu0 0.0
    %10252 = vmatprep.subr.mxu0 0.0
    %10253 = vmatpush1.msra.mxu0 0.0
    %10254 = vmatprep.subr.mxu0 0.0
    %10255 = vmatpush1.msra.mxu0 0.0
    %10256 = vmatprep.subr.mxu0 0.0
    %10257 = vmatpush1.msra.mxu0 0.0
    %10258 = vmatprep.subr.mxu0 0.0
    %10259 = vmatpush1.msra.mxu0 0.0
    %10260 = vmatprep.subr.mxu0 0.0
    %10261 = vmatpush1.msra.mxu0 0.0
    %10262 = vmatprep.subr.mxu0 0.0
    %10263 = vmatpush1.msra.mxu0 0.0
    %10264 = vmatprep.subr.mxu0 0.0
    %10265 = vmatpush1.msra.mxu0 0.0
    %10266 = vmatprep.subr.mxu0 0.0
    %10267 = vmatpush1.msra.mxu0 0.0
    %10268 = vmatprep.subr.mxu0 0.0
    %10269 = vmatpush1.msra.mxu0 0.0
    %10270 = vmatprep.subr.mxu0 0.0
    %10271 = vmatpush1.msra.mxu0 0.0
    %10272 = vmatprep.subr.mxu0 0.0
    %10273 = vmatpush1.msra.mxu0 0.0
    %10274 = vmatprep.subr.mxu0 0.0
    %10275 = vmatpush1.msra.mxu0 0.0
    %10276 = vmatprep.subr.mxu0 0.0
    %10277 = vmatpush1.msra.mxu0 0.0
    %10278 = vmatprep.subr.mxu0 0.0
    %10279 = vmatpush1.msra.mxu0 0.0
    %10280 = vmatprep.subr.mxu0 0.0
    %10281 = vmatpush1.msra.mxu0 0.0
    %10282 = vmatprep.subr.mxu0 0.0
    %10283 = vmatpush1.msra.mxu0 0.0
    %10284 = vmatprep.subr.mxu0 0.0
    %10285 = vmatpush1.msra.mxu0 0.0
    %10286 = vmatprep.mubr.f32.mxu0 0.0
    %10287 = vmatmul.mubr.f32.gmra.mrb[0].mxu0 %v10149
    %v10288 = vpop.f32.mrb[0].mxu0
    %v10289 = vadd.f32 %v10145, %v10288
    %v10290 = vpop.f32.mrb[0].mxu0
    %10291 = vdwg.mxu0
    %v10292 = vadd.f32 %v10218, %v2770
    %v10293 = vadd.f32 %v10220, %v2774
    %v10294 = vadd.f32 %v10289, %v2778
    %10295 = vmatprep.subr.mxu0 %v1922
    %10296 = vmatpush1.msra.mxu0 %v1921
    %10297 = vmatprep.subr.mxu0 %v1925
    %10298 = vmatpush1.msra.mxu0 %v1924
    %10299 = vmatprep.subr.mxu0 %v1928
    %10300 = vmatpush1.msra.mxu0 %v1927
    %10301 = vmatprep.subr.mxu0 %v1931
    %10302 = vmatpush1.msra.mxu0 %v1930
    %10303 = vmatprep.subr.mxu0 %v1934
    %10304 = vmatpush1.msra.mxu0 %v1933
    %10305 = vmatprep.subr.mxu0 %v1937
    %10306 = vmatpush1.msra.mxu0 %v1936
    %10307 = vmatprep.subr.mxu0 %v1940
    %10308 = vmatpush1.msra.mxu0 %v1939
    %10309 = vmatprep.subr.mxu0 %v1943
    %10310 = vmatpush1.msra.mxu0 %v1942
    %10311 = vmatprep.subr.mxu0 %v1946
    %10312 = vmatpush1.msra.mxu0 %v1945
    %10313 = vmatprep.subr.mxu0 %v1949
    %10314 = vmatpush1.msra.mxu0 %v1948
    %10315 = vmatprep.subr.mxu0 %v1952
    %10316 = vmatpush1.msra.mxu0 %v1951
    %10317 = vmatprep.subr.mxu0 %v1955
    %10318 = vmatpush1.msra.mxu0 %v1954
    %10319 = vmatprep.subr.mxu0 %v1958
    %10320 = vmatpush1.msra.mxu0 %v1957
    %10321 = vmatprep.subr.mxu0 %v1961
    %10322 = vmatpush1.msra.mxu0 %v1960
    %10323 = vmatprep.subr.mxu0 %v1964
    %10324 = vmatpush1.msra.mxu0 %v1963
    %10325 = vmatprep.subr.mxu0 %v1967
    %10326 = vmatpush1.msra.mxu0 %v1966
    %10327 = vmatprep.subr.mxu0 0.0
    %10328 = vmatpush1.msra.mxu0 0.0
    %10329 = vmatprep.subr.mxu0 0.0
    %10330 = vmatpush1.msra.mxu0 0.0
    %10331 = vmatprep.subr.mxu0 0.0
    %10332 = vmatpush1.msra.mxu0 0.0
    %10333 = vmatprep.subr.mxu0 0.0
    %10334 = vmatpush1.msra.mxu0 0.0
    %10335 = vmatprep.subr.mxu0 0.0
    %10336 = vmatpush1.msra.mxu0 0.0
    %10337 = vmatprep.subr.mxu0 0.0
    %10338 = vmatpush1.msra.mxu0 0.0
    %10339 = vmatprep.subr.mxu0 0.0
    %10340 = vmatpush1.msra.mxu0 0.0
    %10341 = vmatprep.subr.mxu0 0.0
    %10342 = vmatpush1.msra.mxu0 0.0
    %10343 = vmatprep.subr.mxu0 0.0
    %10344 = vmatpush1.msra.mxu0 0.0
    %10345 = vmatprep.subr.mxu0 0.0
    %10346 = vmatpush1.msra.mxu0 0.0
    %10347 = vmatprep.subr.mxu0 0.0
    %10348 = vmatpush1.msra.mxu0 0.0
    %10349 = vmatprep.subr.mxu0 0.0
    %10350 = vmatpush1.msra.mxu0 0.0
    %10351 = vmatprep.subr.mxu0 0.0
    %10352 = vmatpush1.msra.mxu0 0.0
    %10353 = vmatprep.subr.mxu0 0.0
    %10354 = vmatpush1.msra.mxu0 0.0
    %10355 = vmatprep.subr.mxu0 0.0
    %10356 = vmatpush1.msra.mxu0 0.0
    %10357 = vmatprep.subr.mxu0 0.0
    %10358 = vmatpush1.msra.mxu0 0.0
    %10359 = vmatprep.mubr.f32.mxu0 0.0
    %10360 = vmatmul.mubr.f32.gmra.mrb[0].mxu0 %v9386
    %v10361 = vpop.f32.mrb[0].mxu0
    %v10362 = vadd.f32 %v2789, %v10361
    %v10363 = vpop.f32.mrb[0].mxu0
    %v10364 = vadd.f32 %v2793, %v10363
    %10365 = vdwg.mxu0
    %10366 = vmatprep.subr.mxu0 0.0
    %10367 = vmatpush1.msra.mxu0 %v1923
    %10368 = vmatprep.subr.mxu0 0.0
    %10369 = vmatpush1.msra.mxu0 %v1926
    %10370 = vmatprep.subr.mxu0 0.0
    %10371 = vmatpush1.msra.mxu0 %v1929
    %10372 = vmatprep.subr.mxu0 0.0
    %10373 = vmatpush1.msra.mxu0 %v1932
    %10374 = vmatprep.subr.mxu0 0.0
    %10375 = vmatpush1.msra.mxu0 %v1935
    %10376 = vmatprep.subr.mxu0 0.0
    %10377 = vmatpush1.msra.mxu0 %v1938
    %10378 = vmatprep.subr.mxu0 0.0
    %10379 = vmatpush1.msra.mxu0 %v1941
    %10380 = vmatprep.subr.mxu0 0.0
    %10381 = vmatpush1.msra.mxu0 %v1944
    %10382 = vmatprep.subr.mxu0 0.0
    %10383 = vmatpush1.msra.mxu0 %v1947
    %10384 = vmatprep.subr.mxu0 0.0
    %10385 = vmatpush1.msra.mxu0 %v1950
    %10386 = vmatprep.subr.mxu0 0.0
    %10387 = vmatpush1.msra.mxu0 %v1953
    %10388 = vmatprep.subr.mxu0 0.0
    %10389 = vmatpush1.msra.mxu0 %v1956
    %10390 = vmatprep.subr.mxu0 0.0
    %10391 = vmatpush1.msra.mxu0 %v1959
    %10392 = vmatprep.subr.mxu0 0.0
    %10393 = vmatpush1.msra.mxu0 %v1962
    %10394 = vmatprep.subr.mxu0 0.0
    %10395 = vmatpush1.msra.mxu0 %v1965
    %10396 = vmatprep.subr.mxu0 0.0
    %10397 = vmatpush1.msra.mxu0 %v1968
    %10398 = vmatprep.subr.mxu0 0.0
    %10399 = vmatpush1.msra.mxu0 0.0
    %10400 = vmatprep.subr.mxu0 0.0
    %10401 = vmatpush1.msra.mxu0 0.0
    %10402 = vmatprep.subr.mxu0 0.0
    %10403 = vmatpush1.msra.mxu0 0.0
    %10404 = vmatprep.subr.mxu0 0.0
    %10405 = vmatpush1.msra.mxu0 0.0
    %10406 = vmatprep.subr.mxu0 0.0
    %10407 = vmatpush1.msra.mxu0 0.0
    %10408 = vmatprep.subr.mxu0 0.0
    %10409 = vmatpush1.msra.mxu0 0.0
    %10410 = vmatprep.subr.mxu0 0.0
    %10411 = vmatpush1.msra.mxu0 0.0
    %10412 = vmatprep.subr.mxu0 0.0
    %10413 = vmatpush1.msra.mxu0 0.0
    %10414 = vmatprep.subr.mxu0 0.0
    %10415 = vmatpush1.msra.mxu0 0.0
    %10416 = vmatprep.subr.mxu0 0.0
    %10417 = vmatpush1.msra.mxu0 0.0
    %10418 = vmatprep.subr.mxu0 0.0
    %10419 = vmatpush1.msra.mxu0 0.0
    %10420 = vmatprep.subr.mxu0 0.0
    %10421 = vmatpush1.msra.mxu0 0.0
    %10422 = vmatprep.subr.mxu0 0.0
    %10423 = vmatpush1.msra.mxu0 0.0
    %10424 = vmatprep.subr.mxu0 0.0
    %10425 = vmatpush1.msra.mxu0 0.0
    %10426 = vmatprep.subr.mxu0 0.0
    %10427 = vmatpush1.msra.mxu0 0.0
    %10428 = vmatprep.subr.mxu0 0.0
    %10429 = vmatpush1.msra.mxu0 0.0
    %10430 = vmatprep.mubr.f32.mxu0 0.0
    %10431 = vmatmul.mubr.f32.gmra.mrb[0].mxu0 %v9386
    %v10432 = vpop.f32.mrb[0].mxu0
    %v10433 = vadd.f32 %v2797, %v10432
    %v10434 = vpop.f32.mrb[0].mxu0
    %10435 = vdwg.mxu0
    %v10436 = vadd.f32 %v10292, %v10362
    %v10437 = vxor.u32 %v10436, 2147483648
    %v10438 = vmul.f32 %v10437, 1.442695
    %v10439 = vpow.pop %v10438
    %v10440 = vadd.f32 %v10439, 1.0
    %v10441 = vrcp.pop %v10440
    %v10442 = vmul.f32 1.0, %v10441
    %v10443 = vadd.f32 %v10293, %v10364
    %v10444 = vxor.u32 %v10443, 2147483648
    %v10445 = vmul.f32 %v10444, 1.442695
    %v10446 = vpow.pop %v10445
    %v10447 = vadd.f32 %v10446, 1.0
    %v10448 = vrcp.pop %v10447
    %v10449 = vmul.f32 1.0, %v10448
    %v10450 = vmul.f32 %v10442, %v10433
    %v10451 = vadd.f32 %v10294, %v10450
    %v10452 = vtanh.pop %v10451
    %v10453 = vsub.f32 1.0, %v10449
    %v10454 = vmul.f32 %v10453, %v10452
    %v10455 = vmul.f32 %v10449, %v9386
    %v10456 = vadd.f32 %v10454, %v10455
    %10457 = vmatprep.subr.mxu0 0.0
    %10458 = vmatpush1.msra.mxu0 %v1987
    %10459 = vmatprep.subr.mxu0 0.0
    %10460 = vmatpush1.msra.mxu0 %v1988
    %10461 = vmatprep.subr.mxu0 0.0
    %10462 = vmatpush1.msra.mxu0 %v1989
    %10463 = vmatprep.subr.mxu0 0.0
    %10464 = vmatpush1.msra.mxu0 %v1990
    %10465 = vmatprep.subr.mxu0 0.0
    %10466 = vmatpush1.msra.mxu0 %v1991
    %10467 = vmatprep.subr.mxu0 0.0
    %10468 = vmatpush1.msra.mxu0 %v1992
    %10469 = vmatprep.subr.mxu0 0.0
    %10470 = vmatpush1.msra.mxu0 %v1993
    %10471 = vmatprep.subr.mxu0 0.0
    %10472 = vmatpush1.msra.mxu0 %v1994
    %10473 = vmatprep.subr.mxu0 0.0
    %10474 = vmatpush1.msra.mxu0 %v1995
    %10475 = vmatprep.subr.mxu0 0.0
    %10476 = vmatpush1.msra.mxu0 %v1996
    %10477 = vmatprep.subr.mxu0 0.0
    %10478 = vmatpush1.msra.mxu0 %v1997
    %10479 = vmatprep.subr.mxu0 0.0
    %10480 = vmatpush1.msra.mxu0 %v1998
    %10481 = vmatprep.subr.mxu0 0.0
    %10482 = vmatpush1.msra.mxu0 %v1999
    %10483 = vmatprep.subr.mxu0 0.0
    %10484 = vmatpush1.msra.mxu0 %v2000
    %10485 = vmatprep.subr.mxu0 0.0
    %10486 = vmatpush1.msra.mxu0 %v2001
    %10487 = vmatprep.subr.mxu0 0.0
    %10488 = vmatpush1.msra.mxu0 %v2002
    %10489 = vmatprep.subr.mxu0 0.0
    %10490 = vmatpush1.msra.mxu0 0.0
    %10491 = vmatprep.subr.mxu0 0.0
    %10492 = vmatpush1.msra.mxu0 0.0
    %10493 = vmatprep.subr.mxu0 0.0
    %10494 = vmatpush1.msra.mxu0 0.0
    %10495 = vmatprep.subr.mxu0 0.0
    %10496 = vmatpush1.msra.mxu0 0.0
    %10497 = vmatprep.subr.mxu0 0.0
    %10498 = vmatpush1.msra.mxu0 0.0
    %10499 = vmatprep.subr.mxu0 0.0
    %10500 = vmatpush1.msra.mxu0 0.0
    %10501 = vmatprep.subr.mxu0 0.0
    %10502 = vmatpush1.msra.mxu0 0.0
    %10503 = vmatprep.subr.mxu0 0.0
    %10504 = vmatpush1.msra.mxu0 0.0
    %10505 = vmatprep.subr.mxu0 0.0
    %10506 = vmatpush1.msra.mxu0 0.0
    %10507 = vmatprep.subr.mxu0 0.0
    %10508 = vmatpush1.msra.mxu0 0.0
    %10509 = vmatprep.subr.mxu0 0.0
    %10510 = vmatpush1.msra.mxu0 0.0
    %10511 = vmatprep.subr.mxu0 0.0
    %10512 = vmatpush1.msra.mxu0 0.0
    %10513 = vmatprep.subr.mxu0 0.0
    %10514 = vmatpush1.msra.mxu0 0.0
    %10515 = vmatprep.subr.mxu0 0.0
    %10516 = vmatpush1.msra.mxu0 0.0
    %10517 = vmatprep.subr.mxu0 0.0
    %10518 = vmatpush1.msra.mxu0 0.0
    %10519 = vmatprep.subr.mxu0 0.0
    %10520 = vmatpush1.msra.mxu0 0.0
    %10521 = vmatprep.mubr.f32.mxu0 0.0
    %10522 = vmatmul.mubr.f32.gmra.mrb[0].mxu0 %v10005
    %v10523 = vpop.f32.mrb[0].mxu0
    %v10524 = vadd.f32 0.0, %v10523
    %v10525 = vpop.f32.mrb[0].mxu0
    %10526 = vdwg.mxu0
    %10527 = vmatprep.subr.mxu0 0.0
    %10528 = vmatpush1.msra.mxu0 %v1971
    %10529 = vmatprep.subr.mxu0 0.0
    %10530 = vmatpush1.msra.mxu0 %v1972
    %10531 = vmatprep.subr.mxu0 0.0
    %10532 = vmatpush1.msra.mxu0 %v1973
    %10533 = vmatprep.subr.mxu0 0.0
    %10534 = vmatpush1.msra.mxu0 %v1974
    %10535 = vmatprep.subr.mxu0 0.0
    %10536 = vmatpush1.msra.mxu0 %v1975
    %10537 = vmatprep.subr.mxu0 0.0
    %10538 = vmatpush1.msra.mxu0 %v1976
    %10539 = vmatprep.subr.mxu0 0.0
    %10540 = vmatpush1.msra.mxu0 %v1977
    %10541 = vmatprep.subr.mxu0 0.0
    %10542 = vmatpush1.msra.mxu0 %v1978
    %10543 = vmatprep.subr.mxu0 0.0
    %10544 = vmatpush1.msra.mxu0 %v1979
    %10545 = vmatprep.subr.mxu0 0.0
    %10546 = vmatpush1.msra.mxu0 %v1980
    %10547 = vmatprep.subr.mxu0 0.0
    %10548 = vmatpush1.msra.mxu0 %v1981
    %10549 = vmatprep.subr.mxu0 0.0
    %10550 = vmatpush1.msra.mxu0 %v1982
    %10551 = vmatprep.subr.mxu0 0.0
    %10552 = vmatpush1.msra.mxu0 %v1983
    %10553 = vmatprep.subr.mxu0 0.0
    %10554 = vmatpush1.msra.mxu0 %v1984
    %10555 = vmatprep.subr.mxu0 0.0
    %10556 = vmatpush1.msra.mxu0 %v1985
    %10557 = vmatprep.subr.mxu0 0.0
    %10558 = vmatpush1.msra.mxu0 %v1986
    %10559 = vmatprep.subr.mxu0 0.0
    %10560 = vmatpush1.msra.mxu0 0.0
    %10561 = vmatprep.subr.mxu0 0.0
    %10562 = vmatpush1.msra.mxu0 0.0
    %10563 = vmatprep.subr.mxu0 0.0
    %10564 = vmatpush1.msra.mxu0 0.0
    %10565 = vmatprep.subr.mxu0 0.0
    %10566 = vmatpush1.msra.mxu0 0.0
    %10567 = vmatprep.subr.mxu0 0.0
    %10568 = vmatpush1.msra.mxu0 0.0
    %10569 = vmatprep.subr.mxu0 0.0
    %10570 = vmatpush1.msra.mxu0 0.0
    %10571 = vmatprep.subr.mxu0 0.0
    %10572 = vmatpush1.msra.mxu0 0.0
    %10573 = vmatprep.subr.mxu0 0.0
    %10574 = vmatpush1.msra.mxu0 0.0
    %10575 = vmatprep.subr.mxu0 0.0
    %10576 = vmatpush1.msra.mxu0 0.0
    %10577 = vmatprep.subr.mxu0 0.0
    %10578 = vmatpush1.msra.mxu0 0.0
    %10579 = vmatprep.subr.mxu0 0.0
    %10580 = vmatpush1.msra.mxu0 0.0
    %10581 = vmatprep.subr.mxu0 0.0
    %10582 = vmatpush1.msra.mxu0 0.0
    %10583 = vmatprep.subr.mxu0 0.0
    %10584 = vmatpush1.msra.mxu0 0.0
    %10585 = vmatprep.subr.mxu0 0.0
    %10586 = vmatpush1.msra.mxu0 0.0
    %10587 = vmatprep.subr.mxu0 0.0
    %10588 = vmatpush1.msra.mxu0 0.0
    %10589 = vmatprep.subr.mxu0 0.0
    %10590 = vmatpush1.msra.mxu0 0.0
    %10591 = vmatprep.mubr.f32.mxu0 0.0
    %10592 = vmatmul.mubr.f32.gmra.mrb[0].mxu0 %v10456
    %v10593 = vpop.f32.mrb[0].mxu0
    %v10594 = vadd.f32 %v10524, %v10593
    %v10595 = vpop.f32.mrb[0].mxu0
    %10596 = vdwg.mxu0
    %v10597 = vadd.f32 %v10594, %v3107
    %s10598 = scalar_lea.vmem [#allocation8], 56
    %10599 = vst [vmem:[%s10598] sm:$0xff] %v10597
    // Predicated region
    $region74: #{seq2seq_forward.1} parent=1 // pred_check
      _
    $region75: #{seq2seq_forward.1} parent=1 // pred_check_branch
      %10601 = sbr.rel (0) target = $region77
    $region76: #{seq2seq_forward.1} parent=1 // pred_region
      %s10603 = ssub.s32 1024, 1024
      %10604 = vsyncadd [#allocation5], %s10603
      %s10605 = sshll.u32 [#allocation8], 4
      %s10606 = int_to_ptr.vmem [resolvable:$true] %s10605
      %10611 = dma.vmem_to_hbm [thread:$0]  %s10606, 1024, %s16, [#allocation5], 128, 128, 8
    $region77: #{seq2seq_forward.1} parent=1 // pred_fallthru
      _
    // Predicated region
    $region78: #{seq2seq_forward.1} parent=1 // pred_check
      _
    $region79: #{seq2seq_forward.1} parent=1 // pred_check_branch
      %10613 = sbr.rel (0) target = $region81
    $region80: #{seq2seq_forward.1} parent=1 // pred_region
      %10614 = dma.done [#allocation5], 1024
    $region81: #{seq2seq_forward.1} parent=1 // pred_fallthru
      _
    %10615 = vsyncpa [#allocation4], 1
    %10616 = vsyncpa [#allocation5], 1
    %10617 = vsyncpa [#allocation6], 1

</llo_original>
